<compile_context>
chip_gen: v7x
topology: tpu7x:2x2x1
jax: 0.10.0
libtpu: 0.0.40
codegen_flags: <defaults>
</compile_context>

<pallas_src>
import jax
import jax.numpy as jnp
from jax.experimental import pallas as pl
from jax.experimental.pallas import tpu as pltpu

_BN_EPS = 1e-5
_VMEM = pl.BlockSpec(memory_space=pltpu.MemorySpace.VMEM)


# ----------------------------- Pallas kernels ------------------------------ #

def _conv_pool_kernel(xe_ref, xo_ref, w_ref, b_ref, out_ref):
    """Fused 5x5 conv (BN folded into w) + shift + ReLU + 2x2 max-pool, one image.

    xe_ref / xo_ref : (1, Hp//2, Wp*Cin)  even / odd rows of the padded input (bf16)
    w_ref           : (K, Wp*Cin, 2*NC)   banded weights; columns [0:NC] are output-
                                          column parity 0, [NC:2*NC] are parity 1
    b_ref           : (1, NC)             per-column BN/bias shift (f32, zero padded)
    out_ref         : (1, H//2, NC)       pooled activation, NHWC-flat rows (bf16)
    """
    hh = out_ref.shape[1]                  # pooled rows == lhs rows per matmul
    nc = out_ref.shape[2]                  # padded column count (multiple of 128)

    # conv output row 2r   reads padded rows 2r+dy,   dy=0..4  -> these phase slices
    even_src = ((xe_ref, 0), (xo_ref, 0), (xe_ref, 1), (xo_ref, 1), (xe_ref, 2))
    # conv output row 2r+1 reads padded rows 2r+1+dy, dy=0..4
    odd_src = ((xo_ref, 0), (xe_ref, 1), (xo_ref, 1), (xe_ref, 2), (xo_ref, 2))

    def accum(srcs):
        acc = None
        for dy, (src, off) in enumerate(srcs):
            lhs = src[0, off:off + hh, :]                       # (hh, Wp*Cin) bf16
            part = jnp.dot(lhs, w_ref[dy],
                           preferred_element_type=jnp.float32)  # (hh, 2*NC) f32
            acc = part if acc is None else acc + part
        # max over the two output-column parities (lane-aligned halves)
        return jnp.maximum(acc[:, :nc], acc[:, nc:])

    # max over the two output-row parities; per-channel shift commutes with max,
    # ReLU is monotone -> apply both after the pooling max.
    m = jnp.maximum(accum(even_src), accum(odd_src))
    out_ref[0] = jnp.maximum(m + b_ref[...], 0.0).astype(out_ref.dtype)


def _fc_kernel(x_ref, w_ref, b_ref, out_ref):
    """x:(N,K) bf16  w:(K,128) bf16  b:(1,128) f32  out:(N,128) f32 (lane-dense)."""
    out_ref[...] = (jnp.dot(x_ref[...], w_ref[...],
                            preferred_element_type=jnp.float32) + b_ref[...])


# ------------------------- trace-time weight folding ------------------------ #

def _fold_bn(w_oihw, b, gamma, beta, mean, var):
    """Fold conv bias + eval-mode BatchNorm into HWIO weights and a per-channel shift."""
    s = gamma * jax.lax.rsqrt(var + _BN_EPS)                 # (Cout,)
    w_hwio = jnp.transpose(w_oihw, (2, 3, 1, 0)) * s         # (K,K,Cin,Cout) * s[co]
    shift = (b - mean) * s + beta                            # (Cout,)
    return w_hwio, shift


def _banded_pool_weights(w_hwio, width, wcols_pad):
    """Block-Toeplitz weights: (K, Wp*Cin, 2*wcols_pad).

    For dy, column block q*wcols_pad + (w'*Cout+co) holds w_hwio[dy, dx, ci, co]
    at row wp*Cin+ci with dx = wp-(2*w'+q); columns [wcols:wcols_pad) are zero.
    """
    k, _, cin, cout = w_hwio.shape
    wp, wh = width + k - 1, width // 2
    wcols = wh * cout
    cols = jnp.arange(wh)
    mats = []
    for dy in range(k):
        per_q = []
        for q in (0, 1):
            m = jnp.zeros((wp, cin, wh, cout), jnp.float32)
            for dx in range(k):
                rows = 2 * cols + q + dx                     # (wh,)
                vals = jnp.broadcast_to(w_hwio[dy, dx][None], (wh, cin, cout))
                m = m.at[rows, :, cols, :].set(vals)
            m = m.reshape(wp * cin, wcols)
            per_q.append(jnp.pad(m, ((0, 0), (0, wcols_pad - wcols))))
        mats.append(jnp.concatenate(per_q, axis=1))          # (Wp*Cin, 2*wcols_pad)
    return jnp.stack(mats)                                   # (K, Wp*Cin, 2*wcols_pad)


# ------------------------------ layer wrappers ----------------------------- #

def conv_bn_relu_pool(x_nhwc, w_oihw, b, gamma, beta, mean, var):
    """NHWC in -> (N, H//2, W//2, Cout) pooled activation (NHWC, bf16)."""
    n, h, w, cin = x_nhwc.shape
    cout, _, k, _ = w_oihw.shape
    pad = k // 2
    hp, hh, wh = h + 2 * pad, h // 2, w // 2
    wpcin = (w + 2 * pad) * cin
    wcols = wh * cout
    wcols_pad = ((wcols + 127) // 128) * 128                 # lane-dense store width

    w_hwio, shift = _fold_bn(w_oihw, b, gamma, beta, mean, var)
    wmat = _banded_pool_weights(w_hwio, w, wcols_pad).astype(jnp.bfloat16)
    btile = (jnp.zeros((1, wcols_pad), jnp.float32)
             .at[0, :wcols].set(jnp.tile(shift, wh)))        # col = w'*Cout + co

    xpad = jnp.pad(x_nhwc, ((0, 0), (pad, pad), (pad, pad), (0, 0)))
    xpad = xpad.reshape(n, hp, wpcin).astype(jnp.bfloat16)   # rows flattened (wp,ci)
    xe = xpad[:, 0::2, :]                                    # (n, hp//2, wpcin)
    xo = xpad[:, 1::2, :]

    out = pl.pallas_call(
        _conv_pool_kernel,
        out_shape=jax.ShapeDtypeStruct((n, hh, wcols_pad), jnp.bfloat16),
        grid=(n,),
        in_specs=[
            pl.BlockSpec((1, hp // 2, wpcin), lambda i: (i, 0, 0)),
            pl.BlockSpec((1, hp // 2, wpcin), lambda i: (i, 0, 0)),
            pl.BlockSpec((k, wpcin, 2 * wcols_pad), lambda i: (0, 0, 0)),
            pl.BlockSpec((1, wcols_pad), lambda i: (0, 0)),
        ],
        out_specs=pl.BlockSpec((1, hh, wcols_pad), lambda i: (i, 0, 0)),
        compiler_params=pltpu.CompilerParams(
            dimension_semantics=("parallel",)),
    )(xe, xo, wmat, btile)

    # strip lane padding (tiny wrapper-side slice) and expose NHWC
    return out[:, :, :wcols].reshape(n, hh, wh, cout)


def cnn_forward(x_nchw, params):
    x = jnp.transpose(x_nchw, (0, 2, 3, 1)).astype(jnp.float32)     # NHWC (N,28,28,1)
    n = x.shape[0]

    # layer1: Conv2d(1,16,5,pad=2)+BN+ReLU+MaxPool(2) -> (N,14,14,16)
    out = conv_bn_relu_pool(x, params["w1"], params["b1"], params["g1"],
                            params["be1"], params["m1"], params["v1"])
    # layer2: Conv2d(16,32,5,pad=2)+BN+ReLU+MaxPool(2) -> (N,7,7,32)
    out = conv_bn_relu_pool(out, params["w2"], params["b2"], params["g2"],
                            params["be2"], params["m2"], params["v2"])
    _, h2, w2, c2 = out.shape                                       # 7, 7, 32
    flat = out.reshape(n, h2 * w2 * c2)                             # j = h*(w2*c2)+w*c2+c

    # fc: permute weight columns once so the kernel consumes the NHWC-flat activation
    # directly (PyTorch flattens NCHW: j_pt = c*(h2*w2) + h*w2 + w); pad out to 128 lanes.
    h_i, w_i, c_i = jnp.meshgrid(jnp.arange(h2), jnp.arange(w2), jnp.arange(c2),
                                 indexing="ij")
    pt_cols = (c_i * (h2 * w2) + h_i * w2 + w_i).reshape(-1)
    wfc = params["wfc"][:, pt_cols].T                               # (1568, 10)
    wfc_pad = (jnp.zeros((wfc.shape[0], 128), jnp.float32)
               .at[:, :10].set(wfc)).astype(jnp.bfloat16)
    bfc_pad = jnp.zeros((1, 128), jnp.float32).at[:, :10].set(params["bfc"][None, :])

    logits = pl.pallas_call(
        _fc_kernel,
        out_shape=jax.ShapeDtypeStruct((n, 128), jnp.float32),
        in_specs=[_VMEM, _VMEM, _VMEM],
        out_specs=_VMEM,
    )(flat, wfc_pad, bfc_pad)
    return logits[:, :10]


# ------------------------- pure-JAX reference (check) ----------------------- #

def _reference_forward(x_nchw, params):
    x = jnp.transpose(x_nchw, (0, 2, 3, 1)).astype(jnp.float32)

    def layer(x, w_oihw, b, g, be, m, v):
        w_hwio = jnp.transpose(w_oihw, (2, 3, 1, 0))
        y = jax.lax.conv_general_dilated(
            x, w_hwio, (1, 1), ((2, 2), (2, 2)),
            dimension_numbers=("NHWC", "HWIO", "NHWC")) + b
        y = (y - m) * jax.lax.rsqrt(v + _BN_EPS) * g + be
        y = jnp.maximum(y, 0.0)
        n, hh, ww, c = y.shape
        return y.reshape(n, hh // 2, 2, ww // 2, 2, c).max(axis=(2, 4))

    y = layer(x, params["w1"], params["b1"], params["g1"], params["be1"],
              params["m1"], params["v1"])
    y = layer(y, params["w2"], params["b2"], params["g2"], params["be2"],
              params["m2"], params["v2"])
    flat = jnp.transpose(y, (0, 3, 1, 2)).reshape(y.shape[0], -1)   # NCHW flatten
    return flat @ params["wfc"].T + params["bfc"]


# ----------------------------------- main ----------------------------------- #

if __name__ == "__main__":
    key = jax.random.PRNGKey(0)
    ks = jax.random.split(key, 8)

    N = 2
    x = jax.random.normal(ks[0], (N, 1, 28, 28), jnp.float32)       # NCHW like PyTorch

    params = {
        # Conv2d(1, 16, kernel_size=5, padding=2): weight OIHW, bias (16,)
        "w1": jax.random.normal(ks[1], (16, 1, 5, 5), jnp.float32) * 0.10,
        "b1": jax.random.normal(ks[2], (16,), jnp.float32) * 0.10,
        # BatchNorm2d(16) eval-mode running stats at PyTorch defaults
        "g1": jnp.ones((16,), jnp.float32), "be1": jnp.zeros((16,), jnp.float32),
        "m1": jnp.zeros((16,), jnp.float32), "v1": jnp.ones((16,), jnp.float32),
        # Conv2d(16, 32, kernel_size=5, padding=2)
        "w2": jax.random.normal(ks[3], (32, 16, 5, 5), jnp.float32) * 0.05,
        "b2": jax.random.normal(ks[4], (32,), jnp.float32) * 0.10,
        # BatchNorm2d(32)
        "g2": jnp.ones((32,), jnp.float32), "be2": jnp.zeros((32,), jnp.float32),
        "m2": jnp.zeros((32,), jnp.float32), "v2": jnp.ones((32,), jnp.float32),
        # Linear(7*7*32, 10): weight (10, 1568), bias (10,)
        "wfc": jax.random.normal(ks[5], (10, 7 * 7 * 32), jnp.float32) * 0.02,
        "bfc": jax.random.normal(ks[6], (10,), jnp.float32) * 0.10,
    }

    logits = jax.jit(cnn_forward)(x, params)
    logits = jax.block_until_ready(logits)

    assert logits.shape == (N, 10), logits.shape
    assert bool(jnp.all(jnp.isfinite(logits)))

    # Loose-tolerance check vs. a pure-JAX f32 reference (kernel uses bf16 operands).
    ref = _reference_forward(x, params)
    err = float(jnp.max(jnp.abs(logits - ref)))
    assert err < 0.15, f"max abs error vs reference: {err}"

    print("KERNEL_OK")
</pallas_src>

<mosaic_0001>
module attributes {stable_mosaic.version = 11 : i64} {
  func.func @_conv_pool_kernel(%arg0: i32, %arg1: memref<1x16x32xbf16, #tpu.memory_space<vmem>>, %arg2: memref<1x16x32xbf16, #tpu.memory_space<vmem>>, %arg3: memref<5x32x512xbf16, #tpu.memory_space<vmem>>, %arg4: memref<1x256xf32, #tpu.memory_space<vmem>>, %arg5: memref<1x14x256xbf16, #tpu.memory_space<vmem>>) attributes {dimension_semantics = [#tpu.dimension_semantics<parallel>], iteration_bounds = array<i64: 2>, scalar_prefetch = 0 : i64, scratch_operands = 0 : i64, tpu.core_type = #tpu.core_type<tc>, window_params = [{transform_indices = @transform_0, window_bounds = array<i64: 1, 16, 32>}, {transform_indices = @transform_1, window_bounds = array<i64: 1, 16, 32>}, {pipeline_mode = #tpu.pipeline_mode<synchronous>, transform_indices = @transform_2, window_bounds = array<i64: 5, 32, 512>}, {pipeline_mode = #tpu.pipeline_mode<synchronous>, transform_indices = @transform_3, window_bounds = array<i64: 1, 256>}, {transform_indices = @transform_4, window_bounds = array<i64: 1, 14, 256>}]} {
    %c0 = arith.constant 0 : index
    %c0_0 = arith.constant 0 : index
    %c0_1 = arith.constant 0 : index
    %0 = vector.load %arg1[%c0, %c0_0, %c0_1] : memref<1x16x32xbf16, #tpu.memory_space<vmem>>, vector<1x14x32xbf16>
    %1 = vector.shape_cast %0 : vector<1x14x32xbf16> to vector<14x32xbf16>
    %c0_2 = arith.constant 0 : index
    %c0_3 = arith.constant 0 : index
    %c0_4 = arith.constant 0 : index
    %2 = vector.load %arg3[%c0_2, %c0_3, %c0_4] : memref<5x32x512xbf16, #tpu.memory_space<vmem>>, vector<1x32x512xbf16>
    %3 = vector.shape_cast %2 : vector<1x32x512xbf16> to vector<32x512xbf16>
    %cst = arith.constant dense<0.000000e+00> : vector<14x512xf32>
    %4 = tpu.matmul %1, %3, %cst {dimension_numbers = #tpu.dot_dimension_numbers<[1], [0], [0], [1], [0, 0, 1, 1], [], []>} : vector<14x32xbf16>, vector<32x512xbf16>, vector<14x512xf32> -> vector<14x512xf32>
    %c0_5 = arith.constant 0 : index
    %c0_6 = arith.constant 0 : index
    %c0_7 = arith.constant 0 : index
    %5 = vector.load %arg2[%c0_5, %c0_6, %c0_7] : memref<1x16x32xbf16, #tpu.memory_space<vmem>>, vector<1x14x32xbf16>
    %6 = vector.shape_cast %5 : vector<1x14x32xbf16> to vector<14x32xbf16>
    %c1 = arith.constant 1 : index
    %c0_8 = arith.constant 0 : index
    %c0_9 = arith.constant 0 : index
    %7 = vector.load %arg3[%c1, %c0_8, %c0_9] : memref<5x32x512xbf16, #tpu.memory_space<vmem>>, vector<1x32x512xbf16>
    %8 = vector.shape_cast %7 : vector<1x32x512xbf16> to vector<32x512xbf16>
    %cst_10 = arith.constant dense<0.000000e+00> : vector<14x512xf32>
    %9 = tpu.matmul %6, %8, %cst_10 {dimension_numbers = #tpu.dot_dimension_numbers<[1], [0], [0], [1], [0, 0, 1, 1], [], []>} : vector<14x32xbf16>, vector<32x512xbf16>, vector<14x512xf32> -> vector<14x512xf32>
    %10 = arith.addf %4, %9 : vector<14x512xf32>
    %c0_11 = arith.constant 0 : index
    %c1_12 = arith.constant 1 : index
    %c0_13 = arith.constant 0 : index
    %11 = vector.load %arg1[%c0_11, %c1_12, %c0_13] : memref<1x16x32xbf16, #tpu.memory_space<vmem>>, vector<1x14x32xbf16>
    %12 = vector.shape_cast %11 : vector<1x14x32xbf16> to vector<14x32xbf16>
    %c2 = arith.constant 2 : index
    %c0_14 = arith.constant 0 : index
    %c0_15 = arith.constant 0 : index
    %13 = vector.load %arg3[%c2, %c0_14, %c0_15] : memref<5x32x512xbf16, #tpu.memory_space<vmem>>, vector<1x32x512xbf16>
    %14 = vector.shape_cast %13 : vector<1x32x512xbf16> to vector<32x512xbf16>
    %cst_16 = arith.constant dense<0.000000e+00> : vector<14x512xf32>
    %15 = tpu.matmul %12, %14, %cst_16 {dimension_numbers = #tpu.dot_dimension_numbers<[1], [0], [0], [1], [0, 0, 1, 1], [], []>} : vector<14x32xbf16>, vector<32x512xbf16>, vector<14x512xf32> -> vector<14x512xf32>
    %16 = arith.addf %10, %15 : vector<14x512xf32>
    %c0_17 = arith.constant 0 : index
    %c1_18 = arith.constant 1 : index
    %c0_19 = arith.constant 0 : index
    %17 = vector.load %arg2[%c0_17, %c1_18, %c0_19] : memref<1x16x32xbf16, #tpu.memory_space<vmem>>, vector<1x14x32xbf16>
    %18 = vector.shape_cast %17 : vector<1x14x32xbf16> to vector<14x32xbf16>
    %c3 = arith.constant 3 : index
    %c0_20 = arith.constant 0 : index
    %c0_21 = arith.constant 0 : index
    %19 = vector.load %arg3[%c3, %c0_20, %c0_21] : memref<5x32x512xbf16, #tpu.memory_space<vmem>>, vector<1x32x512xbf16>
    %20 = vector.shape_cast %19 : vector<1x32x512xbf16> to vector<32x512xbf16>
    %cst_22 = arith.constant dense<0.000000e+00> : vector<14x512xf32>
    %21 = tpu.matmul %18, %20, %cst_22 {dimension_numbers = #tpu.dot_dimension_numbers<[1], [0], [0], [1], [0, 0, 1, 1], [], []>} : vector<14x32xbf16>, vector<32x512xbf16>, vector<14x512xf32> -> vector<14x512xf32>
    %22 = arith.addf %16, %21 : vector<14x512xf32>
    %c0_23 = arith.constant 0 : index
    %c2_24 = arith.constant 2 : index
    %c0_25 = arith.constant 0 : index
    %23 = vector.load %arg1[%c0_23, %c2_24, %c0_25] : memref<1x16x32xbf16, #tpu.memory_space<vmem>>, vector<1x14x32xbf16>
    %24 = vector.shape_cast %23 : vector<1x14x32xbf16> to vector<14x32xbf16>
    %c4 = arith.constant 4 : index
    %c0_26 = arith.constant 0 : index
    %c0_27 = arith.constant 0 : index
    %25 = vector.load %arg3[%c4, %c0_26, %c0_27] : memref<5x32x512xbf16, #tpu.memory_space<vmem>>, vector<1x32x512xbf16>
    %26 = vector.shape_cast %25 : vector<1x32x512xbf16> to vector<32x512xbf16>
    %cst_28 = arith.constant dense<0.000000e+00> : vector<14x512xf32>
    %27 = tpu.matmul %24, %26, %cst_28 {dimension_numbers = #tpu.dot_dimension_numbers<[1], [0], [0], [1], [0, 0, 1, 1], [], []>} : vector<14x32xbf16>, vector<32x512xbf16>, vector<14x512xf32> -> vector<14x512xf32>
    %28 = arith.addf %22, %27 : vector<14x512xf32>
    %29 = vector.extract_strided_slice %28 {offsets = [0, 0], sizes = [14, 256], strides = [1, 1]} : vector<14x512xf32> to vector<14x256xf32>
    %30 = vector.extract_strided_slice %28 {offsets = [0, 256], sizes = [14, 256], strides = [1, 1]} : vector<14x512xf32> to vector<14x256xf32>
    %31 = arith.maximumf %29, %30 : vector<14x256xf32>
    %c0_29 = arith.constant 0 : index
    %c0_30 = arith.constant 0 : index
    %c0_31 = arith.constant 0 : index
    %32 = vector.load %arg2[%c0_29, %c0_30, %c0_31] : memref<1x16x32xbf16, #tpu.memory_space<vmem>>, vector<1x14x32xbf16>
    %33 = vector.shape_cast %32 : vector<1x14x32xbf16> to vector<14x32xbf16>
    %c0_32 = arith.constant 0 : index
    %c0_33 = arith.constant 0 : index
    %c0_34 = arith.constant 0 : index
    %34 = vector.load %arg3[%c0_32, %c0_33, %c0_34] : memref<5x32x512xbf16, #tpu.memory_space<vmem>>, vector<1x32x512xbf16>
    %35 = vector.shape_cast %34 : vector<1x32x512xbf16> to vector<32x512xbf16>
    %cst_35 = arith.constant dense<0.000000e+00> : vector<14x512xf32>
    %36 = tpu.matmul %33, %35, %cst_35 {dimension_numbers = #tpu.dot_dimension_numbers<[1], [0], [0], [1], [0, 0, 1, 1], [], []>} : vector<14x32xbf16>, vector<32x512xbf16>, vector<14x512xf32> -> vector<14x512xf32>
    %c0_36 = arith.constant 0 : index
    %c1_37 = arith.constant 1 : index
    %c0_38 = arith.constant 0 : index
    %37 = vector.load %arg1[%c0_36, %c1_37, %c0_38] : memref<1x16x32xbf16, #tpu.memory_space<vmem>>, vector<1x14x32xbf16>
    %38 = vector.shape_cast %37 : vector<1x14x32xbf16> to vector<14x32xbf16>
    %c1_39 = arith.constant 1 : index
    %c0_40 = arith.constant 0 : index
    %c0_41 = arith.constant 0 : index
    %39 = vector.load %arg3[%c1_39, %c0_40, %c0_41] : memref<5x32x512xbf16, #tpu.memory_space<vmem>>, vector<1x32x512xbf16>
    %40 = vector.shape_cast %39 : vector<1x32x512xbf16> to vector<32x512xbf16>
    %cst_42 = arith.constant dense<0.000000e+00> : vector<14x512xf32>
    %41 = tpu.matmul %38, %40, %cst_42 {dimension_numbers = #tpu.dot_dimension_numbers<[1], [0], [0], [1], [0, 0, 1, 1], [], []>} : vector<14x32xbf16>, vector<32x512xbf16>, vector<14x512xf32> -> vector<14x512xf32>
    %42 = arith.addf %36, %41 : vector<14x512xf32>
    %c0_43 = arith.constant 0 : index
    %c1_44 = arith.constant 1 : index
    %c0_45 = arith.constant 0 : index
    %43 = vector.load %arg2[%c0_43, %c1_44, %c0_45] : memref<1x16x32xbf16, #tpu.memory_space<vmem>>, vector<1x14x32xbf16>
    %44 = vector.shape_cast %43 : vector<1x14x32xbf16> to vector<14x32xbf16>
    %c2_46 = arith.constant 2 : index
    %c0_47 = arith.constant 0 : index
    %c0_48 = arith.constant 0 : index
    %45 = vector.load %arg3[%c2_46, %c0_47, %c0_48] : memref<5x32x512xbf16, #tpu.memory_space<vmem>>, vector<1x32x512xbf16>
    %46 = vector.shape_cast %45 : vector<1x32x512xbf16> to vector<32x512xbf16>
    %cst_49 = arith.constant dense<0.000000e+00> : vector<14x512xf32>
    %47 = tpu.matmul %44, %46, %cst_49 {dimension_numbers = #tpu.dot_dimension_numbers<[1], [0], [0], [1], [0, 0, 1, 1], [], []>} : vector<14x32xbf16>, vector<32x512xbf16>, vector<14x512xf32> -> vector<14x512xf32>
    %48 = arith.addf %42, %47 : vector<14x512xf32>
    %c0_50 = arith.constant 0 : index
    %c2_51 = arith.constant 2 : index
    %c0_52 = arith.constant 0 : index
    %49 = vector.load %arg1[%c0_50, %c2_51, %c0_52] : memref<1x16x32xbf16, #tpu.memory_space<vmem>>, vector<1x14x32xbf16>
    %50 = vector.shape_cast %49 : vector<1x14x32xbf16> to vector<14x32xbf16>
    %c3_53 = arith.constant 3 : index
    %c0_54 = arith.constant 0 : index
    %c0_55 = arith.constant 0 : index
    %51 = vector.load %arg3[%c3_53, %c0_54, %c0_55] : memref<5x32x512xbf16, #tpu.memory_space<vmem>>, vector<1x32x512xbf16>
    %52 = vector.shape_cast %51 : vector<1x32x512xbf16> to vector<32x512xbf16>
    %cst_56 = arith.constant dense<0.000000e+00> : vector<14x512xf32>
    %53 = tpu.matmul %50, %52, %cst_56 {dimension_numbers = #tpu.dot_dimension_numbers<[1], [0], [0], [1], [0, 0, 1, 1], [], []>} : vector<14x32xbf16>, vector<32x512xbf16>, vector<14x512xf32> -> vector<14x512xf32>
    %54 = arith.addf %48, %53 : vector<14x512xf32>
    %c0_57 = arith.constant 0 : index
    %c2_58 = arith.constant 2 : index
    %c0_59 = arith.constant 0 : index
    %55 = vector.load %arg2[%c0_57, %c2_58, %c0_59] : memref<1x16x32xbf16, #tpu.memory_space<vmem>>, vector<1x14x32xbf16>
    %56 = vector.shape_cast %55 : vector<1x14x32xbf16> to vector<14x32xbf16>
    %c4_60 = arith.constant 4 : index
    %c0_61 = arith.constant 0 : index
    %c0_62 = arith.constant 0 : index
    %57 = vector.load %arg3[%c4_60, %c0_61, %c0_62] : memref<5x32x512xbf16, #tpu.memory_space<vmem>>, vector<1x32x512xbf16>
    %58 = vector.shape_cast %57 : vector<1x32x512xbf16> to vector<32x512xbf16>
    %cst_63 = arith.constant dense<0.000000e+00> : vector<14x512xf32>
    %59 = tpu.matmul %56, %58, %cst_63 {dimension_numbers = #tpu.dot_dimension_numbers<[1], [0], [0], [1], [0, 0, 1, 1], [], []>} : vector<14x32xbf16>, vector<32x512xbf16>, vector<14x512xf32> -> vector<14x512xf32>
    %60 = arith.addf %54, %59 : vector<14x512xf32>
    %61 = vector.extract_strided_slice %60 {offsets = [0, 0], sizes = [14, 256], strides = [1, 1]} : vector<14x512xf32> to vector<14x256xf32>
    %62 = vector.extract_strided_slice %60 {offsets = [0, 256], sizes = [14, 256], strides = [1, 1]} : vector<14x512xf32> to vector<14x256xf32>
    %63 = arith.maximumf %61, %62 : vector<14x256xf32>
    %64 = arith.maximumf %31, %63 : vector<14x256xf32>
    %c0_64 = arith.constant 0 : index
    %c0_65 = arith.constant 0 : index
    %65 = vector.load %arg4[%c0_64, %c0_65] : memref<1x256xf32, #tpu.memory_space<vmem>>, vector<1x256xf32>
    %66 = vector.broadcast %65 : vector<1x256xf32> to vector<14x256xf32>
    %67 = arith.addf %64, %66 : vector<14x256xf32>
    %cst_66 = arith.constant 0.000000e+00 : f32
    %68 = vector.broadcast %cst_66 : f32 to vector<14x256xf32>
    %69 = arith.maximumf %67, %68 : vector<14x256xf32>
    %70 = arith.truncf %69 : vector<14x256xf32> to vector<14x256xbf16>
    %c0_67 = arith.constant 0 : index
    %c0_68 = arith.constant 0 : index
    %c0_69 = arith.constant 0 : index
    %71 = vector.load %arg5[%c0_67, %c0_68, %c0_69] : memref<1x14x256xbf16, #tpu.memory_space<vmem>>, vector<1x14x256xbf16>
    %72 = vector.shape_cast %71 : vector<1x14x256xbf16> to vector<14x256xbf16>
    %73 = vector.shape_cast %70 : vector<14x256xbf16> to vector<1x14x256xbf16>
    tpu.vector_store %arg5[%c0_67, %c0_68, %c0_69], %73 {strides = array<i32>} : memref<1x14x256xbf16, #tpu.memory_space<vmem>>, vector<1x14x256xbf16>,
    return
  }
  func.func @transform_0(%arg0: i32) -> (i32, i32, i32) {
    %c0_i32 = arith.constant 0 : i32
    %c0_i32_0 = arith.constant 0 : i32
    %c0_i32_1 = arith.constant 0 : i32
    return %arg0, %c0_i32, %c0_i32_0 : i32, i32, i32
  }
  func.func @transform_1(%arg0: i32) -> (i32, i32, i32) {
    %c0_i32 = arith.constant 0 : i32
    %c0_i32_0 = arith.constant 0 : i32
    %c0_i32_1 = arith.constant 0 : i32
    return %arg0, %c0_i32, %c0_i32_0 : i32, i32, i32
  }
  func.func @transform_2(%arg0: i32) -> (i32, i32, i32) {
    %c0_i32 = arith.constant 0 : i32
    %c0_i32_0 = arith.constant 0 : i32
    %c0_i32_1 = arith.constant 0 : i32
    %c0_i32_2 = arith.constant 0 : i32
    return %c0_i32, %c0_i32_0, %c0_i32_1 : i32, i32, i32
  }
  func.func @transform_3(%arg0: i32) -> (i32, i32) {
    %c0_i32 = arith.constant 0 : i32
    %c0_i32_0 = arith.constant 0 : i32
    %c0_i32_1 = arith.constant 0 : i32
    return %c0_i32, %c0_i32_0 : i32, i32
  }
  func.func @transform_4(%arg0: i32) -> (i32, i32, i32) {
    %c0_i32 = arith.constant 0 : i32
    %c0_i32_0 = arith.constant 0 : i32
    %c0_i32_1 = arith.constant 0 : i32
    return %arg0, %c0_i32, %c0_i32_0 : i32, i32, i32
  }
}

module attributes {stable_mosaic.version = 11 : i64} {
  func.func @_conv_pool_kernel(%arg0: i32, %arg1: memref<1x9x288xbf16, #tpu.memory_space<vmem>>, %arg2: memref<1x9x288xbf16, #tpu.memory_space<vmem>>, %arg3: memref<5x288x512xbf16, #tpu.memory_space<vmem>>, %arg4: memref<1x256xf32, #tpu.memory_space<vmem>>, %arg5: memref<1x7x256xbf16, #tpu.memory_space<vmem>>) attributes {dimension_semantics = [#tpu.dimension_semantics<parallel>], iteration_bounds = array<i64: 2>, scalar_prefetch = 0 : i64, scratch_operands = 0 : i64, tpu.core_type = #tpu.core_type<tc>, window_params = [{transform_indices = @transform_0, window_bounds = array<i64: 1, 9, 288>}, {transform_indices = @transform_1, window_bounds = array<i64: 1, 9, 288>}, {pipeline_mode = #tpu.pipeline_mode<synchronous>, transform_indices = @transform_2, window_bounds = array<i64: 5, 288, 512>}, {pipeline_mode = #tpu.pipeline_mode<synchronous>, transform_indices = @transform_3, window_bounds = array<i64: 1, 256>}, {transform_indices = @transform_4, window_bounds = array<i64: 1, 7, 256>}]} {
    %c0 = arith.constant 0 : index
    %c0_0 = arith.constant 0 : index
    %c0_1 = arith.constant 0 : index
    %0 = vector.load %arg1[%c0, %c0_0, %c0_1] : memref<1x9x288xbf16, #tpu.memory_space<vmem>>, vector<1x7x288xbf16>
    %1 = vector.shape_cast %0 : vector<1x7x288xbf16> to vector<7x288xbf16>
    %c0_2 = arith.constant 0 : index
    %c0_3 = arith.constant 0 : index
    %c0_4 = arith.constant 0 : index
    %2 = vector.load %arg3[%c0_2, %c0_3, %c0_4] : memref<5x288x512xbf16, #tpu.memory_space<vmem>>, vector<1x288x512xbf16>
    %3 = vector.shape_cast %2 : vector<1x288x512xbf16> to vector<288x512xbf16>
    %cst = arith.constant dense<0.000000e+00> : vector<7x512xf32>
    %4 = tpu.matmul %1, %3, %cst {dimension_numbers = #tpu.dot_dimension_numbers<[1], [0], [0], [1], [0, 0, 1, 1], [], []>} : vector<7x288xbf16>, vector<288x512xbf16>, vector<7x512xf32> -> vector<7x512xf32>
    %c0_5 = arith.constant 0 : index
    %c0_6 = arith.constant 0 : index
    %c0_7 = arith.constant 0 : index
    %5 = vector.load %arg2[%c0_5, %c0_6, %c0_7] : memref<1x9x288xbf16, #tpu.memory_space<vmem>>, vector<1x7x288xbf16>
    %6 = vector.shape_cast %5 : vector<1x7x288xbf16> to vector<7x288xbf16>
    %c1 = arith.constant 1 : index
    %c0_8 = arith.constant 0 : index
    %c0_9 = arith.constant 0 : index
    %7 = vector.load %arg3[%c1, %c0_8, %c0_9] : memref<5x288x512xbf16, #tpu.memory_space<vmem>>, vector<1x288x512xbf16>
    %8 = vector.shape_cast %7 : vector<1x288x512xbf16> to vector<288x512xbf16>
    %cst_10 = arith.constant dense<0.000000e+00> : vector<7x512xf32>
    %9 = tpu.matmul %6, %8, %cst_10 {dimension_numbers = #tpu.dot_dimension_numbers<[1], [0], [0], [1], [0, 0, 1, 1], [], []>} : vector<7x288xbf16>, vector<288x512xbf16>, vector<7x512xf32> -> vector<7x512xf32>
    %10 = arith.addf %4, %9 : vector<7x512xf32>
    %c0_11 = arith.constant 0 : index
    %c1_12 = arith.constant 1 : index
    %c0_13 = arith.constant 0 : index
    %11 = vector.load %arg1[%c0_11, %c1_12, %c0_13] : memref<1x9x288xbf16, #tpu.memory_space<vmem>>, vector<1x7x288xbf16>
    %12 = vector.shape_cast %11 : vector<1x7x288xbf16> to vector<7x288xbf16>
    %c2 = arith.constant 2 : index
    %c0_14 = arith.constant 0 : index
    %c0_15 = arith.constant 0 : index
    %13 = vector.load %arg3[%c2, %c0_14, %c0_15] : memref<5x288x512xbf16, #tpu.memory_space<vmem>>, vector<1x288x512xbf16>
    %14 = vector.shape_cast %13 : vector<1x288x512xbf16> to vector<288x512xbf16>
    %cst_16 = arith.constant dense<0.000000e+00> : vector<7x512xf32>
    %15 = tpu.matmul %12, %14, %cst_16 {dimension_numbers = #tpu.dot_dimension_numbers<[1], [0], [0], [1], [0, 0, 1, 1], [], []>} : vector<7x288xbf16>, vector<288x512xbf16>, vector<7x512xf32> -> vector<7x512xf32>
    %16 = arith.addf %10, %15 : vector<7x512xf32>
    %c0_17 = arith.constant 0 : index
    %c1_18 = arith.constant 1 : index
    %c0_19 = arith.constant 0 : index
    %17 = vector.load %arg2[%c0_17, %c1_18, %c0_19] : memref<1x9x288xbf16, #tpu.memory_space<vmem>>, vector<1x7x288xbf16>
    %18 = vector.shape_cast %17 : vector<1x7x288xbf16> to vector<7x288xbf16>
    %c3 = arith.constant 3 : index
    %c0_20 = arith.constant 0 : index
    %c0_21 = arith.constant 0 : index
    %19 = vector.load %arg3[%c3, %c0_20, %c0_21] : memref<5x288x512xbf16, #tpu.memory_space<vmem>>, vector<1x288x512xbf16>
    %20 = vector.shape_cast %19 : vector<1x288x512xbf16> to vector<288x512xbf16>
    %cst_22 = arith.constant dense<0.000000e+00> : vector<7x512xf32>
    %21 = tpu.matmul %18, %20, %cst_22 {dimension_numbers = #tpu.dot_dimension_numbers<[1], [0], [0], [1], [0, 0, 1, 1], [], []>} : vector<7x288xbf16>, vector<288x512xbf16>, vector<7x512xf32> -> vector<7x512xf32>
    %22 = arith.addf %16, %21 : vector<7x512xf32>
    %c0_23 = arith.constant 0 : index
    %c2_24 = arith.constant 2 : index
    %c0_25 = arith.constant 0 : index
    %23 = vector.load %arg1[%c0_23, %c2_24, %c0_25] : memref<1x9x288xbf16, #tpu.memory_space<vmem>>, vector<1x7x288xbf16>
    %24 = vector.shape_cast %23 : vector<1x7x288xbf16> to vector<7x288xbf16>
    %c4 = arith.constant 4 : index
    %c0_26 = arith.constant 0 : index
    %c0_27 = arith.constant 0 : index
    %25 = vector.load %arg3[%c4, %c0_26, %c0_27] : memref<5x288x512xbf16, #tpu.memory_space<vmem>>, vector<1x288x512xbf16>
    %26 = vector.shape_cast %25 : vector<1x288x512xbf16> to vector<288x512xbf16>
    %cst_28 = arith.constant dense<0.000000e+00> : vector<7x512xf32>
    %27 = tpu.matmul %24, %26, %cst_28 {dimension_numbers = #tpu.dot_dimension_numbers<[1], [0], [0], [1], [0, 0, 1, 1], [], []>} : vector<7x288xbf16>, vector<288x512xbf16>, vector<7x512xf32> -> vector<7x512xf32>
    %28 = arith.addf %22, %27 : vector<7x512xf32>
    %29 = vector.extract_strided_slice %28 {offsets = [0, 0], sizes = [7, 256], strides = [1, 1]} : vector<7x512xf32> to vector<7x256xf32>
    %30 = vector.extract_strided_slice %28 {offsets = [0, 256], sizes = [7, 256], strides = [1, 1]} : vector<7x512xf32> to vector<7x256xf32>
    %31 = arith.maximumf %29, %30 : vector<7x256xf32>
    %c0_29 = arith.constant 0 : index
    %c0_30 = arith.constant 0 : index
    %c0_31 = arith.constant 0 : index
    %32 = vector.load %arg2[%c0_29, %c0_30, %c0_31] : memref<1x9x288xbf16, #tpu.memory_space<vmem>>, vector<1x7x288xbf16>
    %33 = vector.shape_cast %32 : vector<1x7x288xbf16> to vector<7x288xbf16>
    %c0_32 = arith.constant 0 : index
    %c0_33 = arith.constant 0 : index
    %c0_34 = arith.constant 0 : index
    %34 = vector.load %arg3[%c0_32, %c0_33, %c0_34] : memref<5x288x512xbf16, #tpu.memory_space<vmem>>, vector<1x288x512xbf16>
    %35 = vector.shape_cast %34 : vector<1x288x512xbf16> to vector<288x512xbf16>
    %cst_35 = arith.constant dense<0.000000e+00> : vector<7x512xf32>
    %36 = tpu.matmul %33, %35, %cst_35 {dimension_numbers = #tpu.dot_dimension_numbers<[1], [0], [0], [1], [0, 0, 1, 1], [], []>} : vector<7x288xbf16>, vector<288x512xbf16>, vector<7x512xf32> -> vector<7x512xf32>
    %c0_36 = arith.constant 0 : index
    %c1_37 = arith.constant 1 : index
    %c0_38 = arith.constant 0 : index
    %37 = vector.load %arg1[%c0_36, %c1_37, %c0_38] : memref<1x9x288xbf16, #tpu.memory_space<vmem>>, vector<1x7x288xbf16>
    %38 = vector.shape_cast %37 : vector<1x7x288xbf16> to vector<7x288xbf16>
    %c1_39 = arith.constant 1 : index
    %c0_40 = arith.constant 0 : index
    %c0_41 = arith.constant 0 : index
    %39 = vector.load %arg3[%c1_39, %c0_40, %c0_41] : memref<5x288x512xbf16, #tpu.memory_space<vmem>>, vector<1x288x512xbf16>
    %40 = vector.shape_cast %39 : vector<1x288x512xbf16> to vector<288x512xbf16>
    %cst_42 = arith.constant dense<0.000000e+00> : vector<7x512xf32>
    %41 = tpu.matmul %38, %40, %cst_42 {dimension_numbers = #tpu.dot_dimension_numbers<[1], [0], [0], [1], [0, 0, 1, 1], [], []>} : vector<7x288xbf16>, vector<288x512xbf16>, vector<7x512xf32> -> vector<7x512xf32>
    %42 = arith.addf %36, %41 : vector<7x512xf32>
    %c0_43 = arith.constant 0 : index
    %c1_44 = arith.constant 1 : index
    %c0_45 = arith.constant 0 : index
    %43 = vector.load %arg2[%c0_43, %c1_44, %c0_45] : memref<1x9x288xbf16, #tpu.memory_space<vmem>>, vector<1x7x288xbf16>
    %44 = vector.shape_cast %43 : vector<1x7x288xbf16> to vector<7x288xbf16>
    %c2_46 = arith.constant 2 : index
    %c0_47 = arith.constant 0 : index
    %c0_48 = arith.constant 0 : index
    %45 = vector.load %arg3[%c2_46, %c0_47, %c0_48] : memref<5x288x512xbf16, #tpu.memory_space<vmem>>, vector<1x288x512xbf16>
    %46 = vector.shape_cast %45 : vector<1x288x512xbf16> to vector<288x512xbf16>
    %cst_49 = arith.constant dense<0.000000e+00> : vector<7x512xf32>
    %47 = tpu.matmul %44, %46, %cst_49 {dimension_numbers = #tpu.dot_dimension_numbers<[1], [0], [0], [1], [0, 0, 1, 1], [], []>} : vector<7x288xbf16>, vector<288x512xbf16>, vector<7x512xf32> -> vector<7x512xf32>
    %48 = arith.addf %42, %47 : vector<7x512xf32>
    %c0_50 = arith.constant 0 : index
    %c2_51 = arith.constant 2 : index
    %c0_52 = arith.constant 0 : index
    %49 = vector.load %arg1[%c0_50, %c2_51, %c0_52] : memref<1x9x288xbf16, #tpu.memory_space<vmem>>, vector<1x7x288xbf16>
    %50 = vector.shape_cast %49 : vector<1x7x288xbf16> to vector<7x288xbf16>
    %c3_53 = arith.constant 3 : index
    %c0_54 = arith.constant 0 : index
    %c0_55 = arith.constant 0 : index
    %51 = vector.load %arg3[%c3_53, %c0_54, %c0_55] : memref<5x288x512xbf16, #tpu.memory_space<vmem>>, vector<1x288x512xbf16>
    %52 = vector.shape_cast %51 : vector<1x288x512xbf16> to vector<288x512xbf16>
    %cst_56 = arith.constant dense<0.000000e+00> : vector<7x512xf32>
    %53 = tpu.matmul %50, %52, %cst_56 {dimension_numbers = #tpu.dot_dimension_numbers<[1], [0], [0], [1], [0, 0, 1, 1], [], []>} : vector<7x288xbf16>, vector<288x512xbf16>, vector<7x512xf32> -> vector<7x512xf32>
    %54 = arith.addf %48, %53 : vector<7x512xf32>
    %c0_57 = arith.constant 0 : index
    %c2_58 = arith.constant 2 : index
    %c0_59 = arith.constant 0 : index
    %55 = vector.load %arg2[%c0_57, %c2_58, %c0_59] : memref<1x9x288xbf16, #tpu.memory_space<vmem>>, vector<1x7x288xbf16>
    %56 = vector.shape_cast %55 : vector<1x7x288xbf16> to vector<7x288xbf16>
    %c4_60 = arith.constant 4 : index
    %c0_61 = arith.constant 0 : index
    %c0_62 = arith.constant 0 : index
    %57 = vector.load %arg3[%c4_60, %c0_61, %c0_62] : memref<5x288x512xbf16, #tpu.memory_space<vmem>>, vector<1x288x512xbf16>
    %58 = vector.shape_cast %57 : vector<1x288x512xbf16> to vector<288x512xbf16>
    %cst_63 = arith.constant dense<0.000000e+00> : vector<7x512xf32>
    %59 = tpu.matmul %56, %58, %cst_63 {dimension_numbers = #tpu.dot_dimension_numbers<[1], [0], [0], [1], [0, 0, 1, 1], [], []>} : vector<7x288xbf16>, vector<288x512xbf16>, vector<7x512xf32> -> vector<7x512xf32>
    %60 = arith.addf %54, %59 : vector<7x512xf32>
    %61 = vector.extract_strided_slice %60 {offsets = [0, 0], sizes = [7, 256], strides = [1, 1]} : vector<7x512xf32> to vector<7x256xf32>
    %62 = vector.extract_strided_slice %60 {offsets = [0, 256], sizes = [7, 256], strides = [1, 1]} : vector<7x512xf32> to vector<7x256xf32>
    %63 = arith.maximumf %61, %62 : vector<7x256xf32>
    %64 = arith.maximumf %31, %63 : vector<7x256xf32>
    %c0_64 = arith.constant 0 : index
    %c0_65 = arith.constant 0 : index
    %65 = vector.load %arg4[%c0_64, %c0_65] : memref<1x256xf32, #tpu.memory_space<vmem>>, vector<1x256xf32>
    %66 = vector.broadcast %65 : vector<1x256xf32> to vector<7x256xf32>
    %67 = arith.addf %64, %66 : vector<7x256xf32>
    %cst_66 = arith.constant 0.000000e+00 : f32
    %68 = vector.broadcast %cst_66 : f32 to vector<7x256xf32>
    %69 = arith.maximumf %67, %68 : vector<7x256xf32>
    %70 = arith.truncf %69 : vector<7x256xf32> to vector<7x256xbf16>
    %c0_67 = arith.constant 0 : index
    %c0_68 = arith.constant 0 : index
    %c0_69 = arith.constant 0 : index
    %71 = vector.load %arg5[%c0_67, %c0_68, %c0_69] : memref<1x7x256xbf16, #tpu.memory_space<vmem>>, vector<1x7x256xbf16>
    %72 = vector.shape_cast %71 : vector<1x7x256xbf16> to vector<7x256xbf16>
    %73 = vector.shape_cast %70 : vector<7x256xbf16> to vector<1x7x256xbf16>
    tpu.vector_store %arg5[%c0_67, %c0_68, %c0_69], %73 {strides = array<i32>} : memref<1x7x256xbf16, #tpu.memory_space<vmem>>, vector<1x7x256xbf16>,
    return
  }
  func.func @transform_0(%arg0: i32) -> (i32, i32, i32) {
    %c0_i32 = arith.constant 0 : i32
    %c0_i32_0 = arith.constant 0 : i32
    %c0_i32_1 = arith.constant 0 : i32
    return %arg0, %c0_i32, %c0_i32_0 : i32, i32, i32
  }
  func.func @transform_1(%arg0: i32) -> (i32, i32, i32) {
    %c0_i32 = arith.constant 0 : i32
    %c0_i32_0 = arith.constant 0 : i32
    %c0_i32_1 = arith.constant 0 : i32
    return %arg0, %c0_i32, %c0_i32_0 : i32, i32, i32
  }
  func.func @transform_2(%arg0: i32) -> (i32, i32, i32) {
    %c0_i32 = arith.constant 0 : i32
    %c0_i32_0 = arith.constant 0 : i32
    %c0_i32_1 = arith.constant 0 : i32
    %c0_i32_2 = arith.constant 0 : i32
    return %c0_i32, %c0_i32_0, %c0_i32_1 : i32, i32, i32
  }
  func.func @transform_3(%arg0: i32) -> (i32, i32) {
    %c0_i32 = arith.constant 0 : i32
    %c0_i32_0 = arith.constant 0 : i32
    %c0_i32_1 = arith.constant 0 : i32
    return %c0_i32, %c0_i32_0 : i32, i32
  }
  func.func @transform_4(%arg0: i32) -> (i32, i32, i32) {
    %c0_i32 = arith.constant 0 : i32
    %c0_i32_0 = arith.constant 0 : i32
    %c0_i32_1 = arith.constant 0 : i32
    return %arg0, %c0_i32, %c0_i32_0 : i32, i32, i32
  }
}

module attributes {stable_mosaic.version = 11 : i64} {
  func.func @_fc_kernel(%arg0: memref<2x1568xbf16, #tpu.memory_space<vmem>>, %arg1: memref<1568x128xbf16, #tpu.memory_space<vmem>>, %arg2: memref<1x128xf32, #tpu.memory_space<vmem>>, %arg3: memref<2x128xf32, #tpu.memory_space<vmem>>) attributes {dimension_semantics = [], scalar_prefetch = 0 : i64, scratch_operands = 0 : i64, tpu.core_type = #tpu.core_type<tc>} {
    %c0 = arith.constant 0 : index
    %c0_0 = arith.constant 0 : index
    %0 = vector.load %arg0[%c0, %c0_0] : memref<2x1568xbf16, #tpu.memory_space<vmem>>, vector<2x1568xbf16>
    %c0_1 = arith.constant 0 : index
    %c0_2 = arith.constant 0 : index
    %1 = vector.load %arg1[%c0_1, %c0_2] : memref<1568x128xbf16, #tpu.memory_space<vmem>>, vector<1568x128xbf16>
    %cst = arith.constant dense<0.000000e+00> : vector<2x128xf32>
    %2 = tpu.matmul %0, %1, %cst {dimension_numbers = #tpu.dot_dimension_numbers<[1], [0], [0], [1], [0, 0, 1, 1], [], []>} : vector<2x1568xbf16>, vector<1568x128xbf16>, vector<2x128xf32> -> vector<2x128xf32>
    %c0_3 = arith.constant 0 : index
    %c0_4 = arith.constant 0 : index
    %3 = vector.load %arg2[%c0_3, %c0_4] : memref<1x128xf32, #tpu.memory_space<vmem>>, vector<1x128xf32>
    %4 = vector.broadcast %3 : vector<1x128xf32> to vector<2x128xf32>
    %5 = arith.addf %2, %4 : vector<2x128xf32>
    %c0_5 = arith.constant 0 : index
    %c0_6 = arith.constant 0 : index
    %6 = vector.load %arg3[%c0_5, %c0_6] : memref<2x128xf32, #tpu.memory_space<vmem>>, vector<2x128xf32>
    tpu.vector_store %arg3[%c0_5, %c0_6], %5 {strides = array<i32>} : memref<2x128xf32, #tpu.memory_space<vmem>>, vector<2x128xf32>,
    return
  }
}

</mosaic_0001>

<llo_original>
// kernel: cnn_forward.3
$region0: #{cnn_forward.3}
  #allocation0 [shape = 'u32[]', space=smem, size = 0x4, offset = 0x4, fixed_abs, tag = 'smem constant byte address 0x4 - core index']
  #allocation1 [shape = 'u32[144,128]{1,0:T(1,128)}', space=vmem, size = 0x12000, scoped, tag = 'internal scratch']
  %s0 = inlined_call_operand.vmem [shape: bf16[2,16,32], index: 0, kind: input, shape index: {}]
  %s1 = inlined_call_operand.vmem [shape: bf16[2,16,32], index: 1, kind: input, shape index: {}]
  %s2 = inlined_call_operand.vmem [shape: bf16[5,32,512], index: 2, kind: input, shape index: {}]
  %s3 = inlined_call_operand.vmem [shape: f32[1,256], index: 3, kind: input, shape index: {}]
  %s4 = inlined_call_operand.vmem [shape: bf16[2,14,256], index: 4, kind: output, shape index: {}]
  %s5 = sld [smem:[#allocation0]]
  $region49: #{cnn_forward.3} parent=0
    _
  %s7 = ssub.s32 1, %s5
  %s8 = scalar_select 0, %s7, %s5
  loop: start=0, step=1, limit=4
  $region2: #{cnn_forward.3} parent=0 // loop_pre_header
    _
  $region3: #{cnn_forward.3} parent=0 // loop_header
    %s10 = sphi 0, %s14
    %p11 = scmp.ge.s32.totalorder %s10, 4
    %s20 = sphi 0, %s22
    %s23 = sphi 0, %s20
    %s24 = sphi 0, %s23
    %s40 = sphi 0, %s24
    %s46 = sphi 0, %s48
    %s49 = sphi 0, %s46
    %s50 = sphi 0, %s49
    %s66 = sphi 0, %s50
    %s70 = sphi 0, %s70
    %s72 = sphi 0, %s70
    %s73 = sphi 0, %s72
    %s87 = sphi 0, %s73
    %s91 = sphi 0, %s91
    %s93 = sphi 0, %s91
    %s94 = sphi 0, %s93
    %s108 = sphi 0, %s94
    %s114 = sphi 0, %s116
    %s117 = sphi 0, %s114
    %s118 = sphi 0, %s117
    %s134 = sphi 0, %s118
  $region4: #{cnn_forward.3} parent=0 // loop_header_branch
    %13 = sbr.rel (%p11) target = $region8
  $region5: #{cnn_forward.3} parent=0 // loop_body
    %s15 = ssub.s32 %s10, 1
    %s16 = ssub.s32 %s10, 2
    %s17 = sadd.s32 %s10, 1
    %s18 = ssub.s32 %s10, %s17
    %p19 = scmp.eq.s32.totalorder %s18, 0
    %s21 = sadd.s32 %s20, 1
    %s22 = scalar_select %p19, %s20, %s21
    %p25 = pneg %p19
    %p26 = scmp.eq.s32.totalorder %s10, 1
    %p27 = por %p25, %p26
    %p28 = scmp.ne.s32.totalorder %s20, %s23
    %p29 = scmp.eq.s32.totalorder %s10, 0
    %p30 = por %p28, %p29
    %p31 = scmp.ne.s32.totalorder %s20, %s23
    %p32 = scmp.eq.s32.totalorder %s15, 1
    %p33 = por %p31, %p32
    %p34 = scmp.ne.s32.totalorder %s23, %s24
    %p35 = scmp.eq.s32.totalorder %s15, 0
    %p36 = por %p34, %p35
    %p37 = scmp.ne.s32.totalorder %s23, %s24
    %p38 = scmp.eq.s32.totalorder %s16, 1
    %p39 = por %p37, %p38
    %p41 = scmp.ne.s32.totalorder %s24, %s40
    %p42 = scmp.eq.s32.totalorder %s16, 0
    %p43 = por %p41, %p42
    %s44 = ssub.s32 %s10, %s17
    %p45 = scmp.eq.s32.totalorder %s44, 0
    %s47 = sadd.s32 %s46, 1
    %s48 = scalar_select %p45, %s46, %s47
    %p51 = pneg %p45
    %p52 = scmp.eq.s32.totalorder %s10, 1
    %p53 = por %p51, %p52
    %p54 = scmp.ne.s32.totalorder %s46, %s49
    %p55 = scmp.eq.s32.totalorder %s10, 0
    %p56 = por %p54, %p55
    %p57 = scmp.ne.s32.totalorder %s46, %s49
    %p58 = scmp.eq.s32.totalorder %s15, 1
    %p59 = por %p57, %p58
    %p60 = scmp.ne.s32.totalorder %s49, %s50
    %p61 = scmp.eq.s32.totalorder %s15, 0
    %p62 = por %p60, %p61
    %p63 = scmp.ne.s32.totalorder %s49, %s50
    %p64 = scmp.eq.s32.totalorder %s16, 1
    %p65 = por %p63, %p64
    %p67 = scmp.ne.s32.totalorder %s50, %s66
    %p68 = scmp.eq.s32.totalorder %s16, 0
    %p69 = por %p67, %p68
    %s71 = sadd.s32 %s70, 1
    %p74 = scmp.eq.s32.totalorder %s10, 1
    %p75 = scmp.ne.s32.totalorder %s70, %s72
    %p76 = scmp.eq.s32.totalorder %s10, 0
    %p77 = por %p75, %p76
    %p78 = scmp.ne.s32.totalorder %s70, %s72
    %p79 = scmp.eq.s32.totalorder %s15, 1
    %p80 = por %p78, %p79
    %p81 = scmp.ne.s32.totalorder %s72, %s73
    %p82 = scmp.eq.s32.totalorder %s15, 0
    %p83 = por %p81, %p82
    %p84 = scmp.ne.s32.totalorder %s72, %s73
    %p85 = scmp.eq.s32.totalorder %s16, 1
    %p86 = por %p84, %p85
    %p88 = scmp.ne.s32.totalorder %s73, %s87
    %p89 = scmp.eq.s32.totalorder %s16, 0
    %p90 = por %p88, %p89
    %s92 = sadd.s32 %s91, 1
    %p95 = scmp.eq.s32.totalorder %s10, 1
    %p96 = scmp.ne.s32.totalorder %s91, %s93
    %p97 = scmp.eq.s32.totalorder %s10, 0
    %p98 = por %p96, %p97
    %p99 = scmp.ne.s32.totalorder %s91, %s93
    %p100 = scmp.eq.s32.totalorder %s15, 1
    %p101 = por %p99, %p100
    %p102 = scmp.ne.s32.totalorder %s93, %s94
    %p103 = scmp.eq.s32.totalorder %s15, 0
    %p104 = por %p102, %p103
    %p105 = scmp.ne.s32.totalorder %s93, %s94
    %p106 = scmp.eq.s32.totalorder %s16, 1
    %p107 = por %p105, %p106
    %p109 = scmp.ne.s32.totalorder %s94, %s108
    %p110 = scmp.eq.s32.totalorder %s16, 0
    %p111 = por %p109, %p110
    %s112 = ssub.s32 %s10, %s17
    %p113 = scmp.eq.s32.totalorder %s112, 0
    %s115 = sadd.s32 %s114, 1
    %s116 = scalar_select %p113, %s114, %s115
    %p119 = pneg %p113
    %p120 = scmp.eq.s32.totalorder %s10, 1
    %p121 = por %p119, %p120
    %p122 = scmp.ne.s32.totalorder %s114, %s117
    %p123 = scmp.eq.s32.totalorder %s10, 0
    %p124 = por %p122, %p123
    %p125 = scmp.ne.s32.totalorder %s114, %s117
    %p126 = scmp.eq.s32.totalorder %s15, 1
    %p127 = por %p125, %p126
    %p128 = scmp.ne.s32.totalorder %s117, %s118
    %p129 = scmp.eq.s32.totalorder %s15, 0
    %p130 = por %p128, %p129
    %p131 = scmp.ne.s32.totalorder %s117, %s118
    %p132 = scmp.eq.s32.totalorder %s16, 1
    %p133 = por %p131, %p132
    %p135 = scmp.ne.s32.totalorder %s118, %s134
    %p136 = scmp.eq.s32.totalorder %s16, 0
    %p137 = por %p135, %p136
    %p138 = scmp.le.s32.totalorder 1, %s10
    %p139 = scmp.lt.s32.totalorder %s10, 3
    %p140 = pnand %p138, %p139
    %p141 = pneg %p140
    // Predicated region
    $region9: #{cnn_forward.3} parent=5 // pred_check
      _
    $region10: #{cnn_forward.3} parent=5 // pred_check_branch
      %143 = sbr.rel (%p140) target = $region12
    $region11: #{cnn_forward.3} parent=5 // pred_region
      %s144 = ssub.s32 %s10, 1
      // Predicated region
      $region13: #{cnn_forward.3} parent=11 // pred_check
        %p145 = pneg %p83
      $region14: #{cnn_forward.3} parent=11 // pred_check_branch
        %147 = sbr.rel (%p145) target = $region16
      $region15: #{cnn_forward.3} parent=11 // pred_region
        _
      $region16: #{cnn_forward.3} parent=11 // pred_fallthru
        _
      // Predicated region
      $region17: #{cnn_forward.3} parent=11 // pred_check
        %p148 = pneg %p104
      $region18: #{cnn_forward.3} parent=11 // pred_check_branch
        %150 = sbr.rel (%p148) target = $region20
      $region19: #{cnn_forward.3} parent=11 // pred_region
        _
      $region20: #{cnn_forward.3} parent=11 // pred_fallthru
        _
    $region12: #{cnn_forward.3} parent=5 // pred_fallthru
      _
    %p151 = scmp.lt.s32.totalorder %s10, 2
    // Predicated region
    $region21: #{cnn_forward.3} parent=5 // pred_check
      %p152 = pneg %p151
    $region22: #{cnn_forward.3} parent=5 // pred_check_branch
      %154 = sbr.rel (%p152) target = $region24
    $region23: #{cnn_forward.3} parent=5 // pred_region
      // Predicated region
      $region25: #{cnn_forward.3} parent=23 // pred_check
        %p155 = pneg %p30
      $region26: #{cnn_forward.3} parent=23 // pred_check_branch
        %157 = sbr.rel (%p155) target = $region28
      $region27: #{cnn_forward.3} parent=23 // pred_region
        %p158 = scmp.lt.s32.totalorder %s10, 1
        %s159 = scalar_select %p158, %s10, 1
        %s160 = smul.addr %s159, 2
        %s161 = smul.addr %s160, 4
        %s162 = scalar_lea.vmem %s0, %s161
      $region28: #{cnn_forward.3} parent=23 // pred_fallthru
        _
      // Predicated region
      $region29: #{cnn_forward.3} parent=23 // pred_check
        %p163 = pneg %p56
      $region30: #{cnn_forward.3} parent=23 // pred_check_branch
        %165 = sbr.rel (%p163) target = $region32
      $region31: #{cnn_forward.3} parent=23 // pred_region
        %p166 = scmp.lt.s32.totalorder %s10, 1
        %s167 = scalar_select %p166, %s10, 1
        %s168 = smul.addr %s167, 2
        %s169 = smul.addr %s168, 4
        %s170 = scalar_lea.vmem %s1, %s169
      $region32: #{cnn_forward.3} parent=23 // pred_fallthru
        _
    $region24: #{cnn_forward.3} parent=5 // pred_fallthru
      _
    %p171 = scmp.le.s32.totalorder 1, %s10
    %p172 = scmp.lt.s32.totalorder %s10, 3
    %p173 = pnand %p171, %p172
    %p174 = pneg %p173
    // Predicated region
    $region33: #{cnn_forward.3} parent=5 // pred_check
      _
    $region34: #{cnn_forward.3} parent=5 // pred_check_branch
      %176 = sbr.rel (%p173) target = $region36
    $region35: #{cnn_forward.3} parent=5 // pred_region
      %s177 = ssub.s32 %s10, 1
      %p178 = scmp.lt.s32.totalorder %s15, 1
      %s179 = scalar_select %p178, %s15, 1
      %s180 = smul.addr %s179, 2
      %s181 = smul.addr %s180, 4
      %s182 = scalar_lea.vmem %s0, %s181
      %p183 = pneg %p36
      %p184 = pneg %p33
      %p185 = scmp.lt.s32.totalorder %s15, 1
      %s186 = scalar_select %p185, %s15, 1
      %s187 = smul.addr %s186, 2
      %s188 = smul.addr %s187, 4
      %s189 = scalar_lea.vmem %s1, %s188
      %p190 = pneg %p62
      %p191 = pneg %p59
      %p192 = pneg %p83
      %p193 = pneg %p80
      %p194 = pneg %p104
      %p195 = pneg %p101
      %p196 = pneg %p130
      %p197 = pneg %p127
      %p198 = scmp.lt.s32.totalorder %s15, 1
      %s199 = scalar_select %p198, %s15, 1
      %s200 = smul.addr %s199, 4
      %s201 = smul.addr %s200, 4
      %s202 = scalar_lea.vmem %s4, %s201
      %p203 = scmp.lt.s32.totalorder %s15, 1
      %s204 = scalar_select %p203, %s15, 1
      %s205 = smul.addr %s204, 2
      %s206 = smul.addr %s205, 4
      %s207 = scalar_lea.vmem %s0, %s206
      %p208 = scmp.lt.s32.totalorder %s15, 1
      %s209 = scalar_select %p208, %s15, 1
      %s210 = smul.addr %s209, 2
      %s211 = smul.addr %s210, 4
      %s212 = scalar_lea.vmem %s1, %s211
      %p213 = scmp.lt.s32.totalorder %s15, 1
      %s214 = scalar_select %p213, %s15, 1
      %s215 = smul.addr %s214, 4
      %s216 = smul.addr %s215, 4
      %s217 = scalar_lea.vmem %s4, %s216
      %v219 = vld [vmem:[%s207] sm:$0xf]
      %v220 = vld [vmem:[%s207 + $0x4] sm:$0x7]
      %v221 = vld [vmem:[%s2] sm:$0xff]
      %v222 = vld [vmem:[%s2 + $0x8] sm:$0xff]
      %v223 = vld [vmem:[%s2 + $0x10] sm:$0xff]
      %v224 = vld [vmem:[%s2 + $0x18] sm:$0xff]
      %v225 = vld [vmem:[%s2 + $0x20] sm:$0xff]
      %v226 = vld [vmem:[%s2 + $0x28] sm:$0xff]
      %v227 = vld [vmem:[%s2 + $0x30] sm:$0xff]
      %v228 = vld [vmem:[%s2 + $0x38] sm:$0xff]
      %v229 = vld [vmem:[%s212] sm:$0xf]
      %v230 = vld [vmem:[%s212 + $0x4] sm:$0x7]
      %s231 = scalar_lea.vmem %s2, 64
      %v232 = vld [vmem:[%s231] sm:$0xff]
      %v233 = vld [vmem:[%s231 + $0x8] sm:$0xff]
      %v234 = vld [vmem:[%s231 + $0x10] sm:$0xff]
      %v235 = vld [vmem:[%s231 + $0x18] sm:$0xff]
      %v236 = vld [vmem:[%s231 + $0x20] sm:$0xff]
      %v237 = vld [vmem:[%s231 + $0x28] sm:$0xff]
      %v238 = vld [vmem:[%s231 + $0x30] sm:$0xff]
      %v239 = vld [vmem:[%s231 + $0x38] sm:$0xff]
      %v242 = vunpack.c.l.b16 %v229
      %v243 = vunpack.c.l.b16 %v230
      %v244 = vpack.c.b16 %v243, %v242
      %v253 = vunpack.c.l.b16 %v232
      %v254 = vunpack.c.h.b16 %v232
      %v255 = vunpack.c.l.b16 %v233
      %v256 = vunpack.c.h.b16 %v233
      %v257 = vunpack.c.l.b16 %v234
      %v258 = vunpack.c.h.b16 %v234
      %v259 = vunpack.c.l.b16 %v235
      %v260 = vunpack.c.h.b16 %v235
      %v261 = vunpack.c.l.b16 %v236
      %v262 = vunpack.c.h.b16 %v236
      %v263 = vunpack.c.l.b16 %v237
      %v264 = vunpack.c.h.b16 %v237
      %v265 = vunpack.c.l.b16 %v238
      %v266 = vunpack.c.h.b16 %v238
      %v267 = vunpack.c.l.b16 %v239
      %v268 = vunpack.c.h.b16 %v239
      %v269 = vpack.c.b16 %v257, %v253
      %v270 = vpack.c.b16 %v258, %v254
      %v271 = vpack.c.b16 %v259, %v255
      %v272 = vpack.c.b16 %v260, %v256
      %v273 = vpack.c.b16 %v265, %v261
      %v274 = vpack.c.b16 %v266, %v262
      %v275 = vpack.c.b16 %v267, %v263
      %v276 = vpack.c.b16 %v268, %v264
      %vm285 = vcmask 261120
      %v287 = vsel %vm285, %v244, 0
      %289 = vmatprep.subr.bf16.mxu0 %v270
      %290 = vmatpush1.bf16.msra.mxu0 %v269
      %291 = vmatprep.subr.bf16.mxu0 %v274
      %292 = vmatpush1.bf16.msra.mxu0 %v273
      %293 = vmatprep.subr.bf16.mxu0 0
      %294 = vmatpush1.bf16.msra.mxu0 0
      %295 = vmatprep.subr.bf16.mxu0 0
      %296 = vmatpush1.bf16.msra.mxu0 0
      %297 = vmatprep.subr.bf16.mxu0 0
      %298 = vmatpush1.bf16.msra.mxu0 0
      %299 = vmatprep.subr.bf16.mxu0 0
      %300 = vmatpush1.bf16.msra.mxu0 0
      %301 = vmatprep.subr.bf16.mxu0 0
      %302 = vmatpush1.bf16.msra.mxu0 0
      %303 = vmatprep.subr.bf16.mxu0 0
      %304 = vmatpush1.bf16.msra.mxu0 0
      %305 = vmatprep.subr.bf16.mxu0 0
      %306 = vmatpush1.bf16.msra.mxu0 0
      %307 = vmatprep.subr.bf16.mxu0 0
      %308 = vmatpush1.bf16.msra.mxu0 0
      %309 = vmatprep.subr.bf16.mxu0 0
      %310 = vmatpush1.bf16.msra.mxu0 0
      %311 = vmatprep.subr.bf16.mxu0 0
      %312 = vmatpush1.bf16.msra.mxu0 0
      %313 = vmatprep.subr.bf16.mxu0 0
      %314 = vmatpush1.bf16.msra.mxu0 0
      %315 = vmatprep.subr.bf16.mxu0 0
      %316 = vmatpush1.bf16.msra.mxu0 0
      %317 = vmatprep.subr.bf16.mxu0 0
      %318 = vmatpush1.bf16.msra.mxu0 0
      %319 = vmatprep.subr.bf16.mxu0 0
      %320 = vmatpush1.bf16.msra.mxu0 0
      %321 = vmatprep.mubr.bf16.mxu0 0
      %322 = vmatmul.mubr.bf16.gmra.mrb[0].mxu0 %v287
      %v323 = vpop.f32.mrb[0].mxu0
      %v324 = vadd.f32 0.0, %v323
      %v325 = vpop.f32.mrb[0].mxu0
      %v326 = vadd.f32 0.0, %v325
      %v327 = vpop.f32.mrb[0].mxu0
      %v328 = vadd.f32 0.0, %v327
      %v329 = vpop.f32.mrb[0].mxu0
      %v330 = vadd.f32 0.0, %v329
      %331 = vdwg.mxu0
      %332 = vmatprep.subr.bf16.mxu0 %v272
      %333 = vmatpush1.bf16.msra.mxu0 %v271
      %334 = vmatprep.subr.bf16.mxu0 %v276
      %335 = vmatpush1.bf16.msra.mxu0 %v275
      %336 = vmatprep.subr.bf16.mxu0 0
      %337 = vmatpush1.bf16.msra.mxu0 0
      %338 = vmatprep.subr.bf16.mxu0 0
      %339 = vmatpush1.bf16.msra.mxu0 0
      %340 = vmatprep.subr.bf16.mxu0 0
      %341 = vmatpush1.bf16.msra.mxu0 0
      %342 = vmatprep.subr.bf16.mxu0 0
      %343 = vmatpush1.bf16.msra.mxu0 0
      %344 = vmatprep.subr.bf16.mxu0 0
      %345 = vmatpush1.bf16.msra.mxu0 0
      %346 = vmatprep.subr.bf16.mxu0 0
      %347 = vmatpush1.bf16.msra.mxu0 0
      %348 = vmatprep.subr.bf16.mxu0 0
      %349 = vmatpush1.bf16.msra.mxu0 0
      %350 = vmatprep.subr.bf16.mxu0 0
      %351 = vmatpush1.bf16.msra.mxu0 0
      %352 = vmatprep.subr.bf16.mxu0 0
      %353 = vmatpush1.bf16.msra.mxu0 0
      %354 = vmatprep.subr.bf16.mxu0 0
      %355 = vmatpush1.bf16.msra.mxu0 0
      %356 = vmatprep.subr.bf16.mxu0 0
      %357 = vmatpush1.bf16.msra.mxu0 0
      %358 = vmatprep.subr.bf16.mxu0 0
      %359 = vmatpush1.bf16.msra.mxu0 0
      %360 = vmatprep.subr.bf16.mxu0 0
      %361 = vmatpush1.bf16.msra.mxu0 0
      %362 = vmatprep.subr.bf16.mxu0 0
      %363 = vmatpush1.bf16.msra.mxu0 0
      %364 = vmatprep.mubr.bf16.mxu0 0
      %365 = vmatmul.mubr.bf16.gmra.mrb[0].mxu0 %v287
      %v366 = vpop.f32.mrb[0].mxu0
      %v367 = vadd.f32 0.0, %v366
      %v368 = vpop.f32.mrb[0].mxu0
      %v369 = vadd.f32 0.0, %v368
      %v370 = vpop.f32.mrb[0].mxu0
      %v371 = vadd.f32 0.0, %v370
      %v372 = vpop.f32.mrb[0].mxu0
      %v373 = vadd.f32 0.0, %v372
      %374 = vdwg.mxu0
      %v377 = vunpack.c.l.b16 %v219
      %v378 = vunpack.c.l.b16 %v220
      %v379 = vpack.c.b16 %v378, %v377
      %v388 = vunpack.c.l.b16 %v221
      %v389 = vunpack.c.h.b16 %v221
      %v390 = vunpack.c.l.b16 %v222
      %v391 = vunpack.c.h.b16 %v222
      %v392 = vunpack.c.l.b16 %v223
      %v393 = vunpack.c.h.b16 %v223
      %v394 = vunpack.c.l.b16 %v224
      %v395 = vunpack.c.h.b16 %v224
      %v396 = vunpack.c.l.b16 %v225
      %v397 = vunpack.c.h.b16 %v225
      %v398 = vunpack.c.l.b16 %v226
      %v399 = vunpack.c.h.b16 %v226
      %v400 = vunpack.c.l.b16 %v227
      %v401 = vunpack.c.h.b16 %v227
      %v402 = vunpack.c.l.b16 %v228
      %v403 = vunpack.c.h.b16 %v228
      %v404 = vpack.c.b16 %v392, %v388
      %v405 = vpack.c.b16 %v393, %v389
      %v406 = vpack.c.b16 %v394, %v390
      %v407 = vpack.c.b16 %v395, %v391
      %v408 = vpack.c.b16 %v400, %v396
      %v409 = vpack.c.b16 %v401, %v397
      %v410 = vpack.c.b16 %v402, %v398
      %v411 = vpack.c.b16 %v403, %v399
      %v421 = vsel %vm285, %v379, 0
      %423 = vmatprep.subr.bf16.mxu0 %v405
      %424 = vmatpush1.bf16.msra.mxu0 %v404
      %425 = vmatprep.subr.bf16.mxu0 %v409
      %426 = vmatpush1.bf16.msra.mxu0 %v408
      %427 = vmatprep.subr.bf16.mxu0 0
      %428 = vmatpush1.bf16.msra.mxu0 0
      %429 = vmatprep.subr.bf16.mxu0 0
      %430 = vmatpush1.bf16.msra.mxu0 0
      %431 = vmatprep.subr.bf16.mxu0 0
      %432 = vmatpush1.bf16.msra.mxu0 0
      %433 = vmatprep.subr.bf16.mxu0 0
      %434 = vmatpush1.bf16.msra.mxu0 0
      %435 = vmatprep.subr.bf16.mxu0 0
      %436 = vmatpush1.bf16.msra.mxu0 0
      %437 = vmatprep.subr.bf16.mxu0 0
      %438 = vmatpush1.bf16.msra.mxu0 0
      %439 = vmatprep.subr.bf16.mxu0 0
      %440 = vmatpush1.bf16.msra.mxu0 0
      %441 = vmatprep.subr.bf16.mxu0 0
      %442 = vmatpush1.bf16.msra.mxu0 0
      %443 = vmatprep.subr.bf16.mxu0 0
      %444 = vmatpush1.bf16.msra.mxu0 0
      %445 = vmatprep.subr.bf16.mxu0 0
      %446 = vmatpush1.bf16.msra.mxu0 0
      %447 = vmatprep.subr.bf16.mxu0 0
      %448 = vmatpush1.bf16.msra.mxu0 0
      %449 = vmatprep.subr.bf16.mxu0 0
      %450 = vmatpush1.bf16.msra.mxu0 0
      %451 = vmatprep.subr.bf16.mxu0 0
      %452 = vmatpush1.bf16.msra.mxu0 0
      %453 = vmatprep.subr.bf16.mxu0 0
      %454 = vmatpush1.bf16.msra.mxu0 0
      %455 = vmatprep.mubr.bf16.mxu0 0
      %456 = vmatmul.mubr.bf16.gmra.mrb[0].mxu0 %v421
      %v457 = vpop.f32.mrb[0].mxu0
      %v458 = vadd.f32 %v324, %v457
      %v459 = vpop.f32.mrb[0].mxu0
      %v460 = vadd.f32 %v326, %v459
      %v461 = vpop.f32.mrb[0].mxu0
      %v462 = vadd.f32 %v328, %v461
      %v463 = vpop.f32.mrb[0].mxu0
      %v464 = vadd.f32 %v330, %v463
      %465 = vdwg.mxu0
      %466 = vmatprep.subr.bf16.mxu0 %v407
      %467 = vmatpush1.bf16.msra.mxu0 %v406
      %468 = vmatprep.subr.bf16.mxu0 %v411
      %469 = vmatpush1.bf16.msra.mxu0 %v410
      %470 = vmatprep.subr.bf16.mxu0 0
      %471 = vmatpush1.bf16.msra.mxu0 0
      %472 = vmatprep.subr.bf16.mxu0 0
      %473 = vmatpush1.bf16.msra.mxu0 0
      %474 = vmatprep.subr.bf16.mxu0 0
      %475 = vmatpush1.bf16.msra.mxu0 0
      %476 = vmatprep.subr.bf16.mxu0 0
      %477 = vmatpush1.bf16.msra.mxu0 0
      %478 = vmatprep.subr.bf16.mxu0 0
      %479 = vmatpush1.bf16.msra.mxu0 0
      %480 = vmatprep.subr.bf16.mxu0 0
      %481 = vmatpush1.bf16.msra.mxu0 0
      %482 = vmatprep.subr.bf16.mxu0 0
      %483 = vmatpush1.bf16.msra.mxu0 0
      %484 = vmatprep.subr.bf16.mxu0 0
      %485 = vmatpush1.bf16.msra.mxu0 0
      %486 = vmatprep.subr.bf16.mxu0 0
      %487 = vmatpush1.bf16.msra.mxu0 0
      %488 = vmatprep.subr.bf16.mxu0 0
      %489 = vmatpush1.bf16.msra.mxu0 0
      %490 = vmatprep.subr.bf16.mxu0 0
      %491 = vmatpush1.bf16.msra.mxu0 0
      %492 = vmatprep.subr.bf16.mxu0 0
      %493 = vmatpush1.bf16.msra.mxu0 0
      %494 = vmatprep.subr.bf16.mxu0 0
      %495 = vmatpush1.bf16.msra.mxu0 0
      %496 = vmatprep.subr.bf16.mxu0 0
      %497 = vmatpush1.bf16.msra.mxu0 0
      %498 = vmatprep.mubr.bf16.mxu0 0
      %499 = vmatmul.mubr.bf16.gmra.mrb[0].mxu0 %v421
      %v500 = vpop.f32.mrb[0].mxu0
      %v501 = vadd.f32 %v367, %v500
      %v502 = vpop.f32.mrb[0].mxu0
      %v503 = vadd.f32 %v369, %v502
      %v504 = vpop.f32.mrb[0].mxu0
      %v505 = vadd.f32 %v371, %v504
      %v506 = vpop.f32.mrb[0].mxu0
      %v507 = vadd.f32 %v373, %v506
      %508 = vdwg.mxu0
      %v509 = vld [vmem:[%s207 + $0x4] sm:$0xf]
      %s510 = scalar_lea.vmem %s2, 128
      %v511 = vld [vmem:[%s510] sm:$0xff]
      %v512 = vld [vmem:[%s510 + $0x8] sm:$0xff]
      %v513 = vld [vmem:[%s510 + $0x10] sm:$0xff]
      %v514 = vld [vmem:[%s510 + $0x18] sm:$0xff]
      %v515 = vld [vmem:[%s510 + $0x20] sm:$0xff]
      %v516 = vld [vmem:[%s510 + $0x28] sm:$0xff]
      %v517 = vld [vmem:[%s510 + $0x30] sm:$0xff]
      %v518 = vld [vmem:[%s510 + $0x38] sm:$0xff]
      %v520 = vunpack.c.l.b16 %v509
      %v521 = vpack.c.b16 %v520, %v377
      %v523 = vshrl.u32 %v521, 16
      %v525 = vshll.u32 %v521, 16
      %v527 = vrot.slane %v525, 1
      %v528 = vor.u32 %v523, %v527
      %v537 = vunpack.c.l.b16 %v511
      %v538 = vunpack.c.h.b16 %v511
      %v539 = vunpack.c.l.b16 %v512
      %v540 = vunpack.c.h.b16 %v512
      %v541 = vunpack.c.l.b16 %v513
      %v542 = vunpack.c.h.b16 %v513
      %v543 = vunpack.c.l.b16 %v514
      %v544 = vunpack.c.h.b16 %v514
      %v545 = vunpack.c.l.b16 %v515
      %v546 = vunpack.c.h.b16 %v515
      %v547 = vunpack.c.l.b16 %v516
      %v548 = vunpack.c.h.b16 %v516
      %v549 = vunpack.c.l.b16 %v517
      %v550 = vunpack.c.h.b16 %v517
      %v551 = vunpack.c.l.b16 %v518
      %v552 = vunpack.c.h.b16 %v518
      %v553 = vpack.c.b16 %v541, %v537
      %v554 = vpack.c.b16 %v542, %v538
      %v555 = vpack.c.b16 %v543, %v539
      %v556 = vpack.c.b16 %v544, %v540
      %v557 = vpack.c.b16 %v549, %v545
      %v558 = vpack.c.b16 %v550, %v546
      %v559 = vpack.c.b16 %v551, %v547
      %v560 = vpack.c.b16 %v552, %v548
      %v570 = vsel %vm285, %v528, 0
      %572 = vmatprep.subr.bf16.mxu0 %v554
      %573 = vmatpush1.bf16.msra.mxu0 %v553
      %574 = vmatprep.subr.bf16.mxu0 %v558
      %575 = vmatpush1.bf16.msra.mxu0 %v557
      %576 = vmatprep.subr.bf16.mxu0 0
      %577 = vmatpush1.bf16.msra.mxu0 0
      %578 = vmatprep.subr.bf16.mxu0 0
      %579 = vmatpush1.bf16.msra.mxu0 0
      %580 = vmatprep.subr.bf16.mxu0 0
      %581 = vmatpush1.bf16.msra.mxu0 0
      %582 = vmatprep.subr.bf16.mxu0 0
      %583 = vmatpush1.bf16.msra.mxu0 0
      %584 = vmatprep.subr.bf16.mxu0 0
      %585 = vmatpush1.bf16.msra.mxu0 0
      %586 = vmatprep.subr.bf16.mxu0 0
      %587 = vmatpush1.bf16.msra.mxu0 0
      %588 = vmatprep.subr.bf16.mxu0 0
      %589 = vmatpush1.bf16.msra.mxu0 0
      %590 = vmatprep.subr.bf16.mxu0 0
      %591 = vmatpush1.bf16.msra.mxu0 0
      %592 = vmatprep.subr.bf16.mxu0 0
      %593 = vmatpush1.bf16.msra.mxu0 0
      %594 = vmatprep.subr.bf16.mxu0 0
      %595 = vmatpush1.bf16.msra.mxu0 0
      %596 = vmatprep.subr.bf16.mxu0 0
      %597 = vmatpush1.bf16.msra.mxu0 0
      %598 = vmatprep.subr.bf16.mxu0 0
      %599 = vmatpush1.bf16.msra.mxu0 0
      %600 = vmatprep.subr.bf16.mxu0 0
      %601 = vmatpush1.bf16.msra.mxu0 0
      %602 = vmatprep.subr.bf16.mxu0 0
      %603 = vmatpush1.bf16.msra.mxu0 0
      %604 = vmatprep.mubr.bf16.mxu0 0
      %605 = vmatmul.mubr.bf16.gmra.mrb[0].mxu0 %v570
      %v606 = vpop.f32.mrb[0].mxu0
      %v607 = vadd.f32 0.0, %v606
      %v608 = vpop.f32.mrb[0].mxu0
      %v609 = vadd.f32 0.0, %v608
      %v610 = vpop.f32.mrb[0].mxu0
      %v611 = vadd.f32 0.0, %v610
      %v612 = vpop.f32.mrb[0].mxu0
      %v613 = vadd.f32 0.0, %v612
      %614 = vdwg.mxu0
      %615 = vmatprep.subr.bf16.mxu0 %v556
      %616 = vmatpush1.bf16.msra.mxu0 %v555
      %617 = vmatprep.subr.bf16.mxu0 %v560
      %618 = vmatpush1.bf16.msra.mxu0 %v559
      %619 = vmatprep.subr.bf16.mxu0 0
      %620 = vmatpush1.bf16.msra.mxu0 0
      %621 = vmatprep.subr.bf16.mxu0 0
      %622 = vmatpush1.bf16.msra.mxu0 0
      %623 = vmatprep.subr.bf16.mxu0 0
      %624 = vmatpush1.bf16.msra.mxu0 0
      %625 = vmatprep.subr.bf16.mxu0 0
      %626 = vmatpush1.bf16.msra.mxu0 0
      %627 = vmatprep.subr.bf16.mxu0 0
      %628 = vmatpush1.bf16.msra.mxu0 0
      %629 = vmatprep.subr.bf16.mxu0 0
      %630 = vmatpush1.bf16.msra.mxu0 0
      %631 = vmatprep.subr.bf16.mxu0 0
      %632 = vmatpush1.bf16.msra.mxu0 0
      %633 = vmatprep.subr.bf16.mxu0 0
      %634 = vmatpush1.bf16.msra.mxu0 0
      %635 = vmatprep.subr.bf16.mxu0 0
      %636 = vmatpush1.bf16.msra.mxu0 0
      %637 = vmatprep.subr.bf16.mxu0 0
      %638 = vmatpush1.bf16.msra.mxu0 0
      %639 = vmatprep.subr.bf16.mxu0 0
      %640 = vmatpush1.bf16.msra.mxu0 0
      %641 = vmatprep.subr.bf16.mxu0 0
      %642 = vmatpush1.bf16.msra.mxu0 0
      %643 = vmatprep.subr.bf16.mxu0 0
      %644 = vmatpush1.bf16.msra.mxu0 0
      %645 = vmatprep.subr.bf16.mxu0 0
      %646 = vmatpush1.bf16.msra.mxu0 0
      %647 = vmatprep.mubr.bf16.mxu0 0
      %648 = vmatmul.mubr.bf16.gmra.mrb[0].mxu0 %v570
      %v649 = vpop.f32.mrb[0].mxu0
      %v650 = vadd.f32 0.0, %v649
      %v651 = vpop.f32.mrb[0].mxu0
      %v652 = vadd.f32 0.0, %v651
      %v653 = vpop.f32.mrb[0].mxu0
      %v654 = vadd.f32 0.0, %v653
      %v655 = vpop.f32.mrb[0].mxu0
      %v656 = vadd.f32 0.0, %v655
      %657 = vdwg.mxu0
      %v658 = vadd.f32 %v458, %v607
      %v659 = vadd.f32 %v460, %v609
      %v660 = vadd.f32 %v501, %v650
      %v661 = vadd.f32 %v503, %v652
      %v662 = vadd.f32 %v462, %v611
      %v663 = vadd.f32 %v464, %v613
      %v664 = vadd.f32 %v505, %v654
      %v665 = vadd.f32 %v507, %v656
      %v666 = vld [vmem:[%s212 + $0x4] sm:$0xf]
      %s667 = scalar_lea.vmem %s2, 192
      %v668 = vld [vmem:[%s667] sm:$0xff]
      %v669 = vld [vmem:[%s667 + $0x8] sm:$0xff]
      %v670 = vld [vmem:[%s667 + $0x10] sm:$0xff]
      %v671 = vld [vmem:[%s667 + $0x18] sm:$0xff]
      %v672 = vld [vmem:[%s667 + $0x20] sm:$0xff]
      %v673 = vld [vmem:[%s667 + $0x28] sm:$0xff]
      %v674 = vld [vmem:[%s667 + $0x30] sm:$0xff]
      %v675 = vld [vmem:[%s667 + $0x38] sm:$0xff]
      %v677 = vunpack.c.l.b16 %v666
      %v678 = vpack.c.b16 %v677, %v242
      %v680 = vshrl.u32 %v678, 16
      %v682 = vshll.u32 %v678, 16
      %v684 = vrot.slane %v682, 1
      %v685 = vor.u32 %v680, %v684
      %v694 = vunpack.c.l.b16 %v668
      %v695 = vunpack.c.h.b16 %v668
      %v696 = vunpack.c.l.b16 %v669
      %v697 = vunpack.c.h.b16 %v669
      %v698 = vunpack.c.l.b16 %v670
      %v699 = vunpack.c.h.b16 %v670
      %v700 = vunpack.c.l.b16 %v671
      %v701 = vunpack.c.h.b16 %v671
      %v702 = vunpack.c.l.b16 %v672
      %v703 = vunpack.c.h.b16 %v672
      %v704 = vunpack.c.l.b16 %v673
      %v705 = vunpack.c.h.b16 %v673
      %v706 = vunpack.c.l.b16 %v674
      %v707 = vunpack.c.h.b16 %v674
      %v708 = vunpack.c.l.b16 %v675
      %v709 = vunpack.c.h.b16 %v675
      %v710 = vpack.c.b16 %v698, %v694
      %v711 = vpack.c.b16 %v699, %v695
      %v712 = vpack.c.b16 %v700, %v696
      %v713 = vpack.c.b16 %v701, %v697
      %v714 = vpack.c.b16 %v706, %v702
      %v715 = vpack.c.b16 %v707, %v703
      %v716 = vpack.c.b16 %v708, %v704
      %v717 = vpack.c.b16 %v709, %v705
      %v727 = vsel %vm285, %v685, 0
      %729 = vmatprep.subr.bf16.mxu0 %v711
      %730 = vmatpush1.bf16.msra.mxu0 %v710
      %731 = vmatprep.subr.bf16.mxu0 %v715
      %732 = vmatpush1.bf16.msra.mxu0 %v714
      %733 = vmatprep.subr.bf16.mxu0 0
      %734 = vmatpush1.bf16.msra.mxu0 0
      %735 = vmatprep.subr.bf16.mxu0 0
      %736 = vmatpush1.bf16.msra.mxu0 0
      %737 = vmatprep.subr.bf16.mxu0 0
      %738 = vmatpush1.bf16.msra.mxu0 0
      %739 = vmatprep.subr.bf16.mxu0 0
      %740 = vmatpush1.bf16.msra.mxu0 0
      %741 = vmatprep.subr.bf16.mxu0 0
      %742 = vmatpush1.bf16.msra.mxu0 0
      %743 = vmatprep.subr.bf16.mxu0 0
      %744 = vmatpush1.bf16.msra.mxu0 0
      %745 = vmatprep.subr.bf16.mxu0 0
      %746 = vmatpush1.bf16.msra.mxu0 0
      %747 = vmatprep.subr.bf16.mxu0 0
      %748 = vmatpush1.bf16.msra.mxu0 0
      %749 = vmatprep.subr.bf16.mxu0 0
      %750 = vmatpush1.bf16.msra.mxu0 0
      %751 = vmatprep.subr.bf16.mxu0 0
      %752 = vmatpush1.bf16.msra.mxu0 0
      %753 = vmatprep.subr.bf16.mxu0 0
      %754 = vmatpush1.bf16.msra.mxu0 0
      %755 = vmatprep.subr.bf16.mxu0 0
      %756 = vmatpush1.bf16.msra.mxu0 0
      %757 = vmatprep.subr.bf16.mxu0 0
      %758 = vmatpush1.bf16.msra.mxu0 0
      %759 = vmatprep.subr.bf16.mxu0 0
      %760 = vmatpush1.bf16.msra.mxu0 0
      %761 = vmatprep.mubr.bf16.mxu0 0
      %762 = vmatmul.mubr.bf16.gmra.mrb[0].mxu0 %v727
      %v763 = vpop.f32.mrb[0].mxu0
      %v764 = vadd.f32 0.0, %v763
      %v765 = vpop.f32.mrb[0].mxu0
      %v766 = vadd.f32 0.0, %v765
      %v767 = vpop.f32.mrb[0].mxu0
      %v768 = vadd.f32 0.0, %v767
      %v769 = vpop.f32.mrb[0].mxu0
      %v770 = vadd.f32 0.0, %v769
      %771 = vdwg.mxu0
      %772 = vmatprep.subr.bf16.mxu0 %v713
      %773 = vmatpush1.bf16.msra.mxu0 %v712
      %774 = vmatprep.subr.bf16.mxu0 %v717
      %775 = vmatpush1.bf16.msra.mxu0 %v716
      %776 = vmatprep.subr.bf16.mxu0 0
      %777 = vmatpush1.bf16.msra.mxu0 0
      %778 = vmatprep.subr.bf16.mxu0 0
      %779 = vmatpush1.bf16.msra.mxu0 0
      %780 = vmatprep.subr.bf16.mxu0 0
      %781 = vmatpush1.bf16.msra.mxu0 0
      %782 = vmatprep.subr.bf16.mxu0 0
      %783 = vmatpush1.bf16.msra.mxu0 0
      %784 = vmatprep.subr.bf16.mxu0 0
      %785 = vmatpush1.bf16.msra.mxu0 0
      %786 = vmatprep.subr.bf16.mxu0 0
      %787 = vmatpush1.bf16.msra.mxu0 0
      %788 = vmatprep.subr.bf16.mxu0 0
      %789 = vmatpush1.bf16.msra.mxu0 0
      %790 = vmatprep.subr.bf16.mxu0 0
      %791 = vmatpush1.bf16.msra.mxu0 0
      %792 = vmatprep.subr.bf16.mxu0 0
      %793 = vmatpush1.bf16.msra.mxu0 0
      %794 = vmatprep.subr.bf16.mxu0 0
      %795 = vmatpush1.bf16.msra.mxu0 0
      %796 = vmatprep.subr.bf16.mxu0 0
      %797 = vmatpush1.bf16.msra.mxu0 0
      %798 = vmatprep.subr.bf16.mxu0 0
      %799 = vmatpush1.bf16.msra.mxu0 0
      %800 = vmatprep.subr.bf16.mxu0 0
      %801 = vmatpush1.bf16.msra.mxu0 0
      %802 = vmatprep.subr.bf16.mxu0 0
      %803 = vmatpush1.bf16.msra.mxu0 0
      %804 = vmatprep.mubr.bf16.mxu0 0
      %805 = vmatmul.mubr.bf16.gmra.mrb[0].mxu0 %v727
      %v806 = vpop.f32.mrb[0].mxu0
      %v807 = vadd.f32 0.0, %v806
      %v808 = vpop.f32.mrb[0].mxu0
      %v809 = vadd.f32 0.0, %v808
      %v810 = vpop.f32.mrb[0].mxu0
      %v811 = vadd.f32 0.0, %v810
      %v812 = vpop.f32.mrb[0].mxu0
      %v813 = vadd.f32 0.0, %v812
      %814 = vdwg.mxu0
      %v815 = vadd.f32 %v658, %v764
      %v816 = vadd.f32 %v659, %v766
      %v817 = vadd.f32 %v660, %v807
      %v818 = vadd.f32 %v661, %v809
      %v819 = vadd.f32 %v662, %v768
      %v820 = vadd.f32 %v663, %v770
      %v821 = vadd.f32 %v664, %v811
      %v822 = vadd.f32 %v665, %v813
      %v823 = vld [vmem:[%s207] sm:$0xe]
      %s824 = scalar_lea.vmem %s2, 256
      %v825 = vld [vmem:[%s824] sm:$0xff]
      %v826 = vld [vmem:[%s824 + $0x8] sm:$0xff]
      %v827 = vld [vmem:[%s824 + $0x10] sm:$0xff]
      %v828 = vld [vmem:[%s824 + $0x18] sm:$0xff]
      %v829 = vld [vmem:[%s824 + $0x20] sm:$0xff]
      %v830 = vld [vmem:[%s824 + $0x28] sm:$0xff]
      %v831 = vld [vmem:[%s824 + $0x30] sm:$0xff]
      %v832 = vld [vmem:[%s824 + $0x38] sm:$0xff]
      %v834 = vunpack.c.l.b16 %v823
      %v835 = vpack.c.b16 %v520, %v834
      %v836 = vrot.slane %v835, 1
      %v845 = vunpack.c.l.b16 %v825
      %v846 = vunpack.c.h.b16 %v825
      %v847 = vunpack.c.l.b16 %v826
      %v848 = vunpack.c.h.b16 %v826
      %v849 = vunpack.c.l.b16 %v827
      %v850 = vunpack.c.h.b16 %v827
      %v851 = vunpack.c.l.b16 %v828
      %v852 = vunpack.c.h.b16 %v828
      %v853 = vunpack.c.l.b16 %v829
      %v854 = vunpack.c.h.b16 %v829
      %v855 = vunpack.c.l.b16 %v830
      %v856 = vunpack.c.h.b16 %v830
      %v857 = vunpack.c.l.b16 %v831
      %v858 = vunpack.c.h.b16 %v831
      %v859 = vunpack.c.l.b16 %v832
      %v860 = vunpack.c.h.b16 %v832
      %v861 = vpack.c.b16 %v849, %v845
      %v862 = vpack.c.b16 %v850, %v846
      %v863 = vpack.c.b16 %v851, %v847
      %v864 = vpack.c.b16 %v852, %v848
      %v865 = vpack.c.b16 %v857, %v853
      %v866 = vpack.c.b16 %v858, %v854
      %v867 = vpack.c.b16 %v859, %v855
      %v868 = vpack.c.b16 %v860, %v856
      %v878 = vsel %vm285, %v836, 0
      %880 = vmatprep.subr.bf16.mxu0 %v862
      %881 = vmatpush1.bf16.msra.mxu0 %v861
      %882 = vmatprep.subr.bf16.mxu0 %v866
      %883 = vmatpush1.bf16.msra.mxu0 %v865
      %884 = vmatprep.subr.bf16.mxu0 0
      %885 = vmatpush1.bf16.msra.mxu0 0
      %886 = vmatprep.subr.bf16.mxu0 0
      %887 = vmatpush1.bf16.msra.mxu0 0
      %888 = vmatprep.subr.bf16.mxu0 0
      %889 = vmatpush1.bf16.msra.mxu0 0
      %890 = vmatprep.subr.bf16.mxu0 0
      %891 = vmatpush1.bf16.msra.mxu0 0
      %892 = vmatprep.subr.bf16.mxu0 0
      %893 = vmatpush1.bf16.msra.mxu0 0
      %894 = vmatprep.subr.bf16.mxu0 0
      %895 = vmatpush1.bf16.msra.mxu0 0
      %896 = vmatprep.subr.bf16.mxu0 0
      %897 = vmatpush1.bf16.msra.mxu0 0
      %898 = vmatprep.subr.bf16.mxu0 0
      %899 = vmatpush1.bf16.msra.mxu0 0
      %900 = vmatprep.subr.bf16.mxu0 0
      %901 = vmatpush1.bf16.msra.mxu0 0
      %902 = vmatprep.subr.bf16.mxu0 0
      %903 = vmatpush1.bf16.msra.mxu0 0
      %904 = vmatprep.subr.bf16.mxu0 0
      %905 = vmatpush1.bf16.msra.mxu0 0
      %906 = vmatprep.subr.bf16.mxu0 0
      %907 = vmatpush1.bf16.msra.mxu0 0
      %908 = vmatprep.subr.bf16.mxu0 0
      %909 = vmatpush1.bf16.msra.mxu0 0
      %910 = vmatprep.subr.bf16.mxu0 0
      %911 = vmatpush1.bf16.msra.mxu0 0
      %912 = vmatprep.mubr.bf16.mxu0 0
      %913 = vmatmul.mubr.bf16.gmra.mrb[0].mxu0 %v878
      %v914 = vpop.f32.mrb[0].mxu0
      %v915 = vadd.f32 0.0, %v914
      %v916 = vpop.f32.mrb[0].mxu0
      %v917 = vadd.f32 0.0, %v916
      %v918 = vpop.f32.mrb[0].mxu0
      %v919 = vadd.f32 0.0, %v918
      %v920 = vpop.f32.mrb[0].mxu0
      %v921 = vadd.f32 0.0, %v920
      %922 = vdwg.mxu0
      %923 = vmatprep.subr.bf16.mxu0 %v864
      %924 = vmatpush1.bf16.msra.mxu0 %v863
      %925 = vmatprep.subr.bf16.mxu0 %v868
      %926 = vmatpush1.bf16.msra.mxu0 %v867
      %927 = vmatprep.subr.bf16.mxu0 0
      %928 = vmatpush1.bf16.msra.mxu0 0
      %929 = vmatprep.subr.bf16.mxu0 0
      %930 = vmatpush1.bf16.msra.mxu0 0
      %931 = vmatprep.subr.bf16.mxu0 0
      %932 = vmatpush1.bf16.msra.mxu0 0
      %933 = vmatprep.subr.bf16.mxu0 0
      %934 = vmatpush1.bf16.msra.mxu0 0
      %935 = vmatprep.subr.bf16.mxu0 0
      %936 = vmatpush1.bf16.msra.mxu0 0
      %937 = vmatprep.subr.bf16.mxu0 0
      %938 = vmatpush1.bf16.msra.mxu0 0
      %939 = vmatprep.subr.bf16.mxu0 0
      %940 = vmatpush1.bf16.msra.mxu0 0
      %941 = vmatprep.subr.bf16.mxu0 0
      %942 = vmatpush1.bf16.msra.mxu0 0
      %943 = vmatprep.subr.bf16.mxu0 0
      %944 = vmatpush1.bf16.msra.mxu0 0
      %945 = vmatprep.subr.bf16.mxu0 0
      %946 = vmatpush1.bf16.msra.mxu0 0
      %947 = vmatprep.subr.bf16.mxu0 0
      %948 = vmatpush1.bf16.msra.mxu0 0
      %949 = vmatprep.subr.bf16.mxu0 0
      %950 = vmatpush1.bf16.msra.mxu0 0
      %951 = vmatprep.subr.bf16.mxu0 0
      %952 = vmatpush1.bf16.msra.mxu0 0
      %953 = vmatprep.subr.bf16.mxu0 0
      %954 = vmatpush1.bf16.msra.mxu0 0
      %955 = vmatprep.mubr.bf16.mxu0 0
      %956 = vmatmul.mubr.bf16.gmra.mrb[0].mxu0 %v878
      %v957 = vpop.f32.mrb[0].mxu0
      %v958 = vadd.f32 0.0, %v957
      %v959 = vpop.f32.mrb[0].mxu0
      %v960 = vadd.f32 0.0, %v959
      %v961 = vpop.f32.mrb[0].mxu0
      %v962 = vadd.f32 0.0, %v961
      %v963 = vpop.f32.mrb[0].mxu0
      %v964 = vadd.f32 0.0, %v963
      %965 = vdwg.mxu0
      %v966 = vadd.f32 %v815, %v915
      %v967 = vadd.f32 %v816, %v917
      %v968 = vadd.f32 %v817, %v958
      %v969 = vadd.f32 %v818, %v960
      %v970 = vadd.f32 %v819, %v919
      %v971 = vadd.f32 %v820, %v921
      %v972 = vadd.f32 %v821, %v962
      %v973 = vadd.f32 %v822, %v964
      %v974 = vmax.f32 %v966, %v968
      %v975 = vmax.f32 %v967, %v969
      %v976 = vmax.f32 %v970, %v972
      %v977 = vmax.f32 %v971, %v973
      %978 = vmatprep.subr.bf16.mxu0 %v270
      %979 = vmatpush1.bf16.msra.mxu0 %v269
      %980 = vmatprep.subr.bf16.mxu0 %v274
      %981 = vmatpush1.bf16.msra.mxu0 %v273
      %982 = vmatprep.subr.bf16.mxu0 0
      %983 = vmatpush1.bf16.msra.mxu0 0
      %984 = vmatprep.subr.bf16.mxu0 0
      %985 = vmatpush1.bf16.msra.mxu0 0
      %986 = vmatprep.subr.bf16.mxu0 0
      %987 = vmatpush1.bf16.msra.mxu0 0
      %988 = vmatprep.subr.bf16.mxu0 0
      %989 = vmatpush1.bf16.msra.mxu0 0
      %990 = vmatprep.subr.bf16.mxu0 0
      %991 = vmatpush1.bf16.msra.mxu0 0
      %992 = vmatprep.subr.bf16.mxu0 0
      %993 = vmatpush1.bf16.msra.mxu0 0
      %994 = vmatprep.subr.bf16.mxu0 0
      %995 = vmatpush1.bf16.msra.mxu0 0
      %996 = vmatprep.subr.bf16.mxu0 0
      %997 = vmatpush1.bf16.msra.mxu0 0
      %998 = vmatprep.subr.bf16.mxu0 0
      %999 = vmatpush1.bf16.msra.mxu0 0
      %1000 = vmatprep.subr.bf16.mxu0 0
      %1001 = vmatpush1.bf16.msra.mxu0 0
      %1002 = vmatprep.subr.bf16.mxu0 0
      %1003 = vmatpush1.bf16.msra.mxu0 0
      %1004 = vmatprep.subr.bf16.mxu0 0
      %1005 = vmatpush1.bf16.msra.mxu0 0
      %1006 = vmatprep.subr.bf16.mxu0 0
      %1007 = vmatpush1.bf16.msra.mxu0 0
      %1008 = vmatprep.subr.bf16.mxu0 0
      %1009 = vmatpush1.bf16.msra.mxu0 0
      %1010 = vmatprep.mubr.bf16.mxu0 0
      %1011 = vmatmul.mubr.bf16.gmra.mrb[0].mxu0 %v570
      %v1012 = vpop.f32.mrb[0].mxu0
      %v1013 = vadd.f32 0.0, %v1012
      %v1014 = vpop.f32.mrb[0].mxu0
      %v1015 = vadd.f32 0.0, %v1014
      %v1016 = vpop.f32.mrb[0].mxu0
      %v1017 = vadd.f32 0.0, %v1016
      %v1018 = vpop.f32.mrb[0].mxu0
      %v1019 = vadd.f32 0.0, %v1018
      %1020 = vdwg.mxu0
      %1021 = vmatprep.subr.bf16.mxu0 %v272
      %1022 = vmatpush1.bf16.msra.mxu0 %v271
      %1023 = vmatprep.subr.bf16.mxu0 %v276
      %1024 = vmatpush1.bf16.msra.mxu0 %v275
      %1025 = vmatprep.subr.bf16.mxu0 0
      %1026 = vmatpush1.bf16.msra.mxu0 0
      %1027 = vmatprep.subr.bf16.mxu0 0
      %1028 = vmatpush1.bf16.msra.mxu0 0
      %1029 = vmatprep.subr.bf16.mxu0 0
      %1030 = vmatpush1.bf16.msra.mxu0 0
      %1031 = vmatprep.subr.bf16.mxu0 0
      %1032 = vmatpush1.bf16.msra.mxu0 0
      %1033 = vmatprep.subr.bf16.mxu0 0
      %1034 = vmatpush1.bf16.msra.mxu0 0
      %1035 = vmatprep.subr.bf16.mxu0 0
      %1036 = vmatpush1.bf16.msra.mxu0 0
      %1037 = vmatprep.subr.bf16.mxu0 0
      %1038 = vmatpush1.bf16.msra.mxu0 0
      %1039 = vmatprep.subr.bf16.mxu0 0
      %1040 = vmatpush1.bf16.msra.mxu0 0
      %1041 = vmatprep.subr.bf16.mxu0 0
      %1042 = vmatpush1.bf16.msra.mxu0 0
      %1043 = vmatprep.subr.bf16.mxu0 0
      %1044 = vmatpush1.bf16.msra.mxu0 0
      %1045 = vmatprep.subr.bf16.mxu0 0
      %1046 = vmatpush1.bf16.msra.mxu0 0
      %1047 = vmatprep.subr.bf16.mxu0 0
      %1048 = vmatpush1.bf16.msra.mxu0 0
      %1049 = vmatprep.subr.bf16.mxu0 0
      %1050 = vmatpush1.bf16.msra.mxu0 0
      %1051 = vmatprep.subr.bf16.mxu0 0
      %1052 = vmatpush1.bf16.msra.mxu0 0
      %1053 = vmatprep.mubr.bf16.mxu0 0
      %1054 = vmatmul.mubr.bf16.gmra.mrb[0].mxu0 %v570
      %v1055 = vpop.f32.mrb[0].mxu0
      %v1056 = vadd.f32 0.0, %v1055
      %v1057 = vpop.f32.mrb[0].mxu0
      %v1058 = vadd.f32 0.0, %v1057
      %v1059 = vpop.f32.mrb[0].mxu0
      %v1060 = vadd.f32 0.0, %v1059
      %v1061 = vpop.f32.mrb[0].mxu0
      %v1062 = vadd.f32 0.0, %v1061
      %1063 = vdwg.mxu0
      %1064 = vmatprep.subr.bf16.mxu0 %v405
      %1065 = vmatpush1.bf16.msra.mxu0 %v404
      %1066 = vmatprep.subr.bf16.mxu0 %v409
      %1067 = vmatpush1.bf16.msra.mxu0 %v408
      %1068 = vmatprep.subr.bf16.mxu0 0
      %1069 = vmatpush1.bf16.msra.mxu0 0
      %1070 = vmatprep.subr.bf16.mxu0 0
      %1071 = vmatpush1.bf16.msra.mxu0 0
      %1072 = vmatprep.subr.bf16.mxu0 0
      %1073 = vmatpush1.bf16.msra.mxu0 0
      %1074 = vmatprep.subr.bf16.mxu0 0
      %1075 = vmatpush1.bf16.msra.mxu0 0
      %1076 = vmatprep.subr.bf16.mxu0 0
      %1077 = vmatpush1.bf16.msra.mxu0 0
      %1078 = vmatprep.subr.bf16.mxu0 0
      %1079 = vmatpush1.bf16.msra.mxu0 0
      %1080 = vmatprep.subr.bf16.mxu0 0
      %1081 = vmatpush1.bf16.msra.mxu0 0
      %1082 = vmatprep.subr.bf16.mxu0 0
      %1083 = vmatpush1.bf16.msra.mxu0 0
      %1084 = vmatprep.subr.bf16.mxu0 0
      %1085 = vmatpush1.bf16.msra.mxu0 0
      %1086 = vmatprep.subr.bf16.mxu0 0
      %1087 = vmatpush1.bf16.msra.mxu0 0
      %1088 = vmatprep.subr.bf16.mxu0 0
      %1089 = vmatpush1.bf16.msra.mxu0 0
      %1090 = vmatprep.subr.bf16.mxu0 0
      %1091 = vmatpush1.bf16.msra.mxu0 0
      %1092 = vmatprep.subr.bf16.mxu0 0
      %1093 = vmatpush1.bf16.msra.mxu0 0
      %1094 = vmatprep.subr.bf16.mxu0 0
      %1095 = vmatpush1.bf16.msra.mxu0 0
      %1096 = vmatprep.mubr.bf16.mxu0 0
      %1097 = vmatmul.mubr.bf16.gmra.mrb[0].mxu0 %v287
      %v1098 = vpop.f32.mrb[0].mxu0
      %v1099 = vadd.f32 %v1013, %v1098
      %v1100 = vpop.f32.mrb[0].mxu0
      %v1101 = vadd.f32 %v1015, %v1100
      %v1102 = vpop.f32.mrb[0].mxu0
      %v1103 = vadd.f32 %v1017, %v1102
      %v1104 = vpop.f32.mrb[0].mxu0
      %v1105 = vadd.f32 %v1019, %v1104
      %1106 = vdwg.mxu0
      %1107 = vmatprep.subr.bf16.mxu0 %v407
      %1108 = vmatpush1.bf16.msra.mxu0 %v406
      %1109 = vmatprep.subr.bf16.mxu0 %v411
      %1110 = vmatpush1.bf16.msra.mxu0 %v410
      %1111 = vmatprep.subr.bf16.mxu0 0
      %1112 = vmatpush1.bf16.msra.mxu0 0
      %1113 = vmatprep.subr.bf16.mxu0 0
      %1114 = vmatpush1.bf16.msra.mxu0 0
      %1115 = vmatprep.subr.bf16.mxu0 0
      %1116 = vmatpush1.bf16.msra.mxu0 0
      %1117 = vmatprep.subr.bf16.mxu0 0
      %1118 = vmatpush1.bf16.msra.mxu0 0
      %1119 = vmatprep.subr.bf16.mxu0 0
      %1120 = vmatpush1.bf16.msra.mxu0 0
      %1121 = vmatprep.subr.bf16.mxu0 0
      %1122 = vmatpush1.bf16.msra.mxu0 0
      %1123 = vmatprep.subr.bf16.mxu0 0
      %1124 = vmatpush1.bf16.msra.mxu0 0
      %1125 = vmatprep.subr.bf16.mxu0 0
      %1126 = vmatpush1.bf16.msra.mxu0 0
      %1127 = vmatprep.subr.bf16.mxu0 0
      %1128 = vmatpush1.bf16.msra.mxu0 0
      %1129 = vmatprep.subr.bf16.mxu0 0
      %1130 = vmatpush1.bf16.msra.mxu0 0
      %1131 = vmatprep.subr.bf16.mxu0 0
      %1132 = vmatpush1.bf16.msra.mxu0 0
      %1133 = vmatprep.subr.bf16.mxu0 0
      %1134 = vmatpush1.bf16.msra.mxu0 0
      %1135 = vmatprep.subr.bf16.mxu0 0
      %1136 = vmatpush1.bf16.msra.mxu0 0
      %1137 = vmatprep.subr.bf16.mxu0 0
      %1138 = vmatpush1.bf16.msra.mxu0 0
      %1139 = vmatprep.mubr.bf16.mxu0 0
      %1140 = vmatmul.mubr.bf16.gmra.mrb[0].mxu0 %v287
      %v1141 = vpop.f32.mrb[0].mxu0
      %v1142 = vadd.f32 %v1056, %v1141
      %v1143 = vpop.f32.mrb[0].mxu0
      %v1144 = vadd.f32 %v1058, %v1143
      %v1145 = vpop.f32.mrb[0].mxu0
      %v1146 = vadd.f32 %v1060, %v1145
      %v1147 = vpop.f32.mrb[0].mxu0
      %v1148 = vadd.f32 %v1062, %v1147
      %1149 = vdwg.mxu0
      %1150 = vmatprep.subr.bf16.mxu0 %v554
      %1151 = vmatpush1.bf16.msra.mxu0 %v553
      %1152 = vmatprep.subr.bf16.mxu0 %v558
      %1153 = vmatpush1.bf16.msra.mxu0 %v557
      %1154 = vmatprep.subr.bf16.mxu0 0
      %1155 = vmatpush1.bf16.msra.mxu0 0
      %1156 = vmatprep.subr.bf16.mxu0 0
      %1157 = vmatpush1.bf16.msra.mxu0 0
      %1158 = vmatprep.subr.bf16.mxu0 0
      %1159 = vmatpush1.bf16.msra.mxu0 0
      %1160 = vmatprep.subr.bf16.mxu0 0
      %1161 = vmatpush1.bf16.msra.mxu0 0
      %1162 = vmatprep.subr.bf16.mxu0 0
      %1163 = vmatpush1.bf16.msra.mxu0 0
      %1164 = vmatprep.subr.bf16.mxu0 0
      %1165 = vmatpush1.bf16.msra.mxu0 0
      %1166 = vmatprep.subr.bf16.mxu0 0
      %1167 = vmatpush1.bf16.msra.mxu0 0
      %1168 = vmatprep.subr.bf16.mxu0 0
      %1169 = vmatpush1.bf16.msra.mxu0 0
      %1170 = vmatprep.subr.bf16.mxu0 0
      %1171 = vmatpush1.bf16.msra.mxu0 0
      %1172 = vmatprep.subr.bf16.mxu0 0
      %1173 = vmatpush1.bf16.msra.mxu0 0
      %1174 = vmatprep.subr.bf16.mxu0 0
      %1175 = vmatpush1.bf16.msra.mxu0 0
      %1176 = vmatprep.subr.bf16.mxu0 0
      %1177 = vmatpush1.bf16.msra.mxu0 0
      %1178 = vmatprep.subr.bf16.mxu0 0
      %1179 = vmatpush1.bf16.msra.mxu0 0
      %1180 = vmatprep.subr.bf16.mxu0 0
      %1181 = vmatpush1.bf16.msra.mxu0 0
      %1182 = vmatprep.mubr.bf16.mxu0 0
      %1183 = vmatmul.mubr.bf16.gmra.mrb[0].mxu0 %v727
      %v1184 = vpop.f32.mrb[0].mxu0
      %v1185 = vadd.f32 0.0, %v1184
      %v1186 = vpop.f32.mrb[0].mxu0
      %v1187 = vadd.f32 0.0, %v1186
      %v1188 = vpop.f32.mrb[0].mxu0
      %v1189 = vadd.f32 0.0, %v1188
      %v1190 = vpop.f32.mrb[0].mxu0
      %v1191 = vadd.f32 0.0, %v1190
      %1192 = vdwg.mxu0
      %1193 = vmatprep.subr.bf16.mxu0 %v556
      %1194 = vmatpush1.bf16.msra.mxu0 %v555
      %1195 = vmatprep.subr.bf16.mxu0 %v560
      %1196 = vmatpush1.bf16.msra.mxu0 %v559
      %1197 = vmatprep.subr.bf16.mxu0 0
      %1198 = vmatpush1.bf16.msra.mxu0 0
      %1199 = vmatprep.subr.bf16.mxu0 0
      %1200 = vmatpush1.bf16.msra.mxu0 0
      %1201 = vmatprep.subr.bf16.mxu0 0
      %1202 = vmatpush1.bf16.msra.mxu0 0
      %1203 = vmatprep.subr.bf16.mxu0 0
      %1204 = vmatpush1.bf16.msra.mxu0 0
      %1205 = vmatprep.subr.bf16.mxu0 0
      %1206 = vmatpush1.bf16.msra.mxu0 0
      %1207 = vmatprep.subr.bf16.mxu0 0
      %1208 = vmatpush1.bf16.msra.mxu0 0
      %1209 = vmatprep.subr.bf16.mxu0 0
      %1210 = vmatpush1.bf16.msra.mxu0 0
      %1211 = vmatprep.subr.bf16.mxu0 0
      %1212 = vmatpush1.bf16.msra.mxu0 0
      %1213 = vmatprep.subr.bf16.mxu0 0
      %1214 = vmatpush1.bf16.msra.mxu0 0
      %1215 = vmatprep.subr.bf16.mxu0 0
      %1216 = vmatpush1.bf16.msra.mxu0 0
      %1217 = vmatprep.subr.bf16.mxu0 0
      %1218 = vmatpush1.bf16.msra.mxu0 0
      %1219 = vmatprep.subr.bf16.mxu0 0
      %1220 = vmatpush1.bf16.msra.mxu0 0
      %1221 = vmatprep.subr.bf16.mxu0 0
      %1222 = vmatpush1.bf16.msra.mxu0 0
      %1223 = vmatprep.subr.bf16.mxu0 0
      %1224 = vmatpush1.bf16.msra.mxu0 0
      %1225 = vmatprep.mubr.bf16.mxu0 0
      %1226 = vmatmul.mubr.bf16.gmra.mrb[0].mxu0 %v727
      %v1227 = vpop.f32.mrb[0].mxu0
      %v1228 = vadd.f32 0.0, %v1227
      %v1229 = vpop.f32.mrb[0].mxu0
      %v1230 = vadd.f32 0.0, %v1229
      %v1231 = vpop.f32.mrb[0].mxu0
      %v1232 = vadd.f32 0.0, %v1231
      %v1233 = vpop.f32.mrb[0].mxu0
      %v1234 = vadd.f32 0.0, %v1233
      %1235 = vdwg.mxu0
      %v1236 = vadd.f32 %v1099, %v1185
      %v1237 = vadd.f32 %v1101, %v1187
      %v1238 = vadd.f32 %v1142, %v1228
      %v1239 = vadd.f32 %v1144, %v1230
      %v1240 = vadd.f32 %v1103, %v1189
      %v1241 = vadd.f32 %v1105, %v1191
      %v1242 = vadd.f32 %v1146, %v1232
      %v1243 = vadd.f32 %v1148, %v1234
      %1244 = vmatprep.subr.bf16.mxu0 %v711
      %1245 = vmatpush1.bf16.msra.mxu0 %v710
      %1246 = vmatprep.subr.bf16.mxu0 %v715
      %1247 = vmatpush1.bf16.msra.mxu0 %v714
      %1248 = vmatprep.subr.bf16.mxu0 0
      %1249 = vmatpush1.bf16.msra.mxu0 0
      %1250 = vmatprep.subr.bf16.mxu0 0
      %1251 = vmatpush1.bf16.msra.mxu0 0
      %1252 = vmatprep.subr.bf16.mxu0 0
      %1253 = vmatpush1.bf16.msra.mxu0 0
      %1254 = vmatprep.subr.bf16.mxu0 0
      %1255 = vmatpush1.bf16.msra.mxu0 0
      %1256 = vmatprep.subr.bf16.mxu0 0
      %1257 = vmatpush1.bf16.msra.mxu0 0
      %1258 = vmatprep.subr.bf16.mxu0 0
      %1259 = vmatpush1.bf16.msra.mxu0 0
      %1260 = vmatprep.subr.bf16.mxu0 0
      %1261 = vmatpush1.bf16.msra.mxu0 0
      %1262 = vmatprep.subr.bf16.mxu0 0
      %1263 = vmatpush1.bf16.msra.mxu0 0
      %1264 = vmatprep.subr.bf16.mxu0 0
      %1265 = vmatpush1.bf16.msra.mxu0 0
      %1266 = vmatprep.subr.bf16.mxu0 0
      %1267 = vmatpush1.bf16.msra.mxu0 0
      %1268 = vmatprep.subr.bf16.mxu0 0
      %1269 = vmatpush1.bf16.msra.mxu0 0
      %1270 = vmatprep.subr.bf16.mxu0 0
      %1271 = vmatpush1.bf16.msra.mxu0 0
      %1272 = vmatprep.subr.bf16.mxu0 0
      %1273 = vmatpush1.bf16.msra.mxu0 0
      %1274 = vmatprep.subr.bf16.mxu0 0
      %1275 = vmatpush1.bf16.msra.mxu0 0
      %1276 = vmatprep.mubr.bf16.mxu0 0
      %1277 = vmatmul.mubr.bf16.gmra.mrb[0].mxu0 %v878
      %v1278 = vpop.f32.mrb[0].mxu0
      %v1279 = vadd.f32 0.0, %v1278
      %v1280 = vpop.f32.mrb[0].mxu0
      %v1281 = vadd.f32 0.0, %v1280
      %v1282 = vpop.f32.mrb[0].mxu0
      %v1283 = vadd.f32 0.0, %v1282
      %v1284 = vpop.f32.mrb[0].mxu0
      %v1285 = vadd.f32 0.0, %v1284
      %1286 = vdwg.mxu0
      %1287 = vmatprep.subr.bf16.mxu0 %v713
      %1288 = vmatpush1.bf16.msra.mxu0 %v712
      %1289 = vmatprep.subr.bf16.mxu0 %v717
      %1290 = vmatpush1.bf16.msra.mxu0 %v716
      %1291 = vmatprep.subr.bf16.mxu0 0
      %1292 = vmatpush1.bf16.msra.mxu0 0
      %1293 = vmatprep.subr.bf16.mxu0 0
      %1294 = vmatpush1.bf16.msra.mxu0 0
      %1295 = vmatprep.subr.bf16.mxu0 0
      %1296 = vmatpush1.bf16.msra.mxu0 0
      %1297 = vmatprep.subr.bf16.mxu0 0
      %1298 = vmatpush1.bf16.msra.mxu0 0
      %1299 = vmatprep.subr.bf16.mxu0 0
      %1300 = vmatpush1.bf16.msra.mxu0 0
      %1301 = vmatprep.subr.bf16.mxu0 0
      %1302 = vmatpush1.bf16.msra.mxu0 0
      %1303 = vmatprep.subr.bf16.mxu0 0
      %1304 = vmatpush1.bf16.msra.mxu0 0
      %1305 = vmatprep.subr.bf16.mxu0 0
      %1306 = vmatpush1.bf16.msra.mxu0 0
      %1307 = vmatprep.subr.bf16.mxu0 0
      %1308 = vmatpush1.bf16.msra.mxu0 0
      %1309 = vmatprep.subr.bf16.mxu0 0
      %1310 = vmatpush1.bf16.msra.mxu0 0
      %1311 = vmatprep.subr.bf16.mxu0 0
      %1312 = vmatpush1.bf16.msra.mxu0 0
      %1313 = vmatprep.subr.bf16.mxu0 0
      %1314 = vmatpush1.bf16.msra.mxu0 0
      %1315 = vmatprep.subr.bf16.mxu0 0
      %1316 = vmatpush1.bf16.msra.mxu0 0
      %1317 = vmatprep.subr.bf16.mxu0 0
      %1318 = vmatpush1.bf16.msra.mxu0 0
      %1319 = vmatprep.mubr.bf16.mxu0 0
      %1320 = vmatmul.mubr.bf16.gmra.mrb[0].mxu0 %v878
      %v1321 = vpop.f32.mrb[0].mxu0
      %v1322 = vadd.f32 0.0, %v1321
      %v1323 = vpop.f32.mrb[0].mxu0
      %v1324 = vadd.f32 0.0, %v1323
      %v1325 = vpop.f32.mrb[0].mxu0
      %v1326 = vadd.f32 0.0, %v1325
      %v1327 = vpop.f32.mrb[0].mxu0
      %v1328 = vadd.f32 0.0, %v1327
      %1329 = vdwg.mxu0
      %v1330 = vadd.f32 %v1236, %v1279
      %v1331 = vadd.f32 %v1237, %v1281
      %v1332 = vadd.f32 %v1238, %v1322
      %v1333 = vadd.f32 %v1239, %v1324
      %v1334 = vadd.f32 %v1240, %v1283
      %v1335 = vadd.f32 %v1241, %v1285
      %v1336 = vadd.f32 %v1242, %v1326
      %v1337 = vadd.f32 %v1243, %v1328
      %v1338 = vld [vmem:[%s212] sm:$0xe]
      %v1340 = vunpack.c.l.b16 %v1338
      %v1341 = vpack.c.b16 %v677, %v1340
      %v1342 = vrot.slane %v1341, 1
      %v1344 = vsel %vm285, %v1342, 0
      %1346 = vmatprep.subr.bf16.mxu0 %v862
      %1347 = vmatpush1.bf16.msra.mxu0 %v861
      %1348 = vmatprep.subr.bf16.mxu0 %v866
      %1349 = vmatpush1.bf16.msra.mxu0 %v865
      %1350 = vmatprep.subr.bf16.mxu0 0
      %1351 = vmatpush1.bf16.msra.mxu0 0
      %1352 = vmatprep.subr.bf16.mxu0 0
      %1353 = vmatpush1.bf16.msra.mxu0 0
      %1354 = vmatprep.subr.bf16.mxu0 0
      %1355 = vmatpush1.bf16.msra.mxu0 0
      %1356 = vmatprep.subr.bf16.mxu0 0
      %1357 = vmatpush1.bf16.msra.mxu0 0
      %1358 = vmatprep.subr.bf16.mxu0 0
      %1359 = vmatpush1.bf16.msra.mxu0 0
      %1360 = vmatprep.subr.bf16.mxu0 0
      %1361 = vmatpush1.bf16.msra.mxu0 0
      %1362 = vmatprep.subr.bf16.mxu0 0
      %1363 = vmatpush1.bf16.msra.mxu0 0
      %1364 = vmatprep.subr.bf16.mxu0 0
      %1365 = vmatpush1.bf16.msra.mxu0 0
      %1366 = vmatprep.subr.bf16.mxu0 0
      %1367 = vmatpush1.bf16.msra.mxu0 0
      %1368 = vmatprep.subr.bf16.mxu0 0
      %1369 = vmatpush1.bf16.msra.mxu0 0
      %1370 = vmatprep.subr.bf16.mxu0 0
      %1371 = vmatpush1.bf16.msra.mxu0 0
      %1372 = vmatprep.subr.bf16.mxu0 0
      %1373 = vmatpush1.bf16.msra.mxu0 0
      %1374 = vmatprep.subr.bf16.mxu0 0
      %1375 = vmatpush1.bf16.msra.mxu0 0
      %1376 = vmatprep.subr.bf16.mxu0 0
      %1377 = vmatpush1.bf16.msra.mxu0 0
      %1378 = vmatprep.mubr.bf16.mxu0 0
      %1379 = vmatmul.mubr.bf16.gmra.mrb[0].mxu0 %v1344
      %v1380 = vpop.f32.mrb[0].mxu0
      %v1381 = vadd.f32 0.0, %v1380
      %v1382 = vpop.f32.mrb[0].mxu0
      %v1383 = vadd.f32 0.0, %v1382
      %v1384 = vpop.f32.mrb[0].mxu0
      %v1385 = vadd.f32 0.0, %v1384
      %v1386 = vpop.f32.mrb[0].mxu0
      %v1387 = vadd.f32 0.0, %v1386
      %1388 = vdwg.mxu0
      %1389 = vmatprep.subr.bf16.mxu0 %v864
      %1390 = vmatpush1.bf16.msra.mxu0 %v863
      %1391 = vmatprep.subr.bf16.mxu0 %v868
      %1392 = vmatpush1.bf16.msra.mxu0 %v867
      %1393 = vmatprep.subr.bf16.mxu0 0
      %1394 = vmatpush1.bf16.msra.mxu0 0
      %1395 = vmatprep.subr.bf16.mxu0 0
      %1396 = vmatpush1.bf16.msra.mxu0 0
      %1397 = vmatprep.subr.bf16.mxu0 0
      %1398 = vmatpush1.bf16.msra.mxu0 0
      %1399 = vmatprep.subr.bf16.mxu0 0
      %1400 = vmatpush1.bf16.msra.mxu0 0
      %1401 = vmatprep.subr.bf16.mxu0 0
      %1402 = vmatpush1.bf16.msra.mxu0 0
      %1403 = vmatprep.subr.bf16.mxu0 0
      %1404 = vmatpush1.bf16.msra.mxu0 0
      %1405 = vmatprep.subr.bf16.mxu0 0
      %1406 = vmatpush1.bf16.msra.mxu0 0
      %1407 = vmatprep.subr.bf16.mxu0 0
      %1408 = vmatpush1.bf16.msra.mxu0 0
      %1409 = vmatprep.subr.bf16.mxu0 0
      %1410 = vmatpush1.bf16.msra.mxu0 0
      %1411 = vmatprep.subr.bf16.mxu0 0
      %1412 = vmatpush1.bf16.msra.mxu0 0
      %1413 = vmatprep.subr.bf16.mxu0 0
      %1414 = vmatpush1.bf16.msra.mxu0 0
      %1415 = vmatprep.subr.bf16.mxu0 0
      %1416 = vmatpush1.bf16.msra.mxu0 0
      %1417 = vmatprep.subr.bf16.mxu0 0
      %1418 = vmatpush1.bf16.msra.mxu0 0
      %1419 = vmatprep.subr.bf16.mxu0 0
      %1420 = vmatpush1.bf16.msra.mxu0 0
      %1421 = vmatprep.mubr.bf16.mxu0 0
      %1422 = vmatmul.mubr.bf16.gmra.mrb[0].mxu0 %v1344
      %v1423 = vpop.f32.mrb[0].mxu0
      %v1424 = vadd.f32 0.0, %v1423
      %v1425 = vpop.f32.mrb[0].mxu0
      %v1426 = vadd.f32 0.0, %v1425
      %v1427 = vpop.f32.mrb[0].mxu0
      %v1428 = vadd.f32 0.0, %v1427
      %v1429 = vpop.f32.mrb[0].mxu0
      %v1430 = vadd.f32 0.0, %v1429
      %1431 = vdwg.mxu0
      %v1432 = vadd.f32 %v1330, %v1381
      %v1433 = vadd.f32 %v1331, %v1383
      %v1434 = vadd.f32 %v1332, %v1424
      %v1435 = vadd.f32 %v1333, %v1426
      %v1436 = vadd.f32 %v1334, %v1385
      %v1437 = vadd.f32 %v1335, %v1387
      %v1438 = vadd.f32 %v1336, %v1428
      %v1439 = vadd.f32 %v1337, %v1430
      %v1440 = vmax.f32 %v1432, %v1434
      %v1441 = vmax.f32 %v1433, %v1435
      %v1442 = vmax.f32 %v1436, %v1438
      %v1443 = vmax.f32 %v1437, %v1439
      %v1444 = vmax.f32 %v974, %v1440
      %v1445 = vmax.f32 %v975, %v1441
      %v1446 = vmax.f32 %v976, %v1442
      %v1447 = vmax.f32 %v977, %v1443
      %v1448 = vld [vmem:[%s3] sm:$0x3]
      %v1450 = vlaneseq
      %v1451 = vshrl.u32 %v1450, 7
      %v1452 = vsub.s32 0, %v1451
      %v1453 = vrot.slane %v1448, %v1452
      %v1454 = vlaneseq
      %v1455 = vshrl.u32 %v1454, 7
      %v1456 = vsub.s32 1, %v1455
      %v1457 = vrot.slane %v1448, %v1456
      %v1460 = vadd.f32 %v1444, %v1453
      %v1461 = vadd.f32 %v1445, %v1457
      %v1462 = vadd.f32 %v1446, %v1453
      %v1463 = vadd.f32 %v1447, %v1457
      %v1464 = vmax.f32 %v1460, 0.0
      %v1465 = vmax.f32 %v1461, 0.0
      %v1466 = vmax.f32 %v1462, 0.0
      %v1467 = vmax.f32 %v1463, 0.0
      %v1468 = vpack.c.bf16 %v1466, %v1464
      %v1469 = vpack.c.bf16 %v1467, %v1465
      %v1472 = vunpack.c.l.b16 %v1468
      %v1473 = vunpack.c.l.b16 %v1469
      %v1474 = vunpack.c.h.b16 %v1468
      %v1475 = vunpack.c.h.b16 %v1469
      %v1476 = vpack.c.b16 %v1473, %v1472
      %v1477 = vpack.c.b16 %v1475, %v1474
      %1480 = vst [vmem:[%s217] sm:$0xff] %v1476
      %1481 = vst [vmem:[%s217 + $0x8] sm:$0x77] %v1477
      %p1482 = scmp.lt.s32.totalorder %s15, 1
      %s1483 = scalar_select %p1482, %s15, 1
      %s1484 = smul.addr %s1483, 4
      %s1485 = smul.addr %s1484, 4
      %s1486 = scalar_lea.vmem %s4, %s1485
      // Predicated region
      $region37: #{cnn_forward.3} parent=35 // pred_check
        %p1487 = pneg %p127
      $region38: #{cnn_forward.3} parent=35 // pred_check_branch
        %1489 = sbr.rel (%p1487) target = $region40
      $region39: #{cnn_forward.3} parent=35 // pred_region
        _
      $region40: #{cnn_forward.3} parent=35 // pred_fallthru
        _
    $region36: #{cnn_forward.3} parent=5 // pred_fallthru
      _
    %p1490 = scmp.le.s32.totalorder 2, %s10
    // Predicated region
    $region41: #{cnn_forward.3} parent=5 // pred_check
      %p1491 = pneg %p1490
    $region42: #{cnn_forward.3} parent=5 // pred_check_branch
      %1493 = sbr.rel (%p1491) target = $region44
    $region43: #{cnn_forward.3} parent=5 // pred_region
      %s1494 = ssub.s32 %s10, 2
      // Predicated region
      $region45: #{cnn_forward.3} parent=43 // pred_check
        %p1495 = pneg %p133
      $region46: #{cnn_forward.3} parent=43 // pred_check_branch
        %1497 = sbr.rel (%p1495) target = $region48
      $region47: #{cnn_forward.3} parent=43 // pred_region
        %p1498 = scmp.lt.s32.totalorder %s16, 1
        %s1499 = scalar_select %p1498, %s16, 1
        %s1500 = smul.addr %s1499, 4
        %s1501 = smul.addr %s1500, 4
        %s1502 = scalar_lea.vmem %s4, %s1501
      $region48: #{cnn_forward.3} parent=43 // pred_fallthru
        _
    $region44: #{cnn_forward.3} parent=5 // pred_fallthru
      _
  $region6: #{cnn_forward.3} parent=0 // loop_footer
    %s14 = sadd.s32 1, %s10
  $region7: #{cnn_forward.3} parent=0 // loop_footer_branch
    %9 = sbr.rel target = $region3
  $region8: #{cnn_forward.3} parent=0 // loop_exit
    _

// kernel: cnn_forward.5
$region0: #{cnn_forward.5}
  #allocation0 [shape = 'u32[]', space=smem, size = 0x4, offset = 0x4, fixed_abs, tag = 'smem constant byte address 0x4 - core index']
  #allocation1 [shape = 'u32[144,128]{1,0:T(1,128)}', space=vmem, size = 0x12000, scoped, tag = 'internal scratch']
  %s0 = inlined_call_operand.vmem [shape: bf16[2,1568], index: 0, kind: input, shape index: {}]
  %s1 = inlined_call_operand.vmem [shape: bf16[1568,128], index: 1, kind: input, shape index: {}]
  %s2 = inlined_call_operand.vmem [shape: f32[1,128], index: 2, kind: input, shape index: {}]
  %s3 = inlined_call_operand.hbm [shape: f32[2,128], index: 3, kind: output, shape index: {}]
  %s4 = sld [smem:[#allocation0]]
  $region22: #{cnn_forward.5} parent=0
    _
  %s6 = ssub.s32 1, %s4
  %s7 = scalar_select 0, %s6, %s4
  $region1: #{cnn_forward.5} parent=0
    #allocation2 [shape = 'u8[1024]{0}', space=vmem, size = 0x400, scoped, tag = 'output window, operand 0, single buffered']
    #allocation3 [shape = 's32[1]{0}', space=sflag, size = 0x4, scoped, tag = 'scoped memory for cnn_forward.5']
    %8 = vsyncpa [#allocation3], 0
    // Predicated region
    $region2: #{cnn_forward.5} parent=1 // pred_check
      _
    $region3: #{cnn_forward.5} parent=1 // pred_check_branch
      %10 = sbr.rel (0) target = $region5
    $region4: #{cnn_forward.5} parent=1 // pred_region
      _
    $region5: #{cnn_forward.5} parent=1 // pred_fallthru
      _
    // Predicated region
    $region6: #{cnn_forward.5} parent=1 // pred_check
      _
    $region7: #{cnn_forward.5} parent=1 // pred_check_branch
      %12 = sbr.rel (0) target = $region9
    $region8: #{cnn_forward.5} parent=1 // pred_region
      _
    $region9: #{cnn_forward.5} parent=1 // pred_fallthru
      _
    // Predicated region
    $region10: #{cnn_forward.5} parent=1 // pred_check
      _
    $region11: #{cnn_forward.5} parent=1 // pred_check_branch
      %14 = sbr.rel (0) target = $region13
    $region12: #{cnn_forward.5} parent=1 // pred_region
      _
    $region13: #{cnn_forward.5} parent=1 // pred_fallthru
      _
    %v16 = vld [vmem:[%s0] sm:$0xff]
    %v17 = vld [vmem:[%s0 + $0x8] sm:$0x1f]
    %v18 = vld [vmem:[%s1] sm:$0xf]
    %v19 = vld [vmem:[%s1 + $0x4] sm:$0xf]
    %v20 = vld [vmem:[%s1 + $0x8] sm:$0xf]
    %v21 = vld [vmem:[%s1 + $0xc] sm:$0xf]
    %v22 = vld [vmem:[%s1 + $0x10] sm:$0xf]
    %v23 = vld [vmem:[%s1 + $0x14] sm:$0xf]
    %v24 = vld [vmem:[%s1 + $0x18] sm:$0xf]
    %v25 = vld [vmem:[%s1 + $0x1c] sm:$0xf]
    %v26 = vld [vmem:[%s1 + $0x20] sm:$0xf]
    %v27 = vld [vmem:[%s1 + $0x24] sm:$0xf]
    %v28 = vld [vmem:[%s1 + $0x28] sm:$0xf]
    %v29 = vld [vmem:[%s1 + $0x2c] sm:$0xf]
    %v30 = vld [vmem:[%s1 + $0x30] sm:$0xf]
    %v31 = vld [vmem:[%s1 + $0x34] sm:$0xf]
    %v32 = vld [vmem:[%s1 + $0x38] sm:$0xf]
    %v33 = vld [vmem:[%s1 + $0x3c] sm:$0xf]
    %v34 = vld [vmem:[%s1 + $0x40] sm:$0xf]
    %v35 = vld [vmem:[%s1 + $0x44] sm:$0xf]
    %v36 = vld [vmem:[%s1 + $0x48] sm:$0xf]
    %v37 = vld [vmem:[%s1 + $0x4c] sm:$0xf]
    %v38 = vld [vmem:[%s1 + $0x50] sm:$0xf]
    %v39 = vld [vmem:[%s1 + $0x54] sm:$0xf]
    %v40 = vld [vmem:[%s1 + $0x58] sm:$0xf]
    %v41 = vld [vmem:[%s1 + $0x5c] sm:$0xf]
    %v42 = vld [vmem:[%s1 + $0x60] sm:$0xf]
    %v43 = vld [vmem:[%s1 + $0x64] sm:$0xf]
    %v44 = vld [vmem:[%s1 + $0x68] sm:$0xf]
    %v45 = vld [vmem:[%s1 + $0x6c] sm:$0xf]
    %v46 = vld [vmem:[%s1 + $0x70] sm:$0xf]
    %v47 = vld [vmem:[%s1 + $0x74] sm:$0xf]
    %v48 = vld [vmem:[%s1 + $0x78] sm:$0xf]
    %v49 = vld [vmem:[%s1 + $0x7c] sm:$0xf]
    %v50 = vld [vmem:[%s1 + $0x80] sm:$0xf]
    %v51 = vld [vmem:[%s1 + $0x84] sm:$0xf]
    %v52 = vld [vmem:[%s1 + $0x88] sm:$0xf]
    %v53 = vld [vmem:[%s1 + $0x8c] sm:$0xf]
    %v54 = vld [vmem:[%s1 + $0x90] sm:$0xf]
    %v55 = vld [vmem:[%s1 + $0x94] sm:$0xf]
    %v56 = vld [vmem:[%s1 + $0x98] sm:$0xf]
    %v57 = vld [vmem:[%s1 + $0x9c] sm:$0xf]
    %v58 = vld [vmem:[%s1 + $0xa0] sm:$0xf]
    %v59 = vld [vmem:[%s1 + $0xa4] sm:$0xf]
    %v60 = vld [vmem:[%s1 + $0xa8] sm:$0xf]
    %v61 = vld [vmem:[%s1 + $0xac] sm:$0xf]
    %v62 = vld [vmem:[%s1 + $0xb0] sm:$0xf]
    %v63 = vld [vmem:[%s1 + $0xb4] sm:$0xf]
    %v64 = vld [vmem:[%s1 + $0xb8] sm:$0xf]
    %v65 = vld [vmem:[%s1 + $0xbc] sm:$0xf]
    %v66 = vld [vmem:[%s1 + $0xc0] sm:$0xf]
    %v67 = vld [vmem:[%s1 + $0xc4] sm:$0xf]
    %v68 = vld [vmem:[%s1 + $0xc8] sm:$0xf]
    %v69 = vld [vmem:[%s1 + $0xcc] sm:$0xf]
    %v70 = vld [vmem:[%s1 + $0xd0] sm:$0xf]
    %v71 = vld [vmem:[%s1 + $0xd4] sm:$0xf]
    %v72 = vld [vmem:[%s1 + $0xd8] sm:$0xf]
    %v73 = vld [vmem:[%s1 + $0xdc] sm:$0xf]
    %v74 = vld [vmem:[%s1 + $0xe0] sm:$0xf]
    %v75 = vld [vmem:[%s1 + $0xe4] sm:$0xf]
    %v76 = vld [vmem:[%s1 + $0xe8] sm:$0xf]
    %v77 = vld [vmem:[%s1 + $0xec] sm:$0xf]
    %v78 = vld [vmem:[%s1 + $0xf0] sm:$0xf]
    %v79 = vld [vmem:[%s1 + $0xf4] sm:$0xf]
    %v80 = vld [vmem:[%s1 + $0xf8] sm:$0xf]
    %v81 = vld [vmem:[%s1 + $0xfc] sm:$0xf]
    %v82 = vld [vmem:[%s1 + $0x100] sm:$0xf]
    %v83 = vld [vmem:[%s1 + $0x104] sm:$0xf]
    %v84 = vld [vmem:[%s1 + $0x108] sm:$0xf]
    %v85 = vld [vmem:[%s1 + $0x10c] sm:$0xf]
    %v86 = vld [vmem:[%s1 + $0x110] sm:$0xf]
    %v87 = vld [vmem:[%s1 + $0x114] sm:$0xf]
    %v88 = vld [vmem:[%s1 + $0x118] sm:$0xf]
    %v89 = vld [vmem:[%s1 + $0x11c] sm:$0xf]
    %v90 = vld [vmem:[%s1 + $0x120] sm:$0xf]
    %v91 = vld [vmem:[%s1 + $0x124] sm:$0xf]
    %v92 = vld [vmem:[%s1 + $0x128] sm:$0xf]
    %v93 = vld [vmem:[%s1 + $0x12c] sm:$0xf]
    %v94 = vld [vmem:[%s1 + $0x130] sm:$0xf]
    %v95 = vld [vmem:[%s1 + $0x134] sm:$0xf]
    %v96 = vld [vmem:[%s1 + $0x138] sm:$0xf]
    %v97 = vld [vmem:[%s1 + $0x13c] sm:$0xf]
    %v98 = vld [vmem:[%s1 + $0x140] sm:$0xf]
    %v99 = vld [vmem:[%s1 + $0x144] sm:$0xf]
    %v100 = vld [vmem:[%s1 + $0x148] sm:$0xf]
    %v101 = vld [vmem:[%s1 + $0x14c] sm:$0xf]
    %v102 = vld [vmem:[%s1 + $0x150] sm:$0xf]
    %v103 = vld [vmem:[%s1 + $0x154] sm:$0xf]
    %v104 = vld [vmem:[%s1 + $0x158] sm:$0xf]
    %v105 = vld [vmem:[%s1 + $0x15c] sm:$0xf]
    %v106 = vld [vmem:[%s1 + $0x160] sm:$0xf]
    %v107 = vld [vmem:[%s1 + $0x164] sm:$0xf]
    %v108 = vld [vmem:[%s1 + $0x168] sm:$0xf]
    %v109 = vld [vmem:[%s1 + $0x16c] sm:$0xf]
    %v110 = vld [vmem:[%s1 + $0x170] sm:$0xf]
    %v111 = vld [vmem:[%s1 + $0x174] sm:$0xf]
    %v112 = vld [vmem:[%s1 + $0x178] sm:$0xf]
    %v113 = vld [vmem:[%s1 + $0x17c] sm:$0xf]
    %v114 = vld [vmem:[%s1 + $0x180] sm:$0xf]
    %v115 = vld [vmem:[%s1 + $0x184] sm:$0xf]
    %v116 = vld [vmem:[%s1 + $0x188] sm:$0xf]
    %v117 = vld [vmem:[%s1 + $0x18c] sm:$0xf]
    %v118 = vld [vmem:[%s1 + $0x190] sm:$0xf]
    %v119 = vld [vmem:[%s1 + $0x194] sm:$0xf]
    %v120 = vld [vmem:[%s1 + $0x198] sm:$0xf]
    %v121 = vld [vmem:[%s1 + $0x19c] sm:$0xf]
    %v122 = vld [vmem:[%s1 + $0x1a0] sm:$0xf]
    %v123 = vld [vmem:[%s1 + $0x1a4] sm:$0xf]
    %v124 = vld [vmem:[%s1 + $0x1a8] sm:$0xf]
    %v125 = vld [vmem:[%s1 + $0x1ac] sm:$0xf]
    %v126 = vld [vmem:[%s1 + $0x1b0] sm:$0xf]
    %v127 = vld [vmem:[%s1 + $0x1b4] sm:$0xf]
    %v128 = vld [vmem:[%s1 + $0x1b8] sm:$0xf]
    %v129 = vld [vmem:[%s1 + $0x1bc] sm:$0xf]
    %v130 = vld [vmem:[%s1 + $0x1c0] sm:$0xf]
    %v131 = vld [vmem:[%s1 + $0x1c4] sm:$0xf]
    %v132 = vld [vmem:[%s1 + $0x1c8] sm:$0xf]
    %v133 = vld [vmem:[%s1 + $0x1cc] sm:$0xf]
    %v134 = vld [vmem:[%s1 + $0x1d0] sm:$0xf]
    %v135 = vld [vmem:[%s1 + $0x1d4] sm:$0xf]
    %v136 = vld [vmem:[%s1 + $0x1d8] sm:$0xf]
    %v137 = vld [vmem:[%s1 + $0x1dc] sm:$0xf]
    %v138 = vld [vmem:[%s1 + $0x1e0] sm:$0xf]
    %v139 = vld [vmem:[%s1 + $0x1e4] sm:$0xf]
    %v140 = vld [vmem:[%s1 + $0x1e8] sm:$0xf]
    %v141 = vld [vmem:[%s1 + $0x1ec] sm:$0xf]
    %v142 = vld [vmem:[%s1 + $0x1f0] sm:$0xf]
    %v143 = vld [vmem:[%s1 + $0x1f4] sm:$0xf]
    %v144 = vld [vmem:[%s1 + $0x1f8] sm:$0xf]
    %v145 = vld [vmem:[%s1 + $0x1fc] sm:$0xf]
    %v146 = vld [vmem:[%s1 + $0x200] sm:$0xf]
    %v147 = vld [vmem:[%s1 + $0x204] sm:$0xf]
    %v148 = vld [vmem:[%s1 + $0x208] sm:$0xf]
    %v149 = vld [vmem:[%s1 + $0x20c] sm:$0xf]
    %v150 = vld [vmem:[%s1 + $0x210] sm:$0xf]
    %v151 = vld [vmem:[%s1 + $0x214] sm:$0xf]
    %v152 = vld [vmem:[%s1 + $0x218] sm:$0xf]
    %v153 = vld [vmem:[%s1 + $0x21c] sm:$0xf]
    %v154 = vld [vmem:[%s1 + $0x220] sm:$0xf]
    %v155 = vld [vmem:[%s1 + $0x224] sm:$0xf]
    %v156 = vld [vmem:[%s1 + $0x228] sm:$0xf]
    %v157 = vld [vmem:[%s1 + $0x22c] sm:$0xf]
    %v158 = vld [vmem:[%s1 + $0x230] sm:$0xf]
    %v159 = vld [vmem:[%s1 + $0x234] sm:$0xf]
    %v160 = vld [vmem:[%s1 + $0x238] sm:$0xf]
    %v161 = vld [vmem:[%s1 + $0x23c] sm:$0xf]
    %v162 = vld [vmem:[%s1 + $0x240] sm:$0xf]
    %v163 = vld [vmem:[%s1 + $0x244] sm:$0xf]
    %v164 = vld [vmem:[%s1 + $0x248] sm:$0xf]
    %v165 = vld [vmem:[%s1 + $0x24c] sm:$0xf]
    %v166 = vld [vmem:[%s1 + $0x250] sm:$0xf]
    %v167 = vld [vmem:[%s1 + $0x254] sm:$0xf]
    %v168 = vld [vmem:[%s1 + $0x258] sm:$0xf]
    %v169 = vld [vmem:[%s1 + $0x25c] sm:$0xf]
    %v170 = vld [vmem:[%s1 + $0x260] sm:$0xf]
    %v171 = vld [vmem:[%s1 + $0x264] sm:$0xf]
    %v172 = vld [vmem:[%s1 + $0x268] sm:$0xf]
    %v173 = vld [vmem:[%s1 + $0x26c] sm:$0xf]
    %v174 = vld [vmem:[%s1 + $0x270] sm:$0xf]
    %v175 = vld [vmem:[%s1 + $0x274] sm:$0xf]
    %v176 = vld [vmem:[%s1 + $0x278] sm:$0xf]
    %v177 = vld [vmem:[%s1 + $0x27c] sm:$0xf]
    %v178 = vld [vmem:[%s1 + $0x280] sm:$0xf]
    %v179 = vld [vmem:[%s1 + $0x284] sm:$0xf]
    %v180 = vld [vmem:[%s1 + $0x288] sm:$0xf]
    %v181 = vld [vmem:[%s1 + $0x28c] sm:$0xf]
    %v182 = vld [vmem:[%s1 + $0x290] sm:$0xf]
    %v183 = vld [vmem:[%s1 + $0x294] sm:$0xf]
    %v184 = vld [vmem:[%s1 + $0x298] sm:$0xf]
    %v185 = vld [vmem:[%s1 + $0x29c] sm:$0xf]
    %v186 = vld [vmem:[%s1 + $0x2a0] sm:$0xf]
    %v187 = vld [vmem:[%s1 + $0x2a4] sm:$0xf]
    %v188 = vld [vmem:[%s1 + $0x2a8] sm:$0xf]
    %v189 = vld [vmem:[%s1 + $0x2ac] sm:$0xf]
    %v190 = vld [vmem:[%s1 + $0x2b0] sm:$0xf]
    %v191 = vld [vmem:[%s1 + $0x2b4] sm:$0xf]
    %v192 = vld [vmem:[%s1 + $0x2b8] sm:$0xf]
    %v193 = vld [vmem:[%s1 + $0x2bc] sm:$0xf]
    %v194 = vld [vmem:[%s1 + $0x2c0] sm:$0xf]
    %v195 = vld [vmem:[%s1 + $0x2c4] sm:$0xf]
    %v196 = vld [vmem:[%s1 + $0x2c8] sm:$0xf]
    %v197 = vld [vmem:[%s1 + $0x2cc] sm:$0xf]
    %v198 = vld [vmem:[%s1 + $0x2d0] sm:$0xf]
    %v199 = vld [vmem:[%s1 + $0x2d4] sm:$0xf]
    %v200 = vld [vmem:[%s1 + $0x2d8] sm:$0xf]
    %v201 = vld [vmem:[%s1 + $0x2dc] sm:$0xf]
    %v202 = vld [vmem:[%s1 + $0x2e0] sm:$0xf]
    %v203 = vld [vmem:[%s1 + $0x2e4] sm:$0xf]
    %v204 = vld [vmem:[%s1 + $0x2e8] sm:$0xf]
    %v205 = vld [vmem:[%s1 + $0x2ec] sm:$0xf]
    %v206 = vld [vmem:[%s1 + $0x2f0] sm:$0xf]
    %v207 = vld [vmem:[%s1 + $0x2f4] sm:$0xf]
    %v208 = vld [vmem:[%s1 + $0x2f8] sm:$0xf]
    %v209 = vld [vmem:[%s1 + $0x2fc] sm:$0xf]
    %v210 = vld [vmem:[%s1 + $0x300] sm:$0xf]
    %v211 = vld [vmem:[%s1 + $0x304] sm:$0xf]
    %v212 = vld [vmem:[%s1 + $0x308] sm:$0xf]
    %v213 = vld [vmem:[%s1 + $0x30c] sm:$0xf]
    %v214 = vld [vmem:[%s2] sm:$0x1]
    %v216 = vlaneseq
    %v217 = vshrl.u32 %v216, 7
    %v218 = vsub.s32 0, %v217
    %v219 = vrot.slane %v214, %v218
    %v223 = vcombine.high %v16, %v16
    %v225 = vunpack.c.l.s4 1966171168
    %v226 = vunpack.c.0.s8 %v225
    %v227 = vlaneseq
    %v228 = vshrl.u32 %v227, 7
    %v229 = vsub.s32 %v226, %v228
    %v230 = vrot.slane %v16, %v229
    %v232 = vunpack.c.l.s4 1966171168
    %v233 = vunpack.c.0.s8 %v232
    %v234 = vlaneseq
    %v235 = vshrl.u32 %v234, 7
    %v236 = vsub.s32 %v233, %v235
    %v237 = vrot.slane %v223, %v236
    %v238 = vcombine.high %v230, %v230
    %v239 = vcombine.high %v237, %v237
    %v241 = vunpack.c.l.s4 1966171168
    %v242 = vunpack.c.0.s8 %v241
    %v243 = vlaneseq
    %v244 = vshrl.u32 %v243, 7
    %v245 = vsub.s32 %v242, %v244
    %v246 = vrot.slane %v230, %v245
    %v248 = vunpack.c.l.s4 1966171168
    %v249 = vunpack.c.0.s8 %v248
    %v250 = vlaneseq
    %v251 = vshrl.u32 %v250, 7
    %v252 = vsub.s32 %v249, %v251
    %v253 = vrot.slane %v237, %v252
    %v255 = vunpack.c.l.s4 1966171168
    %v256 = vunpack.c.0.s8 %v255
    %v257 = vlaneseq
    %v258 = vshrl.u32 %v257, 7
    %v259 = vsub.s32 %v256, %v258
    %v260 = vrot.slane %v238, %v259
    %v262 = vunpack.c.l.s4 1966171168
    %v263 = vunpack.c.0.s8 %v262
    %v264 = vlaneseq
    %v265 = vshrl.u32 %v264, 7
    %v266 = vsub.s32 %v263, %v265
    %v267 = vrot.slane %v239, %v266
    %v268 = vcombine.high %v246, %v246
    %v269 = vcombine.high %v253, %v253
    %v270 = vcombine.high %v260, %v260
    %v271 = vcombine.high %v267, %v267
    %v272 = vcombine.high %v17, %v17
    %v274 = vunpack.c.l.s4 1966171168
    %v275 = vunpack.c.0.s8 %v274
    %v276 = vlaneseq
    %v277 = vshrl.u32 %v276, 7
    %v278 = vsub.s32 %v275, %v277
    %v279 = vrot.slane %v17, %v278
    %v281 = vunpack.c.l.s4 1966171168
    %v282 = vunpack.c.0.s8 %v281
    %v283 = vlaneseq
    %v284 = vshrl.u32 %v283, 7
    %v285 = vsub.s32 %v282, %v284
    %v286 = vrot.slane %v272, %v285
    %v287 = vcombine.high %v279, %v279
    %v289 = vunpack.c.l.s4 1966171168
    %v290 = vunpack.c.0.s8 %v289
    %v291 = vlaneseq
    %v292 = vshrl.u32 %v291, 7
    %v293 = vsub.s32 %v290, %v292
    %v294 = vrot.slane %v279, %v293
    %v296 = vunpack.c.l.s4 1966171168
    %v297 = vunpack.c.0.s8 %v296
    %v298 = vlaneseq
    %v299 = vshrl.u32 %v298, 7
    %v300 = vsub.s32 %v297, %v299
    %v301 = vrot.slane %v286, %v300
    %v303 = vunpack.c.l.s4 1966171168
    %v304 = vunpack.c.0.s8 %v303
    %v305 = vlaneseq
    %v306 = vshrl.u32 %v305, 7
    %v307 = vsub.s32 %v304, %v306
    %v308 = vrot.slane %v287, %v307
    %v309 = vcombine.high %v294, %v294
    %v310 = vcombine.high %v308, %v308
    %v519 = vunpack.c.l.b16 %v18
    %v520 = vunpack.c.l.b16 %v19
    %v521 = vunpack.c.l.b16 %v20
    %v522 = vunpack.c.l.b16 %v21
    %v523 = vunpack.c.l.b16 %v22
    %v524 = vunpack.c.l.b16 %v23
    %v525 = vunpack.c.l.b16 %v24
    %v526 = vunpack.c.l.b16 %v25
    %v527 = vunpack.c.l.b16 %v26
    %v528 = vunpack.c.l.b16 %v27
    %v529 = vunpack.c.l.b16 %v28
    %v530 = vunpack.c.l.b16 %v29
    %v531 = vunpack.c.l.b16 %v30
    %v532 = vunpack.c.l.b16 %v31
    %v533 = vunpack.c.l.b16 %v32
    %v534 = vunpack.c.l.b16 %v33
    %v535 = vunpack.c.l.b16 %v34
    %v536 = vunpack.c.l.b16 %v35
    %v537 = vunpack.c.l.b16 %v36
    %v538 = vunpack.c.l.b16 %v37
    %v539 = vunpack.c.l.b16 %v38
    %v540 = vunpack.c.l.b16 %v39
    %v541 = vunpack.c.l.b16 %v40
    %v542 = vunpack.c.l.b16 %v41
    %v543 = vunpack.c.l.b16 %v42
    %v544 = vunpack.c.l.b16 %v43
    %v545 = vunpack.c.l.b16 %v44
    %v546 = vunpack.c.l.b16 %v45
    %v547 = vunpack.c.l.b16 %v46
    %v548 = vunpack.c.l.b16 %v47
    %v549 = vunpack.c.l.b16 %v48
    %v550 = vunpack.c.l.b16 %v49
    %v551 = vunpack.c.l.b16 %v50
    %v552 = vunpack.c.l.b16 %v51
    %v553 = vunpack.c.l.b16 %v52
    %v554 = vunpack.c.l.b16 %v53
    %v555 = vunpack.c.l.b16 %v54
    %v556 = vunpack.c.l.b16 %v55
    %v557 = vunpack.c.l.b16 %v56
    %v558 = vunpack.c.l.b16 %v57
    %v559 = vunpack.c.l.b16 %v58
    %v560 = vunpack.c.l.b16 %v59
    %v561 = vunpack.c.l.b16 %v60
    %v562 = vunpack.c.l.b16 %v61
    %v563 = vunpack.c.l.b16 %v62
    %v564 = vunpack.c.l.b16 %v63
    %v565 = vunpack.c.l.b16 %v64
    %v566 = vunpack.c.l.b16 %v65
    %v567 = vunpack.c.l.b16 %v66
    %v568 = vunpack.c.l.b16 %v67
    %v569 = vunpack.c.l.b16 %v68
    %v570 = vunpack.c.l.b16 %v69
    %v571 = vunpack.c.l.b16 %v70
    %v572 = vunpack.c.l.b16 %v71
    %v573 = vunpack.c.l.b16 %v72
    %v574 = vunpack.c.l.b16 %v73
    %v575 = vunpack.c.l.b16 %v74
    %v576 = vunpack.c.l.b16 %v75
    %v577 = vunpack.c.l.b16 %v76
    %v578 = vunpack.c.l.b16 %v77
    %v579 = vunpack.c.l.b16 %v78
    %v580 = vunpack.c.l.b16 %v79
    %v581 = vunpack.c.l.b16 %v80
    %v582 = vunpack.c.l.b16 %v81
    %v583 = vunpack.c.l.b16 %v82
    %v584 = vunpack.c.l.b16 %v83
    %v585 = vunpack.c.l.b16 %v84
    %v586 = vunpack.c.l.b16 %v85
    %v587 = vunpack.c.l.b16 %v86
    %v588 = vunpack.c.l.b16 %v87
    %v589 = vunpack.c.l.b16 %v88
    %v590 = vunpack.c.l.b16 %v89
    %v591 = vunpack.c.l.b16 %v90
    %v592 = vunpack.c.l.b16 %v91
    %v593 = vunpack.c.l.b16 %v92
    %v594 = vunpack.c.l.b16 %v93
    %v595 = vunpack.c.l.b16 %v94
    %v596 = vunpack.c.l.b16 %v95
    %v597 = vunpack.c.l.b16 %v96
    %v598 = vunpack.c.l.b16 %v97
    %v599 = vunpack.c.l.b16 %v98
    %v600 = vunpack.c.l.b16 %v99
    %v601 = vunpack.c.l.b16 %v100
    %v602 = vunpack.c.l.b16 %v101
    %v603 = vunpack.c.l.b16 %v102
    %v604 = vunpack.c.l.b16 %v103
    %v605 = vunpack.c.l.b16 %v104
    %v606 = vunpack.c.l.b16 %v105
    %v607 = vunpack.c.l.b16 %v106
    %v608 = vunpack.c.l.b16 %v107
    %v609 = vunpack.c.l.b16 %v108
    %v610 = vunpack.c.l.b16 %v109
    %v611 = vunpack.c.l.b16 %v110
    %v612 = vunpack.c.l.b16 %v111
    %v613 = vunpack.c.l.b16 %v112
    %v614 = vunpack.c.l.b16 %v113
    %v615 = vunpack.c.l.b16 %v114
    %v616 = vunpack.c.l.b16 %v115
    %v617 = vunpack.c.l.b16 %v116
    %v618 = vunpack.c.l.b16 %v117
    %v619 = vunpack.c.l.b16 %v118
    %v620 = vunpack.c.l.b16 %v119
    %v621 = vunpack.c.l.b16 %v120
    %v622 = vunpack.c.l.b16 %v121
    %v623 = vunpack.c.l.b16 %v122
    %v624 = vunpack.c.l.b16 %v123
    %v625 = vunpack.c.l.b16 %v124
    %v626 = vunpack.c.l.b16 %v125
    %v627 = vunpack.c.l.b16 %v126
    %v628 = vunpack.c.l.b16 %v127
    %v629 = vunpack.c.l.b16 %v128
    %v630 = vunpack.c.l.b16 %v129
    %v631 = vunpack.c.l.b16 %v130
    %v632 = vunpack.c.l.b16 %v131
    %v633 = vunpack.c.l.b16 %v132
    %v634 = vunpack.c.l.b16 %v133
    %v635 = vunpack.c.l.b16 %v134
    %v636 = vunpack.c.l.b16 %v135
    %v637 = vunpack.c.l.b16 %v136
    %v638 = vunpack.c.l.b16 %v137
    %v639 = vunpack.c.l.b16 %v138
    %v640 = vunpack.c.l.b16 %v139
    %v641 = vunpack.c.l.b16 %v140
    %v642 = vunpack.c.l.b16 %v141
    %v643 = vunpack.c.l.b16 %v142
    %v644 = vunpack.c.l.b16 %v143
    %v645 = vunpack.c.l.b16 %v144
    %v646 = vunpack.c.l.b16 %v145
    %v647 = vunpack.c.l.b16 %v146
    %v648 = vunpack.c.l.b16 %v147
    %v649 = vunpack.c.l.b16 %v148
    %v650 = vunpack.c.l.b16 %v149
    %v651 = vunpack.c.l.b16 %v150
    %v652 = vunpack.c.l.b16 %v151
    %v653 = vunpack.c.l.b16 %v152
    %v654 = vunpack.c.l.b16 %v153
    %v655 = vunpack.c.l.b16 %v154
    %v656 = vunpack.c.l.b16 %v155
    %v657 = vunpack.c.l.b16 %v156
    %v658 = vunpack.c.l.b16 %v157
    %v659 = vunpack.c.l.b16 %v158
    %v660 = vunpack.c.l.b16 %v159
    %v661 = vunpack.c.l.b16 %v160
    %v662 = vunpack.c.l.b16 %v161
    %v663 = vunpack.c.l.b16 %v162
    %v664 = vunpack.c.l.b16 %v163
    %v665 = vunpack.c.l.b16 %v164
    %v666 = vunpack.c.l.b16 %v165
    %v667 = vunpack.c.l.b16 %v166
    %v668 = vunpack.c.l.b16 %v167
    %v669 = vunpack.c.l.b16 %v168
    %v670 = vunpack.c.l.b16 %v169
    %v671 = vunpack.c.l.b16 %v170
    %v672 = vunpack.c.l.b16 %v171
    %v673 = vunpack.c.l.b16 %v172
    %v674 = vunpack.c.l.b16 %v173
    %v675 = vunpack.c.l.b16 %v174
    %v676 = vunpack.c.l.b16 %v175
    %v677 = vunpack.c.l.b16 %v176
    %v678 = vunpack.c.l.b16 %v177
    %v679 = vunpack.c.l.b16 %v178
    %v680 = vunpack.c.l.b16 %v179
    %v681 = vunpack.c.l.b16 %v180
    %v682 = vunpack.c.l.b16 %v181
    %v683 = vunpack.c.l.b16 %v182
    %v684 = vunpack.c.l.b16 %v183
    %v685 = vunpack.c.l.b16 %v184
    %v686 = vunpack.c.l.b16 %v185
    %v687 = vunpack.c.l.b16 %v186
    %v688 = vunpack.c.l.b16 %v187
    %v689 = vunpack.c.l.b16 %v188
    %v690 = vunpack.c.l.b16 %v189
    %v691 = vunpack.c.l.b16 %v190
    %v692 = vunpack.c.l.b16 %v191
    %v693 = vunpack.c.l.b16 %v192
    %v694 = vunpack.c.l.b16 %v193
    %v695 = vunpack.c.l.b16 %v194
    %v696 = vunpack.c.l.b16 %v195
    %v697 = vunpack.c.l.b16 %v196
    %v698 = vunpack.c.l.b16 %v197
    %v699 = vunpack.c.l.b16 %v198
    %v700 = vunpack.c.l.b16 %v199
    %v701 = vunpack.c.l.b16 %v200
    %v702 = vunpack.c.l.b16 %v201
    %v703 = vunpack.c.l.b16 %v202
    %v704 = vunpack.c.l.b16 %v203
    %v705 = vunpack.c.l.b16 %v204
    %v706 = vunpack.c.l.b16 %v205
    %v707 = vunpack.c.l.b16 %v206
    %v708 = vunpack.c.l.b16 %v207
    %v709 = vunpack.c.l.b16 %v208
    %v710 = vunpack.c.l.b16 %v209
    %v711 = vunpack.c.l.b16 %v210
    %v712 = vunpack.c.l.b16 %v211
    %v713 = vunpack.c.l.b16 %v212
    %v714 = vunpack.c.l.b16 %v213
    %v715 = vpack.c.b16 %v520, %v519
    %v716 = vpack.c.b16 %v522, %v521
    %v717 = vpack.c.b16 %v524, %v523
    %v718 = vpack.c.b16 %v526, %v525
    %v719 = vpack.c.b16 %v528, %v527
    %v720 = vpack.c.b16 %v530, %v529
    %v721 = vpack.c.b16 %v532, %v531
    %v722 = vpack.c.b16 %v534, %v533
    %v723 = vpack.c.b16 %v536, %v535
    %v724 = vpack.c.b16 %v538, %v537
    %v725 = vpack.c.b16 %v540, %v539
    %v726 = vpack.c.b16 %v542, %v541
    %v727 = vpack.c.b16 %v544, %v543
    %v728 = vpack.c.b16 %v546, %v545
    %v729 = vpack.c.b16 %v548, %v547
    %v730 = vpack.c.b16 %v550, %v549
    %v731 = vpack.c.b16 %v552, %v551
    %v732 = vpack.c.b16 %v554, %v553
    %v733 = vpack.c.b16 %v556, %v555
    %v734 = vpack.c.b16 %v558, %v557
    %v735 = vpack.c.b16 %v560, %v559
    %v736 = vpack.c.b16 %v562, %v561
    %v737 = vpack.c.b16 %v564, %v563
    %v738 = vpack.c.b16 %v566, %v565
    %v739 = vpack.c.b16 %v568, %v567
    %v740 = vpack.c.b16 %v570, %v569
    %v741 = vpack.c.b16 %v572, %v571
    %v742 = vpack.c.b16 %v574, %v573
    %v743 = vpack.c.b16 %v576, %v575
    %v744 = vpack.c.b16 %v578, %v577
    %v745 = vpack.c.b16 %v580, %v579
    %v746 = vpack.c.b16 %v582, %v581
    %v747 = vpack.c.b16 %v584, %v583
    %v748 = vpack.c.b16 %v586, %v585
    %v749 = vpack.c.b16 %v588, %v587
    %v750 = vpack.c.b16 %v590, %v589
    %v751 = vpack.c.b16 %v592, %v591
    %v752 = vpack.c.b16 %v594, %v593
    %v753 = vpack.c.b16 %v596, %v595
    %v754 = vpack.c.b16 %v598, %v597
    %v755 = vpack.c.b16 %v600, %v599
    %v756 = vpack.c.b16 %v602, %v601
    %v757 = vpack.c.b16 %v604, %v603
    %v758 = vpack.c.b16 %v606, %v605
    %v759 = vpack.c.b16 %v608, %v607
    %v760 = vpack.c.b16 %v610, %v609
    %v761 = vpack.c.b16 %v612, %v611
    %v762 = vpack.c.b16 %v614, %v613
    %v763 = vpack.c.b16 %v616, %v615
    %v764 = vpack.c.b16 %v618, %v617
    %v765 = vpack.c.b16 %v620, %v619
    %v766 = vpack.c.b16 %v622, %v621
    %v767 = vpack.c.b16 %v624, %v623
    %v768 = vpack.c.b16 %v626, %v625
    %v769 = vpack.c.b16 %v628, %v627
    %v770 = vpack.c.b16 %v630, %v629
    %v771 = vpack.c.b16 %v632, %v631
    %v772 = vpack.c.b16 %v634, %v633
    %v773 = vpack.c.b16 %v636, %v635
    %v774 = vpack.c.b16 %v638, %v637
    %v775 = vpack.c.b16 %v640, %v639
    %v776 = vpack.c.b16 %v642, %v641
    %v777 = vpack.c.b16 %v644, %v643
    %v778 = vpack.c.b16 %v646, %v645
    %v779 = vpack.c.b16 %v648, %v647
    %v780 = vpack.c.b16 %v650, %v649
    %v781 = vpack.c.b16 %v652, %v651
    %v782 = vpack.c.b16 %v654, %v653
    %v783 = vpack.c.b16 %v656, %v655
    %v784 = vpack.c.b16 %v658, %v657
    %v785 = vpack.c.b16 %v660, %v659
    %v786 = vpack.c.b16 %v662, %v661
    %v787 = vpack.c.b16 %v664, %v663
    %v788 = vpack.c.b16 %v666, %v665
    %v789 = vpack.c.b16 %v668, %v667
    %v790 = vpack.c.b16 %v670, %v669
    %v791 = vpack.c.b16 %v672, %v671
    %v792 = vpack.c.b16 %v674, %v673
    %v793 = vpack.c.b16 %v676, %v675
    %v794 = vpack.c.b16 %v678, %v677
    %v795 = vpack.c.b16 %v680, %v679
    %v796 = vpack.c.b16 %v682, %v681
    %v797 = vpack.c.b16 %v684, %v683
    %v798 = vpack.c.b16 %v686, %v685
    %v799 = vpack.c.b16 %v688, %v687
    %v800 = vpack.c.b16 %v690, %v689
    %v801 = vpack.c.b16 %v692, %v691
    %v802 = vpack.c.b16 %v694, %v693
    %v803 = vpack.c.b16 %v696, %v695
    %v804 = vpack.c.b16 %v698, %v697
    %v805 = vpack.c.b16 %v700, %v699
    %v806 = vpack.c.b16 %v702, %v701
    %v807 = vpack.c.b16 %v704, %v703
    %v808 = vpack.c.b16 %v706, %v705
    %v809 = vpack.c.b16 %v708, %v707
    %v810 = vpack.c.b16 %v710, %v709
    %v811 = vpack.c.b16 %v712, %v711
    %v812 = vpack.c.b16 %v714, %v713
    %vm911 = vcmask 261120
    %v913 = vsel %vm911, %v301, 0
    %915 = vmatprep.subr.bf16.mxu0 0
    %916 = vmatpush1.bf16.msra.mxu0 %v715
    %917 = vmatprep.subr.bf16.mxu0 0
    %918 = vmatpush1.bf16.msra.mxu0 %v716
    %919 = vmatprep.subr.bf16.mxu0 0
    %920 = vmatpush1.bf16.msra.mxu0 %v717
    %921 = vmatprep.subr.bf16.mxu0 0
    %922 = vmatpush1.bf16.msra.mxu0 %v718
    %923 = vmatprep.subr.bf16.mxu0 0
    %924 = vmatpush1.bf16.msra.mxu0 %v719
    %925 = vmatprep.subr.bf16.mxu0 0
    %926 = vmatpush1.bf16.msra.mxu0 %v720
    %927 = vmatprep.subr.bf16.mxu0 0
    %928 = vmatpush1.bf16.msra.mxu0 %v721
    %929 = vmatprep.subr.bf16.mxu0 0
    %930 = vmatpush1.bf16.msra.mxu0 %v722
    %931 = vmatprep.subr.bf16.mxu0 0
    %932 = vmatpush1.bf16.msra.mxu0 %v723
    %933 = vmatprep.subr.bf16.mxu0 0
    %934 = vmatpush1.bf16.msra.mxu0 %v724
    %935 = vmatprep.subr.bf16.mxu0 0
    %936 = vmatpush1.bf16.msra.mxu0 %v725
    %937 = vmatprep.subr.bf16.mxu0 0
    %938 = vmatpush1.bf16.msra.mxu0 %v726
    %939 = vmatprep.subr.bf16.mxu0 0
    %940 = vmatpush1.bf16.msra.mxu0 %v727
    %941 = vmatprep.subr.bf16.mxu0 0
    %942 = vmatpush1.bf16.msra.mxu0 %v728
    %943 = vmatprep.subr.bf16.mxu0 0
    %944 = vmatpush1.bf16.msra.mxu0 %v729
    %945 = vmatprep.subr.bf16.mxu0 0
    %946 = vmatpush1.bf16.msra.mxu0 %v730
    %947 = vmatprep.mubr.bf16.mxu0 %v260
    %948 = vmatmul.mubr.bf16.gmra.mrb[0].mxu0 %v246
    %v949 = vpop.f32.mrb[0].mxu0
    %v950 = vadd.f32 %v219, %v949
    %v951 = vpop.f32.mrb[0].mxu0
    %v952 = vpop.f32.mrb[0].mxu0
    %v953 = vpop.f32.mrb[0].mxu0
    %954 = vdwg.mxu0
    %955 = vmatprep.subr.bf16.mxu0 0
    %956 = vmatpush1.bf16.msra.mxu0 %v731
    %957 = vmatprep.subr.bf16.mxu0 0
    %958 = vmatpush1.bf16.msra.mxu0 %v732
    %959 = vmatprep.subr.bf16.mxu0 0
    %960 = vmatpush1.bf16.msra.mxu0 %v733
    %961 = vmatprep.subr.bf16.mxu0 0
    %962 = vmatpush1.bf16.msra.mxu0 %v734
    %963 = vmatprep.subr.bf16.mxu0 0
    %964 = vmatpush1.bf16.msra.mxu0 %v735
    %965 = vmatprep.subr.bf16.mxu0 0
    %966 = vmatpush1.bf16.msra.mxu0 %v736
    %967 = vmatprep.subr.bf16.mxu0 0
    %968 = vmatpush1.bf16.msra.mxu0 %v737
    %969 = vmatprep.subr.bf16.mxu0 0
    %970 = vmatpush1.bf16.msra.mxu0 %v738
    %971 = vmatprep.subr.bf16.mxu0 0
    %972 = vmatpush1.bf16.msra.mxu0 %v739
    %973 = vmatprep.subr.bf16.mxu0 0
    %974 = vmatpush1.bf16.msra.mxu0 %v740
    %975 = vmatprep.subr.bf16.mxu0 0
    %976 = vmatpush1.bf16.msra.mxu0 %v741
    %977 = vmatprep.subr.bf16.mxu0 0
    %978 = vmatpush1.bf16.msra.mxu0 %v742
    %979 = vmatprep.subr.bf16.mxu0 0
    %980 = vmatpush1.bf16.msra.mxu0 %v743
    %981 = vmatprep.subr.bf16.mxu0 0
    %982 = vmatpush1.bf16.msra.mxu0 %v744
    %983 = vmatprep.subr.bf16.mxu0 0
    %984 = vmatpush1.bf16.msra.mxu0 %v745
    %985 = vmatprep.subr.bf16.mxu0 0
    %986 = vmatpush1.bf16.msra.mxu0 %v746
    %987 = vmatprep.mubr.bf16.mxu0 %v270
    %988 = vmatmul.mubr.bf16.gmra.mrb[0].mxu0 %v268
    %v989 = vpop.f32.mrb[0].mxu0
    %v990 = vadd.f32 %v950, %v989
    %v991 = vpop.f32.mrb[0].mxu0
    %v992 = vpop.f32.mrb[0].mxu0
    %v993 = vpop.f32.mrb[0].mxu0
    %994 = vdwg.mxu0
    %995 = vmatprep.subr.bf16.mxu0 0
    %996 = vmatpush1.bf16.msra.mxu0 %v747
    %997 = vmatprep.subr.bf16.mxu0 0
    %998 = vmatpush1.bf16.msra.mxu0 %v748
    %999 = vmatprep.subr.bf16.mxu0 0
    %1000 = vmatpush1.bf16.msra.mxu0 %v749
    %1001 = vmatprep.subr.bf16.mxu0 0
    %1002 = vmatpush1.bf16.msra.mxu0 %v750
    %1003 = vmatprep.subr.bf16.mxu0 0
    %1004 = vmatpush1.bf16.msra.mxu0 %v751
    %1005 = vmatprep.subr.bf16.mxu0 0
    %1006 = vmatpush1.bf16.msra.mxu0 %v752
    %1007 = vmatprep.subr.bf16.mxu0 0
    %1008 = vmatpush1.bf16.msra.mxu0 %v753
    %1009 = vmatprep.subr.bf16.mxu0 0
    %1010 = vmatpush1.bf16.msra.mxu0 %v754
    %1011 = vmatprep.subr.bf16.mxu0 0
    %1012 = vmatpush1.bf16.msra.mxu0 %v755
    %1013 = vmatprep.subr.bf16.mxu0 0
    %1014 = vmatpush1.bf16.msra.mxu0 %v756
    %1015 = vmatprep.subr.bf16.mxu0 0
    %1016 = vmatpush1.bf16.msra.mxu0 %v757
    %1017 = vmatprep.subr.bf16.mxu0 0
    %1018 = vmatpush1.bf16.msra.mxu0 %v758
    %1019 = vmatprep.subr.bf16.mxu0 0
    %1020 = vmatpush1.bf16.msra.mxu0 %v759
    %1021 = vmatprep.subr.bf16.mxu0 0
    %1022 = vmatpush1.bf16.msra.mxu0 %v760
    %1023 = vmatprep.subr.bf16.mxu0 0
    %1024 = vmatpush1.bf16.msra.mxu0 %v761
    %1025 = vmatprep.subr.bf16.mxu0 0
    %1026 = vmatpush1.bf16.msra.mxu0 %v762
    %1027 = vmatprep.mubr.bf16.mxu0 %v267
    %1028 = vmatmul.mubr.bf16.gmra.mrb[0].mxu0 %v253
    %v1029 = vpop.f32.mrb[0].mxu0
    %v1030 = vadd.f32 %v990, %v1029
    %v1031 = vpop.f32.mrb[0].mxu0
    %v1032 = vpop.f32.mrb[0].mxu0
    %v1033 = vpop.f32.mrb[0].mxu0
    %1034 = vdwg.mxu0
    %1035 = vmatprep.subr.bf16.mxu0 0
    %1036 = vmatpush1.bf16.msra.mxu0 %v763
    %1037 = vmatprep.subr.bf16.mxu0 0
    %1038 = vmatpush1.bf16.msra.mxu0 %v764
    %1039 = vmatprep.subr.bf16.mxu0 0
    %1040 = vmatpush1.bf16.msra.mxu0 %v765
    %1041 = vmatprep.subr.bf16.mxu0 0
    %1042 = vmatpush1.bf16.msra.mxu0 %v766
    %1043 = vmatprep.subr.bf16.mxu0 0
    %1044 = vmatpush1.bf16.msra.mxu0 %v767
    %1045 = vmatprep.subr.bf16.mxu0 0
    %1046 = vmatpush1.bf16.msra.mxu0 %v768
    %1047 = vmatprep.subr.bf16.mxu0 0
    %1048 = vmatpush1.bf16.msra.mxu0 %v769
    %1049 = vmatprep.subr.bf16.mxu0 0
    %1050 = vmatpush1.bf16.msra.mxu0 %v770
    %1051 = vmatprep.subr.bf16.mxu0 0
    %1052 = vmatpush1.bf16.msra.mxu0 %v771
    %1053 = vmatprep.subr.bf16.mxu0 0
    %1054 = vmatpush1.bf16.msra.mxu0 %v772
    %1055 = vmatprep.subr.bf16.mxu0 0
    %1056 = vmatpush1.bf16.msra.mxu0 %v773
    %1057 = vmatprep.subr.bf16.mxu0 0
    %1058 = vmatpush1.bf16.msra.mxu0 %v774
    %1059 = vmatprep.subr.bf16.mxu0 0
    %1060 = vmatpush1.bf16.msra.mxu0 %v775
    %1061 = vmatprep.subr.bf16.mxu0 0
    %1062 = vmatpush1.bf16.msra.mxu0 %v776
    %1063 = vmatprep.subr.bf16.mxu0 0
    %1064 = vmatpush1.bf16.msra.mxu0 %v777
    %1065 = vmatprep.subr.bf16.mxu0 0
    %1066 = vmatpush1.bf16.msra.mxu0 %v778
    %1067 = vmatprep.mubr.bf16.mxu0 %v271
    %1068 = vmatmul.mubr.bf16.gmra.mrb[0].mxu0 %v269
    %v1069 = vpop.f32.mrb[0].mxu0
    %v1070 = vadd.f32 %v1030, %v1069
    %v1071 = vpop.f32.mrb[0].mxu0
    %v1072 = vpop.f32.mrb[0].mxu0
    %v1073 = vpop.f32.mrb[0].mxu0
    %1074 = vdwg.mxu0
    %1075 = vmatprep.subr.bf16.mxu0 0
    %1076 = vmatpush1.bf16.msra.mxu0 %v779
    %1077 = vmatprep.subr.bf16.mxu0 0
    %1078 = vmatpush1.bf16.msra.mxu0 %v780
    %1079 = vmatprep.subr.bf16.mxu0 0
    %1080 = vmatpush1.bf16.msra.mxu0 %v781
    %1081 = vmatprep.subr.bf16.mxu0 0
    %1082 = vmatpush1.bf16.msra.mxu0 %v782
    %1083 = vmatprep.subr.bf16.mxu0 0
    %1084 = vmatpush1.bf16.msra.mxu0 %v783
    %1085 = vmatprep.subr.bf16.mxu0 0
    %1086 = vmatpush1.bf16.msra.mxu0 %v784
    %1087 = vmatprep.subr.bf16.mxu0 0
    %1088 = vmatpush1.bf16.msra.mxu0 %v785
    %1089 = vmatprep.subr.bf16.mxu0 0
    %1090 = vmatpush1.bf16.msra.mxu0 %v786
    %1091 = vmatprep.subr.bf16.mxu0 0
    %1092 = vmatpush1.bf16.msra.mxu0 %v787
    %1093 = vmatprep.subr.bf16.mxu0 0
    %1094 = vmatpush1.bf16.msra.mxu0 %v788
    %1095 = vmatprep.subr.bf16.mxu0 0
    %1096 = vmatpush1.bf16.msra.mxu0 %v789
    %1097 = vmatprep.subr.bf16.mxu0 0
    %1098 = vmatpush1.bf16.msra.mxu0 %v790
    %1099 = vmatprep.subr.bf16.mxu0 0
    %1100 = vmatpush1.bf16.msra.mxu0 %v791
    %1101 = vmatprep.subr.bf16.mxu0 0
    %1102 = vmatpush1.bf16.msra.mxu0 %v792
    %1103 = vmatprep.subr.bf16.mxu0 0
    %1104 = vmatpush1.bf16.msra.mxu0 %v793
    %1105 = vmatprep.subr.bf16.mxu0 0
    %1106 = vmatpush1.bf16.msra.mxu0 %v794
    %1107 = vmatprep.mubr.bf16.mxu0 %v308
    %1108 = vmatmul.mubr.bf16.gmra.mrb[0].mxu0 %v294
    %v1109 = vpop.f32.mrb[0].mxu0
    %v1110 = vadd.f32 %v1070, %v1109
    %v1111 = vpop.f32.mrb[0].mxu0
    %v1112 = vpop.f32.mrb[0].mxu0
    %v1113 = vpop.f32.mrb[0].mxu0
    %1114 = vdwg.mxu0
    %1115 = vmatprep.subr.bf16.mxu0 0
    %1116 = vmatpush1.bf16.msra.mxu0 %v795
    %1117 = vmatprep.subr.bf16.mxu0 0
    %1118 = vmatpush1.bf16.msra.mxu0 %v796
    %1119 = vmatprep.subr.bf16.mxu0 0
    %1120 = vmatpush1.bf16.msra.mxu0 %v797
    %1121 = vmatprep.subr.bf16.mxu0 0
    %1122 = vmatpush1.bf16.msra.mxu0 %v798
    %1123 = vmatprep.subr.bf16.mxu0 0
    %1124 = vmatpush1.bf16.msra.mxu0 %v799
    %1125 = vmatprep.subr.bf16.mxu0 0
    %1126 = vmatpush1.bf16.msra.mxu0 %v800
    %1127 = vmatprep.subr.bf16.mxu0 0
    %1128 = vmatpush1.bf16.msra.mxu0 %v801
    %1129 = vmatprep.subr.bf16.mxu0 0
    %1130 = vmatpush1.bf16.msra.mxu0 %v802
    %1131 = vmatprep.subr.bf16.mxu0 0
    %1132 = vmatpush1.bf16.msra.mxu0 %v803
    %1133 = vmatprep.subr.bf16.mxu0 0
    %1134 = vmatpush1.bf16.msra.mxu0 %v804
    %1135 = vmatprep.subr.bf16.mxu0 0
    %1136 = vmatpush1.bf16.msra.mxu0 %v805
    %1137 = vmatprep.subr.bf16.mxu0 0
    %1138 = vmatpush1.bf16.msra.mxu0 %v806
    %1139 = vmatprep.subr.bf16.mxu0 0
    %1140 = vmatpush1.bf16.msra.mxu0 %v807
    %1141 = vmatprep.subr.bf16.mxu0 0
    %1142 = vmatpush1.bf16.msra.mxu0 %v808
    %1143 = vmatprep.subr.bf16.mxu0 0
    %1144 = vmatpush1.bf16.msra.mxu0 %v809
    %1145 = vmatprep.subr.bf16.mxu0 0
    %1146 = vmatpush1.bf16.msra.mxu0 %v810
    %1147 = vmatprep.mubr.bf16.mxu0 %v310
    %1148 = vmatmul.mubr.bf16.gmra.mrb[0].mxu0 %v309
    %v1149 = vpop.f32.mrb[0].mxu0
    %v1150 = vadd.f32 %v1110, %v1149
    %v1151 = vpop.f32.mrb[0].mxu0
    %v1152 = vpop.f32.mrb[0].mxu0
    %v1153 = vpop.f32.mrb[0].mxu0
    %1154 = vdwg.mxu0
    %1155 = vmatprep.subr.bf16.mxu0 0
    %1156 = vmatpush1.bf16.msra.mxu0 %v811
    %1157 = vmatprep.subr.bf16.mxu0 0
    %1158 = vmatpush1.bf16.msra.mxu0 %v812
    %1159 = vmatprep.subr.bf16.mxu0 0
    %1160 = vmatpush1.bf16.msra.mxu0 0
    %1161 = vmatprep.subr.bf16.mxu0 0
    %1162 = vmatpush1.bf16.msra.mxu0 0
    %1163 = vmatprep.subr.bf16.mxu0 0
    %1164 = vmatpush1.bf16.msra.mxu0 0
    %1165 = vmatprep.subr.bf16.mxu0 0
    %1166 = vmatpush1.bf16.msra.mxu0 0
    %1167 = vmatprep.subr.bf16.mxu0 0
    %1168 = vmatpush1.bf16.msra.mxu0 0
    %1169 = vmatprep.subr.bf16.mxu0 0
    %1170 = vmatpush1.bf16.msra.mxu0 0
    %1171 = vmatprep.subr.bf16.mxu0 0
    %1172 = vmatpush1.bf16.msra.mxu0 0
    %1173 = vmatprep.subr.bf16.mxu0 0
    %1174 = vmatpush1.bf16.msra.mxu0 0
    %1175 = vmatprep.subr.bf16.mxu0 0
    %1176 = vmatpush1.bf16.msra.mxu0 0
    %1177 = vmatprep.subr.bf16.mxu0 0
    %1178 = vmatpush1.bf16.msra.mxu0 0
    %1179 = vmatprep.subr.bf16.mxu0 0
    %1180 = vmatpush1.bf16.msra.mxu0 0
    %1181 = vmatprep.subr.bf16.mxu0 0
    %1182 = vmatpush1.bf16.msra.mxu0 0
    %1183 = vmatprep.subr.bf16.mxu0 0
    %1184 = vmatpush1.bf16.msra.mxu0 0
    %1185 = vmatprep.subr.bf16.mxu0 0
    %1186 = vmatpush1.bf16.msra.mxu0 0
    %1187 = vmatprep.mubr.bf16.mxu0 0
    %1188 = vmatmul.mubr.bf16.gmra.mrb[0].mxu0 %v913
    %v1189 = vpop.f32.mrb[0].mxu0
    %v1190 = vadd.f32 %v1150, %v1189
    %v1191 = vpop.f32.mrb[0].mxu0
    %v1192 = vpop.f32.mrb[0].mxu0
    %v1193 = vpop.f32.mrb[0].mxu0
    %1194 = vdwg.mxu0
    %1195 = vst [vmem:[#allocation2] sm:$0x3] %v1190
    // Predicated region
    $region14: #{cnn_forward.5} parent=1 // pred_check
      _
    $region15: #{cnn_forward.5} parent=1 // pred_check_branch
      %1197 = sbr.rel (0) target = $region17
    $region16: #{cnn_forward.5} parent=1 // pred_region
      %s1199 = ssub.s32 32, 32
      %1200 = vsyncadd [#allocation3], %s1199
      %s1202 = sshll.u32 [#allocation2], 4
      %s1203 = int_to_ptr.vmem [resolvable:$true] %s1202
      %1205 = dma.vmem_to_hbm [thread:$0]  %s1203, 32, %s3, [#allocation3]
    $region17: #{cnn_forward.5} parent=1 // pred_fallthru
      _
    // Predicated region
    $region18: #{cnn_forward.5} parent=1 // pred_check
      _
    $region19: #{cnn_forward.5} parent=1 // pred_check_branch
      %1207 = sbr.rel (0) target = $region21
    $region20: #{cnn_forward.5} parent=1 // pred_region
      %1208 = dma.done [#allocation3], 32
    $region21: #{cnn_forward.5} parent=1 // pred_fallthru
      _
    %1209 = vsyncpa [#allocation3], 1

// kernel: cnn_forward.4
$region0: #{cnn_forward.4}
  #allocation0 [shape = 'u32[]', space=smem, size = 0x4, offset = 0x4, fixed_abs, tag = 'smem constant byte address 0x4 - core index']
  #allocation1 [shape = 'u32[144,128]{1,0:T(1,128)}', space=vmem, size = 0x12000, scoped, tag = 'internal scratch']
  %s0 = inlined_call_operand.vmem [shape: bf16[2,9,288], index: 0, kind: input, shape index: {}]
  %s1 = inlined_call_operand.vmem [shape: bf16[2,9,288], index: 1, kind: input, shape index: {}]
  %s2 = inlined_call_operand.vmem [shape: bf16[5,288,512], index: 2, kind: input, shape index: {}]
  %s3 = inlined_call_operand.vmem [shape: f32[1,256], index: 3, kind: input, shape index: {}]
  %s4 = inlined_call_operand.vmem [shape: bf16[2,7,256], index: 4, kind: output, shape index: {}]
  %s5 = sld [smem:[#allocation0]]
  $region49: #{cnn_forward.4} parent=0
    _
  %s7 = ssub.s32 1, %s5
  %s8 = scalar_select 0, %s7, %s5
  loop: start=0, step=1, limit=4
  $region2: #{cnn_forward.4} parent=0 // loop_pre_header
    _
  $region3: #{cnn_forward.4} parent=0 // loop_header
    %s10 = sphi 0, %s14
    %p11 = scmp.ge.s32.totalorder %s10, 4
    %s20 = sphi 0, %s22
    %s23 = sphi 0, %s20
    %s24 = sphi 0, %s23
    %s40 = sphi 0, %s24
    %s46 = sphi 0, %s48
    %s49 = sphi 0, %s46
    %s50 = sphi 0, %s49
    %s66 = sphi 0, %s50
    %s70 = sphi 0, %s70
    %s72 = sphi 0, %s70
    %s73 = sphi 0, %s72
    %s87 = sphi 0, %s73
    %s91 = sphi 0, %s91
    %s93 = sphi 0, %s91
    %s94 = sphi 0, %s93
    %s108 = sphi 0, %s94
    %s114 = sphi 0, %s116
    %s117 = sphi 0, %s114
    %s118 = sphi 0, %s117
    %s134 = sphi 0, %s118
  $region4: #{cnn_forward.4} parent=0 // loop_header_branch
    %13 = sbr.rel (%p11) target = $region8
  $region5: #{cnn_forward.4} parent=0 // loop_body
    %s15 = ssub.s32 %s10, 1
    %s16 = ssub.s32 %s10, 2
    %s17 = sadd.s32 %s10, 1
    %s18 = ssub.s32 %s10, %s17
    %p19 = scmp.eq.s32.totalorder %s18, 0
    %s21 = sadd.s32 %s20, 1
    %s22 = scalar_select %p19, %s20, %s21
    %p25 = pneg %p19
    %p26 = scmp.eq.s32.totalorder %s10, 1
    %p27 = por %p25, %p26
    %p28 = scmp.ne.s32.totalorder %s20, %s23
    %p29 = scmp.eq.s32.totalorder %s10, 0
    %p30 = por %p28, %p29
    %p31 = scmp.ne.s32.totalorder %s20, %s23
    %p32 = scmp.eq.s32.totalorder %s15, 1
    %p33 = por %p31, %p32
    %p34 = scmp.ne.s32.totalorder %s23, %s24
    %p35 = scmp.eq.s32.totalorder %s15, 0
    %p36 = por %p34, %p35
    %p37 = scmp.ne.s32.totalorder %s23, %s24
    %p38 = scmp.eq.s32.totalorder %s16, 1
    %p39 = por %p37, %p38
    %p41 = scmp.ne.s32.totalorder %s24, %s40
    %p42 = scmp.eq.s32.totalorder %s16, 0
    %p43 = por %p41, %p42
    %s44 = ssub.s32 %s10, %s17
    %p45 = scmp.eq.s32.totalorder %s44, 0
    %s47 = sadd.s32 %s46, 1
    %s48 = scalar_select %p45, %s46, %s47
    %p51 = pneg %p45
    %p52 = scmp.eq.s32.totalorder %s10, 1
    %p53 = por %p51, %p52
    %p54 = scmp.ne.s32.totalorder %s46, %s49
    %p55 = scmp.eq.s32.totalorder %s10, 0
    %p56 = por %p54, %p55
    %p57 = scmp.ne.s32.totalorder %s46, %s49
    %p58 = scmp.eq.s32.totalorder %s15, 1
    %p59 = por %p57, %p58
    %p60 = scmp.ne.s32.totalorder %s49, %s50
    %p61 = scmp.eq.s32.totalorder %s15, 0
    %p62 = por %p60, %p61
    %p63 = scmp.ne.s32.totalorder %s49, %s50
    %p64 = scmp.eq.s32.totalorder %s16, 1
    %p65 = por %p63, %p64
    %p67 = scmp.ne.s32.totalorder %s50, %s66
    %p68 = scmp.eq.s32.totalorder %s16, 0
    %p69 = por %p67, %p68
    %s71 = sadd.s32 %s70, 1
    %p74 = scmp.eq.s32.totalorder %s10, 1
    %p75 = scmp.ne.s32.totalorder %s70, %s72
    %p76 = scmp.eq.s32.totalorder %s10, 0
    %p77 = por %p75, %p76
    %p78 = scmp.ne.s32.totalorder %s70, %s72
    %p79 = scmp.eq.s32.totalorder %s15, 1
    %p80 = por %p78, %p79
    %p81 = scmp.ne.s32.totalorder %s72, %s73
    %p82 = scmp.eq.s32.totalorder %s15, 0
    %p83 = por %p81, %p82
    %p84 = scmp.ne.s32.totalorder %s72, %s73
    %p85 = scmp.eq.s32.totalorder %s16, 1
    %p86 = por %p84, %p85
    %p88 = scmp.ne.s32.totalorder %s73, %s87
    %p89 = scmp.eq.s32.totalorder %s16, 0
    %p90 = por %p88, %p89
    %s92 = sadd.s32 %s91, 1
    %p95 = scmp.eq.s32.totalorder %s10, 1
    %p96 = scmp.ne.s32.totalorder %s91, %s93
    %p97 = scmp.eq.s32.totalorder %s10, 0
    %p98 = por %p96, %p97
    %p99 = scmp.ne.s32.totalorder %s91, %s93
    %p100 = scmp.eq.s32.totalorder %s15, 1
    %p101 = por %p99, %p100
    %p102 = scmp.ne.s32.totalorder %s93, %s94
    %p103 = scmp.eq.s32.totalorder %s15, 0
    %p104 = por %p102, %p103
    %p105 = scmp.ne.s32.totalorder %s93, %s94
    %p106 = scmp.eq.s32.totalorder %s16, 1
    %p107 = por %p105, %p106
    %p109 = scmp.ne.s32.totalorder %s94, %s108
    %p110 = scmp.eq.s32.totalorder %s16, 0
    %p111 = por %p109, %p110
    %s112 = ssub.s32 %s10, %s17
    %p113 = scmp.eq.s32.totalorder %s112, 0
    %s115 = sadd.s32 %s114, 1
    %s116 = scalar_select %p113, %s114, %s115
    %p119 = pneg %p113
    %p120 = scmp.eq.s32.totalorder %s10, 1
    %p121 = por %p119, %p120
    %p122 = scmp.ne.s32.totalorder %s114, %s117
    %p123 = scmp.eq.s32.totalorder %s10, 0
    %p124 = por %p122, %p123
    %p125 = scmp.ne.s32.totalorder %s114, %s117
    %p126 = scmp.eq.s32.totalorder %s15, 1
    %p127 = por %p125, %p126
    %p128 = scmp.ne.s32.totalorder %s117, %s118
    %p129 = scmp.eq.s32.totalorder %s15, 0
    %p130 = por %p128, %p129
    %p131 = scmp.ne.s32.totalorder %s117, %s118
    %p132 = scmp.eq.s32.totalorder %s16, 1
    %p133 = por %p131, %p132
    %p135 = scmp.ne.s32.totalorder %s118, %s134
    %p136 = scmp.eq.s32.totalorder %s16, 0
    %p137 = por %p135, %p136
    %p138 = scmp.le.s32.totalorder 1, %s10
    %p139 = scmp.lt.s32.totalorder %s10, 3
    %p140 = pnand %p138, %p139
    %p141 = pneg %p140
    // Predicated region
    $region9: #{cnn_forward.4} parent=5 // pred_check
      _
    $region10: #{cnn_forward.4} parent=5 // pred_check_branch
      %143 = sbr.rel (%p140) target = $region12
    $region11: #{cnn_forward.4} parent=5 // pred_region
      %s144 = ssub.s32 %s10, 1
      // Predicated region
      $region13: #{cnn_forward.4} parent=11 // pred_check
        %p145 = pneg %p83
      $region14: #{cnn_forward.4} parent=11 // pred_check_branch
        %147 = sbr.rel (%p145) target = $region16
      $region15: #{cnn_forward.4} parent=11 // pred_region
        _
      $region16: #{cnn_forward.4} parent=11 // pred_fallthru
        _
      // Predicated region
      $region17: #{cnn_forward.4} parent=11 // pred_check
        %p148 = pneg %p104
      $region18: #{cnn_forward.4} parent=11 // pred_check_branch
        %150 = sbr.rel (%p148) target = $region20
      $region19: #{cnn_forward.4} parent=11 // pred_region
        _
      $region20: #{cnn_forward.4} parent=11 // pred_fallthru
        _
    $region12: #{cnn_forward.4} parent=5 // pred_fallthru
      _
    %p151 = scmp.lt.s32.totalorder %s10, 2
    // Predicated region
    $region21: #{cnn_forward.4} parent=5 // pred_check
      %p152 = pneg %p151
    $region22: #{cnn_forward.4} parent=5 // pred_check_branch
      %154 = sbr.rel (%p152) target = $region24
    $region23: #{cnn_forward.4} parent=5 // pred_region
      // Predicated region
      $region25: #{cnn_forward.4} parent=23 // pred_check
        %p155 = pneg %p30
      $region26: #{cnn_forward.4} parent=23 // pred_check_branch
        %157 = sbr.rel (%p155) target = $region28
      $region27: #{cnn_forward.4} parent=23 // pred_region
        %p158 = scmp.lt.s32.totalorder %s10, 1
        %s159 = scalar_select %p158, %s10, 1
        %s160 = smul.addr %s159, 6
        %s161 = smul.addr %s160, 4
        %s162 = scalar_lea.vmem %s0, %s161
      $region28: #{cnn_forward.4} parent=23 // pred_fallthru
        _
      // Predicated region
      $region29: #{cnn_forward.4} parent=23 // pred_check
        %p163 = pneg %p56
      $region30: #{cnn_forward.4} parent=23 // pred_check_branch
        %165 = sbr.rel (%p163) target = $region32
      $region31: #{cnn_forward.4} parent=23 // pred_region
        %p166 = scmp.lt.s32.totalorder %s10, 1
        %s167 = scalar_select %p166, %s10, 1
        %s168 = smul.addr %s167, 6
        %s169 = smul.addr %s168, 4
        %s170 = scalar_lea.vmem %s1, %s169
      $region32: #{cnn_forward.4} parent=23 // pred_fallthru
        _
    $region24: #{cnn_forward.4} parent=5 // pred_fallthru
      _
    %p171 = scmp.le.s32.totalorder 1, %s10
    %p172 = scmp.lt.s32.totalorder %s10, 3
    %p173 = pnand %p171, %p172
    %p174 = pneg %p173
    // Predicated region
    $region33: #{cnn_forward.4} parent=5 // pred_check
      _
    $region34: #{cnn_forward.4} parent=5 // pred_check_branch
      %176 = sbr.rel (%p173) target = $region36
    $region35: #{cnn_forward.4} parent=5 // pred_region
      %s177 = ssub.s32 %s10, 1
      %p178 = scmp.lt.s32.totalorder %s15, 1
      %s179 = scalar_select %p178, %s15, 1
      %s180 = smul.addr %s179, 6
      %s181 = smul.addr %s180, 4
      %s182 = scalar_lea.vmem %s0, %s181
      %p183 = pneg %p36
      %p184 = pneg %p33
      %p185 = scmp.lt.s32.totalorder %s15, 1
      %s186 = scalar_select %p185, %s15, 1
      %s187 = smul.addr %s186, 6
      %s188 = smul.addr %s187, 4
      %s189 = scalar_lea.vmem %s1, %s188
      %p190 = pneg %p62
      %p191 = pneg %p59
      %p192 = pneg %p83
      %p193 = pneg %p80
      %p194 = pneg %p104
      %p195 = pneg %p101
      %p196 = pneg %p130
      %p197 = pneg %p127
      %p198 = scmp.lt.s32.totalorder %s15, 1
      %s199 = scalar_select %p198, %s15, 1
      %s200 = smul.addr %s199, 2
      %s201 = smul.addr %s200, 4
      %s202 = scalar_lea.vmem %s4, %s201
      %p203 = scmp.lt.s32.totalorder %s15, 1
      %s204 = scalar_select %p203, %s15, 1
      %s205 = smul.addr %s204, 6
      %s206 = smul.addr %s205, 4
      %s207 = scalar_lea.vmem %s0, %s206
      %p208 = scmp.lt.s32.totalorder %s15, 1
      %s209 = scalar_select %p208, %s15, 1
      %s210 = smul.addr %s209, 6
      %s211 = smul.addr %s210, 4
      %s212 = scalar_lea.vmem %s1, %s211
      %p213 = scmp.lt.s32.totalorder %s15, 1
      %s214 = scalar_select %p213, %s15, 1
      %s215 = smul.addr %s214, 2
      %s216 = smul.addr %s215, 4
      %s217 = scalar_lea.vmem %s4, %s216
      %v219 = vld [vmem:[%s207] sm:$0xff]
      %v220 = vld [vmem:[%s207 + $0x8] sm:$0xf]
      %v221 = vld [vmem:[%s2] sm:$0xff]
      %v222 = vld [vmem:[%s2 + $0x8] sm:$0xff]
      %v223 = vld [vmem:[%s2 + $0x10] sm:$0xff]
      %v224 = vld [vmem:[%s2 + $0x18] sm:$0xff]
      %v225 = vld [vmem:[%s2 + $0x20] sm:$0xff]
      %v226 = vld [vmem:[%s2 + $0x28] sm:$0xff]
      %v227 = vld [vmem:[%s2 + $0x30] sm:$0xff]
      %v228 = vld [vmem:[%s2 + $0x38] sm:$0xff]
      %v229 = vld [vmem:[%s2 + $0x40] sm:$0xff]
      %v230 = vld [vmem:[%s2 + $0x48] sm:$0xff]
      %v231 = vld [vmem:[%s2 + $0x50] sm:$0xff]
      %v232 = vld [vmem:[%s2 + $0x58] sm:$0xff]
      %v233 = vld [vmem:[%s2 + $0x60] sm:$0xff]
      %v234 = vld [vmem:[%s2 + $0x68] sm:$0xff]
      %v235 = vld [vmem:[%s2 + $0x70] sm:$0xff]
      %v236 = vld [vmem:[%s2 + $0x78] sm:$0xff]
      %v237 = vld [vmem:[%s2 + $0x80] sm:$0xff]
      %v238 = vld [vmem:[%s2 + $0x88] sm:$0xff]
      %v239 = vld [vmem:[%s2 + $0x90] sm:$0xff]
      %v240 = vld [vmem:[%s2 + $0x98] sm:$0xff]
      %v241 = vld [vmem:[%s2 + $0xa0] sm:$0xff]
      %v242 = vld [vmem:[%s2 + $0xa8] sm:$0xff]
      %v243 = vld [vmem:[%s2 + $0xb0] sm:$0xff]
      %v244 = vld [vmem:[%s2 + $0xb8] sm:$0xff]
      %v245 = vld [vmem:[%s2 + $0xc0] sm:$0xff]
      %v246 = vld [vmem:[%s2 + $0xc8] sm:$0xff]
      %v247 = vld [vmem:[%s2 + $0xd0] sm:$0xff]
      %v248 = vld [vmem:[%s2 + $0xd8] sm:$0xff]
      %v249 = vld [vmem:[%s2 + $0xe0] sm:$0xff]
      %v250 = vld [vmem:[%s2 + $0xe8] sm:$0xff]
      %v251 = vld [vmem:[%s2 + $0xf0] sm:$0xff]
      %v252 = vld [vmem:[%s2 + $0xf8] sm:$0xff]
      %v253 = vld [vmem:[%s2 + $0x100] sm:$0xff]
      %v254 = vld [vmem:[%s2 + $0x108] sm:$0xff]
      %v255 = vld [vmem:[%s2 + $0x110] sm:$0xff]
      %v256 = vld [vmem:[%s2 + $0x118] sm:$0xff]
      %v257 = vld [vmem:[%s2 + $0x120] sm:$0xff]
      %v258 = vld [vmem:[%s2 + $0x128] sm:$0xff]
      %v259 = vld [vmem:[%s2 + $0x130] sm:$0xff]
      %v260 = vld [vmem:[%s2 + $0x138] sm:$0xff]
      %v261 = vld [vmem:[%s2 + $0x140] sm:$0xff]
      %v262 = vld [vmem:[%s2 + $0x148] sm:$0xff]
      %v263 = vld [vmem:[%s2 + $0x150] sm:$0xff]
      %v264 = vld [vmem:[%s2 + $0x158] sm:$0xff]
      %v265 = vld [vmem:[%s2 + $0x160] sm:$0xff]
      %v266 = vld [vmem:[%s2 + $0x168] sm:$0xff]
      %v267 = vld [vmem:[%s2 + $0x170] sm:$0xff]
      %v268 = vld [vmem:[%s2 + $0x178] sm:$0xff]
      %v269 = vld [vmem:[%s2 + $0x180] sm:$0xff]
      %v270 = vld [vmem:[%s2 + $0x188] sm:$0xff]
      %v271 = vld [vmem:[%s2 + $0x190] sm:$0xff]
      %v272 = vld [vmem:[%s2 + $0x198] sm:$0xff]
      %v273 = vld [vmem:[%s2 + $0x1a0] sm:$0xff]
      %v274 = vld [vmem:[%s2 + $0x1a8] sm:$0xff]
      %v275 = vld [vmem:[%s2 + $0x1b0] sm:$0xff]
      %v276 = vld [vmem:[%s2 + $0x1b8] sm:$0xff]
      %v277 = vld [vmem:[%s2 + $0x1c0] sm:$0xff]
      %v278 = vld [vmem:[%s2 + $0x1c8] sm:$0xff]
      %v279 = vld [vmem:[%s2 + $0x1d0] sm:$0xff]
      %v280 = vld [vmem:[%s2 + $0x1d8] sm:$0xff]
      %v281 = vld [vmem:[%s2 + $0x1e0] sm:$0xff]
      %v282 = vld [vmem:[%s2 + $0x1e8] sm:$0xff]
      %v283 = vld [vmem:[%s2 + $0x1f0] sm:$0xff]
      %v284 = vld [vmem:[%s2 + $0x1f8] sm:$0xff]
      %v285 = vld [vmem:[%s2 + $0x200] sm:$0xff]
      %v286 = vld [vmem:[%s2 + $0x208] sm:$0xff]
      %v287 = vld [vmem:[%s2 + $0x210] sm:$0xff]
      %v288 = vld [vmem:[%s2 + $0x218] sm:$0xff]
      %v289 = vld [vmem:[%s2 + $0x220] sm:$0xff]
      %v290 = vld [vmem:[%s2 + $0x228] sm:$0xff]
      %v291 = vld [vmem:[%s2 + $0x230] sm:$0xff]
      %v292 = vld [vmem:[%s2 + $0x238] sm:$0xff]
      %v293 = vld [vmem:[%s212] sm:$0xff]
      %v294 = vld [vmem:[%s212 + $0x8] sm:$0xf]
      %s295 = scalar_lea.vmem %s2, 576
      %v296 = vld [vmem:[%s295] sm:$0xff]
      %v297 = vld [vmem:[%s295 + $0x8] sm:$0xff]
      %v298 = vld [vmem:[%s295 + $0x10] sm:$0xff]
      %v299 = vld [vmem:[%s295 + $0x18] sm:$0xff]
      %v300 = vld [vmem:[%s295 + $0x20] sm:$0xff]
      %v301 = vld [vmem:[%s295 + $0x28] sm:$0xff]
      %v302 = vld [vmem:[%s295 + $0x30] sm:$0xff]
      %v303 = vld [vmem:[%s295 + $0x38] sm:$0xff]
      %v304 = vld [vmem:[%s295 + $0x40] sm:$0xff]
      %v305 = vld [vmem:[%s295 + $0x48] sm:$0xff]
      %v306 = vld [vmem:[%s295 + $0x50] sm:$0xff]
      %v307 = vld [vmem:[%s295 + $0x58] sm:$0xff]
      %v308 = vld [vmem:[%s295 + $0x60] sm:$0xff]
      %v309 = vld [vmem:[%s295 + $0x68] sm:$0xff]
      %v310 = vld [vmem:[%s295 + $0x70] sm:$0xff]
      %v311 = vld [vmem:[%s295 + $0x78] sm:$0xff]
      %v312 = vld [vmem:[%s295 + $0x80] sm:$0xff]
      %v313 = vld [vmem:[%s295 + $0x88] sm:$0xff]
      %v314 = vld [vmem:[%s295 + $0x90] sm:$0xff]
      %v315 = vld [vmem:[%s295 + $0x98] sm:$0xff]
      %v316 = vld [vmem:[%s295 + $0xa0] sm:$0xff]
      %v317 = vld [vmem:[%s295 + $0xa8] sm:$0xff]
      %v318 = vld [vmem:[%s295 + $0xb0] sm:$0xff]
      %v319 = vld [vmem:[%s295 + $0xb8] sm:$0xff]
      %v320 = vld [vmem:[%s295 + $0xc0] sm:$0xff]
      %v321 = vld [vmem:[%s295 + $0xc8] sm:$0xff]
      %v322 = vld [vmem:[%s295 + $0xd0] sm:$0xff]
      %v323 = vld [vmem:[%s295 + $0xd8] sm:$0xff]
      %v324 = vld [vmem:[%s295 + $0xe0] sm:$0xff]
      %v325 = vld [vmem:[%s295 + $0xe8] sm:$0xff]
      %v326 = vld [vmem:[%s295 + $0xf0] sm:$0xff]
      %v327 = vld [vmem:[%s295 + $0xf8] sm:$0xff]
      %v328 = vld [vmem:[%s295 + $0x100] sm:$0xff]
      %v329 = vld [vmem:[%s295 + $0x108] sm:$0xff]
      %v330 = vld [vmem:[%s295 + $0x110] sm:$0xff]
      %v331 = vld [vmem:[%s295 + $0x118] sm:$0xff]
      %v332 = vld [vmem:[%s295 + $0x120] sm:$0xff]
      %v333 = vld [vmem:[%s295 + $0x128] sm:$0xff]
      %v334 = vld [vmem:[%s295 + $0x130] sm:$0xff]
      %v335 = vld [vmem:[%s295 + $0x138] sm:$0xff]
      %v336 = vld [vmem:[%s295 + $0x140] sm:$0xff]
      %v337 = vld [vmem:[%s295 + $0x148] sm:$0xff]
      %v338 = vld [vmem:[%s295 + $0x150] sm:$0xff]
      %v339 = vld [vmem:[%s295 + $0x158] sm:$0xff]
      %v340 = vld [vmem:[%s295 + $0x160] sm:$0xff]
      %v341 = vld [vmem:[%s295 + $0x168] sm:$0xff]
      %v342 = vld [vmem:[%s295 + $0x170] sm:$0xff]
      %v343 = vld [vmem:[%s295 + $0x178] sm:$0xff]
      %v344 = vld [vmem:[%s295 + $0x180] sm:$0xff]
      %v345 = vld [vmem:[%s295 + $0x188] sm:$0xff]
      %v346 = vld [vmem:[%s295 + $0x190] sm:$0xff]
      %v347 = vld [vmem:[%s295 + $0x198] sm:$0xff]
      %v348 = vld [vmem:[%s295 + $0x1a0] sm:$0xff]
      %v349 = vld [vmem:[%s295 + $0x1a8] sm:$0xff]
      %v350 = vld [vmem:[%s295 + $0x1b0] sm:$0xff]
      %v351 = vld [vmem:[%s295 + $0x1b8] sm:$0xff]
      %v352 = vld [vmem:[%s295 + $0x1c0] sm:$0xff]
      %v353 = vld [vmem:[%s295 + $0x1c8] sm:$0xff]
      %v354 = vld [vmem:[%s295 + $0x1d0] sm:$0xff]
      %v355 = vld [vmem:[%s295 + $0x1d8] sm:$0xff]
      %v356 = vld [vmem:[%s295 + $0x1e0] sm:$0xff]
      %v357 = vld [vmem:[%s295 + $0x1e8] sm:$0xff]
      %v358 = vld [vmem:[%s295 + $0x1f0] sm:$0xff]
      %v359 = vld [vmem:[%s295 + $0x1f8] sm:$0xff]
      %v360 = vld [vmem:[%s295 + $0x200] sm:$0xff]
      %v361 = vld [vmem:[%s295 + $0x208] sm:$0xff]
      %v362 = vld [vmem:[%s295 + $0x210] sm:$0xff]
      %v363 = vld [vmem:[%s295 + $0x218] sm:$0xff]
      %v364 = vld [vmem:[%s295 + $0x220] sm:$0xff]
      %v365 = vld [vmem:[%s295 + $0x228] sm:$0xff]
      %v366 = vld [vmem:[%s295 + $0x230] sm:$0xff]
      %v367 = vld [vmem:[%s295 + $0x238] sm:$0xff]
      %v370 = vunpack.c.l.b16 %v293
      %v371 = vunpack.c.h.b16 %v293
      %v372 = vunpack.c.l.b16 %v294
      %v373 = vpack.c.b16 %v370, %v370
      %v374 = vpack.c.b16 %v371, %v371
      %v375 = vpack.c.b16 %v372, %v372
      %v450 = vunpack.c.l.b16 %v296
      %v451 = vunpack.c.h.b16 %v296
      %v452 = vunpack.c.l.b16 %v297
      %v453 = vunpack.c.h.b16 %v297
      %v454 = vunpack.c.l.b16 %v298
      %v455 = vunpack.c.h.b16 %v298
      %v456 = vunpack.c.l.b16 %v299
      %v457 = vunpack.c.h.b16 %v299
      %v458 = vunpack.c.l.b16 %v300
      %v459 = vunpack.c.h.b16 %v300
      %v460 = vunpack.c.l.b16 %v301
      %v461 = vunpack.c.h.b16 %v301
      %v462 = vunpack.c.l.b16 %v302
      %v463 = vunpack.c.h.b16 %v302
      %v464 = vunpack.c.l.b16 %v303
      %v465 = vunpack.c.h.b16 %v303
      %v466 = vunpack.c.l.b16 %v304
      %v467 = vunpack.c.h.b16 %v304
      %v468 = vunpack.c.l.b16 %v305
      %v469 = vunpack.c.h.b16 %v305
      %v470 = vunpack.c.l.b16 %v306
      %v471 = vunpack.c.h.b16 %v306
      %v472 = vunpack.c.l.b16 %v307
      %v473 = vunpack.c.h.b16 %v307
      %v474 = vunpack.c.l.b16 %v308
      %v475 = vunpack.c.h.b16 %v308
      %v476 = vunpack.c.l.b16 %v309
      %v477 = vunpack.c.h.b16 %v309
      %v478 = vunpack.c.l.b16 %v310
      %v479 = vunpack.c.h.b16 %v310
      %v480 = vunpack.c.l.b16 %v311
      %v481 = vunpack.c.h.b16 %v311
      %v482 = vunpack.c.l.b16 %v312
      %v483 = vunpack.c.h.b16 %v312
      %v484 = vunpack.c.l.b16 %v313
      %v485 = vunpack.c.h.b16 %v313
      %v486 = vunpack.c.l.b16 %v314
      %v487 = vunpack.c.h.b16 %v314
      %v488 = vunpack.c.l.b16 %v315
      %v489 = vunpack.c.h.b16 %v315
      %v490 = vunpack.c.l.b16 %v316
      %v491 = vunpack.c.h.b16 %v316
      %v492 = vunpack.c.l.b16 %v317
      %v493 = vunpack.c.h.b16 %v317
      %v494 = vunpack.c.l.b16 %v318
      %v495 = vunpack.c.h.b16 %v318
      %v496 = vunpack.c.l.b16 %v319
      %v497 = vunpack.c.h.b16 %v319
      %v498 = vunpack.c.l.b16 %v320
      %v499 = vunpack.c.h.b16 %v320
      %v500 = vunpack.c.l.b16 %v321
      %v501 = vunpack.c.h.b16 %v321
      %v502 = vunpack.c.l.b16 %v322
      %v503 = vunpack.c.h.b16 %v322
      %v504 = vunpack.c.l.b16 %v323
      %v505 = vunpack.c.h.b16 %v323
      %v506 = vunpack.c.l.b16 %v324
      %v507 = vunpack.c.h.b16 %v324
      %v508 = vunpack.c.l.b16 %v325
      %v509 = vunpack.c.h.b16 %v325
      %v510 = vunpack.c.l.b16 %v326
      %v511 = vunpack.c.h.b16 %v326
      %v512 = vunpack.c.l.b16 %v327
      %v513 = vunpack.c.h.b16 %v327
      %v514 = vunpack.c.l.b16 %v328
      %v515 = vunpack.c.h.b16 %v328
      %v516 = vunpack.c.l.b16 %v329
      %v517 = vunpack.c.h.b16 %v329
      %v518 = vunpack.c.l.b16 %v330
      %v519 = vunpack.c.h.b16 %v330
      %v520 = vunpack.c.l.b16 %v331
      %v521 = vunpack.c.h.b16 %v331
      %v522 = vunpack.c.l.b16 %v332
      %v523 = vunpack.c.h.b16 %v332
      %v524 = vunpack.c.l.b16 %v333
      %v525 = vunpack.c.h.b16 %v333
      %v526 = vunpack.c.l.b16 %v334
      %v527 = vunpack.c.h.b16 %v334
      %v528 = vunpack.c.l.b16 %v335
      %v529 = vunpack.c.h.b16 %v335
      %v530 = vunpack.c.l.b16 %v336
      %v531 = vunpack.c.h.b16 %v336
      %v532 = vunpack.c.l.b16 %v337
      %v533 = vunpack.c.h.b16 %v337
      %v534 = vunpack.c.l.b16 %v338
      %v535 = vunpack.c.h.b16 %v338
      %v536 = vunpack.c.l.b16 %v339
      %v537 = vunpack.c.h.b16 %v339
      %v538 = vunpack.c.l.b16 %v340
      %v539 = vunpack.c.h.b16 %v340
      %v540 = vunpack.c.l.b16 %v341
      %v541 = vunpack.c.h.b16 %v341
      %v542 = vunpack.c.l.b16 %v342
      %v543 = vunpack.c.h.b16 %v342
      %v544 = vunpack.c.l.b16 %v343
      %v545 = vunpack.c.h.b16 %v343
      %v546 = vunpack.c.l.b16 %v344
      %v547 = vunpack.c.h.b16 %v344
      %v548 = vunpack.c.l.b16 %v345
      %v549 = vunpack.c.h.b16 %v345
      %v550 = vunpack.c.l.b16 %v346
      %v551 = vunpack.c.h.b16 %v346
      %v552 = vunpack.c.l.b16 %v347
      %v553 = vunpack.c.h.b16 %v347
      %v554 = vunpack.c.l.b16 %v348
      %v555 = vunpack.c.h.b16 %v348
      %v556 = vunpack.c.l.b16 %v349
      %v557 = vunpack.c.h.b16 %v349
      %v558 = vunpack.c.l.b16 %v350
      %v559 = vunpack.c.h.b16 %v350
      %v560 = vunpack.c.l.b16 %v351
      %v561 = vunpack.c.h.b16 %v351
      %v562 = vunpack.c.l.b16 %v352
      %v563 = vunpack.c.h.b16 %v352
      %v564 = vunpack.c.l.b16 %v353
      %v565 = vunpack.c.h.b16 %v353
      %v566 = vunpack.c.l.b16 %v354
      %v567 = vunpack.c.h.b16 %v354
      %v568 = vunpack.c.l.b16 %v355
      %v569 = vunpack.c.h.b16 %v355
      %v570 = vunpack.c.l.b16 %v356
      %v571 = vunpack.c.h.b16 %v356
      %v572 = vunpack.c.l.b16 %v357
      %v573 = vunpack.c.h.b16 %v357
      %v574 = vunpack.c.l.b16 %v358
      %v575 = vunpack.c.h.b16 %v358
      %v576 = vunpack.c.l.b16 %v359
      %v577 = vunpack.c.h.b16 %v359
      %v578 = vunpack.c.l.b16 %v360
      %v579 = vunpack.c.h.b16 %v360
      %v580 = vunpack.c.l.b16 %v361
      %v581 = vunpack.c.h.b16 %v361
      %v582 = vunpack.c.l.b16 %v362
      %v583 = vunpack.c.h.b16 %v362
      %v584 = vunpack.c.l.b16 %v363
      %v585 = vunpack.c.h.b16 %v363
      %v586 = vunpack.c.l.b16 %v364
      %v587 = vunpack.c.h.b16 %v364
      %v588 = vunpack.c.l.b16 %v365
      %v589 = vunpack.c.h.b16 %v365
      %v590 = vunpack.c.l.b16 %v366
      %v591 = vunpack.c.h.b16 %v366
      %v592 = vunpack.c.l.b16 %v367
      %v593 = vunpack.c.h.b16 %v367
      %v594 = vpack.c.b16 %v454, %v450
      %v595 = vpack.c.b16 %v455, %v451
      %v596 = vpack.c.b16 %v456, %v452
      %v597 = vpack.c.b16 %v457, %v453
      %v598 = vpack.c.b16 %v462, %v458
      %v599 = vpack.c.b16 %v463, %v459
      %v600 = vpack.c.b16 %v464, %v460
      %v601 = vpack.c.b16 %v465, %v461
      %v602 = vpack.c.b16 %v470, %v466
      %v603 = vpack.c.b16 %v471, %v467
      %v604 = vpack.c.b16 %v472, %v468
      %v605 = vpack.c.b16 %v473, %v469
      %v606 = vpack.c.b16 %v478, %v474
      %v607 = vpack.c.b16 %v479, %v475
      %v608 = vpack.c.b16 %v480, %v476
      %v609 = vpack.c.b16 %v481, %v477
      %v610 = vpack.c.b16 %v486, %v482
      %v611 = vpack.c.b16 %v487, %v483
      %v612 = vpack.c.b16 %v488, %v484
      %v613 = vpack.c.b16 %v489, %v485
      %v614 = vpack.c.b16 %v494, %v490
      %v615 = vpack.c.b16 %v495, %v491
      %v616 = vpack.c.b16 %v496, %v492
      %v617 = vpack.c.b16 %v497, %v493
      %v618 = vpack.c.b16 %v502, %v498
      %v619 = vpack.c.b16 %v503, %v499
      %v620 = vpack.c.b16 %v504, %v500
      %v621 = vpack.c.b16 %v505, %v501
      %v622 = vpack.c.b16 %v510, %v506
      %v623 = vpack.c.b16 %v511, %v507
      %v624 = vpack.c.b16 %v512, %v508
      %v625 = vpack.c.b16 %v513, %v509
      %v626 = vpack.c.b16 %v518, %v514
      %v627 = vpack.c.b16 %v519, %v515
      %v628 = vpack.c.b16 %v520, %v516
      %v629 = vpack.c.b16 %v521, %v517
      %v630 = vpack.c.b16 %v526, %v522
      %v631 = vpack.c.b16 %v527, %v523
      %v632 = vpack.c.b16 %v528, %v524
      %v633 = vpack.c.b16 %v529, %v525
      %v634 = vpack.c.b16 %v534, %v530
      %v635 = vpack.c.b16 %v535, %v531
      %v636 = vpack.c.b16 %v536, %v532
      %v637 = vpack.c.b16 %v537, %v533
      %v638 = vpack.c.b16 %v542, %v538
      %v639 = vpack.c.b16 %v543, %v539
      %v640 = vpack.c.b16 %v544, %v540
      %v641 = vpack.c.b16 %v545, %v541
      %v642 = vpack.c.b16 %v550, %v546
      %v643 = vpack.c.b16 %v551, %v547
      %v644 = vpack.c.b16 %v552, %v548
      %v645 = vpack.c.b16 %v553, %v549
      %v646 = vpack.c.b16 %v558, %v554
      %v647 = vpack.c.b16 %v559, %v555
      %v648 = vpack.c.b16 %v560, %v556
      %v649 = vpack.c.b16 %v561, %v557
      %v650 = vpack.c.b16 %v566, %v562
      %v651 = vpack.c.b16 %v567, %v563
      %v652 = vpack.c.b16 %v568, %v564
      %v653 = vpack.c.b16 %v569, %v565
      %v654 = vpack.c.b16 %v574, %v570
      %v655 = vpack.c.b16 %v575, %v571
      %v656 = vpack.c.b16 %v576, %v572
      %v657 = vpack.c.b16 %v577, %v573
      %v658 = vpack.c.b16 %v582, %v578
      %v659 = vpack.c.b16 %v583, %v579
      %v660 = vpack.c.b16 %v584, %v580
      %v661 = vpack.c.b16 %v585, %v581
      %v662 = vpack.c.b16 %v590, %v586
      %v663 = vpack.c.b16 %v591, %v587
      %v664 = vpack.c.b16 %v592, %v588
      %v665 = vpack.c.b16 %v593, %v589
      %vm738 = vcmask 261120
      %v740 = vsel %vm738, %v375, 0
      %742 = vmatprep.subr.bf16.mxu0 %v595
      %743 = vmatpush1.bf16.msra.mxu0 %v594
      %744 = vmatprep.subr.bf16.mxu0 %v599
      %745 = vmatpush1.bf16.msra.mxu0 %v598
      %746 = vmatprep.subr.bf16.mxu0 %v603
      %747 = vmatpush1.bf16.msra.mxu0 %v602
      %748 = vmatprep.subr.bf16.mxu0 %v607
      %749 = vmatpush1.bf16.msra.mxu0 %v606
      %750 = vmatprep.subr.bf16.mxu0 %v611
      %751 = vmatpush1.bf16.msra.mxu0 %v610
      %752 = vmatprep.subr.bf16.mxu0 %v615
      %753 = vmatpush1.bf16.msra.mxu0 %v614
      %754 = vmatprep.subr.bf16.mxu0 %v619
      %755 = vmatpush1.bf16.msra.mxu0 %v618
      %756 = vmatprep.subr.bf16.mxu0 %v623
      %757 = vmatpush1.bf16.msra.mxu0 %v622
      %758 = vmatprep.subr.bf16.mxu0 %v627
      %759 = vmatpush1.bf16.msra.mxu0 %v626
      %760 = vmatprep.subr.bf16.mxu0 %v631
      %761 = vmatpush1.bf16.msra.mxu0 %v630
      %762 = vmatprep.subr.bf16.mxu0 %v635
      %763 = vmatpush1.bf16.msra.mxu0 %v634
      %764 = vmatprep.subr.bf16.mxu0 %v639
      %765 = vmatpush1.bf16.msra.mxu0 %v638
      %766 = vmatprep.subr.bf16.mxu0 %v643
      %767 = vmatpush1.bf16.msra.mxu0 %v642
      %768 = vmatprep.subr.bf16.mxu0 %v647
      %769 = vmatpush1.bf16.msra.mxu0 %v646
      %770 = vmatprep.subr.bf16.mxu0 %v651
      %771 = vmatpush1.bf16.msra.mxu0 %v650
      %772 = vmatprep.subr.bf16.mxu0 %v655
      %773 = vmatpush1.bf16.msra.mxu0 %v654
      %774 = vmatprep.mubr.bf16.mxu0 %v374
      %775 = vmatmul.mubr.bf16.gmra.mrb[0].mxu0 %v373
      %v776 = vpop.f32.mrb[0].mxu0
      %v777 = vadd.f32 0.0, %v776
      %v778 = vpop.f32.mrb[0].mxu0
      %v779 = vadd.f32 0.0, %v778
      %v780 = vpop.f32.mrb[0].mxu0
      %v781 = vpop.f32.mrb[0].mxu0
      %782 = vdwg.mxu0
      %783 = vmatprep.subr.bf16.mxu0 %v659
      %784 = vmatpush1.bf16.msra.mxu0 %v658
      %785 = vmatprep.subr.bf16.mxu0 %v663
      %786 = vmatpush1.bf16.msra.mxu0 %v662
      %787 = vmatprep.subr.bf16.mxu0 0
      %788 = vmatpush1.bf16.msra.mxu0 0
      %789 = vmatprep.subr.bf16.mxu0 0
      %790 = vmatpush1.bf16.msra.mxu0 0
      %791 = vmatprep.subr.bf16.mxu0 0
      %792 = vmatpush1.bf16.msra.mxu0 0
      %793 = vmatprep.subr.bf16.mxu0 0
      %794 = vmatpush1.bf16.msra.mxu0 0
      %795 = vmatprep.subr.bf16.mxu0 0
      %796 = vmatpush1.bf16.msra.mxu0 0
      %797 = vmatprep.subr.bf16.mxu0 0
      %798 = vmatpush1.bf16.msra.mxu0 0
      %799 = vmatprep.subr.bf16.mxu0 0
      %800 = vmatpush1.bf16.msra.mxu0 0
      %801 = vmatprep.subr.bf16.mxu0 0
      %802 = vmatpush1.bf16.msra.mxu0 0
      %803 = vmatprep.subr.bf16.mxu0 0
      %804 = vmatpush1.bf16.msra.mxu0 0
      %805 = vmatprep.subr.bf16.mxu0 0
      %806 = vmatpush1.bf16.msra.mxu0 0
      %807 = vmatprep.subr.bf16.mxu0 0
      %808 = vmatpush1.bf16.msra.mxu0 0
      %809 = vmatprep.subr.bf16.mxu0 0
      %810 = vmatpush1.bf16.msra.mxu0 0
      %811 = vmatprep.subr.bf16.mxu0 0
      %812 = vmatpush1.bf16.msra.mxu0 0
      %813 = vmatprep.subr.bf16.mxu0 0
      %814 = vmatpush1.bf16.msra.mxu0 0
      %815 = vmatprep.mubr.bf16.mxu0 0
      %816 = vmatmul.mubr.bf16.gmra.mrb[0].mxu0 %v740
      %v817 = vpop.f32.mrb[0].mxu0
      %v818 = vadd.f32 %v777, %v817
      %v819 = vpop.f32.mrb[0].mxu0
      %v820 = vadd.f32 %v779, %v819
      %v821 = vpop.f32.mrb[0].mxu0
      %v822 = vpop.f32.mrb[0].mxu0
      %823 = vdwg.mxu0
      %824 = vmatprep.subr.bf16.mxu0 %v597
      %825 = vmatpush1.bf16.msra.mxu0 %v596
      %826 = vmatprep.subr.bf16.mxu0 %v601
      %827 = vmatpush1.bf16.msra.mxu0 %v600
      %828 = vmatprep.subr.bf16.mxu0 %v605
      %829 = vmatpush1.bf16.msra.mxu0 %v604
      %830 = vmatprep.subr.bf16.mxu0 %v609
      %831 = vmatpush1.bf16.msra.mxu0 %v608
      %832 = vmatprep.subr.bf16.mxu0 %v613
      %833 = vmatpush1.bf16.msra.mxu0 %v612
      %834 = vmatprep.subr.bf16.mxu0 %v617
      %835 = vmatpush1.bf16.msra.mxu0 %v616
      %836 = vmatprep.subr.bf16.mxu0 %v621
      %837 = vmatpush1.bf16.msra.mxu0 %v620
      %838 = vmatprep.subr.bf16.mxu0 %v625
      %839 = vmatpush1.bf16.msra.mxu0 %v624
      %840 = vmatprep.subr.bf16.mxu0 %v629
      %841 = vmatpush1.bf16.msra.mxu0 %v628
      %842 = vmatprep.subr.bf16.mxu0 %v633
      %843 = vmatpush1.bf16.msra.mxu0 %v632
      %844 = vmatprep.subr.bf16.mxu0 %v637
      %845 = vmatpush1.bf16.msra.mxu0 %v636
      %846 = vmatprep.subr.bf16.mxu0 %v641
      %847 = vmatpush1.bf16.msra.mxu0 %v640
      %848 = vmatprep.subr.bf16.mxu0 %v645
      %849 = vmatpush1.bf16.msra.mxu0 %v644
      %850 = vmatprep.subr.bf16.mxu0 %v649
      %851 = vmatpush1.bf16.msra.mxu0 %v648
      %852 = vmatprep.subr.bf16.mxu0 %v653
      %853 = vmatpush1.bf16.msra.mxu0 %v652
      %854 = vmatprep.subr.bf16.mxu0 %v657
      %855 = vmatpush1.bf16.msra.mxu0 %v656
      %856 = vmatprep.mubr.bf16.mxu0 %v374
      %857 = vmatmul.mubr.bf16.gmra.mrb[0].mxu0 %v373
      %v858 = vpop.f32.mrb[0].mxu0
      %v859 = vadd.f32 0.0, %v858
      %v860 = vpop.f32.mrb[0].mxu0
      %v861 = vadd.f32 0.0, %v860
      %v862 = vpop.f32.mrb[0].mxu0
      %v863 = vpop.f32.mrb[0].mxu0
      %864 = vdwg.mxu0
      %865 = vmatprep.subr.bf16.mxu0 %v661
      %866 = vmatpush1.bf16.msra.mxu0 %v660
      %867 = vmatprep.subr.bf16.mxu0 %v665
      %868 = vmatpush1.bf16.msra.mxu0 %v664
      %869 = vmatprep.subr.bf16.mxu0 0
      %870 = vmatpush1.bf16.msra.mxu0 0
      %871 = vmatprep.subr.bf16.mxu0 0
      %872 = vmatpush1.bf16.msra.mxu0 0
      %873 = vmatprep.subr.bf16.mxu0 0
      %874 = vmatpush1.bf16.msra.mxu0 0
      %875 = vmatprep.subr.bf16.mxu0 0
      %876 = vmatpush1.bf16.msra.mxu0 0
      %877 = vmatprep.subr.bf16.mxu0 0
      %878 = vmatpush1.bf16.msra.mxu0 0
      %879 = vmatprep.subr.bf16.mxu0 0
      %880 = vmatpush1.bf16.msra.mxu0 0
      %881 = vmatprep.subr.bf16.mxu0 0
      %882 = vmatpush1.bf16.msra.mxu0 0
      %883 = vmatprep.subr.bf16.mxu0 0
      %884 = vmatpush1.bf16.msra.mxu0 0
      %885 = vmatprep.subr.bf16.mxu0 0
      %886 = vmatpush1.bf16.msra.mxu0 0
      %887 = vmatprep.subr.bf16.mxu0 0
      %888 = vmatpush1.bf16.msra.mxu0 0
      %889 = vmatprep.subr.bf16.mxu0 0
      %890 = vmatpush1.bf16.msra.mxu0 0
      %891 = vmatprep.subr.bf16.mxu0 0
      %892 = vmatpush1.bf16.msra.mxu0 0
      %893 = vmatprep.subr.bf16.mxu0 0
      %894 = vmatpush1.bf16.msra.mxu0 0
      %895 = vmatprep.subr.bf16.mxu0 0
      %896 = vmatpush1.bf16.msra.mxu0 0
      %897 = vmatprep.mubr.bf16.mxu0 0
      %898 = vmatmul.mubr.bf16.gmra.mrb[0].mxu0 %v740
      %v899 = vpop.f32.mrb[0].mxu0
      %v900 = vadd.f32 %v859, %v899
      %v901 = vpop.f32.mrb[0].mxu0
      %v902 = vadd.f32 %v861, %v901
      %v903 = vpop.f32.mrb[0].mxu0
      %v904 = vpop.f32.mrb[0].mxu0
      %905 = vdwg.mxu0
      %v908 = vunpack.c.l.b16 %v219
      %v909 = vunpack.c.h.b16 %v219
      %v910 = vunpack.c.l.b16 %v220
      %v911 = vpack.c.b16 %v908, %v908
      %v912 = vpack.c.b16 %v909, %v909
      %v913 = vpack.c.b16 %v910, %v910
      %v988 = vunpack.c.l.b16 %v221
      %v989 = vunpack.c.h.b16 %v221
      %v990 = vunpack.c.l.b16 %v222
      %v991 = vunpack.c.h.b16 %v222
      %v992 = vunpack.c.l.b16 %v223
      %v993 = vunpack.c.h.b16 %v223
      %v994 = vunpack.c.l.b16 %v224
      %v995 = vunpack.c.h.b16 %v224
      %v996 = vunpack.c.l.b16 %v225
      %v997 = vunpack.c.h.b16 %v225
      %v998 = vunpack.c.l.b16 %v226
      %v999 = vunpack.c.h.b16 %v226
      %v1000 = vunpack.c.l.b16 %v227
      %v1001 = vunpack.c.h.b16 %v227
      %v1002 = vunpack.c.l.b16 %v228
      %v1003 = vunpack.c.h.b16 %v228
      %v1004 = vunpack.c.l.b16 %v229
      %v1005 = vunpack.c.h.b16 %v229
      %v1006 = vunpack.c.l.b16 %v230
      %v1007 = vunpack.c.h.b16 %v230
      %v1008 = vunpack.c.l.b16 %v231
      %v1009 = vunpack.c.h.b16 %v231
      %v1010 = vunpack.c.l.b16 %v232
      %v1011 = vunpack.c.h.b16 %v232
      %v1012 = vunpack.c.l.b16 %v233
      %v1013 = vunpack.c.h.b16 %v233
      %v1014 = vunpack.c.l.b16 %v234
      %v1015 = vunpack.c.h.b16 %v234
      %v1016 = vunpack.c.l.b16 %v235
      %v1017 = vunpack.c.h.b16 %v235
      %v1018 = vunpack.c.l.b16 %v236
      %v1019 = vunpack.c.h.b16 %v236
      %v1020 = vunpack.c.l.b16 %v237
      %v1021 = vunpack.c.h.b16 %v237
      %v1022 = vunpack.c.l.b16 %v238
      %v1023 = vunpack.c.h.b16 %v238
      %v1024 = vunpack.c.l.b16 %v239
      %v1025 = vunpack.c.h.b16 %v239
      %v1026 = vunpack.c.l.b16 %v240
      %v1027 = vunpack.c.h.b16 %v240
      %v1028 = vunpack.c.l.b16 %v241
      %v1029 = vunpack.c.h.b16 %v241
      %v1030 = vunpack.c.l.b16 %v242
      %v1031 = vunpack.c.h.b16 %v242
      %v1032 = vunpack.c.l.b16 %v243
      %v1033 = vunpack.c.h.b16 %v243
      %v1034 = vunpack.c.l.b16 %v244
      %v1035 = vunpack.c.h.b16 %v244
      %v1036 = vunpack.c.l.b16 %v245
      %v1037 = vunpack.c.h.b16 %v245
      %v1038 = vunpack.c.l.b16 %v246
      %v1039 = vunpack.c.h.b16 %v246
      %v1040 = vunpack.c.l.b16 %v247
      %v1041 = vunpack.c.h.b16 %v247
      %v1042 = vunpack.c.l.b16 %v248
      %v1043 = vunpack.c.h.b16 %v248
      %v1044 = vunpack.c.l.b16 %v249
      %v1045 = vunpack.c.h.b16 %v249
      %v1046 = vunpack.c.l.b16 %v250
      %v1047 = vunpack.c.h.b16 %v250
      %v1048 = vunpack.c.l.b16 %v251
      %v1049 = vunpack.c.h.b16 %v251
      %v1050 = vunpack.c.l.b16 %v252
      %v1051 = vunpack.c.h.b16 %v252
      %v1052 = vunpack.c.l.b16 %v253
      %v1053 = vunpack.c.h.b16 %v253
      %v1054 = vunpack.c.l.b16 %v254
      %v1055 = vunpack.c.h.b16 %v254
      %v1056 = vunpack.c.l.b16 %v255
      %v1057 = vunpack.c.h.b16 %v255
      %v1058 = vunpack.c.l.b16 %v256
      %v1059 = vunpack.c.h.b16 %v256
      %v1060 = vunpack.c.l.b16 %v257
      %v1061 = vunpack.c.h.b16 %v257
      %v1062 = vunpack.c.l.b16 %v258
      %v1063 = vunpack.c.h.b16 %v258
      %v1064 = vunpack.c.l.b16 %v259
      %v1065 = vunpack.c.h.b16 %v259
      %v1066 = vunpack.c.l.b16 %v260
      %v1067 = vunpack.c.h.b16 %v260
      %v1068 = vunpack.c.l.b16 %v261
      %v1069 = vunpack.c.h.b16 %v261
      %v1070 = vunpack.c.l.b16 %v262
      %v1071 = vunpack.c.h.b16 %v262
      %v1072 = vunpack.c.l.b16 %v263
      %v1073 = vunpack.c.h.b16 %v263
      %v1074 = vunpack.c.l.b16 %v264
      %v1075 = vunpack.c.h.b16 %v264
      %v1076 = vunpack.c.l.b16 %v265
      %v1077 = vunpack.c.h.b16 %v265
      %v1078 = vunpack.c.l.b16 %v266
      %v1079 = vunpack.c.h.b16 %v266
      %v1080 = vunpack.c.l.b16 %v267
      %v1081 = vunpack.c.h.b16 %v267
      %v1082 = vunpack.c.l.b16 %v268
      %v1083 = vunpack.c.h.b16 %v268
      %v1084 = vunpack.c.l.b16 %v269
      %v1085 = vunpack.c.h.b16 %v269
      %v1086 = vunpack.c.l.b16 %v270
      %v1087 = vunpack.c.h.b16 %v270
      %v1088 = vunpack.c.l.b16 %v271
      %v1089 = vunpack.c.h.b16 %v271
      %v1090 = vunpack.c.l.b16 %v272
      %v1091 = vunpack.c.h.b16 %v272
      %v1092 = vunpack.c.l.b16 %v273
      %v1093 = vunpack.c.h.b16 %v273
      %v1094 = vunpack.c.l.b16 %v274
      %v1095 = vunpack.c.h.b16 %v274
      %v1096 = vunpack.c.l.b16 %v275
      %v1097 = vunpack.c.h.b16 %v275
      %v1098 = vunpack.c.l.b16 %v276
      %v1099 = vunpack.c.h.b16 %v276
      %v1100 = vunpack.c.l.b16 %v277
      %v1101 = vunpack.c.h.b16 %v277
      %v1102 = vunpack.c.l.b16 %v278
      %v1103 = vunpack.c.h.b16 %v278
      %v1104 = vunpack.c.l.b16 %v279
      %v1105 = vunpack.c.h.b16 %v279
      %v1106 = vunpack.c.l.b16 %v280
      %v1107 = vunpack.c.h.b16 %v280
      %v1108 = vunpack.c.l.b16 %v281
      %v1109 = vunpack.c.h.b16 %v281
      %v1110 = vunpack.c.l.b16 %v282
      %v1111 = vunpack.c.h.b16 %v282
      %v1112 = vunpack.c.l.b16 %v283
      %v1113 = vunpack.c.h.b16 %v283
      %v1114 = vunpack.c.l.b16 %v284
      %v1115 = vunpack.c.h.b16 %v284
      %v1116 = vunpack.c.l.b16 %v285
      %v1117 = vunpack.c.h.b16 %v285
      %v1118 = vunpack.c.l.b16 %v286
      %v1119 = vunpack.c.h.b16 %v286
      %v1120 = vunpack.c.l.b16 %v287
      %v1121 = vunpack.c.h.b16 %v287
      %v1122 = vunpack.c.l.b16 %v288
      %v1123 = vunpack.c.h.b16 %v288
      %v1124 = vunpack.c.l.b16 %v289
      %v1125 = vunpack.c.h.b16 %v289
      %v1126 = vunpack.c.l.b16 %v290
      %v1127 = vunpack.c.h.b16 %v290
      %v1128 = vunpack.c.l.b16 %v291
      %v1129 = vunpack.c.h.b16 %v291
      %v1130 = vunpack.c.l.b16 %v292
      %v1131 = vunpack.c.h.b16 %v292
      %v1132 = vpack.c.b16 %v992, %v988
      %v1133 = vpack.c.b16 %v993, %v989
      %v1134 = vpack.c.b16 %v994, %v990
      %v1135 = vpack.c.b16 %v995, %v991
      %v1136 = vpack.c.b16 %v1000, %v996
      %v1137 = vpack.c.b16 %v1001, %v997
      %v1138 = vpack.c.b16 %v1002, %v998
      %v1139 = vpack.c.b16 %v1003, %v999
      %v1140 = vpack.c.b16 %v1008, %v1004
      %v1141 = vpack.c.b16 %v1009, %v1005
      %v1142 = vpack.c.b16 %v1010, %v1006
      %v1143 = vpack.c.b16 %v1011, %v1007
      %v1144 = vpack.c.b16 %v1016, %v1012
      %v1145 = vpack.c.b16 %v1017, %v1013
      %v1146 = vpack.c.b16 %v1018, %v1014
      %v1147 = vpack.c.b16 %v1019, %v1015
      %v1148 = vpack.c.b16 %v1024, %v1020
      %v1149 = vpack.c.b16 %v1025, %v1021
      %v1150 = vpack.c.b16 %v1026, %v1022
      %v1151 = vpack.c.b16 %v1027, %v1023
      %v1152 = vpack.c.b16 %v1032, %v1028
      %v1153 = vpack.c.b16 %v1033, %v1029
      %v1154 = vpack.c.b16 %v1034, %v1030
      %v1155 = vpack.c.b16 %v1035, %v1031
      %v1156 = vpack.c.b16 %v1040, %v1036
      %v1157 = vpack.c.b16 %v1041, %v1037
      %v1158 = vpack.c.b16 %v1042, %v1038
      %v1159 = vpack.c.b16 %v1043, %v1039
      %v1160 = vpack.c.b16 %v1048, %v1044
      %v1161 = vpack.c.b16 %v1049, %v1045
      %v1162 = vpack.c.b16 %v1050, %v1046
      %v1163 = vpack.c.b16 %v1051, %v1047
      %v1164 = vpack.c.b16 %v1056, %v1052
      %v1165 = vpack.c.b16 %v1057, %v1053
      %v1166 = vpack.c.b16 %v1058, %v1054
      %v1167 = vpack.c.b16 %v1059, %v1055
      %v1168 = vpack.c.b16 %v1064, %v1060
      %v1169 = vpack.c.b16 %v1065, %v1061
      %v1170 = vpack.c.b16 %v1066, %v1062
      %v1171 = vpack.c.b16 %v1067, %v1063
      %v1172 = vpack.c.b16 %v1072, %v1068
      %v1173 = vpack.c.b16 %v1073, %v1069
      %v1174 = vpack.c.b16 %v1074, %v1070
      %v1175 = vpack.c.b16 %v1075, %v1071
      %v1176 = vpack.c.b16 %v1080, %v1076
      %v1177 = vpack.c.b16 %v1081, %v1077
      %v1178 = vpack.c.b16 %v1082, %v1078
      %v1179 = vpack.c.b16 %v1083, %v1079
      %v1180 = vpack.c.b16 %v1088, %v1084
      %v1181 = vpack.c.b16 %v1089, %v1085
      %v1182 = vpack.c.b16 %v1090, %v1086
      %v1183 = vpack.c.b16 %v1091, %v1087
      %v1184 = vpack.c.b16 %v1096, %v1092
      %v1185 = vpack.c.b16 %v1097, %v1093
      %v1186 = vpack.c.b16 %v1098, %v1094
      %v1187 = vpack.c.b16 %v1099, %v1095
      %v1188 = vpack.c.b16 %v1104, %v1100
      %v1189 = vpack.c.b16 %v1105, %v1101
      %v1190 = vpack.c.b16 %v1106, %v1102
      %v1191 = vpack.c.b16 %v1107, %v1103
      %v1192 = vpack.c.b16 %v1112, %v1108
      %v1193 = vpack.c.b16 %v1113, %v1109
      %v1194 = vpack.c.b16 %v1114, %v1110
      %v1195 = vpack.c.b16 %v1115, %v1111
      %v1196 = vpack.c.b16 %v1120, %v1116
      %v1197 = vpack.c.b16 %v1121, %v1117
      %v1198 = vpack.c.b16 %v1122, %v1118
      %v1199 = vpack.c.b16 %v1123, %v1119
      %v1200 = vpack.c.b16 %v1128, %v1124
      %v1201 = vpack.c.b16 %v1129, %v1125
      %v1202 = vpack.c.b16 %v1130, %v1126
      %v1203 = vpack.c.b16 %v1131, %v1127
      %v1277 = vsel %vm738, %v913, 0
      %1279 = vmatprep.subr.bf16.mxu0 %v1133
      %1280 = vmatpush1.bf16.msra.mxu0 %v1132
      %1281 = vmatprep.subr.bf16.mxu0 %v1137
      %1282 = vmatpush1.bf16.msra.mxu0 %v1136
      %1283 = vmatprep.subr.bf16.mxu0 %v1141
      %1284 = vmatpush1.bf16.msra.mxu0 %v1140
      %1285 = vmatprep.subr.bf16.mxu0 %v1145
      %1286 = vmatpush1.bf16.msra.mxu0 %v1144
      %1287 = vmatprep.subr.bf16.mxu0 %v1149
      %1288 = vmatpush1.bf16.msra.mxu0 %v1148
      %1289 = vmatprep.subr.bf16.mxu0 %v1153
      %1290 = vmatpush1.bf16.msra.mxu0 %v1152
      %1291 = vmatprep.subr.bf16.mxu0 %v1157
      %1292 = vmatpush1.bf16.msra.mxu0 %v1156
      %1293 = vmatprep.subr.bf16.mxu0 %v1161
      %1294 = vmatpush1.bf16.msra.mxu0 %v1160
      %1295 = vmatprep.subr.bf16.mxu0 %v1165
      %1296 = vmatpush1.bf16.msra.mxu0 %v1164
      %1297 = vmatprep.subr.bf16.mxu0 %v1169
      %1298 = vmatpush1.bf16.msra.mxu0 %v1168
      %1299 = vmatprep.subr.bf16.mxu0 %v1173
      %1300 = vmatpush1.bf16.msra.mxu0 %v1172
      %1301 = vmatprep.subr.bf16.mxu0 %v1177
      %1302 = vmatpush1.bf16.msra.mxu0 %v1176
      %1303 = vmatprep.subr.bf16.mxu0 %v1181
      %1304 = vmatpush1.bf16.msra.mxu0 %v1180
      %1305 = vmatprep.subr.bf16.mxu0 %v1185
      %1306 = vmatpush1.bf16.msra.mxu0 %v1184
      %1307 = vmatprep.subr.bf16.mxu0 %v1189
      %1308 = vmatpush1.bf16.msra.mxu0 %v1188
      %1309 = vmatprep.subr.bf16.mxu0 %v1193
      %1310 = vmatpush1.bf16.msra.mxu0 %v1192
      %1311 = vmatprep.mubr.bf16.mxu0 %v912
      %1312 = vmatmul.mubr.bf16.gmra.mrb[0].mxu0 %v911
      %v1313 = vpop.f32.mrb[0].mxu0
      %v1314 = vadd.f32 %v818, %v1313
      %v1315 = vpop.f32.mrb[0].mxu0
      %v1316 = vadd.f32 %v820, %v1315
      %v1317 = vpop.f32.mrb[0].mxu0
      %v1318 = vpop.f32.mrb[0].mxu0
      %1319 = vdwg.mxu0
      %1320 = vmatprep.subr.bf16.mxu0 %v1197
      %1321 = vmatpush1.bf16.msra.mxu0 %v1196
      %1322 = vmatprep.subr.bf16.mxu0 %v1201
      %1323 = vmatpush1.bf16.msra.mxu0 %v1200
      %1324 = vmatprep.subr.bf16.mxu0 0
      %1325 = vmatpush1.bf16.msra.mxu0 0
      %1326 = vmatprep.subr.bf16.mxu0 0
      %1327 = vmatpush1.bf16.msra.mxu0 0
      %1328 = vmatprep.subr.bf16.mxu0 0
      %1329 = vmatpush1.bf16.msra.mxu0 0
      %1330 = vmatprep.subr.bf16.mxu0 0
      %1331 = vmatpush1.bf16.msra.mxu0 0
      %1332 = vmatprep.subr.bf16.mxu0 0
      %1333 = vmatpush1.bf16.msra.mxu0 0
      %1334 = vmatprep.subr.bf16.mxu0 0
      %1335 = vmatpush1.bf16.msra.mxu0 0
      %1336 = vmatprep.subr.bf16.mxu0 0
      %1337 = vmatpush1.bf16.msra.mxu0 0
      %1338 = vmatprep.subr.bf16.mxu0 0
      %1339 = vmatpush1.bf16.msra.mxu0 0
      %1340 = vmatprep.subr.bf16.mxu0 0
      %1341 = vmatpush1.bf16.msra.mxu0 0
      %1342 = vmatprep.subr.bf16.mxu0 0
      %1343 = vmatpush1.bf16.msra.mxu0 0
      %1344 = vmatprep.subr.bf16.mxu0 0
      %1345 = vmatpush1.bf16.msra.mxu0 0
      %1346 = vmatprep.subr.bf16.mxu0 0
      %1347 = vmatpush1.bf16.msra.mxu0 0
      %1348 = vmatprep.subr.bf16.mxu0 0
      %1349 = vmatpush1.bf16.msra.mxu0 0
      %1350 = vmatprep.subr.bf16.mxu0 0
      %1351 = vmatpush1.bf16.msra.mxu0 0
      %1352 = vmatprep.mubr.bf16.mxu0 0
      %1353 = vmatmul.mubr.bf16.gmra.mrb[0].mxu0 %v1277
      %v1354 = vpop.f32.mrb[0].mxu0
      %v1355 = vadd.f32 %v1314, %v1354
      %v1356 = vpop.f32.mrb[0].mxu0
      %v1357 = vadd.f32 %v1316, %v1356
      %v1358 = vpop.f32.mrb[0].mxu0
      %v1359 = vpop.f32.mrb[0].mxu0
      %1360 = vdwg.mxu0
      %1361 = vmatprep.subr.bf16.mxu0 %v1135
      %1362 = vmatpush1.bf16.msra.mxu0 %v1134
      %1363 = vmatprep.subr.bf16.mxu0 %v1139
      %1364 = vmatpush1.bf16.msra.mxu0 %v1138
      %1365 = vmatprep.subr.bf16.mxu0 %v1143
      %1366 = vmatpush1.bf16.msra.mxu0 %v1142
      %1367 = vmatprep.subr.bf16.mxu0 %v1147
      %1368 = vmatpush1.bf16.msra.mxu0 %v1146
      %1369 = vmatprep.subr.bf16.mxu0 %v1151
      %1370 = vmatpush1.bf16.msra.mxu0 %v1150
      %1371 = vmatprep.subr.bf16.mxu0 %v1155
      %1372 = vmatpush1.bf16.msra.mxu0 %v1154
      %1373 = vmatprep.subr.bf16.mxu0 %v1159
      %1374 = vmatpush1.bf16.msra.mxu0 %v1158
      %1375 = vmatprep.subr.bf16.mxu0 %v1163
      %1376 = vmatpush1.bf16.msra.mxu0 %v1162
      %1377 = vmatprep.subr.bf16.mxu0 %v1167
      %1378 = vmatpush1.bf16.msra.mxu0 %v1166
      %1379 = vmatprep.subr.bf16.mxu0 %v1171
      %1380 = vmatpush1.bf16.msra.mxu0 %v1170
      %1381 = vmatprep.subr.bf16.mxu0 %v1175
      %1382 = vmatpush1.bf16.msra.mxu0 %v1174
      %1383 = vmatprep.subr.bf16.mxu0 %v1179
      %1384 = vmatpush1.bf16.msra.mxu0 %v1178
      %1385 = vmatprep.subr.bf16.mxu0 %v1183
      %1386 = vmatpush1.bf16.msra.mxu0 %v1182
      %1387 = vmatprep.subr.bf16.mxu0 %v1187
      %1388 = vmatpush1.bf16.msra.mxu0 %v1186
      %1389 = vmatprep.subr.bf16.mxu0 %v1191
      %1390 = vmatpush1.bf16.msra.mxu0 %v1190
      %1391 = vmatprep.subr.bf16.mxu0 %v1195
      %1392 = vmatpush1.bf16.msra.mxu0 %v1194
      %1393 = vmatprep.mubr.bf16.mxu0 %v912
      %1394 = vmatmul.mubr.bf16.gmra.mrb[0].mxu0 %v911
      %v1395 = vpop.f32.mrb[0].mxu0
      %v1396 = vadd.f32 %v900, %v1395
      %v1397 = vpop.f32.mrb[0].mxu0
      %v1398 = vadd.f32 %v902, %v1397
      %v1399 = vpop.f32.mrb[0].mxu0
      %v1400 = vpop.f32.mrb[0].mxu0
      %1401 = vdwg.mxu0
      %1402 = vmatprep.subr.bf16.mxu0 %v1199
      %1403 = vmatpush1.bf16.msra.mxu0 %v1198
      %1404 = vmatprep.subr.bf16.mxu0 %v1203
      %1405 = vmatpush1.bf16.msra.mxu0 %v1202
      %1406 = vmatprep.subr.bf16.mxu0 0
      %1407 = vmatpush1.bf16.msra.mxu0 0
      %1408 = vmatprep.subr.bf16.mxu0 0
      %1409 = vmatpush1.bf16.msra.mxu0 0
      %1410 = vmatprep.subr.bf16.mxu0 0
      %1411 = vmatpush1.bf16.msra.mxu0 0
      %1412 = vmatprep.subr.bf16.mxu0 0
      %1413 = vmatpush1.bf16.msra.mxu0 0
      %1414 = vmatprep.subr.bf16.mxu0 0
      %1415 = vmatpush1.bf16.msra.mxu0 0
      %1416 = vmatprep.subr.bf16.mxu0 0
      %1417 = vmatpush1.bf16.msra.mxu0 0
      %1418 = vmatprep.subr.bf16.mxu0 0
      %1419 = vmatpush1.bf16.msra.mxu0 0
      %1420 = vmatprep.subr.bf16.mxu0 0
      %1421 = vmatpush1.bf16.msra.mxu0 0
      %1422 = vmatprep.subr.bf16.mxu0 0
      %1423 = vmatpush1.bf16.msra.mxu0 0
      %1424 = vmatprep.subr.bf16.mxu0 0
      %1425 = vmatpush1.bf16.msra.mxu0 0
      %1426 = vmatprep.subr.bf16.mxu0 0
      %1427 = vmatpush1.bf16.msra.mxu0 0
      %1428 = vmatprep.subr.bf16.mxu0 0
      %1429 = vmatpush1.bf16.msra.mxu0 0
      %1430 = vmatprep.subr.bf16.mxu0 0
      %1431 = vmatpush1.bf16.msra.mxu0 0
      %1432 = vmatprep.subr.bf16.mxu0 0
      %1433 = vmatpush1.bf16.msra.mxu0 0
      %1434 = vmatprep.mubr.bf16.mxu0 0
      %1435 = vmatmul.mubr.bf16.gmra.mrb[0].mxu0 %v1277
      %v1436 = vpop.f32.mrb[0].mxu0
      %v1437 = vadd.f32 %v1396, %v1436
      %v1438 = vpop.f32.mrb[0].mxu0
      %v1439 = vadd.f32 %v1398, %v1438
      %v1440 = vpop.f32.mrb[0].mxu0
      %v1441 = vpop.f32.mrb[0].mxu0
      %1442 = vdwg.mxu0
      %s1443 = scalar_lea.vmem %s2, 1152
      %v1444 = vld [vmem:[%s1443] sm:$0xff]
      %v1445 = vld [vmem:[%s1443 + $0x8] sm:$0xff]
      %v1446 = vld [vmem:[%s1443 + $0x10] sm:$0xff]
      %v1447 = vld [vmem:[%s1443 + $0x18] sm:$0xff]
      %v1448 = vld [vmem:[%s1443 + $0x20] sm:$0xff]
      %v1449 = vld [vmem:[%s1443 + $0x28] sm:$0xff]
      %v1450 = vld [vmem:[%s1443 + $0x30] sm:$0xff]
      %v1451 = vld [vmem:[%s1443 + $0x38] sm:$0xff]
      %v1452 = vld [vmem:[%s1443 + $0x40] sm:$0xff]
      %v1453 = vld [vmem:[%s1443 + $0x48] sm:$0xff]
      %v1454 = vld [vmem:[%s1443 + $0x50] sm:$0xff]
      %v1455 = vld [vmem:[%s1443 + $0x58] sm:$0xff]
      %v1456 = vld [vmem:[%s1443 + $0x60] sm:$0xff]
      %v1457 = vld [vmem:[%s1443 + $0x68] sm:$0xff]
      %v1458 = vld [vmem:[%s1443 + $0x70] sm:$0xff]
      %v1459 = vld [vmem:[%s1443 + $0x78] sm:$0xff]
      %v1460 = vld [vmem:[%s1443 + $0x80] sm:$0xff]
      %v1461 = vld [vmem:[%s1443 + $0x88] sm:$0xff]
      %v1462 = vld [vmem:[%s1443 + $0x90] sm:$0xff]
      %v1463 = vld [vmem:[%s1443 + $0x98] sm:$0xff]
      %v1464 = vld [vmem:[%s1443 + $0xa0] sm:$0xff]
      %v1465 = vld [vmem:[%s1443 + $0xa8] sm:$0xff]
      %v1466 = vld [vmem:[%s1443 + $0xb0] sm:$0xff]
      %v1467 = vld [vmem:[%s1443 + $0xb8] sm:$0xff]
      %v1468 = vld [vmem:[%s1443 + $0xc0] sm:$0xff]
      %v1469 = vld [vmem:[%s1443 + $0xc8] sm:$0xff]
      %v1470 = vld [vmem:[%s1443 + $0xd0] sm:$0xff]
      %v1471 = vld [vmem:[%s1443 + $0xd8] sm:$0xff]
      %v1472 = vld [vmem:[%s1443 + $0xe0] sm:$0xff]
      %v1473 = vld [vmem:[%s1443 + $0xe8] sm:$0xff]
      %v1474 = vld [vmem:[%s1443 + $0xf0] sm:$0xff]
      %v1475 = vld [vmem:[%s1443 + $0xf8] sm:$0xff]
      %v1476 = vld [vmem:[%s1443 + $0x100] sm:$0xff]
      %v1477 = vld [vmem:[%s1443 + $0x108] sm:$0xff]
      %v1478 = vld [vmem:[%s1443 + $0x110] sm:$0xff]
      %v1479 = vld [vmem:[%s1443 + $0x118] sm:$0xff]
      %v1480 = vld [vmem:[%s1443 + $0x120] sm:$0xff]
      %v1481 = vld [vmem:[%s1443 + $0x128] sm:$0xff]
      %v1482 = vld [vmem:[%s1443 + $0x130] sm:$0xff]
      %v1483 = vld [vmem:[%s1443 + $0x138] sm:$0xff]
      %v1484 = vld [vmem:[%s1443 + $0x140] sm:$0xff]
      %v1485 = vld [vmem:[%s1443 + $0x148] sm:$0xff]
      %v1486 = vld [vmem:[%s1443 + $0x150] sm:$0xff]
      %v1487 = vld [vmem:[%s1443 + $0x158] sm:$0xff]
      %v1488 = vld [vmem:[%s1443 + $0x160] sm:$0xff]
      %v1489 = vld [vmem:[%s1443 + $0x168] sm:$0xff]
      %v1490 = vld [vmem:[%s1443 + $0x170] sm:$0xff]
      %v1491 = vld [vmem:[%s1443 + $0x178] sm:$0xff]
      %v1492 = vld [vmem:[%s1443 + $0x180] sm:$0xff]
      %v1493 = vld [vmem:[%s1443 + $0x188] sm:$0xff]
      %v1494 = vld [vmem:[%s1443 + $0x190] sm:$0xff]
      %v1495 = vld [vmem:[%s1443 + $0x198] sm:$0xff]
      %v1496 = vld [vmem:[%s1443 + $0x1a0] sm:$0xff]
      %v1497 = vld [vmem:[%s1443 + $0x1a8] sm:$0xff]
      %v1498 = vld [vmem:[%s1443 + $0x1b0] sm:$0xff]
      %v1499 = vld [vmem:[%s1443 + $0x1b8] sm:$0xff]
      %v1500 = vld [vmem:[%s1443 + $0x1c0] sm:$0xff]
      %v1501 = vld [vmem:[%s1443 + $0x1c8] sm:$0xff]
      %v1502 = vld [vmem:[%s1443 + $0x1d0] sm:$0xff]
      %v1503 = vld [vmem:[%s1443 + $0x1d8] sm:$0xff]
      %v1504 = vld [vmem:[%s1443 + $0x1e0] sm:$0xff]
      %v1505 = vld [vmem:[%s1443 + $0x1e8] sm:$0xff]
      %v1506 = vld [vmem:[%s1443 + $0x1f0] sm:$0xff]
      %v1507 = vld [vmem:[%s1443 + $0x1f8] sm:$0xff]
      %v1508 = vld [vmem:[%s1443 + $0x200] sm:$0xff]
      %v1509 = vld [vmem:[%s1443 + $0x208] sm:$0xff]
      %v1510 = vld [vmem:[%s1443 + $0x210] sm:$0xff]
      %v1511 = vld [vmem:[%s1443 + $0x218] sm:$0xff]
      %v1512 = vld [vmem:[%s1443 + $0x220] sm:$0xff]
      %v1513 = vld [vmem:[%s1443 + $0x228] sm:$0xff]
      %v1514 = vld [vmem:[%s1443 + $0x230] sm:$0xff]
      %v1515 = vld [vmem:[%s1443 + $0x238] sm:$0xff]
      %v1517 = vshrl.u32 %v911, 16
      %v1519 = vshll.u32 %v911, 16
      %v1521 = vrot.slane %v1519, 1
      %v1522 = vor.u32 %v1517, %v1521
      %v1524 = vshrl.u32 %v912, 16
      %v1526 = vshll.u32 %v912, 16
      %v1528 = vrot.slane %v1526, 1
      %v1529 = vor.u32 %v1524, %v1528
      %v1530 = vshrl.u32 %v913, 16
      %v1532 = vshll.u32 %v913, 16
      %v1534 = vrot.slane %v1532, 1
      %v1535 = vor.u32 %v1530, %v1534
      %v1610 = vunpack.c.l.b16 %v1444
      %v1611 = vunpack.c.h.b16 %v1444
      %v1612 = vunpack.c.l.b16 %v1445
      %v1613 = vunpack.c.h.b16 %v1445
      %v1614 = vunpack.c.l.b16 %v1446
      %v1615 = vunpack.c.h.b16 %v1446
      %v1616 = vunpack.c.l.b16 %v1447
      %v1617 = vunpack.c.h.b16 %v1447
      %v1618 = vunpack.c.l.b16 %v1448
      %v1619 = vunpack.c.h.b16 %v1448
      %v1620 = vunpack.c.l.b16 %v1449
      %v1621 = vunpack.c.h.b16 %v1449
      %v1622 = vunpack.c.l.b16 %v1450
      %v1623 = vunpack.c.h.b16 %v1450
      %v1624 = vunpack.c.l.b16 %v1451
      %v1625 = vunpack.c.h.b16 %v1451
      %v1626 = vunpack.c.l.b16 %v1452
      %v1627 = vunpack.c.h.b16 %v1452
      %v1628 = vunpack.c.l.b16 %v1453
      %v1629 = vunpack.c.h.b16 %v1453
      %v1630 = vunpack.c.l.b16 %v1454
      %v1631 = vunpack.c.h.b16 %v1454
      %v1632 = vunpack.c.l.b16 %v1455
      %v1633 = vunpack.c.h.b16 %v1455
      %v1634 = vunpack.c.l.b16 %v1456
      %v1635 = vunpack.c.h.b16 %v1456
      %v1636 = vunpack.c.l.b16 %v1457
      %v1637 = vunpack.c.h.b16 %v1457
      %v1638 = vunpack.c.l.b16 %v1458
      %v1639 = vunpack.c.h.b16 %v1458
      %v1640 = vunpack.c.l.b16 %v1459
      %v1641 = vunpack.c.h.b16 %v1459
      %v1642 = vunpack.c.l.b16 %v1460
      %v1643 = vunpack.c.h.b16 %v1460
      %v1644 = vunpack.c.l.b16 %v1461
      %v1645 = vunpack.c.h.b16 %v1461
      %v1646 = vunpack.c.l.b16 %v1462
      %v1647 = vunpack.c.h.b16 %v1462
      %v1648 = vunpack.c.l.b16 %v1463
      %v1649 = vunpack.c.h.b16 %v1463
      %v1650 = vunpack.c.l.b16 %v1464
      %v1651 = vunpack.c.h.b16 %v1464
      %v1652 = vunpack.c.l.b16 %v1465
      %v1653 = vunpack.c.h.b16 %v1465
      %v1654 = vunpack.c.l.b16 %v1466
      %v1655 = vunpack.c.h.b16 %v1466
      %v1656 = vunpack.c.l.b16 %v1467
      %v1657 = vunpack.c.h.b16 %v1467
      %v1658 = vunpack.c.l.b16 %v1468
      %v1659 = vunpack.c.h.b16 %v1468
      %v1660 = vunpack.c.l.b16 %v1469
      %v1661 = vunpack.c.h.b16 %v1469
      %v1662 = vunpack.c.l.b16 %v1470
      %v1663 = vunpack.c.h.b16 %v1470
      %v1664 = vunpack.c.l.b16 %v1471
      %v1665 = vunpack.c.h.b16 %v1471
      %v1666 = vunpack.c.l.b16 %v1472
      %v1667 = vunpack.c.h.b16 %v1472
      %v1668 = vunpack.c.l.b16 %v1473
      %v1669 = vunpack.c.h.b16 %v1473
      %v1670 = vunpack.c.l.b16 %v1474
      %v1671 = vunpack.c.h.b16 %v1474
      %v1672 = vunpack.c.l.b16 %v1475
      %v1673 = vunpack.c.h.b16 %v1475
      %v1674 = vunpack.c.l.b16 %v1476
      %v1675 = vunpack.c.h.b16 %v1476
      %v1676 = vunpack.c.l.b16 %v1477
      %v1677 = vunpack.c.h.b16 %v1477
      %v1678 = vunpack.c.l.b16 %v1478
      %v1679 = vunpack.c.h.b16 %v1478
      %v1680 = vunpack.c.l.b16 %v1479
      %v1681 = vunpack.c.h.b16 %v1479
      %v1682 = vunpack.c.l.b16 %v1480
      %v1683 = vunpack.c.h.b16 %v1480
      %v1684 = vunpack.c.l.b16 %v1481
      %v1685 = vunpack.c.h.b16 %v1481
      %v1686 = vunpack.c.l.b16 %v1482
      %v1687 = vunpack.c.h.b16 %v1482
      %v1688 = vunpack.c.l.b16 %v1483
      %v1689 = vunpack.c.h.b16 %v1483
      %v1690 = vunpack.c.l.b16 %v1484
      %v1691 = vunpack.c.h.b16 %v1484
      %v1692 = vunpack.c.l.b16 %v1485
      %v1693 = vunpack.c.h.b16 %v1485
      %v1694 = vunpack.c.l.b16 %v1486
      %v1695 = vunpack.c.h.b16 %v1486
      %v1696 = vunpack.c.l.b16 %v1487
      %v1697 = vunpack.c.h.b16 %v1487
      %v1698 = vunpack.c.l.b16 %v1488
      %v1699 = vunpack.c.h.b16 %v1488
      %v1700 = vunpack.c.l.b16 %v1489
      %v1701 = vunpack.c.h.b16 %v1489
      %v1702 = vunpack.c.l.b16 %v1490
      %v1703 = vunpack.c.h.b16 %v1490
      %v1704 = vunpack.c.l.b16 %v1491
      %v1705 = vunpack.c.h.b16 %v1491
      %v1706 = vunpack.c.l.b16 %v1492
      %v1707 = vunpack.c.h.b16 %v1492
      %v1708 = vunpack.c.l.b16 %v1493
      %v1709 = vunpack.c.h.b16 %v1493
      %v1710 = vunpack.c.l.b16 %v1494
      %v1711 = vunpack.c.h.b16 %v1494
      %v1712 = vunpack.c.l.b16 %v1495
      %v1713 = vunpack.c.h.b16 %v1495
      %v1714 = vunpack.c.l.b16 %v1496
      %v1715 = vunpack.c.h.b16 %v1496
      %v1716 = vunpack.c.l.b16 %v1497
      %v1717 = vunpack.c.h.b16 %v1497
      %v1718 = vunpack.c.l.b16 %v1498
      %v1719 = vunpack.c.h.b16 %v1498
      %v1720 = vunpack.c.l.b16 %v1499
      %v1721 = vunpack.c.h.b16 %v1499
      %v1722 = vunpack.c.l.b16 %v1500
      %v1723 = vunpack.c.h.b16 %v1500
      %v1724 = vunpack.c.l.b16 %v1501
      %v1725 = vunpack.c.h.b16 %v1501
      %v1726 = vunpack.c.l.b16 %v1502
      %v1727 = vunpack.c.h.b16 %v1502
      %v1728 = vunpack.c.l.b16 %v1503
      %v1729 = vunpack.c.h.b16 %v1503
      %v1730 = vunpack.c.l.b16 %v1504
      %v1731 = vunpack.c.h.b16 %v1504
      %v1732 = vunpack.c.l.b16 %v1505
      %v1733 = vunpack.c.h.b16 %v1505
      %v1734 = vunpack.c.l.b16 %v1506
      %v1735 = vunpack.c.h.b16 %v1506
      %v1736 = vunpack.c.l.b16 %v1507
      %v1737 = vunpack.c.h.b16 %v1507
      %v1738 = vunpack.c.l.b16 %v1508
      %v1739 = vunpack.c.h.b16 %v1508
      %v1740 = vunpack.c.l.b16 %v1509
      %v1741 = vunpack.c.h.b16 %v1509
      %v1742 = vunpack.c.l.b16 %v1510
      %v1743 = vunpack.c.h.b16 %v1510
      %v1744 = vunpack.c.l.b16 %v1511
      %v1745 = vunpack.c.h.b16 %v1511
      %v1746 = vunpack.c.l.b16 %v1512
      %v1747 = vunpack.c.h.b16 %v1512
      %v1748 = vunpack.c.l.b16 %v1513
      %v1749 = vunpack.c.h.b16 %v1513
      %v1750 = vunpack.c.l.b16 %v1514
      %v1751 = vunpack.c.h.b16 %v1514
      %v1752 = vunpack.c.l.b16 %v1515
      %v1753 = vunpack.c.h.b16 %v1515
      %v1754 = vpack.c.b16 %v1614, %v1610
      %v1755 = vpack.c.b16 %v1615, %v1611
      %v1756 = vpack.c.b16 %v1616, %v1612
      %v1757 = vpack.c.b16 %v1617, %v1613
      %v1758 = vpack.c.b16 %v1622, %v1618
      %v1759 = vpack.c.b16 %v1623, %v1619
      %v1760 = vpack.c.b16 %v1624, %v1620
      %v1761 = vpack.c.b16 %v1625, %v1621
      %v1762 = vpack.c.b16 %v1630, %v1626
      %v1763 = vpack.c.b16 %v1631, %v1627
      %v1764 = vpack.c.b16 %v1632, %v1628
      %v1765 = vpack.c.b16 %v1633, %v1629
      %v1766 = vpack.c.b16 %v1638, %v1634
      %v1767 = vpack.c.b16 %v1639, %v1635
      %v1768 = vpack.c.b16 %v1640, %v1636
      %v1769 = vpack.c.b16 %v1641, %v1637
      %v1770 = vpack.c.b16 %v1646, %v1642
      %v1771 = vpack.c.b16 %v1647, %v1643
      %v1772 = vpack.c.b16 %v1648, %v1644
      %v1773 = vpack.c.b16 %v1649, %v1645
      %v1774 = vpack.c.b16 %v1654, %v1650
      %v1775 = vpack.c.b16 %v1655, %v1651
      %v1776 = vpack.c.b16 %v1656, %v1652
      %v1777 = vpack.c.b16 %v1657, %v1653
      %v1778 = vpack.c.b16 %v1662, %v1658
      %v1779 = vpack.c.b16 %v1663, %v1659
      %v1780 = vpack.c.b16 %v1664, %v1660
      %v1781 = vpack.c.b16 %v1665, %v1661
      %v1782 = vpack.c.b16 %v1670, %v1666
      %v1783 = vpack.c.b16 %v1671, %v1667
      %v1784 = vpack.c.b16 %v1672, %v1668
      %v1785 = vpack.c.b16 %v1673, %v1669
      %v1786 = vpack.c.b16 %v1678, %v1674
      %v1787 = vpack.c.b16 %v1679, %v1675
      %v1788 = vpack.c.b16 %v1680, %v1676
      %v1789 = vpack.c.b16 %v1681, %v1677
      %v1790 = vpack.c.b16 %v1686, %v1682
      %v1791 = vpack.c.b16 %v1687, %v1683
      %v1792 = vpack.c.b16 %v1688, %v1684
      %v1793 = vpack.c.b16 %v1689, %v1685
      %v1794 = vpack.c.b16 %v1694, %v1690
      %v1795 = vpack.c.b16 %v1695, %v1691
      %v1796 = vpack.c.b16 %v1696, %v1692
      %v1797 = vpack.c.b16 %v1697, %v1693
      %v1798 = vpack.c.b16 %v1702, %v1698
      %v1799 = vpack.c.b16 %v1703, %v1699
      %v1800 = vpack.c.b16 %v1704, %v1700
      %v1801 = vpack.c.b16 %v1705, %v1701
      %v1802 = vpack.c.b16 %v1710, %v1706
      %v1803 = vpack.c.b16 %v1711, %v1707
      %v1804 = vpack.c.b16 %v1712, %v1708
      %v1805 = vpack.c.b16 %v1713, %v1709
      %v1806 = vpack.c.b16 %v1718, %v1714
      %v1807 = vpack.c.b16 %v1719, %v1715
      %v1808 = vpack.c.b16 %v1720, %v1716
      %v1809 = vpack.c.b16 %v1721, %v1717
      %v1810 = vpack.c.b16 %v1726, %v1722
      %v1811 = vpack.c.b16 %v1727, %v1723
      %v1812 = vpack.c.b16 %v1728, %v1724
      %v1813 = vpack.c.b16 %v1729, %v1725
      %v1814 = vpack.c.b16 %v1734, %v1730
      %v1815 = vpack.c.b16 %v1735, %v1731
      %v1816 = vpack.c.b16 %v1736, %v1732
      %v1817 = vpack.c.b16 %v1737, %v1733
      %v1818 = vpack.c.b16 %v1742, %v1738
      %v1819 = vpack.c.b16 %v1743, %v1739
      %v1820 = vpack.c.b16 %v1744, %v1740
      %v1821 = vpack.c.b16 %v1745, %v1741
      %v1822 = vpack.c.b16 %v1750, %v1746
      %v1823 = vpack.c.b16 %v1751, %v1747
      %v1824 = vpack.c.b16 %v1752, %v1748
      %v1825 = vpack.c.b16 %v1753, %v1749
      %v1899 = vsel %vm738, %v1535, 0
      %1901 = vmatprep.subr.bf16.mxu0 %v1755
      %1902 = vmatpush1.bf16.msra.mxu0 %v1754
      %1903 = vmatprep.subr.bf16.mxu0 %v1759
      %1904 = vmatpush1.bf16.msra.mxu0 %v1758
      %1905 = vmatprep.subr.bf16.mxu0 %v1763
      %1906 = vmatpush1.bf16.msra.mxu0 %v1762
      %1907 = vmatprep.subr.bf16.mxu0 %v1767
      %1908 = vmatpush1.bf16.msra.mxu0 %v1766
      %1909 = vmatprep.subr.bf16.mxu0 %v1771
      %1910 = vmatpush1.bf16.msra.mxu0 %v1770
      %1911 = vmatprep.subr.bf16.mxu0 %v1775
      %1912 = vmatpush1.bf16.msra.mxu0 %v1774
      %1913 = vmatprep.subr.bf16.mxu0 %v1779
      %1914 = vmatpush1.bf16.msra.mxu0 %v1778
      %1915 = vmatprep.subr.bf16.mxu0 %v1783
      %1916 = vmatpush1.bf16.msra.mxu0 %v1782
      %1917 = vmatprep.subr.bf16.mxu0 %v1787
      %1918 = vmatpush1.bf16.msra.mxu0 %v1786
      %1919 = vmatprep.subr.bf16.mxu0 %v1791
      %1920 = vmatpush1.bf16.msra.mxu0 %v1790
      %1921 = vmatprep.subr.bf16.mxu0 %v1795
      %1922 = vmatpush1.bf16.msra.mxu0 %v1794
      %1923 = vmatprep.subr.bf16.mxu0 %v1799
      %1924 = vmatpush1.bf16.msra.mxu0 %v1798
      %1925 = vmatprep.subr.bf16.mxu0 %v1803
      %1926 = vmatpush1.bf16.msra.mxu0 %v1802
      %1927 = vmatprep.subr.bf16.mxu0 %v1807
      %1928 = vmatpush1.bf16.msra.mxu0 %v1806
      %1929 = vmatprep.subr.bf16.mxu0 %v1811
      %1930 = vmatpush1.bf16.msra.mxu0 %v1810
      %1931 = vmatprep.subr.bf16.mxu0 %v1815
      %1932 = vmatpush1.bf16.msra.mxu0 %v1814
      %1933 = vmatprep.mubr.bf16.mxu0 %v1529
      %1934 = vmatmul.mubr.bf16.gmra.mrb[0].mxu0 %v1522
      %v1935 = vpop.f32.mrb[0].mxu0
      %v1936 = vadd.f32 0.0, %v1935
      %v1937 = vpop.f32.mrb[0].mxu0
      %v1938 = vadd.f32 0.0, %v1937
      %v1939 = vpop.f32.mrb[0].mxu0
      %v1940 = vpop.f32.mrb[0].mxu0
      %1941 = vdwg.mxu0
      %1942 = vmatprep.subr.bf16.mxu0 %v1819
      %1943 = vmatpush1.bf16.msra.mxu0 %v1818
      %1944 = vmatprep.subr.bf16.mxu0 %v1823
      %1945 = vmatpush1.bf16.msra.mxu0 %v1822
      %1946 = vmatprep.subr.bf16.mxu0 0
      %1947 = vmatpush1.bf16.msra.mxu0 0
      %1948 = vmatprep.subr.bf16.mxu0 0
      %1949 = vmatpush1.bf16.msra.mxu0 0
      %1950 = vmatprep.subr.bf16.mxu0 0
      %1951 = vmatpush1.bf16.msra.mxu0 0
      %1952 = vmatprep.subr.bf16.mxu0 0
      %1953 = vmatpush1.bf16.msra.mxu0 0
      %1954 = vmatprep.subr.bf16.mxu0 0
      %1955 = vmatpush1.bf16.msra.mxu0 0
      %1956 = vmatprep.subr.bf16.mxu0 0
      %1957 = vmatpush1.bf16.msra.mxu0 0
      %1958 = vmatprep.subr.bf16.mxu0 0
      %1959 = vmatpush1.bf16.msra.mxu0 0
      %1960 = vmatprep.subr.bf16.mxu0 0
      %1961 = vmatpush1.bf16.msra.mxu0 0
      %1962 = vmatprep.subr.bf16.mxu0 0
      %1963 = vmatpush1.bf16.msra.mxu0 0
      %1964 = vmatprep.subr.bf16.mxu0 0
      %1965 = vmatpush1.bf16.msra.mxu0 0
      %1966 = vmatprep.subr.bf16.mxu0 0
      %1967 = vmatpush1.bf16.msra.mxu0 0
      %1968 = vmatprep.subr.bf16.mxu0 0
      %1969 = vmatpush1.bf16.msra.mxu0 0
      %1970 = vmatprep.subr.bf16.mxu0 0
      %1971 = vmatpush1.bf16.msra.mxu0 0
      %1972 = vmatprep.subr.bf16.mxu0 0
      %1973 = vmatpush1.bf16.msra.mxu0 0
      %1974 = vmatprep.mubr.bf16.mxu0 0
      %1975 = vmatmul.mubr.bf16.gmra.mrb[0].mxu0 %v1899
      %v1976 = vpop.f32.mrb[0].mxu0
      %v1977 = vadd.f32 %v1936, %v1976
      %v1978 = vpop.f32.mrb[0].mxu0
      %v1979 = vadd.f32 %v1938, %v1978
      %v1980 = vpop.f32.mrb[0].mxu0
      %v1981 = vpop.f32.mrb[0].mxu0
      %1982 = vdwg.mxu0
      %1983 = vmatprep.subr.bf16.mxu0 %v1757
      %1984 = vmatpush1.bf16.msra.mxu0 %v1756
      %1985 = vmatprep.subr.bf16.mxu0 %v1761
      %1986 = vmatpush1.bf16.msra.mxu0 %v1760
      %1987 = vmatprep.subr.bf16.mxu0 %v1765
      %1988 = vmatpush1.bf16.msra.mxu0 %v1764
      %1989 = vmatprep.subr.bf16.mxu0 %v1769
      %1990 = vmatpush1.bf16.msra.mxu0 %v1768
      %1991 = vmatprep.subr.bf16.mxu0 %v1773
      %1992 = vmatpush1.bf16.msra.mxu0 %v1772
      %1993 = vmatprep.subr.bf16.mxu0 %v1777
      %1994 = vmatpush1.bf16.msra.mxu0 %v1776
      %1995 = vmatprep.subr.bf16.mxu0 %v1781
      %1996 = vmatpush1.bf16.msra.mxu0 %v1780
      %1997 = vmatprep.subr.bf16.mxu0 %v1785
      %1998 = vmatpush1.bf16.msra.mxu0 %v1784
      %1999 = vmatprep.subr.bf16.mxu0 %v1789
      %2000 = vmatpush1.bf16.msra.mxu0 %v1788
      %2001 = vmatprep.subr.bf16.mxu0 %v1793
      %2002 = vmatpush1.bf16.msra.mxu0 %v1792
      %2003 = vmatprep.subr.bf16.mxu0 %v1797
      %2004 = vmatpush1.bf16.msra.mxu0 %v1796
      %2005 = vmatprep.subr.bf16.mxu0 %v1801
      %2006 = vmatpush1.bf16.msra.mxu0 %v1800
      %2007 = vmatprep.subr.bf16.mxu0 %v1805
      %2008 = vmatpush1.bf16.msra.mxu0 %v1804
      %2009 = vmatprep.subr.bf16.mxu0 %v1809
      %2010 = vmatpush1.bf16.msra.mxu0 %v1808
      %2011 = vmatprep.subr.bf16.mxu0 %v1813
      %2012 = vmatpush1.bf16.msra.mxu0 %v1812
      %2013 = vmatprep.subr.bf16.mxu0 %v1817
      %2014 = vmatpush1.bf16.msra.mxu0 %v1816
      %2015 = vmatprep.mubr.bf16.mxu0 %v1529
      %2016 = vmatmul.mubr.bf16.gmra.mrb[0].mxu0 %v1522
      %v2017 = vpop.f32.mrb[0].mxu0
      %v2018 = vadd.f32 0.0, %v2017
      %v2019 = vpop.f32.mrb[0].mxu0
      %v2020 = vadd.f32 0.0, %v2019
      %v2021 = vpop.f32.mrb[0].mxu0
      %v2022 = vpop.f32.mrb[0].mxu0
      %2023 = vdwg.mxu0
      %2024 = vmatprep.subr.bf16.mxu0 %v1821
      %2025 = vmatpush1.bf16.msra.mxu0 %v1820
      %2026 = vmatprep.subr.bf16.mxu0 %v1825
      %2027 = vmatpush1.bf16.msra.mxu0 %v1824
      %2028 = vmatprep.subr.bf16.mxu0 0
      %2029 = vmatpush1.bf16.msra.mxu0 0
      %2030 = vmatprep.subr.bf16.mxu0 0
      %2031 = vmatpush1.bf16.msra.mxu0 0
      %2032 = vmatprep.subr.bf16.mxu0 0
      %2033 = vmatpush1.bf16.msra.mxu0 0
      %2034 = vmatprep.subr.bf16.mxu0 0
      %2035 = vmatpush1.bf16.msra.mxu0 0
      %2036 = vmatprep.subr.bf16.mxu0 0
      %2037 = vmatpush1.bf16.msra.mxu0 0
      %2038 = vmatprep.subr.bf16.mxu0 0
      %2039 = vmatpush1.bf16.msra.mxu0 0
      %2040 = vmatprep.subr.bf16.mxu0 0
      %2041 = vmatpush1.bf16.msra.mxu0 0
      %2042 = vmatprep.subr.bf16.mxu0 0
      %2043 = vmatpush1.bf16.msra.mxu0 0
      %2044 = vmatprep.subr.bf16.mxu0 0
      %2045 = vmatpush1.bf16.msra.mxu0 0
      %2046 = vmatprep.subr.bf16.mxu0 0
      %2047 = vmatpush1.bf16.msra.mxu0 0
      %2048 = vmatprep.subr.bf16.mxu0 0
      %2049 = vmatpush1.bf16.msra.mxu0 0
      %2050 = vmatprep.subr.bf16.mxu0 0
      %2051 = vmatpush1.bf16.msra.mxu0 0
      %2052 = vmatprep.subr.bf16.mxu0 0
      %2053 = vmatpush1.bf16.msra.mxu0 0
      %2054 = vmatprep.subr.bf16.mxu0 0
      %2055 = vmatpush1.bf16.msra.mxu0 0
      %2056 = vmatprep.mubr.bf16.mxu0 0
      %2057 = vmatmul.mubr.bf16.gmra.mrb[0].mxu0 %v1899
      %v2058 = vpop.f32.mrb[0].mxu0
      %v2059 = vadd.f32 %v2018, %v2058
      %v2060 = vpop.f32.mrb[0].mxu0
      %v2061 = vadd.f32 %v2020, %v2060
      %v2062 = vpop.f32.mrb[0].mxu0
      %v2063 = vpop.f32.mrb[0].mxu0
      %2064 = vdwg.mxu0
      %v2065 = vadd.f32 %v1355, %v1977
      %v2066 = vadd.f32 %v1357, %v1979
      %v2067 = vadd.f32 %v1437, %v2059
      %v2068 = vadd.f32 %v1439, %v2061
      %s2069 = scalar_lea.vmem %s2, 1728
      %v2070 = vld [vmem:[%s2069] sm:$0xff]
      %v2071 = vld [vmem:[%s2069 + $0x8] sm:$0xff]
      %v2072 = vld [vmem:[%s2069 + $0x10] sm:$0xff]
      %v2073 = vld [vmem:[%s2069 + $0x18] sm:$0xff]
      %v2074 = vld [vmem:[%s2069 + $0x20] sm:$0xff]
      %v2075 = vld [vmem:[%s2069 + $0x28] sm:$0xff]
      %v2076 = vld [vmem:[%s2069 + $0x30] sm:$0xff]
      %v2077 = vld [vmem:[%s2069 + $0x38] sm:$0xff]
      %v2078 = vld [vmem:[%s2069 + $0x40] sm:$0xff]
      %v2079 = vld [vmem:[%s2069 + $0x48] sm:$0xff]
      %v2080 = vld [vmem:[%s2069 + $0x50] sm:$0xff]
      %v2081 = vld [vmem:[%s2069 + $0x58] sm:$0xff]
      %v2082 = vld [vmem:[%s2069 + $0x60] sm:$0xff]
      %v2083 = vld [vmem:[%s2069 + $0x68] sm:$0xff]
      %v2084 = vld [vmem:[%s2069 + $0x70] sm:$0xff]
      %v2085 = vld [vmem:[%s2069 + $0x78] sm:$0xff]
      %v2086 = vld [vmem:[%s2069 + $0x80] sm:$0xff]
      %v2087 = vld [vmem:[%s2069 + $0x88] sm:$0xff]
      %v2088 = vld [vmem:[%s2069 + $0x90] sm:$0xff]
      %v2089 = vld [vmem:[%s2069 + $0x98] sm:$0xff]
      %v2090 = vld [vmem:[%s2069 + $0xa0] sm:$0xff]
      %v2091 = vld [vmem:[%s2069 + $0xa8] sm:$0xff]
      %v2092 = vld [vmem:[%s2069 + $0xb0] sm:$0xff]
      %v2093 = vld [vmem:[%s2069 + $0xb8] sm:$0xff]
      %v2094 = vld [vmem:[%s2069 + $0xc0] sm:$0xff]
      %v2095 = vld [vmem:[%s2069 + $0xc8] sm:$0xff]
      %v2096 = vld [vmem:[%s2069 + $0xd0] sm:$0xff]
      %v2097 = vld [vmem:[%s2069 + $0xd8] sm:$0xff]
      %v2098 = vld [vmem:[%s2069 + $0xe0] sm:$0xff]
      %v2099 = vld [vmem:[%s2069 + $0xe8] sm:$0xff]
      %v2100 = vld [vmem:[%s2069 + $0xf0] sm:$0xff]
      %v2101 = vld [vmem:[%s2069 + $0xf8] sm:$0xff]
      %v2102 = vld [vmem:[%s2069 + $0x100] sm:$0xff]
      %v2103 = vld [vmem:[%s2069 + $0x108] sm:$0xff]
      %v2104 = vld [vmem:[%s2069 + $0x110] sm:$0xff]
      %v2105 = vld [vmem:[%s2069 + $0x118] sm:$0xff]
      %v2106 = vld [vmem:[%s2069 + $0x120] sm:$0xff]
      %v2107 = vld [vmem:[%s2069 + $0x128] sm:$0xff]
      %v2108 = vld [vmem:[%s2069 + $0x130] sm:$0xff]
      %v2109 = vld [vmem:[%s2069 + $0x138] sm:$0xff]
      %v2110 = vld [vmem:[%s2069 + $0x140] sm:$0xff]
      %v2111 = vld [vmem:[%s2069 + $0x148] sm:$0xff]
      %v2112 = vld [vmem:[%s2069 + $0x150] sm:$0xff]
      %v2113 = vld [vmem:[%s2069 + $0x158] sm:$0xff]
      %v2114 = vld [vmem:[%s2069 + $0x160] sm:$0xff]
      %v2115 = vld [vmem:[%s2069 + $0x168] sm:$0xff]
      %v2116 = vld [vmem:[%s2069 + $0x170] sm:$0xff]
      %v2117 = vld [vmem:[%s2069 + $0x178] sm:$0xff]
      %v2118 = vld [vmem:[%s2069 + $0x180] sm:$0xff]
      %v2119 = vld [vmem:[%s2069 + $0x188] sm:$0xff]
      %v2120 = vld [vmem:[%s2069 + $0x190] sm:$0xff]
      %v2121 = vld [vmem:[%s2069 + $0x198] sm:$0xff]
      %v2122 = vld [vmem:[%s2069 + $0x1a0] sm:$0xff]
      %v2123 = vld [vmem:[%s2069 + $0x1a8] sm:$0xff]
      %v2124 = vld [vmem:[%s2069 + $0x1b0] sm:$0xff]
      %v2125 = vld [vmem:[%s2069 + $0x1b8] sm:$0xff]
      %v2126 = vld [vmem:[%s2069 + $0x1c0] sm:$0xff]
      %v2127 = vld [vmem:[%s2069 + $0x1c8] sm:$0xff]
      %v2128 = vld [vmem:[%s2069 + $0x1d0] sm:$0xff]
      %v2129 = vld [vmem:[%s2069 + $0x1d8] sm:$0xff]
      %v2130 = vld [vmem:[%s2069 + $0x1e0] sm:$0xff]
      %v2131 = vld [vmem:[%s2069 + $0x1e8] sm:$0xff]
      %v2132 = vld [vmem:[%s2069 + $0x1f0] sm:$0xff]
      %v2133 = vld [vmem:[%s2069 + $0x1f8] sm:$0xff]
      %v2134 = vld [vmem:[%s2069 + $0x200] sm:$0xff]
      %v2135 = vld [vmem:[%s2069 + $0x208] sm:$0xff]
      %v2136 = vld [vmem:[%s2069 + $0x210] sm:$0xff]
      %v2137 = vld [vmem:[%s2069 + $0x218] sm:$0xff]
      %v2138 = vld [vmem:[%s2069 + $0x220] sm:$0xff]
      %v2139 = vld [vmem:[%s2069 + $0x228] sm:$0xff]
      %v2140 = vld [vmem:[%s2069 + $0x230] sm:$0xff]
      %v2141 = vld [vmem:[%s2069 + $0x238] sm:$0xff]
      %v2143 = vshrl.u32 %v373, 16
      %v2145 = vshll.u32 %v373, 16
      %v2147 = vrot.slane %v2145, 1
      %v2148 = vor.u32 %v2143, %v2147
      %v2150 = vshrl.u32 %v374, 16
      %v2152 = vshll.u32 %v374, 16
      %v2154 = vrot.slane %v2152, 1
      %v2155 = vor.u32 %v2150, %v2154
      %v2156 = vshrl.u32 %v375, 16
      %v2158 = vshll.u32 %v375, 16
      %v2160 = vrot.slane %v2158, 1
      %v2161 = vor.u32 %v2156, %v2160
      %v2236 = vunpack.c.l.b16 %v2070
      %v2237 = vunpack.c.h.b16 %v2070
      %v2238 = vunpack.c.l.b16 %v2071
      %v2239 = vunpack.c.h.b16 %v2071
      %v2240 = vunpack.c.l.b16 %v2072
      %v2241 = vunpack.c.h.b16 %v2072
      %v2242 = vunpack.c.l.b16 %v2073
      %v2243 = vunpack.c.h.b16 %v2073
      %v2244 = vunpack.c.l.b16 %v2074
      %v2245 = vunpack.c.h.b16 %v2074
      %v2246 = vunpack.c.l.b16 %v2075
      %v2247 = vunpack.c.h.b16 %v2075
      %v2248 = vunpack.c.l.b16 %v2076
      %v2249 = vunpack.c.h.b16 %v2076
      %v2250 = vunpack.c.l.b16 %v2077
      %v2251 = vunpack.c.h.b16 %v2077
      %v2252 = vunpack.c.l.b16 %v2078
      %v2253 = vunpack.c.h.b16 %v2078
      %v2254 = vunpack.c.l.b16 %v2079
      %v2255 = vunpack.c.h.b16 %v2079
      %v2256 = vunpack.c.l.b16 %v2080
      %v2257 = vunpack.c.h.b16 %v2080
      %v2258 = vunpack.c.l.b16 %v2081
      %v2259 = vunpack.c.h.b16 %v2081
      %v2260 = vunpack.c.l.b16 %v2082
      %v2261 = vunpack.c.h.b16 %v2082
      %v2262 = vunpack.c.l.b16 %v2083
      %v2263 = vunpack.c.h.b16 %v2083
      %v2264 = vunpack.c.l.b16 %v2084
      %v2265 = vunpack.c.h.b16 %v2084
      %v2266 = vunpack.c.l.b16 %v2085
      %v2267 = vunpack.c.h.b16 %v2085
      %v2268 = vunpack.c.l.b16 %v2086
      %v2269 = vunpack.c.h.b16 %v2086
      %v2270 = vunpack.c.l.b16 %v2087
      %v2271 = vunpack.c.h.b16 %v2087
      %v2272 = vunpack.c.l.b16 %v2088
      %v2273 = vunpack.c.h.b16 %v2088
      %v2274 = vunpack.c.l.b16 %v2089
      %v2275 = vunpack.c.h.b16 %v2089
      %v2276 = vunpack.c.l.b16 %v2090
      %v2277 = vunpack.c.h.b16 %v2090
      %v2278 = vunpack.c.l.b16 %v2091
      %v2279 = vunpack.c.h.b16 %v2091
      %v2280 = vunpack.c.l.b16 %v2092
      %v2281 = vunpack.c.h.b16 %v2092
      %v2282 = vunpack.c.l.b16 %v2093
      %v2283 = vunpack.c.h.b16 %v2093
      %v2284 = vunpack.c.l.b16 %v2094
      %v2285 = vunpack.c.h.b16 %v2094
      %v2286 = vunpack.c.l.b16 %v2095
      %v2287 = vunpack.c.h.b16 %v2095
      %v2288 = vunpack.c.l.b16 %v2096
      %v2289 = vunpack.c.h.b16 %v2096
      %v2290 = vunpack.c.l.b16 %v2097
      %v2291 = vunpack.c.h.b16 %v2097
      %v2292 = vunpack.c.l.b16 %v2098
      %v2293 = vunpack.c.h.b16 %v2098
      %v2294 = vunpack.c.l.b16 %v2099
      %v2295 = vunpack.c.h.b16 %v2099
      %v2296 = vunpack.c.l.b16 %v2100
      %v2297 = vunpack.c.h.b16 %v2100
      %v2298 = vunpack.c.l.b16 %v2101
      %v2299 = vunpack.c.h.b16 %v2101
      %v2300 = vunpack.c.l.b16 %v2102
      %v2301 = vunpack.c.h.b16 %v2102
      %v2302 = vunpack.c.l.b16 %v2103
      %v2303 = vunpack.c.h.b16 %v2103
      %v2304 = vunpack.c.l.b16 %v2104
      %v2305 = vunpack.c.h.b16 %v2104
      %v2306 = vunpack.c.l.b16 %v2105
      %v2307 = vunpack.c.h.b16 %v2105
      %v2308 = vunpack.c.l.b16 %v2106
      %v2309 = vunpack.c.h.b16 %v2106
      %v2310 = vunpack.c.l.b16 %v2107
      %v2311 = vunpack.c.h.b16 %v2107
      %v2312 = vunpack.c.l.b16 %v2108
      %v2313 = vunpack.c.h.b16 %v2108
      %v2314 = vunpack.c.l.b16 %v2109
      %v2315 = vunpack.c.h.b16 %v2109
      %v2316 = vunpack.c.l.b16 %v2110
      %v2317 = vunpack.c.h.b16 %v2110
      %v2318 = vunpack.c.l.b16 %v2111
      %v2319 = vunpack.c.h.b16 %v2111
      %v2320 = vunpack.c.l.b16 %v2112
      %v2321 = vunpack.c.h.b16 %v2112
      %v2322 = vunpack.c.l.b16 %v2113
      %v2323 = vunpack.c.h.b16 %v2113
      %v2324 = vunpack.c.l.b16 %v2114
      %v2325 = vunpack.c.h.b16 %v2114
      %v2326 = vunpack.c.l.b16 %v2115
      %v2327 = vunpack.c.h.b16 %v2115
      %v2328 = vunpack.c.l.b16 %v2116
      %v2329 = vunpack.c.h.b16 %v2116
      %v2330 = vunpack.c.l.b16 %v2117
      %v2331 = vunpack.c.h.b16 %v2117
      %v2332 = vunpack.c.l.b16 %v2118
      %v2333 = vunpack.c.h.b16 %v2118
      %v2334 = vunpack.c.l.b16 %v2119
      %v2335 = vunpack.c.h.b16 %v2119
      %v2336 = vunpack.c.l.b16 %v2120
      %v2337 = vunpack.c.h.b16 %v2120
      %v2338 = vunpack.c.l.b16 %v2121
      %v2339 = vunpack.c.h.b16 %v2121
      %v2340 = vunpack.c.l.b16 %v2122
      %v2341 = vunpack.c.h.b16 %v2122
      %v2342 = vunpack.c.l.b16 %v2123
      %v2343 = vunpack.c.h.b16 %v2123
      %v2344 = vunpack.c.l.b16 %v2124
      %v2345 = vunpack.c.h.b16 %v2124
      %v2346 = vunpack.c.l.b16 %v2125
      %v2347 = vunpack.c.h.b16 %v2125
      %v2348 = vunpack.c.l.b16 %v2126
      %v2349 = vunpack.c.h.b16 %v2126
      %v2350 = vunpack.c.l.b16 %v2127
      %v2351 = vunpack.c.h.b16 %v2127
      %v2352 = vunpack.c.l.b16 %v2128
      %v2353 = vunpack.c.h.b16 %v2128
      %v2354 = vunpack.c.l.b16 %v2129
      %v2355 = vunpack.c.h.b16 %v2129
      %v2356 = vunpack.c.l.b16 %v2130
      %v2357 = vunpack.c.h.b16 %v2130
      %v2358 = vunpack.c.l.b16 %v2131
      %v2359 = vunpack.c.h.b16 %v2131
      %v2360 = vunpack.c.l.b16 %v2132
      %v2361 = vunpack.c.h.b16 %v2132
      %v2362 = vunpack.c.l.b16 %v2133
      %v2363 = vunpack.c.h.b16 %v2133
      %v2364 = vunpack.c.l.b16 %v2134
      %v2365 = vunpack.c.h.b16 %v2134
      %v2366 = vunpack.c.l.b16 %v2135
      %v2367 = vunpack.c.h.b16 %v2135
      %v2368 = vunpack.c.l.b16 %v2136
      %v2369 = vunpack.c.h.b16 %v2136
      %v2370 = vunpack.c.l.b16 %v2137
      %v2371 = vunpack.c.h.b16 %v2137
      %v2372 = vunpack.c.l.b16 %v2138
      %v2373 = vunpack.c.h.b16 %v2138
      %v2374 = vunpack.c.l.b16 %v2139
      %v2375 = vunpack.c.h.b16 %v2139
      %v2376 = vunpack.c.l.b16 %v2140
      %v2377 = vunpack.c.h.b16 %v2140
      %v2378 = vunpack.c.l.b16 %v2141
      %v2379 = vunpack.c.h.b16 %v2141
      %v2380 = vpack.c.b16 %v2240, %v2236
      %v2381 = vpack.c.b16 %v2241, %v2237
      %v2382 = vpack.c.b16 %v2242, %v2238
      %v2383 = vpack.c.b16 %v2243, %v2239
      %v2384 = vpack.c.b16 %v2248, %v2244
      %v2385 = vpack.c.b16 %v2249, %v2245
      %v2386 = vpack.c.b16 %v2250, %v2246
      %v2387 = vpack.c.b16 %v2251, %v2247
      %v2388 = vpack.c.b16 %v2256, %v2252
      %v2389 = vpack.c.b16 %v2257, %v2253
      %v2390 = vpack.c.b16 %v2258, %v2254
      %v2391 = vpack.c.b16 %v2259, %v2255
      %v2392 = vpack.c.b16 %v2264, %v2260
      %v2393 = vpack.c.b16 %v2265, %v2261
      %v2394 = vpack.c.b16 %v2266, %v2262
      %v2395 = vpack.c.b16 %v2267, %v2263
      %v2396 = vpack.c.b16 %v2272, %v2268
      %v2397 = vpack.c.b16 %v2273, %v2269
      %v2398 = vpack.c.b16 %v2274, %v2270
      %v2399 = vpack.c.b16 %v2275, %v2271
      %v2400 = vpack.c.b16 %v2280, %v2276
      %v2401 = vpack.c.b16 %v2281, %v2277
      %v2402 = vpack.c.b16 %v2282, %v2278
      %v2403 = vpack.c.b16 %v2283, %v2279
      %v2404 = vpack.c.b16 %v2288, %v2284
      %v2405 = vpack.c.b16 %v2289, %v2285
      %v2406 = vpack.c.b16 %v2290, %v2286
      %v2407 = vpack.c.b16 %v2291, %v2287
      %v2408 = vpack.c.b16 %v2296, %v2292
      %v2409 = vpack.c.b16 %v2297, %v2293
      %v2410 = vpack.c.b16 %v2298, %v2294
      %v2411 = vpack.c.b16 %v2299, %v2295
      %v2412 = vpack.c.b16 %v2304, %v2300
      %v2413 = vpack.c.b16 %v2305, %v2301
      %v2414 = vpack.c.b16 %v2306, %v2302
      %v2415 = vpack.c.b16 %v2307, %v2303
      %v2416 = vpack.c.b16 %v2312, %v2308
      %v2417 = vpack.c.b16 %v2313, %v2309
      %v2418 = vpack.c.b16 %v2314, %v2310
      %v2419 = vpack.c.b16 %v2315, %v2311
      %v2420 = vpack.c.b16 %v2320, %v2316
      %v2421 = vpack.c.b16 %v2321, %v2317
      %v2422 = vpack.c.b16 %v2322, %v2318
      %v2423 = vpack.c.b16 %v2323, %v2319
      %v2424 = vpack.c.b16 %v2328, %v2324
      %v2425 = vpack.c.b16 %v2329, %v2325
      %v2426 = vpack.c.b16 %v2330, %v2326
      %v2427 = vpack.c.b16 %v2331, %v2327
      %v2428 = vpack.c.b16 %v2336, %v2332
      %v2429 = vpack.c.b16 %v2337, %v2333
      %v2430 = vpack.c.b16 %v2338, %v2334
      %v2431 = vpack.c.b16 %v2339, %v2335
      %v2432 = vpack.c.b16 %v2344, %v2340
      %v2433 = vpack.c.b16 %v2345, %v2341
      %v2434 = vpack.c.b16 %v2346, %v2342
      %v2435 = vpack.c.b16 %v2347, %v2343
      %v2436 = vpack.c.b16 %v2352, %v2348
      %v2437 = vpack.c.b16 %v2353, %v2349
      %v2438 = vpack.c.b16 %v2354, %v2350
      %v2439 = vpack.c.b16 %v2355, %v2351
      %v2440 = vpack.c.b16 %v2360, %v2356
      %v2441 = vpack.c.b16 %v2361, %v2357
      %v2442 = vpack.c.b16 %v2362, %v2358
      %v2443 = vpack.c.b16 %v2363, %v2359
      %v2444 = vpack.c.b16 %v2368, %v2364
      %v2445 = vpack.c.b16 %v2369, %v2365
      %v2446 = vpack.c.b16 %v2370, %v2366
      %v2447 = vpack.c.b16 %v2371, %v2367
      %v2448 = vpack.c.b16 %v2376, %v2372
      %v2449 = vpack.c.b16 %v2377, %v2373
      %v2450 = vpack.c.b16 %v2378, %v2374
      %v2451 = vpack.c.b16 %v2379, %v2375
      %v2525 = vsel %vm738, %v2161, 0
      %2527 = vmatprep.subr.bf16.mxu0 %v2381
      %2528 = vmatpush1.bf16.msra.mxu0 %v2380
      %2529 = vmatprep.subr.bf16.mxu0 %v2385
      %2530 = vmatpush1.bf16.msra.mxu0 %v2384
      %2531 = vmatprep.subr.bf16.mxu0 %v2389
      %2532 = vmatpush1.bf16.msra.mxu0 %v2388
      %2533 = vmatprep.subr.bf16.mxu0 %v2393
      %2534 = vmatpush1.bf16.msra.mxu0 %v2392
      %2535 = vmatprep.subr.bf16.mxu0 %v2397
      %2536 = vmatpush1.bf16.msra.mxu0 %v2396
      %2537 = vmatprep.subr.bf16.mxu0 %v2401
      %2538 = vmatpush1.bf16.msra.mxu0 %v2400
      %2539 = vmatprep.subr.bf16.mxu0 %v2405
      %2540 = vmatpush1.bf16.msra.mxu0 %v2404
      %2541 = vmatprep.subr.bf16.mxu0 %v2409
      %2542 = vmatpush1.bf16.msra.mxu0 %v2408
      %2543 = vmatprep.subr.bf16.mxu0 %v2413
      %2544 = vmatpush1.bf16.msra.mxu0 %v2412
      %2545 = vmatprep.subr.bf16.mxu0 %v2417
      %2546 = vmatpush1.bf16.msra.mxu0 %v2416
      %2547 = vmatprep.subr.bf16.mxu0 %v2421
      %2548 = vmatpush1.bf16.msra.mxu0 %v2420
      %2549 = vmatprep.subr.bf16.mxu0 %v2425
      %2550 = vmatpush1.bf16.msra.mxu0 %v2424
      %2551 = vmatprep.subr.bf16.mxu0 %v2429
      %2552 = vmatpush1.bf16.msra.mxu0 %v2428
      %2553 = vmatprep.subr.bf16.mxu0 %v2433
      %2554 = vmatpush1.bf16.msra.mxu0 %v2432
      %2555 = vmatprep.subr.bf16.mxu0 %v2437
      %2556 = vmatpush1.bf16.msra.mxu0 %v2436
      %2557 = vmatprep.subr.bf16.mxu0 %v2441
      %2558 = vmatpush1.bf16.msra.mxu0 %v2440
      %2559 = vmatprep.mubr.bf16.mxu0 %v2155
      %2560 = vmatmul.mubr.bf16.gmra.mrb[0].mxu0 %v2148
      %v2561 = vpop.f32.mrb[0].mxu0
      %v2562 = vadd.f32 0.0, %v2561
      %v2563 = vpop.f32.mrb[0].mxu0
      %v2564 = vadd.f32 0.0, %v2563
      %v2565 = vpop.f32.mrb[0].mxu0
      %v2566 = vpop.f32.mrb[0].mxu0
      %2567 = vdwg.mxu0
      %2568 = vmatprep.subr.bf16.mxu0 %v2445
      %2569 = vmatpush1.bf16.msra.mxu0 %v2444
      %2570 = vmatprep.subr.bf16.mxu0 %v2449
      %2571 = vmatpush1.bf16.msra.mxu0 %v2448
      %2572 = vmatprep.subr.bf16.mxu0 0
      %2573 = vmatpush1.bf16.msra.mxu0 0
      %2574 = vmatprep.subr.bf16.mxu0 0
      %2575 = vmatpush1.bf16.msra.mxu0 0
      %2576 = vmatprep.subr.bf16.mxu0 0
      %2577 = vmatpush1.bf16.msra.mxu0 0
      %2578 = vmatprep.subr.bf16.mxu0 0
      %2579 = vmatpush1.bf16.msra.mxu0 0
      %2580 = vmatprep.subr.bf16.mxu0 0
      %2581 = vmatpush1.bf16.msra.mxu0 0
      %2582 = vmatprep.subr.bf16.mxu0 0
      %2583 = vmatpush1.bf16.msra.mxu0 0
      %2584 = vmatprep.subr.bf16.mxu0 0
      %2585 = vmatpush1.bf16.msra.mxu0 0
      %2586 = vmatprep.subr.bf16.mxu0 0
      %2587 = vmatpush1.bf16.msra.mxu0 0
      %2588 = vmatprep.subr.bf16.mxu0 0
      %2589 = vmatpush1.bf16.msra.mxu0 0
      %2590 = vmatprep.subr.bf16.mxu0 0
      %2591 = vmatpush1.bf16.msra.mxu0 0
      %2592 = vmatprep.subr.bf16.mxu0 0
      %2593 = vmatpush1.bf16.msra.mxu0 0
      %2594 = vmatprep.subr.bf16.mxu0 0
      %2595 = vmatpush1.bf16.msra.mxu0 0
      %2596 = vmatprep.subr.bf16.mxu0 0
      %2597 = vmatpush1.bf16.msra.mxu0 0
      %2598 = vmatprep.subr.bf16.mxu0 0
      %2599 = vmatpush1.bf16.msra.mxu0 0
      %2600 = vmatprep.mubr.bf16.mxu0 0
      %2601 = vmatmul.mubr.bf16.gmra.mrb[0].mxu0 %v2525
      %v2602 = vpop.f32.mrb[0].mxu0
      %v2603 = vadd.f32 %v2562, %v2602
      %v2604 = vpop.f32.mrb[0].mxu0
      %v2605 = vadd.f32 %v2564, %v2604
      %v2606 = vpop.f32.mrb[0].mxu0
      %v2607 = vpop.f32.mrb[0].mxu0
      %2608 = vdwg.mxu0
      %2609 = vmatprep.subr.bf16.mxu0 %v2383
      %2610 = vmatpush1.bf16.msra.mxu0 %v2382
      %2611 = vmatprep.subr.bf16.mxu0 %v2387
      %2612 = vmatpush1.bf16.msra.mxu0 %v2386
      %2613 = vmatprep.subr.bf16.mxu0 %v2391
      %2614 = vmatpush1.bf16.msra.mxu0 %v2390
      %2615 = vmatprep.subr.bf16.mxu0 %v2395
      %2616 = vmatpush1.bf16.msra.mxu0 %v2394
      %2617 = vmatprep.subr.bf16.mxu0 %v2399
      %2618 = vmatpush1.bf16.msra.mxu0 %v2398
      %2619 = vmatprep.subr.bf16.mxu0 %v2403
      %2620 = vmatpush1.bf16.msra.mxu0 %v2402
      %2621 = vmatprep.subr.bf16.mxu0 %v2407
      %2622 = vmatpush1.bf16.msra.mxu0 %v2406
      %2623 = vmatprep.subr.bf16.mxu0 %v2411
      %2624 = vmatpush1.bf16.msra.mxu0 %v2410
      %2625 = vmatprep.subr.bf16.mxu0 %v2415
      %2626 = vmatpush1.bf16.msra.mxu0 %v2414
      %2627 = vmatprep.subr.bf16.mxu0 %v2419
      %2628 = vmatpush1.bf16.msra.mxu0 %v2418
      %2629 = vmatprep.subr.bf16.mxu0 %v2423
      %2630 = vmatpush1.bf16.msra.mxu0 %v2422
      %2631 = vmatprep.subr.bf16.mxu0 %v2427
      %2632 = vmatpush1.bf16.msra.mxu0 %v2426
      %2633 = vmatprep.subr.bf16.mxu0 %v2431
      %2634 = vmatpush1.bf16.msra.mxu0 %v2430
      %2635 = vmatprep.subr.bf16.mxu0 %v2435
      %2636 = vmatpush1.bf16.msra.mxu0 %v2434
      %2637 = vmatprep.subr.bf16.mxu0 %v2439
      %2638 = vmatpush1.bf16.msra.mxu0 %v2438
      %2639 = vmatprep.subr.bf16.mxu0 %v2443
      %2640 = vmatpush1.bf16.msra.mxu0 %v2442
      %2641 = vmatprep.mubr.bf16.mxu0 %v2155
      %2642 = vmatmul.mubr.bf16.gmra.mrb[0].mxu0 %v2148
      %v2643 = vpop.f32.mrb[0].mxu0
      %v2644 = vadd.f32 0.0, %v2643
      %v2645 = vpop.f32.mrb[0].mxu0
      %v2646 = vadd.f32 0.0, %v2645
      %v2647 = vpop.f32.mrb[0].mxu0
      %v2648 = vpop.f32.mrb[0].mxu0
      %2649 = vdwg.mxu0
      %2650 = vmatprep.subr.bf16.mxu0 %v2447
      %2651 = vmatpush1.bf16.msra.mxu0 %v2446
      %2652 = vmatprep.subr.bf16.mxu0 %v2451
      %2653 = vmatpush1.bf16.msra.mxu0 %v2450
      %2654 = vmatprep.subr.bf16.mxu0 0
      %2655 = vmatpush1.bf16.msra.mxu0 0
      %2656 = vmatprep.subr.bf16.mxu0 0
      %2657 = vmatpush1.bf16.msra.mxu0 0
      %2658 = vmatprep.subr.bf16.mxu0 0
      %2659 = vmatpush1.bf16.msra.mxu0 0
      %2660 = vmatprep.subr.bf16.mxu0 0
      %2661 = vmatpush1.bf16.msra.mxu0 0
      %2662 = vmatprep.subr.bf16.mxu0 0
      %2663 = vmatpush1.bf16.msra.mxu0 0
      %2664 = vmatprep.subr.bf16.mxu0 0
      %2665 = vmatpush1.bf16.msra.mxu0 0
      %2666 = vmatprep.subr.bf16.mxu0 0
      %2667 = vmatpush1.bf16.msra.mxu0 0
      %2668 = vmatprep.subr.bf16.mxu0 0
      %2669 = vmatpush1.bf16.msra.mxu0 0
      %2670 = vmatprep.subr.bf16.mxu0 0
      %2671 = vmatpush1.bf16.msra.mxu0 0
      %2672 = vmatprep.subr.bf16.mxu0 0
      %2673 = vmatpush1.bf16.msra.mxu0 0
      %2674 = vmatprep.subr.bf16.mxu0 0
      %2675 = vmatpush1.bf16.msra.mxu0 0
      %2676 = vmatprep.subr.bf16.mxu0 0
      %2677 = vmatpush1.bf16.msra.mxu0 0
      %2678 = vmatprep.subr.bf16.mxu0 0
      %2679 = vmatpush1.bf16.msra.mxu0 0
      %2680 = vmatprep.subr.bf16.mxu0 0
      %2681 = vmatpush1.bf16.msra.mxu0 0
      %2682 = vmatprep.mubr.bf16.mxu0 0
      %2683 = vmatmul.mubr.bf16.gmra.mrb[0].mxu0 %v2525
      %v2684 = vpop.f32.mrb[0].mxu0
      %v2685 = vadd.f32 %v2644, %v2684
      %v2686 = vpop.f32.mrb[0].mxu0
      %v2687 = vadd.f32 %v2646, %v2686
      %v2688 = vpop.f32.mrb[0].mxu0
      %v2689 = vpop.f32.mrb[0].mxu0
      %2690 = vdwg.mxu0
      %v2691 = vadd.f32 %v2065, %v2603
      %v2692 = vadd.f32 %v2066, %v2605
      %v2693 = vadd.f32 %v2067, %v2685
      %v2694 = vadd.f32 %v2068, %v2687
      %v2695 = vld [vmem:[%s207] sm:$0xee]
      %v2696 = vld [vmem:[%s207 + $0x8] sm:$0xe]
      %v2697 = vld [vmem:[%s207 + $0xc] sm:$0x11]
      %v2698 = vld [vmem:[%s207 + $0x14] sm:$0x1]
      %s2699 = scalar_lea.vmem %s2, 2304
      %v2700 = vld [vmem:[%s2699] sm:$0xff]
      %v2701 = vld [vmem:[%s2699 + $0x8] sm:$0xff]
      %v2702 = vld [vmem:[%s2699 + $0x10] sm:$0xff]
      %v2703 = vld [vmem:[%s2699 + $0x18] sm:$0xff]
      %v2704 = vld [vmem:[%s2699 + $0x20] sm:$0xff]
      %v2705 = vld [vmem:[%s2699 + $0x28] sm:$0xff]
      %v2706 = vld [vmem:[%s2699 + $0x30] sm:$0xff]
      %v2707 = vld [vmem:[%s2699 + $0x38] sm:$0xff]
      %v2708 = vld [vmem:[%s2699 + $0x40] sm:$0xff]
      %v2709 = vld [vmem:[%s2699 + $0x48] sm:$0xff]
      %v2710 = vld [vmem:[%s2699 + $0x50] sm:$0xff]
      %v2711 = vld [vmem:[%s2699 + $0x58] sm:$0xff]
      %v2712 = vld [vmem:[%s2699 + $0x60] sm:$0xff]
      %v2713 = vld [vmem:[%s2699 + $0x68] sm:$0xff]
      %v2714 = vld [vmem:[%s2699 + $0x70] sm:$0xff]
      %v2715 = vld [vmem:[%s2699 + $0x78] sm:$0xff]
      %v2716 = vld [vmem:[%s2699 + $0x80] sm:$0xff]
      %v2717 = vld [vmem:[%s2699 + $0x88] sm:$0xff]
      %v2718 = vld [vmem:[%s2699 + $0x90] sm:$0xff]
      %v2719 = vld [vmem:[%s2699 + $0x98] sm:$0xff]
      %v2720 = vld [vmem:[%s2699 + $0xa0] sm:$0xff]
      %v2721 = vld [vmem:[%s2699 + $0xa8] sm:$0xff]
      %v2722 = vld [vmem:[%s2699 + $0xb0] sm:$0xff]
      %v2723 = vld [vmem:[%s2699 + $0xb8] sm:$0xff]
      %v2724 = vld [vmem:[%s2699 + $0xc0] sm:$0xff]
      %v2725 = vld [vmem:[%s2699 + $0xc8] sm:$0xff]
      %v2726 = vld [vmem:[%s2699 + $0xd0] sm:$0xff]
      %v2727 = vld [vmem:[%s2699 + $0xd8] sm:$0xff]
      %v2728 = vld [vmem:[%s2699 + $0xe0] sm:$0xff]
      %v2729 = vld [vmem:[%s2699 + $0xe8] sm:$0xff]
      %v2730 = vld [vmem:[%s2699 + $0xf0] sm:$0xff]
      %v2731 = vld [vmem:[%s2699 + $0xf8] sm:$0xff]
      %v2732 = vld [vmem:[%s2699 + $0x100] sm:$0xff]
      %v2733 = vld [vmem:[%s2699 + $0x108] sm:$0xff]
      %v2734 = vld [vmem:[%s2699 + $0x110] sm:$0xff]
      %v2735 = vld [vmem:[%s2699 + $0x118] sm:$0xff]
      %v2736 = vld [vmem:[%s2699 + $0x120] sm:$0xff]
      %v2737 = vld [vmem:[%s2699 + $0x128] sm:$0xff]
      %v2738 = vld [vmem:[%s2699 + $0x130] sm:$0xff]
      %v2739 = vld [vmem:[%s2699 + $0x138] sm:$0xff]
      %v2740 = vld [vmem:[%s2699 + $0x140] sm:$0xff]
      %v2741 = vld [vmem:[%s2699 + $0x148] sm:$0xff]
      %v2742 = vld [vmem:[%s2699 + $0x150] sm:$0xff]
      %v2743 = vld [vmem:[%s2699 + $0x158] sm:$0xff]
      %v2744 = vld [vmem:[%s2699 + $0x160] sm:$0xff]
      %v2745 = vld [vmem:[%s2699 + $0x168] sm:$0xff]
      %v2746 = vld [vmem:[%s2699 + $0x170] sm:$0xff]
      %v2747 = vld [vmem:[%s2699 + $0x178] sm:$0xff]
      %v2748 = vld [vmem:[%s2699 + $0x180] sm:$0xff]
      %v2749 = vld [vmem:[%s2699 + $0x188] sm:$0xff]
      %v2750 = vld [vmem:[%s2699 + $0x190] sm:$0xff]
      %v2751 = vld [vmem:[%s2699 + $0x198] sm:$0xff]
      %v2752 = vld [vmem:[%s2699 + $0x1a0] sm:$0xff]
      %v2753 = vld [vmem:[%s2699 + $0x1a8] sm:$0xff]
      %v2754 = vld [vmem:[%s2699 + $0x1b0] sm:$0xff]
      %v2755 = vld [vmem:[%s2699 + $0x1b8] sm:$0xff]
      %v2756 = vld [vmem:[%s2699 + $0x1c0] sm:$0xff]
      %v2757 = vld [vmem:[%s2699 + $0x1c8] sm:$0xff]
      %v2758 = vld [vmem:[%s2699 + $0x1d0] sm:$0xff]
      %v2759 = vld [vmem:[%s2699 + $0x1d8] sm:$0xff]
      %v2760 = vld [vmem:[%s2699 + $0x1e0] sm:$0xff]
      %v2761 = vld [vmem:[%s2699 + $0x1e8] sm:$0xff]
      %v2762 = vld [vmem:[%s2699 + $0x1f0] sm:$0xff]
      %v2763 = vld [vmem:[%s2699 + $0x1f8] sm:$0xff]
      %v2764 = vld [vmem:[%s2699 + $0x200] sm:$0xff]
      %v2765 = vld [vmem:[%s2699 + $0x208] sm:$0xff]
      %v2766 = vld [vmem:[%s2699 + $0x210] sm:$0xff]
      %v2767 = vld [vmem:[%s2699 + $0x218] sm:$0xff]
      %v2768 = vld [vmem:[%s2699 + $0x220] sm:$0xff]
      %v2769 = vld [vmem:[%s2699 + $0x228] sm:$0xff]
      %v2770 = vld [vmem:[%s2699 + $0x230] sm:$0xff]
      %v2771 = vld [vmem:[%s2699 + $0x238] sm:$0xff]
      %v2776 = vunpack.c.l.b16 %v2695
      %v2777 = vunpack.c.h.b16 %v2695
      %v2778 = vunpack.c.l.b16 %v2696
      %v2779 = vunpack.c.l.b16 %v2697
      %v2780 = vunpack.c.h.b16 %v2697
      %v2781 = vunpack.c.l.b16 %v2698
      %v2782 = vpack.c.b16 %v2779, %v2776
      %v2783 = vpack.c.b16 %v2780, %v2777
      %v2784 = vpack.c.b16 %v2781, %v2778
      %v2785 = vrot.slane %v2782, 1
      %v2786 = vrot.slane %v2783, 1
      %v2787 = vrot.slane %v2784, 1
      %v2862 = vunpack.c.l.b16 %v2700
      %v2863 = vunpack.c.h.b16 %v2700
      %v2864 = vunpack.c.l.b16 %v2701
      %v2865 = vunpack.c.h.b16 %v2701
      %v2866 = vunpack.c.l.b16 %v2702
      %v2867 = vunpack.c.h.b16 %v2702
      %v2868 = vunpack.c.l.b16 %v2703
      %v2869 = vunpack.c.h.b16 %v2703
      %v2870 = vunpack.c.l.b16 %v2704
      %v2871 = vunpack.c.h.b16 %v2704
      %v2872 = vunpack.c.l.b16 %v2705
      %v2873 = vunpack.c.h.b16 %v2705
      %v2874 = vunpack.c.l.b16 %v2706
      %v2875 = vunpack.c.h.b16 %v2706
      %v2876 = vunpack.c.l.b16 %v2707
      %v2877 = vunpack.c.h.b16 %v2707
      %v2878 = vunpack.c.l.b16 %v2708
      %v2879 = vunpack.c.h.b16 %v2708
      %v2880 = vunpack.c.l.b16 %v2709
      %v2881 = vunpack.c.h.b16 %v2709
      %v2882 = vunpack.c.l.b16 %v2710
      %v2883 = vunpack.c.h.b16 %v2710
      %v2884 = vunpack.c.l.b16 %v2711
      %v2885 = vunpack.c.h.b16 %v2711
      %v2886 = vunpack.c.l.b16 %v2712
      %v2887 = vunpack.c.h.b16 %v2712
      %v2888 = vunpack.c.l.b16 %v2713
      %v2889 = vunpack.c.h.b16 %v2713
      %v2890 = vunpack.c.l.b16 %v2714
      %v2891 = vunpack.c.h.b16 %v2714
      %v2892 = vunpack.c.l.b16 %v2715
      %v2893 = vunpack.c.h.b16 %v2715
      %v2894 = vunpack.c.l.b16 %v2716
      %v2895 = vunpack.c.h.b16 %v2716
      %v2896 = vunpack.c.l.b16 %v2717
      %v2897 = vunpack.c.h.b16 %v2717
      %v2898 = vunpack.c.l.b16 %v2718
      %v2899 = vunpack.c.h.b16 %v2718
      %v2900 = vunpack.c.l.b16 %v2719
      %v2901 = vunpack.c.h.b16 %v2719
      %v2902 = vunpack.c.l.b16 %v2720
      %v2903 = vunpack.c.h.b16 %v2720
      %v2904 = vunpack.c.l.b16 %v2721
      %v2905 = vunpack.c.h.b16 %v2721
      %v2906 = vunpack.c.l.b16 %v2722
      %v2907 = vunpack.c.h.b16 %v2722
      %v2908 = vunpack.c.l.b16 %v2723
      %v2909 = vunpack.c.h.b16 %v2723
      %v2910 = vunpack.c.l.b16 %v2724
      %v2911 = vunpack.c.h.b16 %v2724
      %v2912 = vunpack.c.l.b16 %v2725
      %v2913 = vunpack.c.h.b16 %v2725
      %v2914 = vunpack.c.l.b16 %v2726
      %v2915 = vunpack.c.h.b16 %v2726
      %v2916 = vunpack.c.l.b16 %v2727
      %v2917 = vunpack.c.h.b16 %v2727
      %v2918 = vunpack.c.l.b16 %v2728
      %v2919 = vunpack.c.h.b16 %v2728
      %v2920 = vunpack.c.l.b16 %v2729
      %v2921 = vunpack.c.h.b16 %v2729
      %v2922 = vunpack.c.l.b16 %v2730
      %v2923 = vunpack.c.h.b16 %v2730
      %v2924 = vunpack.c.l.b16 %v2731
      %v2925 = vunpack.c.h.b16 %v2731
      %v2926 = vunpack.c.l.b16 %v2732
      %v2927 = vunpack.c.h.b16 %v2732
      %v2928 = vunpack.c.l.b16 %v2733
      %v2929 = vunpack.c.h.b16 %v2733
      %v2930 = vunpack.c.l.b16 %v2734
      %v2931 = vunpack.c.h.b16 %v2734
      %v2932 = vunpack.c.l.b16 %v2735
      %v2933 = vunpack.c.h.b16 %v2735
      %v2934 = vunpack.c.l.b16 %v2736
      %v2935 = vunpack.c.h.b16 %v2736
      %v2936 = vunpack.c.l.b16 %v2737
      %v2937 = vunpack.c.h.b16 %v2737
      %v2938 = vunpack.c.l.b16 %v2738
      %v2939 = vunpack.c.h.b16 %v2738
      %v2940 = vunpack.c.l.b16 %v2739
      %v2941 = vunpack.c.h.b16 %v2739
      %v2942 = vunpack.c.l.b16 %v2740
      %v2943 = vunpack.c.h.b16 %v2740
      %v2944 = vunpack.c.l.b16 %v2741
      %v2945 = vunpack.c.h.b16 %v2741
      %v2946 = vunpack.c.l.b16 %v2742
      %v2947 = vunpack.c.h.b16 %v2742
      %v2948 = vunpack.c.l.b16 %v2743
      %v2949 = vunpack.c.h.b16 %v2743
      %v2950 = vunpack.c.l.b16 %v2744
      %v2951 = vunpack.c.h.b16 %v2744
      %v2952 = vunpack.c.l.b16 %v2745
      %v2953 = vunpack.c.h.b16 %v2745
      %v2954 = vunpack.c.l.b16 %v2746
      %v2955 = vunpack.c.h.b16 %v2746
      %v2956 = vunpack.c.l.b16 %v2747
      %v2957 = vunpack.c.h.b16 %v2747
      %v2958 = vunpack.c.l.b16 %v2748
      %v2959 = vunpack.c.h.b16 %v2748
      %v2960 = vunpack.c.l.b16 %v2749
      %v2961 = vunpack.c.h.b16 %v2749
      %v2962 = vunpack.c.l.b16 %v2750
      %v2963 = vunpack.c.h.b16 %v2750
      %v2964 = vunpack.c.l.b16 %v2751
      %v2965 = vunpack.c.h.b16 %v2751
      %v2966 = vunpack.c.l.b16 %v2752
      %v2967 = vunpack.c.h.b16 %v2752
      %v2968 = vunpack.c.l.b16 %v2753
      %v2969 = vunpack.c.h.b16 %v2753
      %v2970 = vunpack.c.l.b16 %v2754
      %v2971 = vunpack.c.h.b16 %v2754
      %v2972 = vunpack.c.l.b16 %v2755
      %v2973 = vunpack.c.h.b16 %v2755
      %v2974 = vunpack.c.l.b16 %v2756
      %v2975 = vunpack.c.h.b16 %v2756
      %v2976 = vunpack.c.l.b16 %v2757
      %v2977 = vunpack.c.h.b16 %v2757
      %v2978 = vunpack.c.l.b16 %v2758
      %v2979 = vunpack.c.h.b16 %v2758
      %v2980 = vunpack.c.l.b16 %v2759
      %v2981 = vunpack.c.h.b16 %v2759
      %v2982 = vunpack.c.l.b16 %v2760
      %v2983 = vunpack.c.h.b16 %v2760
      %v2984 = vunpack.c.l.b16 %v2761
      %v2985 = vunpack.c.h.b16 %v2761
      %v2986 = vunpack.c.l.b16 %v2762
      %v2987 = vunpack.c.h.b16 %v2762
      %v2988 = vunpack.c.l.b16 %v2763
      %v2989 = vunpack.c.h.b16 %v2763
      %v2990 = vunpack.c.l.b16 %v2764
      %v2991 = vunpack.c.h.b16 %v2764
      %v2992 = vunpack.c.l.b16 %v2765
      %v2993 = vunpack.c.h.b16 %v2765
      %v2994 = vunpack.c.l.b16 %v2766
      %v2995 = vunpack.c.h.b16 %v2766
      %v2996 = vunpack.c.l.b16 %v2767
      %v2997 = vunpack.c.h.b16 %v2767
      %v2998 = vunpack.c.l.b16 %v2768
      %v2999 = vunpack.c.h.b16 %v2768
      %v3000 = vunpack.c.l.b16 %v2769
      %v3001 = vunpack.c.h.b16 %v2769
      %v3002 = vunpack.c.l.b16 %v2770
      %v3003 = vunpack.c.h.b16 %v2770
      %v3004 = vunpack.c.l.b16 %v2771
      %v3005 = vunpack.c.h.b16 %v2771
      %v3006 = vpack.c.b16 %v2866, %v2862
      %v3007 = vpack.c.b16 %v2867, %v2863
      %v3008 = vpack.c.b16 %v2868, %v2864
      %v3009 = vpack.c.b16 %v2869, %v2865
      %v3010 = vpack.c.b16 %v2874, %v2870
      %v3011 = vpack.c.b16 %v2875, %v2871
      %v3012 = vpack.c.b16 %v2876, %v2872
      %v3013 = vpack.c.b16 %v2877, %v2873
      %v3014 = vpack.c.b16 %v2882, %v2878
      %v3015 = vpack.c.b16 %v2883, %v2879
      %v3016 = vpack.c.b16 %v2884, %v2880
      %v3017 = vpack.c.b16 %v2885, %v2881
      %v3018 = vpack.c.b16 %v2890, %v2886
      %v3019 = vpack.c.b16 %v2891, %v2887
      %v3020 = vpack.c.b16 %v2892, %v2888
      %v3021 = vpack.c.b16 %v2893, %v2889
      %v3022 = vpack.c.b16 %v2898, %v2894
      %v3023 = vpack.c.b16 %v2899, %v2895
      %v3024 = vpack.c.b16 %v2900, %v2896
      %v3025 = vpack.c.b16 %v2901, %v2897
      %v3026 = vpack.c.b16 %v2906, %v2902
      %v3027 = vpack.c.b16 %v2907, %v2903
      %v3028 = vpack.c.b16 %v2908, %v2904
      %v3029 = vpack.c.b16 %v2909, %v2905
      %v3030 = vpack.c.b16 %v2914, %v2910
      %v3031 = vpack.c.b16 %v2915, %v2911
      %v3032 = vpack.c.b16 %v2916, %v2912
      %v3033 = vpack.c.b16 %v2917, %v2913
      %v3034 = vpack.c.b16 %v2922, %v2918
      %v3035 = vpack.c.b16 %v2923, %v2919
      %v3036 = vpack.c.b16 %v2924, %v2920
      %v3037 = vpack.c.b16 %v2925, %v2921
      %v3038 = vpack.c.b16 %v2930, %v2926
      %v3039 = vpack.c.b16 %v2931, %v2927
      %v3040 = vpack.c.b16 %v2932, %v2928
      %v3041 = vpack.c.b16 %v2933, %v2929
      %v3042 = vpack.c.b16 %v2938, %v2934
      %v3043 = vpack.c.b16 %v2939, %v2935
      %v3044 = vpack.c.b16 %v2940, %v2936
      %v3045 = vpack.c.b16 %v2941, %v2937
      %v3046 = vpack.c.b16 %v2946, %v2942
      %v3047 = vpack.c.b16 %v2947, %v2943
      %v3048 = vpack.c.b16 %v2948, %v2944
      %v3049 = vpack.c.b16 %v2949, %v2945
      %v3050 = vpack.c.b16 %v2954, %v2950
      %v3051 = vpack.c.b16 %v2955, %v2951
      %v3052 = vpack.c.b16 %v2956, %v2952
      %v3053 = vpack.c.b16 %v2957, %v2953
      %v3054 = vpack.c.b16 %v2962, %v2958
      %v3055 = vpack.c.b16 %v2963, %v2959
      %v3056 = vpack.c.b16 %v2964, %v2960
      %v3057 = vpack.c.b16 %v2965, %v2961
      %v3058 = vpack.c.b16 %v2970, %v2966
      %v3059 = vpack.c.b16 %v2971, %v2967
      %v3060 = vpack.c.b16 %v2972, %v2968
      %v3061 = vpack.c.b16 %v2973, %v2969
      %v3062 = vpack.c.b16 %v2978, %v2974
      %v3063 = vpack.c.b16 %v2979, %v2975
      %v3064 = vpack.c.b16 %v2980, %v2976
      %v3065 = vpack.c.b16 %v2981, %v2977
      %v3066 = vpack.c.b16 %v2986, %v2982
      %v3067 = vpack.c.b16 %v2987, %v2983
      %v3068 = vpack.c.b16 %v2988, %v2984
      %v3069 = vpack.c.b16 %v2989, %v2985
      %v3070 = vpack.c.b16 %v2994, %v2990
      %v3071 = vpack.c.b16 %v2995, %v2991
      %v3072 = vpack.c.b16 %v2996, %v2992
      %v3073 = vpack.c.b16 %v2997, %v2993
      %v3074 = vpack.c.b16 %v3002, %v2998
      %v3075 = vpack.c.b16 %v3003, %v2999
      %v3076 = vpack.c.b16 %v3004, %v3000
      %v3077 = vpack.c.b16 %v3005, %v3001
      %v3151 = vsel %vm738, %v2787, 0
      %3153 = vmatprep.subr.bf16.mxu0 %v3007
      %3154 = vmatpush1.bf16.msra.mxu0 %v3006
      %3155 = vmatprep.subr.bf16.mxu0 %v3011
      %3156 = vmatpush1.bf16.msra.mxu0 %v3010
      %3157 = vmatprep.subr.bf16.mxu0 %v3015
      %3158 = vmatpush1.bf16.msra.mxu0 %v3014
      %3159 = vmatprep.subr.bf16.mxu0 %v3019
      %3160 = vmatpush1.bf16.msra.mxu0 %v3018
      %3161 = vmatprep.subr.bf16.mxu0 %v3023
      %3162 = vmatpush1.bf16.msra.mxu0 %v3022
      %3163 = vmatprep.subr.bf16.mxu0 %v3027
      %3164 = vmatpush1.bf16.msra.mxu0 %v3026
      %3165 = vmatprep.subr.bf16.mxu0 %v3031
      %3166 = vmatpush1.bf16.msra.mxu0 %v3030
      %3167 = vmatprep.subr.bf16.mxu0 %v3035
      %3168 = vmatpush1.bf16.msra.mxu0 %v3034
      %3169 = vmatprep.subr.bf16.mxu0 %v3039
      %3170 = vmatpush1.bf16.msra.mxu0 %v3038
      %3171 = vmatprep.subr.bf16.mxu0 %v3043
      %3172 = vmatpush1.bf16.msra.mxu0 %v3042
      %3173 = vmatprep.subr.bf16.mxu0 %v3047
      %3174 = vmatpush1.bf16.msra.mxu0 %v3046
      %3175 = vmatprep.subr.bf16.mxu0 %v3051
      %3176 = vmatpush1.bf16.msra.mxu0 %v3050
      %3177 = vmatprep.subr.bf16.mxu0 %v3055
      %3178 = vmatpush1.bf16.msra.mxu0 %v3054
      %3179 = vmatprep.subr.bf16.mxu0 %v3059
      %3180 = vmatpush1.bf16.msra.mxu0 %v3058
      %3181 = vmatprep.subr.bf16.mxu0 %v3063
      %3182 = vmatpush1.bf16.msra.mxu0 %v3062
      %3183 = vmatprep.subr.bf16.mxu0 %v3067
      %3184 = vmatpush1.bf16.msra.mxu0 %v3066
      %3185 = vmatprep.mubr.bf16.mxu0 %v2786
      %3186 = vmatmul.mubr.bf16.gmra.mrb[0].mxu0 %v2785
      %v3187 = vpop.f32.mrb[0].mxu0
      %v3188 = vadd.f32 0.0, %v3187
      %v3189 = vpop.f32.mrb[0].mxu0
      %v3190 = vadd.f32 0.0, %v3189
      %v3191 = vpop.f32.mrb[0].mxu0
      %v3192 = vpop.f32.mrb[0].mxu0
      %3193 = vdwg.mxu0
      %3194 = vmatprep.subr.bf16.mxu0 %v3071
      %3195 = vmatpush1.bf16.msra.mxu0 %v3070
      %3196 = vmatprep.subr.bf16.mxu0 %v3075
      %3197 = vmatpush1.bf16.msra.mxu0 %v3074
      %3198 = vmatprep.subr.bf16.mxu0 0
      %3199 = vmatpush1.bf16.msra.mxu0 0
      %3200 = vmatprep.subr.bf16.mxu0 0
      %3201 = vmatpush1.bf16.msra.mxu0 0
      %3202 = vmatprep.subr.bf16.mxu0 0
      %3203 = vmatpush1.bf16.msra.mxu0 0
      %3204 = vmatprep.subr.bf16.mxu0 0
      %3205 = vmatpush1.bf16.msra.mxu0 0
      %3206 = vmatprep.subr.bf16.mxu0 0
      %3207 = vmatpush1.bf16.msra.mxu0 0
      %3208 = vmatprep.subr.bf16.mxu0 0
      %3209 = vmatpush1.bf16.msra.mxu0 0
      %3210 = vmatprep.subr.bf16.mxu0 0
      %3211 = vmatpush1.bf16.msra.mxu0 0
      %3212 = vmatprep.subr.bf16.mxu0 0
      %3213 = vmatpush1.bf16.msra.mxu0 0
      %3214 = vmatprep.subr.bf16.mxu0 0
      %3215 = vmatpush1.bf16.msra.mxu0 0
      %3216 = vmatprep.subr.bf16.mxu0 0
      %3217 = vmatpush1.bf16.msra.mxu0 0
      %3218 = vmatprep.subr.bf16.mxu0 0
      %3219 = vmatpush1.bf16.msra.mxu0 0
      %3220 = vmatprep.subr.bf16.mxu0 0
      %3221 = vmatpush1.bf16.msra.mxu0 0
      %3222 = vmatprep.subr.bf16.mxu0 0
      %3223 = vmatpush1.bf16.msra.mxu0 0
      %3224 = vmatprep.subr.bf16.mxu0 0
      %3225 = vmatpush1.bf16.msra.mxu0 0
      %3226 = vmatprep.mubr.bf16.mxu0 0
      %3227 = vmatmul.mubr.bf16.gmra.mrb[0].mxu0 %v3151
      %v3228 = vpop.f32.mrb[0].mxu0
      %v3229 = vadd.f32 %v3188, %v3228
      %v3230 = vpop.f32.mrb[0].mxu0
      %v3231 = vadd.f32 %v3190, %v3230
      %v3232 = vpop.f32.mrb[0].mxu0
      %v3233 = vpop.f32.mrb[0].mxu0
      %3234 = vdwg.mxu0
      %3235 = vmatprep.subr.bf16.mxu0 %v3009
      %3236 = vmatpush1.bf16.msra.mxu0 %v3008
      %3237 = vmatprep.subr.bf16.mxu0 %v3013
      %3238 = vmatpush1.bf16.msra.mxu0 %v3012
      %3239 = vmatprep.subr.bf16.mxu0 %v3017
      %3240 = vmatpush1.bf16.msra.mxu0 %v3016
      %3241 = vmatprep.subr.bf16.mxu0 %v3021
      %3242 = vmatpush1.bf16.msra.mxu0 %v3020
      %3243 = vmatprep.subr.bf16.mxu0 %v3025
      %3244 = vmatpush1.bf16.msra.mxu0 %v3024
      %3245 = vmatprep.subr.bf16.mxu0 %v3029
      %3246 = vmatpush1.bf16.msra.mxu0 %v3028
      %3247 = vmatprep.subr.bf16.mxu0 %v3033
      %3248 = vmatpush1.bf16.msra.mxu0 %v3032
      %3249 = vmatprep.subr.bf16.mxu0 %v3037
      %3250 = vmatpush1.bf16.msra.mxu0 %v3036
      %3251 = vmatprep.subr.bf16.mxu0 %v3041
      %3252 = vmatpush1.bf16.msra.mxu0 %v3040
      %3253 = vmatprep.subr.bf16.mxu0 %v3045
      %3254 = vmatpush1.bf16.msra.mxu0 %v3044
      %3255 = vmatprep.subr.bf16.mxu0 %v3049
      %3256 = vmatpush1.bf16.msra.mxu0 %v3048
      %3257 = vmatprep.subr.bf16.mxu0 %v3053
      %3258 = vmatpush1.bf16.msra.mxu0 %v3052
      %3259 = vmatprep.subr.bf16.mxu0 %v3057
      %3260 = vmatpush1.bf16.msra.mxu0 %v3056
      %3261 = vmatprep.subr.bf16.mxu0 %v3061
      %3262 = vmatpush1.bf16.msra.mxu0 %v3060
      %3263 = vmatprep.subr.bf16.mxu0 %v3065
      %3264 = vmatpush1.bf16.msra.mxu0 %v3064
      %3265 = vmatprep.subr.bf16.mxu0 %v3069
      %3266 = vmatpush1.bf16.msra.mxu0 %v3068
      %3267 = vmatprep.mubr.bf16.mxu0 %v2786
      %3268 = vmatmul.mubr.bf16.gmra.mrb[0].mxu0 %v2785
      %v3269 = vpop.f32.mrb[0].mxu0
      %v3270 = vadd.f32 0.0, %v3269
      %v3271 = vpop.f32.mrb[0].mxu0
      %v3272 = vadd.f32 0.0, %v3271
      %v3273 = vpop.f32.mrb[0].mxu0
      %v3274 = vpop.f32.mrb[0].mxu0
      %3275 = vdwg.mxu0
      %3276 = vmatprep.subr.bf16.mxu0 %v3073
      %3277 = vmatpush1.bf16.msra.mxu0 %v3072
      %3278 = vmatprep.subr.bf16.mxu0 %v3077
      %3279 = vmatpush1.bf16.msra.mxu0 %v3076
      %3280 = vmatprep.subr.bf16.mxu0 0
      %3281 = vmatpush1.bf16.msra.mxu0 0
      %3282 = vmatprep.subr.bf16.mxu0 0
      %3283 = vmatpush1.bf16.msra.mxu0 0
      %3284 = vmatprep.subr.bf16.mxu0 0
      %3285 = vmatpush1.bf16.msra.mxu0 0
      %3286 = vmatprep.subr.bf16.mxu0 0
      %3287 = vmatpush1.bf16.msra.mxu0 0
      %3288 = vmatprep.subr.bf16.mxu0 0
      %3289 = vmatpush1.bf16.msra.mxu0 0
      %3290 = vmatprep.subr.bf16.mxu0 0
      %3291 = vmatpush1.bf16.msra.mxu0 0
      %3292 = vmatprep.subr.bf16.mxu0 0
      %3293 = vmatpush1.bf16.msra.mxu0 0
      %3294 = vmatprep.subr.bf16.mxu0 0
      %3295 = vmatpush1.bf16.msra.mxu0 0
      %3296 = vmatprep.subr.bf16.mxu0 0
      %3297 = vmatpush1.bf16.msra.mxu0 0
      %3298 = vmatprep.subr.bf16.mxu0 0
      %3299 = vmatpush1.bf16.msra.mxu0 0
      %3300 = vmatprep.subr.bf16.mxu0 0
      %3301 = vmatpush1.bf16.msra.mxu0 0
      %3302 = vmatprep.subr.bf16.mxu0 0
      %3303 = vmatpush1.bf16.msra.mxu0 0
      %3304 = vmatprep.subr.bf16.mxu0 0
      %3305 = vmatpush1.bf16.msra.mxu0 0
      %3306 = vmatprep.subr.bf16.mxu0 0
      %3307 = vmatpush1.bf16.msra.mxu0 0
      %3308 = vmatprep.mubr.bf16.mxu0 0
      %3309 = vmatmul.mubr.bf16.gmra.mrb[0].mxu0 %v3151
      %v3310 = vpop.f32.mrb[0].mxu0
      %v3311 = vadd.f32 %v3270, %v3310
      %v3312 = vpop.f32.mrb[0].mxu0
      %v3313 = vadd.f32 %v3272, %v3312
      %v3314 = vpop.f32.mrb[0].mxu0
      %v3315 = vpop.f32.mrb[0].mxu0
      %3316 = vdwg.mxu0
      %v3317 = vadd.f32 %v2691, %v3229
      %v3318 = vadd.f32 %v2692, %v3231
      %v3319 = vadd.f32 %v2693, %v3311
      %v3320 = vadd.f32 %v2694, %v3313
      %v3321 = vmax.f32 %v3317, %v3319
      %v3322 = vmax.f32 %v3318, %v3320
      %3323 = vmatprep.subr.bf16.mxu0 %v595
      %3324 = vmatpush1.bf16.msra.mxu0 %v594
      %3325 = vmatprep.subr.bf16.mxu0 %v599
      %3326 = vmatpush1.bf16.msra.mxu0 %v598
      %3327 = vmatprep.subr.bf16.mxu0 %v603
      %3328 = vmatpush1.bf16.msra.mxu0 %v602
      %3329 = vmatprep.subr.bf16.mxu0 %v607
      %3330 = vmatpush1.bf16.msra.mxu0 %v606
      %3331 = vmatprep.subr.bf16.mxu0 %v611
      %3332 = vmatpush1.bf16.msra.mxu0 %v610
      %3333 = vmatprep.subr.bf16.mxu0 %v615
      %3334 = vmatpush1.bf16.msra.mxu0 %v614
      %3335 = vmatprep.subr.bf16.mxu0 %v619
      %3336 = vmatpush1.bf16.msra.mxu0 %v618
      %3337 = vmatprep.subr.bf16.mxu0 %v623
      %3338 = vmatpush1.bf16.msra.mxu0 %v622
      %3339 = vmatprep.subr.bf16.mxu0 %v627
      %3340 = vmatpush1.bf16.msra.mxu0 %v626
      %3341 = vmatprep.subr.bf16.mxu0 %v631
      %3342 = vmatpush1.bf16.msra.mxu0 %v630
      %3343 = vmatprep.subr.bf16.mxu0 %v635
      %3344 = vmatpush1.bf16.msra.mxu0 %v634
      %3345 = vmatprep.subr.bf16.mxu0 %v639
      %3346 = vmatpush1.bf16.msra.mxu0 %v638
      %3347 = vmatprep.subr.bf16.mxu0 %v643
      %3348 = vmatpush1.bf16.msra.mxu0 %v642
      %3349 = vmatprep.subr.bf16.mxu0 %v647
      %3350 = vmatpush1.bf16.msra.mxu0 %v646
      %3351 = vmatprep.subr.bf16.mxu0 %v651
      %3352 = vmatpush1.bf16.msra.mxu0 %v650
      %3353 = vmatprep.subr.bf16.mxu0 %v655
      %3354 = vmatpush1.bf16.msra.mxu0 %v654
      %3355 = vmatprep.mubr.bf16.mxu0 %v1529
      %3356 = vmatmul.mubr.bf16.gmra.mrb[0].mxu0 %v1522
      %v3357 = vpop.f32.mrb[0].mxu0
      %v3358 = vadd.f32 0.0, %v3357
      %v3359 = vpop.f32.mrb[0].mxu0
      %v3360 = vadd.f32 0.0, %v3359
      %v3361 = vpop.f32.mrb[0].mxu0
      %v3362 = vpop.f32.mrb[0].mxu0
      %3363 = vdwg.mxu0
      %3364 = vmatprep.subr.bf16.mxu0 %v659
      %3365 = vmatpush1.bf16.msra.mxu0 %v658
      %3366 = vmatprep.subr.bf16.mxu0 %v663
      %3367 = vmatpush1.bf16.msra.mxu0 %v662
      %3368 = vmatprep.subr.bf16.mxu0 0
      %3369 = vmatpush1.bf16.msra.mxu0 0
      %3370 = vmatprep.subr.bf16.mxu0 0
      %3371 = vmatpush1.bf16.msra.mxu0 0
      %3372 = vmatprep.subr.bf16.mxu0 0
      %3373 = vmatpush1.bf16.msra.mxu0 0
      %3374 = vmatprep.subr.bf16.mxu0 0
      %3375 = vmatpush1.bf16.msra.mxu0 0
      %3376 = vmatprep.subr.bf16.mxu0 0
      %3377 = vmatpush1.bf16.msra.mxu0 0
      %3378 = vmatprep.subr.bf16.mxu0 0
      %3379 = vmatpush1.bf16.msra.mxu0 0
      %3380 = vmatprep.subr.bf16.mxu0 0
      %3381 = vmatpush1.bf16.msra.mxu0 0
      %3382 = vmatprep.subr.bf16.mxu0 0
      %3383 = vmatpush1.bf16.msra.mxu0 0
      %3384 = vmatprep.subr.bf16.mxu0 0
      %3385 = vmatpush1.bf16.msra.mxu0 0
      %3386 = vmatprep.subr.bf16.mxu0 0
      %3387 = vmatpush1.bf16.msra.mxu0 0
      %3388 = vmatprep.subr.bf16.mxu0 0
      %3389 = vmatpush1.bf16.msra.mxu0 0
      %3390 = vmatprep.subr.bf16.mxu0 0
      %3391 = vmatpush1.bf16.msra.mxu0 0
      %3392 = vmatprep.subr.bf16.mxu0 0
      %3393 = vmatpush1.bf16.msra.mxu0 0
      %3394 = vmatprep.subr.bf16.mxu0 0
      %3395 = vmatpush1.bf16.msra.mxu0 0
      %3396 = vmatprep.mubr.bf16.mxu0 0
      %3397 = vmatmul.mubr.bf16.gmra.mrb[0].mxu0 %v1899
      %v3398 = vpop.f32.mrb[0].mxu0
      %v3399 = vadd.f32 %v3358, %v3398
      %v3400 = vpop.f32.mrb[0].mxu0
      %v3401 = vadd.f32 %v3360, %v3400
      %v3402 = vpop.f32.mrb[0].mxu0
      %v3403 = vpop.f32.mrb[0].mxu0
      %3404 = vdwg.mxu0
      %3405 = vmatprep.subr.bf16.mxu0 %v597
      %3406 = vmatpush1.bf16.msra.mxu0 %v596
      %3407 = vmatprep.subr.bf16.mxu0 %v601
      %3408 = vmatpush1.bf16.msra.mxu0 %v600
      %3409 = vmatprep.subr.bf16.mxu0 %v605
      %3410 = vmatpush1.bf16.msra.mxu0 %v604
      %3411 = vmatprep.subr.bf16.mxu0 %v609
      %3412 = vmatpush1.bf16.msra.mxu0 %v608
      %3413 = vmatprep.subr.bf16.mxu0 %v613
      %3414 = vmatpush1.bf16.msra.mxu0 %v612
      %3415 = vmatprep.subr.bf16.mxu0 %v617
      %3416 = vmatpush1.bf16.msra.mxu0 %v616
      %3417 = vmatprep.subr.bf16.mxu0 %v621
      %3418 = vmatpush1.bf16.msra.mxu0 %v620
      %3419 = vmatprep.subr.bf16.mxu0 %v625
      %3420 = vmatpush1.bf16.msra.mxu0 %v624
      %3421 = vmatprep.subr.bf16.mxu0 %v629
      %3422 = vmatpush1.bf16.msra.mxu0 %v628
      %3423 = vmatprep.subr.bf16.mxu0 %v633
      %3424 = vmatpush1.bf16.msra.mxu0 %v632
      %3425 = vmatprep.subr.bf16.mxu0 %v637
      %3426 = vmatpush1.bf16.msra.mxu0 %v636
      %3427 = vmatprep.subr.bf16.mxu0 %v641
      %3428 = vmatpush1.bf16.msra.mxu0 %v640
      %3429 = vmatprep.subr.bf16.mxu0 %v645
      %3430 = vmatpush1.bf16.msra.mxu0 %v644
      %3431 = vmatprep.subr.bf16.mxu0 %v649
      %3432 = vmatpush1.bf16.msra.mxu0 %v648
      %3433 = vmatprep.subr.bf16.mxu0 %v653
      %3434 = vmatpush1.bf16.msra.mxu0 %v652
      %3435 = vmatprep.subr.bf16.mxu0 %v657
      %3436 = vmatpush1.bf16.msra.mxu0 %v656
      %3437 = vmatprep.mubr.bf16.mxu0 %v1529
      %3438 = vmatmul.mubr.bf16.gmra.mrb[0].mxu0 %v1522
      %v3439 = vpop.f32.mrb[0].mxu0
      %v3440 = vadd.f32 0.0, %v3439
      %v3441 = vpop.f32.mrb[0].mxu0
      %v3442 = vadd.f32 0.0, %v3441
      %v3443 = vpop.f32.mrb[0].mxu0
      %v3444 = vpop.f32.mrb[0].mxu0
      %3445 = vdwg.mxu0
      %3446 = vmatprep.subr.bf16.mxu0 %v661
      %3447 = vmatpush1.bf16.msra.mxu0 %v660
      %3448 = vmatprep.subr.bf16.mxu0 %v665
      %3449 = vmatpush1.bf16.msra.mxu0 %v664
      %3450 = vmatprep.subr.bf16.mxu0 0
      %3451 = vmatpush1.bf16.msra.mxu0 0
      %3452 = vmatprep.subr.bf16.mxu0 0
      %3453 = vmatpush1.bf16.msra.mxu0 0
      %3454 = vmatprep.subr.bf16.mxu0 0
      %3455 = vmatpush1.bf16.msra.mxu0 0
      %3456 = vmatprep.subr.bf16.mxu0 0
      %3457 = vmatpush1.bf16.msra.mxu0 0
      %3458 = vmatprep.subr.bf16.mxu0 0
      %3459 = vmatpush1.bf16.msra.mxu0 0
      %3460 = vmatprep.subr.bf16.mxu0 0
      %3461 = vmatpush1.bf16.msra.mxu0 0
      %3462 = vmatprep.subr.bf16.mxu0 0
      %3463 = vmatpush1.bf16.msra.mxu0 0
      %3464 = vmatprep.subr.bf16.mxu0 0
      %3465 = vmatpush1.bf16.msra.mxu0 0
      %3466 = vmatprep.subr.bf16.mxu0 0
      %3467 = vmatpush1.bf16.msra.mxu0 0
      %3468 = vmatprep.subr.bf16.mxu0 0
      %3469 = vmatpush1.bf16.msra.mxu0 0
      %3470 = vmatprep.subr.bf16.mxu0 0
      %3471 = vmatpush1.bf16.msra.mxu0 0
      %3472 = vmatprep.subr.bf16.mxu0 0
      %3473 = vmatpush1.bf16.msra.mxu0 0
      %3474 = vmatprep.subr.bf16.mxu0 0
      %3475 = vmatpush1.bf16.msra.mxu0 0
      %3476 = vmatprep.subr.bf16.mxu0 0
      %3477 = vmatpush1.bf16.msra.mxu0 0
      %3478 = vmatprep.mubr.bf16.mxu0 0
      %3479 = vmatmul.mubr.bf16.gmra.mrb[0].mxu0 %v1899
      %v3480 = vpop.f32.mrb[0].mxu0
      %v3481 = vadd.f32 %v3440, %v3480
      %v3482 = vpop.f32.mrb[0].mxu0
      %v3483 = vadd.f32 %v3442, %v3482
      %v3484 = vpop.f32.mrb[0].mxu0
      %v3485 = vpop.f32.mrb[0].mxu0
      %3486 = vdwg.mxu0
      %3487 = vmatprep.subr.bf16.mxu0 %v1133
      %3488 = vmatpush1.bf16.msra.mxu0 %v1132
      %3489 = vmatprep.subr.bf16.mxu0 %v1137
      %3490 = vmatpush1.bf16.msra.mxu0 %v1136
      %3491 = vmatprep.subr.bf16.mxu0 %v1141
      %3492 = vmatpush1.bf16.msra.mxu0 %v1140
      %3493 = vmatprep.subr.bf16.mxu0 %v1145
      %3494 = vmatpush1.bf16.msra.mxu0 %v1144
      %3495 = vmatprep.subr.bf16.mxu0 %v1149
      %3496 = vmatpush1.bf16.msra.mxu0 %v1148
      %3497 = vmatprep.subr.bf16.mxu0 %v1153
      %3498 = vmatpush1.bf16.msra.mxu0 %v1152
      %3499 = vmatprep.subr.bf16.mxu0 %v1157
      %3500 = vmatpush1.bf16.msra.mxu0 %v1156
      %3501 = vmatprep.subr.bf16.mxu0 %v1161
      %3502 = vmatpush1.bf16.msra.mxu0 %v1160
      %3503 = vmatprep.subr.bf16.mxu0 %v1165
      %3504 = vmatpush1.bf16.msra.mxu0 %v1164
      %3505 = vmatprep.subr.bf16.mxu0 %v1169
      %3506 = vmatpush1.bf16.msra.mxu0 %v1168
      %3507 = vmatprep.subr.bf16.mxu0 %v1173
      %3508 = vmatpush1.bf16.msra.mxu0 %v1172
      %3509 = vmatprep.subr.bf16.mxu0 %v1177
      %3510 = vmatpush1.bf16.msra.mxu0 %v1176
      %3511 = vmatprep.subr.bf16.mxu0 %v1181
      %3512 = vmatpush1.bf16.msra.mxu0 %v1180
      %3513 = vmatprep.subr.bf16.mxu0 %v1185
      %3514 = vmatpush1.bf16.msra.mxu0 %v1184
      %3515 = vmatprep.subr.bf16.mxu0 %v1189
      %3516 = vmatpush1.bf16.msra.mxu0 %v1188
      %3517 = vmatprep.subr.bf16.mxu0 %v1193
      %3518 = vmatpush1.bf16.msra.mxu0 %v1192
      %3519 = vmatprep.mubr.bf16.mxu0 %v374
      %3520 = vmatmul.mubr.bf16.gmra.mrb[0].mxu0 %v373
      %v3521 = vpop.f32.mrb[0].mxu0
      %v3522 = vadd.f32 %v3399, %v3521
      %v3523 = vpop.f32.mrb[0].mxu0
      %v3524 = vadd.f32 %v3401, %v3523
      %v3525 = vpop.f32.mrb[0].mxu0
      %v3526 = vpop.f32.mrb[0].mxu0
      %3527 = vdwg.mxu0
      %3528 = vmatprep.subr.bf16.mxu0 %v1197
      %3529 = vmatpush1.bf16.msra.mxu0 %v1196
      %3530 = vmatprep.subr.bf16.mxu0 %v1201
      %3531 = vmatpush1.bf16.msra.mxu0 %v1200
      %3532 = vmatprep.subr.bf16.mxu0 0
      %3533 = vmatpush1.bf16.msra.mxu0 0
      %3534 = vmatprep.subr.bf16.mxu0 0
      %3535 = vmatpush1.bf16.msra.mxu0 0
      %3536 = vmatprep.subr.bf16.mxu0 0
      %3537 = vmatpush1.bf16.msra.mxu0 0
      %3538 = vmatprep.subr.bf16.mxu0 0
      %3539 = vmatpush1.bf16.msra.mxu0 0
      %3540 = vmatprep.subr.bf16.mxu0 0
      %3541 = vmatpush1.bf16.msra.mxu0 0
      %3542 = vmatprep.subr.bf16.mxu0 0
      %3543 = vmatpush1.bf16.msra.mxu0 0
      %3544 = vmatprep.subr.bf16.mxu0 0
      %3545 = vmatpush1.bf16.msra.mxu0 0
      %3546 = vmatprep.subr.bf16.mxu0 0
      %3547 = vmatpush1.bf16.msra.mxu0 0
      %3548 = vmatprep.subr.bf16.mxu0 0
      %3549 = vmatpush1.bf16.msra.mxu0 0
      %3550 = vmatprep.subr.bf16.mxu0 0
      %3551 = vmatpush1.bf16.msra.mxu0 0
      %3552 = vmatprep.subr.bf16.mxu0 0
      %3553 = vmatpush1.bf16.msra.mxu0 0
      %3554 = vmatprep.subr.bf16.mxu0 0
      %3555 = vmatpush1.bf16.msra.mxu0 0
      %3556 = vmatprep.subr.bf16.mxu0 0
      %3557 = vmatpush1.bf16.msra.mxu0 0
      %3558 = vmatprep.subr.bf16.mxu0 0
      %3559 = vmatpush1.bf16.msra.mxu0 0
      %3560 = vmatprep.mubr.bf16.mxu0 0
      %3561 = vmatmul.mubr.bf16.gmra.mrb[0].mxu0 %v740
      %v3562 = vpop.f32.mrb[0].mxu0
      %v3563 = vadd.f32 %v3522, %v3562
      %v3564 = vpop.f32.mrb[0].mxu0
      %v3565 = vadd.f32 %v3524, %v3564
      %v3566 = vpop.f32.mrb[0].mxu0
      %v3567 = vpop.f32.mrb[0].mxu0
      %3568 = vdwg.mxu0
      %3569 = vmatprep.subr.bf16.mxu0 %v1135
      %3570 = vmatpush1.bf16.msra.mxu0 %v1134
      %3571 = vmatprep.subr.bf16.mxu0 %v1139
      %3572 = vmatpush1.bf16.msra.mxu0 %v1138
      %3573 = vmatprep.subr.bf16.mxu0 %v1143
      %3574 = vmatpush1.bf16.msra.mxu0 %v1142
      %3575 = vmatprep.subr.bf16.mxu0 %v1147
      %3576 = vmatpush1.bf16.msra.mxu0 %v1146
      %3577 = vmatprep.subr.bf16.mxu0 %v1151
      %3578 = vmatpush1.bf16.msra.mxu0 %v1150
      %3579 = vmatprep.subr.bf16.mxu0 %v1155
      %3580 = vmatpush1.bf16.msra.mxu0 %v1154
      %3581 = vmatprep.subr.bf16.mxu0 %v1159
      %3582 = vmatpush1.bf16.msra.mxu0 %v1158
      %3583 = vmatprep.subr.bf16.mxu0 %v1163
      %3584 = vmatpush1.bf16.msra.mxu0 %v1162
      %3585 = vmatprep.subr.bf16.mxu0 %v1167
      %3586 = vmatpush1.bf16.msra.mxu0 %v1166
      %3587 = vmatprep.subr.bf16.mxu0 %v1171
      %3588 = vmatpush1.bf16.msra.mxu0 %v1170
      %3589 = vmatprep.subr.bf16.mxu0 %v1175
      %3590 = vmatpush1.bf16.msra.mxu0 %v1174
      %3591 = vmatprep.subr.bf16.mxu0 %v1179
      %3592 = vmatpush1.bf16.msra.mxu0 %v1178
      %3593 = vmatprep.subr.bf16.mxu0 %v1183
      %3594 = vmatpush1.bf16.msra.mxu0 %v1182
      %3595 = vmatprep.subr.bf16.mxu0 %v1187
      %3596 = vmatpush1.bf16.msra.mxu0 %v1186
      %3597 = vmatprep.subr.bf16.mxu0 %v1191
      %3598 = vmatpush1.bf16.msra.mxu0 %v1190
      %3599 = vmatprep.subr.bf16.mxu0 %v1195
      %3600 = vmatpush1.bf16.msra.mxu0 %v1194
      %3601 = vmatprep.mubr.bf16.mxu0 %v374
      %3602 = vmatmul.mubr.bf16.gmra.mrb[0].mxu0 %v373
      %v3603 = vpop.f32.mrb[0].mxu0
      %v3604 = vadd.f32 %v3481, %v3603
      %v3605 = vpop.f32.mrb[0].mxu0
      %v3606 = vadd.f32 %v3483, %v3605
      %v3607 = vpop.f32.mrb[0].mxu0
      %v3608 = vpop.f32.mrb[0].mxu0
      %3609 = vdwg.mxu0
      %3610 = vmatprep.subr.bf16.mxu0 %v1199
      %3611 = vmatpush1.bf16.msra.mxu0 %v1198
      %3612 = vmatprep.subr.bf16.mxu0 %v1203
      %3613 = vmatpush1.bf16.msra.mxu0 %v1202
      %3614 = vmatprep.subr.bf16.mxu0 0
      %3615 = vmatpush1.bf16.msra.mxu0 0
      %3616 = vmatprep.subr.bf16.mxu0 0
      %3617 = vmatpush1.bf16.msra.mxu0 0
      %3618 = vmatprep.subr.bf16.mxu0 0
      %3619 = vmatpush1.bf16.msra.mxu0 0
      %3620 = vmatprep.subr.bf16.mxu0 0
      %3621 = vmatpush1.bf16.msra.mxu0 0
      %3622 = vmatprep.subr.bf16.mxu0 0
      %3623 = vmatpush1.bf16.msra.mxu0 0
      %3624 = vmatprep.subr.bf16.mxu0 0
      %3625 = vmatpush1.bf16.msra.mxu0 0
      %3626 = vmatprep.subr.bf16.mxu0 0
      %3627 = vmatpush1.bf16.msra.mxu0 0
      %3628 = vmatprep.subr.bf16.mxu0 0
      %3629 = vmatpush1.bf16.msra.mxu0 0
      %3630 = vmatprep.subr.bf16.mxu0 0
      %3631 = vmatpush1.bf16.msra.mxu0 0
      %3632 = vmatprep.subr.bf16.mxu0 0
      %3633 = vmatpush1.bf16.msra.mxu0 0
      %3634 = vmatprep.subr.bf16.mxu0 0
      %3635 = vmatpush1.bf16.msra.mxu0 0
      %3636 = vmatprep.subr.bf16.mxu0 0
      %3637 = vmatpush1.bf16.msra.mxu0 0
      %3638 = vmatprep.subr.bf16.mxu0 0
      %3639 = vmatpush1.bf16.msra.mxu0 0
      %3640 = vmatprep.subr.bf16.mxu0 0
      %3641 = vmatpush1.bf16.msra.mxu0 0
      %3642 = vmatprep.mubr.bf16.mxu0 0
      %3643 = vmatmul.mubr.bf16.gmra.mrb[0].mxu0 %v740
      %v3644 = vpop.f32.mrb[0].mxu0
      %v3645 = vadd.f32 %v3604, %v3644
      %v3646 = vpop.f32.mrb[0].mxu0
      %v3647 = vadd.f32 %v3606, %v3646
      %v3648 = vpop.f32.mrb[0].mxu0
      %v3649 = vpop.f32.mrb[0].mxu0
      %3650 = vdwg.mxu0
      %3651 = vmatprep.subr.bf16.mxu0 %v1755
      %3652 = vmatpush1.bf16.msra.mxu0 %v1754
      %3653 = vmatprep.subr.bf16.mxu0 %v1759
      %3654 = vmatpush1.bf16.msra.mxu0 %v1758
      %3655 = vmatprep.subr.bf16.mxu0 %v1763
      %3656 = vmatpush1.bf16.msra.mxu0 %v1762
      %3657 = vmatprep.subr.bf16.mxu0 %v1767
      %3658 = vmatpush1.bf16.msra.mxu0 %v1766
      %3659 = vmatprep.subr.bf16.mxu0 %v1771
      %3660 = vmatpush1.bf16.msra.mxu0 %v1770
      %3661 = vmatprep.subr.bf16.mxu0 %v1775
      %3662 = vmatpush1.bf16.msra.mxu0 %v1774
      %3663 = vmatprep.subr.bf16.mxu0 %v1779
      %3664 = vmatpush1.bf16.msra.mxu0 %v1778
      %3665 = vmatprep.subr.bf16.mxu0 %v1783
      %3666 = vmatpush1.bf16.msra.mxu0 %v1782
      %3667 = vmatprep.subr.bf16.mxu0 %v1787
      %3668 = vmatpush1.bf16.msra.mxu0 %v1786
      %3669 = vmatprep.subr.bf16.mxu0 %v1791
      %3670 = vmatpush1.bf16.msra.mxu0 %v1790
      %3671 = vmatprep.subr.bf16.mxu0 %v1795
      %3672 = vmatpush1.bf16.msra.mxu0 %v1794
      %3673 = vmatprep.subr.bf16.mxu0 %v1799
      %3674 = vmatpush1.bf16.msra.mxu0 %v1798
      %3675 = vmatprep.subr.bf16.mxu0 %v1803
      %3676 = vmatpush1.bf16.msra.mxu0 %v1802
      %3677 = vmatprep.subr.bf16.mxu0 %v1807
      %3678 = vmatpush1.bf16.msra.mxu0 %v1806
      %3679 = vmatprep.subr.bf16.mxu0 %v1811
      %3680 = vmatpush1.bf16.msra.mxu0 %v1810
      %3681 = vmatprep.subr.bf16.mxu0 %v1815
      %3682 = vmatpush1.bf16.msra.mxu0 %v1814
      %3683 = vmatprep.mubr.bf16.mxu0 %v2155
      %3684 = vmatmul.mubr.bf16.gmra.mrb[0].mxu0 %v2148
      %v3685 = vpop.f32.mrb[0].mxu0
      %v3686 = vadd.f32 0.0, %v3685
      %v3687 = vpop.f32.mrb[0].mxu0
      %v3688 = vadd.f32 0.0, %v3687
      %v3689 = vpop.f32.mrb[0].mxu0
      %v3690 = vpop.f32.mrb[0].mxu0
      %3691 = vdwg.mxu0
      %3692 = vmatprep.subr.bf16.mxu0 %v1819
      %3693 = vmatpush1.bf16.msra.mxu0 %v1818
      %3694 = vmatprep.subr.bf16.mxu0 %v1823
      %3695 = vmatpush1.bf16.msra.mxu0 %v1822
      %3696 = vmatprep.subr.bf16.mxu0 0
      %3697 = vmatpush1.bf16.msra.mxu0 0
      %3698 = vmatprep.subr.bf16.mxu0 0
      %3699 = vmatpush1.bf16.msra.mxu0 0
      %3700 = vmatprep.subr.bf16.mxu0 0
      %3701 = vmatpush1.bf16.msra.mxu0 0
      %3702 = vmatprep.subr.bf16.mxu0 0
      %3703 = vmatpush1.bf16.msra.mxu0 0
      %3704 = vmatprep.subr.bf16.mxu0 0
      %3705 = vmatpush1.bf16.msra.mxu0 0
      %3706 = vmatprep.subr.bf16.mxu0 0
      %3707 = vmatpush1.bf16.msra.mxu0 0
      %3708 = vmatprep.subr.bf16.mxu0 0
      %3709 = vmatpush1.bf16.msra.mxu0 0
      %3710 = vmatprep.subr.bf16.mxu0 0
      %3711 = vmatpush1.bf16.msra.mxu0 0
      %3712 = vmatprep.subr.bf16.mxu0 0
      %3713 = vmatpush1.bf16.msra.mxu0 0
      %3714 = vmatprep.subr.bf16.mxu0 0
      %3715 = vmatpush1.bf16.msra.mxu0 0
      %3716 = vmatprep.subr.bf16.mxu0 0
      %3717 = vmatpush1.bf16.msra.mxu0 0
      %3718 = vmatprep.subr.bf16.mxu0 0
      %3719 = vmatpush1.bf16.msra.mxu0 0
      %3720 = vmatprep.subr.bf16.mxu0 0
      %3721 = vmatpush1.bf16.msra.mxu0 0
      %3722 = vmatprep.subr.bf16.mxu0 0
      %3723 = vmatpush1.bf16.msra.mxu0 0
      %3724 = vmatprep.mubr.bf16.mxu0 0
      %3725 = vmatmul.mubr.bf16.gmra.mrb[0].mxu0 %v2525
      %v3726 = vpop.f32.mrb[0].mxu0
      %v3727 = vadd.f32 %v3686, %v3726
      %v3728 = vpop.f32.mrb[0].mxu0
      %v3729 = vadd.f32 %v3688, %v3728
      %v3730 = vpop.f32.mrb[0].mxu0
      %v3731 = vpop.f32.mrb[0].mxu0
      %3732 = vdwg.mxu0
      %3733 = vmatprep.subr.bf16.mxu0 %v1757
      %3734 = vmatpush1.bf16.msra.mxu0 %v1756
      %3735 = vmatprep.subr.bf16.mxu0 %v1761
      %3736 = vmatpush1.bf16.msra.mxu0 %v1760
      %3737 = vmatprep.subr.bf16.mxu0 %v1765
      %3738 = vmatpush1.bf16.msra.mxu0 %v1764
      %3739 = vmatprep.subr.bf16.mxu0 %v1769
      %3740 = vmatpush1.bf16.msra.mxu0 %v1768
      %3741 = vmatprep.subr.bf16.mxu0 %v1773
      %3742 = vmatpush1.bf16.msra.mxu0 %v1772
      %3743 = vmatprep.subr.bf16.mxu0 %v1777
      %3744 = vmatpush1.bf16.msra.mxu0 %v1776
      %3745 = vmatprep.subr.bf16.mxu0 %v1781
      %3746 = vmatpush1.bf16.msra.mxu0 %v1780
      %3747 = vmatprep.subr.bf16.mxu0 %v1785
      %3748 = vmatpush1.bf16.msra.mxu0 %v1784
      %3749 = vmatprep.subr.bf16.mxu0 %v1789
      %3750 = vmatpush1.bf16.msra.mxu0 %v1788
      %3751 = vmatprep.subr.bf16.mxu0 %v1793
      %3752 = vmatpush1.bf16.msra.mxu0 %v1792
      %3753 = vmatprep.subr.bf16.mxu0 %v1797
      %3754 = vmatpush1.bf16.msra.mxu0 %v1796
      %3755 = vmatprep.subr.bf16.mxu0 %v1801
      %3756 = vmatpush1.bf16.msra.mxu0 %v1800
      %3757 = vmatprep.subr.bf16.mxu0 %v1805
      %3758 = vmatpush1.bf16.msra.mxu0 %v1804
      %3759 = vmatprep.subr.bf16.mxu0 %v1809
      %3760 = vmatpush1.bf16.msra.mxu0 %v1808
      %3761 = vmatprep.subr.bf16.mxu0 %v1813
      %3762 = vmatpush1.bf16.msra.mxu0 %v1812
      %3763 = vmatprep.subr.bf16.mxu0 %v1817
      %3764 = vmatpush1.bf16.msra.mxu0 %v1816
      %3765 = vmatprep.mubr.bf16.mxu0 %v2155
      %3766 = vmatmul.mubr.bf16.gmra.mrb[0].mxu0 %v2148
      %v3767 = vpop.f32.mrb[0].mxu0
      %v3768 = vadd.f32 0.0, %v3767
      %v3769 = vpop.f32.mrb[0].mxu0
      %v3770 = vadd.f32 0.0, %v3769
      %v3771 = vpop.f32.mrb[0].mxu0
      %v3772 = vpop.f32.mrb[0].mxu0
      %3773 = vdwg.mxu0
      %3774 = vmatprep.subr.bf16.mxu0 %v1821
      %3775 = vmatpush1.bf16.msra.mxu0 %v1820
      %3776 = vmatprep.subr.bf16.mxu0 %v1825
      %3777 = vmatpush1.bf16.msra.mxu0 %v1824
      %3778 = vmatprep.subr.bf16.mxu0 0
      %3779 = vmatpush1.bf16.msra.mxu0 0
      %3780 = vmatprep.subr.bf16.mxu0 0
      %3781 = vmatpush1.bf16.msra.mxu0 0
      %3782 = vmatprep.subr.bf16.mxu0 0
      %3783 = vmatpush1.bf16.msra.mxu0 0
      %3784 = vmatprep.subr.bf16.mxu0 0
      %3785 = vmatpush1.bf16.msra.mxu0 0
      %3786 = vmatprep.subr.bf16.mxu0 0
      %3787 = vmatpush1.bf16.msra.mxu0 0
      %3788 = vmatprep.subr.bf16.mxu0 0
      %3789 = vmatpush1.bf16.msra.mxu0 0
      %3790 = vmatprep.subr.bf16.mxu0 0
      %3791 = vmatpush1.bf16.msra.mxu0 0
      %3792 = vmatprep.subr.bf16.mxu0 0
      %3793 = vmatpush1.bf16.msra.mxu0 0
      %3794 = vmatprep.subr.bf16.mxu0 0
      %3795 = vmatpush1.bf16.msra.mxu0 0
      %3796 = vmatprep.subr.bf16.mxu0 0
      %3797 = vmatpush1.bf16.msra.mxu0 0
      %3798 = vmatprep.subr.bf16.mxu0 0
      %3799 = vmatpush1.bf16.msra.mxu0 0
      %3800 = vmatprep.subr.bf16.mxu0 0
      %3801 = vmatpush1.bf16.msra.mxu0 0
      %3802 = vmatprep.subr.bf16.mxu0 0
      %3803 = vmatpush1.bf16.msra.mxu0 0
      %3804 = vmatprep.subr.bf16.mxu0 0
      %3805 = vmatpush1.bf16.msra.mxu0 0
      %3806 = vmatprep.mubr.bf16.mxu0 0
      %3807 = vmatmul.mubr.bf16.gmra.mrb[0].mxu0 %v2525
      %v3808 = vpop.f32.mrb[0].mxu0
      %v3809 = vadd.f32 %v3768, %v3808
      %v3810 = vpop.f32.mrb[0].mxu0
      %v3811 = vadd.f32 %v3770, %v3810
      %v3812 = vpop.f32.mrb[0].mxu0
      %v3813 = vpop.f32.mrb[0].mxu0
      %3814 = vdwg.mxu0
      %v3815 = vadd.f32 %v3563, %v3727
      %v3816 = vadd.f32 %v3565, %v3729
      %v3817 = vadd.f32 %v3645, %v3809
      %v3818 = vadd.f32 %v3647, %v3811
      %3819 = vmatprep.subr.bf16.mxu0 %v2381
      %3820 = vmatpush1.bf16.msra.mxu0 %v2380
      %3821 = vmatprep.subr.bf16.mxu0 %v2385
      %3822 = vmatpush1.bf16.msra.mxu0 %v2384
      %3823 = vmatprep.subr.bf16.mxu0 %v2389
      %3824 = vmatpush1.bf16.msra.mxu0 %v2388
      %3825 = vmatprep.subr.bf16.mxu0 %v2393
      %3826 = vmatpush1.bf16.msra.mxu0 %v2392
      %3827 = vmatprep.subr.bf16.mxu0 %v2397
      %3828 = vmatpush1.bf16.msra.mxu0 %v2396
      %3829 = vmatprep.subr.bf16.mxu0 %v2401
      %3830 = vmatpush1.bf16.msra.mxu0 %v2400
      %3831 = vmatprep.subr.bf16.mxu0 %v2405
      %3832 = vmatpush1.bf16.msra.mxu0 %v2404
      %3833 = vmatprep.subr.bf16.mxu0 %v2409
      %3834 = vmatpush1.bf16.msra.mxu0 %v2408
      %3835 = vmatprep.subr.bf16.mxu0 %v2413
      %3836 = vmatpush1.bf16.msra.mxu0 %v2412
      %3837 = vmatprep.subr.bf16.mxu0 %v2417
      %3838 = vmatpush1.bf16.msra.mxu0 %v2416
      %3839 = vmatprep.subr.bf16.mxu0 %v2421
      %3840 = vmatpush1.bf16.msra.mxu0 %v2420
      %3841 = vmatprep.subr.bf16.mxu0 %v2425
      %3842 = vmatpush1.bf16.msra.mxu0 %v2424
      %3843 = vmatprep.subr.bf16.mxu0 %v2429
      %3844 = vmatpush1.bf16.msra.mxu0 %v2428
      %3845 = vmatprep.subr.bf16.mxu0 %v2433
      %3846 = vmatpush1.bf16.msra.mxu0 %v2432
      %3847 = vmatprep.subr.bf16.mxu0 %v2437
      %3848 = vmatpush1.bf16.msra.mxu0 %v2436
      %3849 = vmatprep.subr.bf16.mxu0 %v2441
      %3850 = vmatpush1.bf16.msra.mxu0 %v2440
      %3851 = vmatprep.mubr.bf16.mxu0 %v2786
      %3852 = vmatmul.mubr.bf16.gmra.mrb[0].mxu0 %v2785
      %v3853 = vpop.f32.mrb[0].mxu0
      %v3854 = vadd.f32 0.0, %v3853
      %v3855 = vpop.f32.mrb[0].mxu0
      %v3856 = vadd.f32 0.0, %v3855
      %v3857 = vpop.f32.mrb[0].mxu0
      %v3858 = vpop.f32.mrb[0].mxu0
      %3859 = vdwg.mxu0
      %3860 = vmatprep.subr.bf16.mxu0 %v2445
      %3861 = vmatpush1.bf16.msra.mxu0 %v2444
      %3862 = vmatprep.subr.bf16.mxu0 %v2449
      %3863 = vmatpush1.bf16.msra.mxu0 %v2448
      %3864 = vmatprep.subr.bf16.mxu0 0
      %3865 = vmatpush1.bf16.msra.mxu0 0
      %3866 = vmatprep.subr.bf16.mxu0 0
      %3867 = vmatpush1.bf16.msra.mxu0 0
      %3868 = vmatprep.subr.bf16.mxu0 0
      %3869 = vmatpush1.bf16.msra.mxu0 0
      %3870 = vmatprep.subr.bf16.mxu0 0
      %3871 = vmatpush1.bf16.msra.mxu0 0
      %3872 = vmatprep.subr.bf16.mxu0 0
      %3873 = vmatpush1.bf16.msra.mxu0 0
      %3874 = vmatprep.subr.bf16.mxu0 0
      %3875 = vmatpush1.bf16.msra.mxu0 0
      %3876 = vmatprep.subr.bf16.mxu0 0
      %3877 = vmatpush1.bf16.msra.mxu0 0
      %3878 = vmatprep.subr.bf16.mxu0 0
      %3879 = vmatpush1.bf16.msra.mxu0 0
      %3880 = vmatprep.subr.bf16.mxu0 0
      %3881 = vmatpush1.bf16.msra.mxu0 0
      %3882 = vmatprep.subr.bf16.mxu0 0
      %3883 = vmatpush1.bf16.msra.mxu0 0
      %3884 = vmatprep.subr.bf16.mxu0 0
      %3885 = vmatpush1.bf16.msra.mxu0 0
      %3886 = vmatprep.subr.bf16.mxu0 0
      %3887 = vmatpush1.bf16.msra.mxu0 0
      %3888 = vmatprep.subr.bf16.mxu0 0
      %3889 = vmatpush1.bf16.msra.mxu0 0
      %3890 = vmatprep.subr.bf16.mxu0 0
      %3891 = vmatpush1.bf16.msra.mxu0 0
      %3892 = vmatprep.mubr.bf16.mxu0 0
      %3893 = vmatmul.mubr.bf16.gmra.mrb[0].mxu0 %v3151
      %v3894 = vpop.f32.mrb[0].mxu0
      %v3895 = vadd.f32 %v3854, %v3894
      %v3896 = vpop.f32.mrb[0].mxu0
      %v3897 = vadd.f32 %v3856, %v3896
      %v3898 = vpop.f32.mrb[0].mxu0
      %v3899 = vpop.f32.mrb[0].mxu0
      %3900 = vdwg.mxu0
      %3901 = vmatprep.subr.bf16.mxu0 %v2383
      %3902 = vmatpush1.bf16.msra.mxu0 %v2382
      %3903 = vmatprep.subr.bf16.mxu0 %v2387
      %3904 = vmatpush1.bf16.msra.mxu0 %v2386
      %3905 = vmatprep.subr.bf16.mxu0 %v2391
      %3906 = vmatpush1.bf16.msra.mxu0 %v2390
      %3907 = vmatprep.subr.bf16.mxu0 %v2395
      %3908 = vmatpush1.bf16.msra.mxu0 %v2394
      %3909 = vmatprep.subr.bf16.mxu0 %v2399
      %3910 = vmatpush1.bf16.msra.mxu0 %v2398
      %3911 = vmatprep.subr.bf16.mxu0 %v2403
      %3912 = vmatpush1.bf16.msra.mxu0 %v2402
      %3913 = vmatprep.subr.bf16.mxu0 %v2407
      %3914 = vmatpush1.bf16.msra.mxu0 %v2406
      %3915 = vmatprep.subr.bf16.mxu0 %v2411
      %3916 = vmatpush1.bf16.msra.mxu0 %v2410
      %3917 = vmatprep.subr.bf16.mxu0 %v2415
      %3918 = vmatpush1.bf16.msra.mxu0 %v2414
      %3919 = vmatprep.subr.bf16.mxu0 %v2419
      %3920 = vmatpush1.bf16.msra.mxu0 %v2418
      %3921 = vmatprep.subr.bf16.mxu0 %v2423
      %3922 = vmatpush1.bf16.msra.mxu0 %v2422
      %3923 = vmatprep.subr.bf16.mxu0 %v2427
      %3924 = vmatpush1.bf16.msra.mxu0 %v2426
      %3925 = vmatprep.subr.bf16.mxu0 %v2431
      %3926 = vmatpush1.bf16.msra.mxu0 %v2430
      %3927 = vmatprep.subr.bf16.mxu0 %v2435
      %3928 = vmatpush1.bf16.msra.mxu0 %v2434
      %3929 = vmatprep.subr.bf16.mxu0 %v2439
      %3930 = vmatpush1.bf16.msra.mxu0 %v2438
      %3931 = vmatprep.subr.bf16.mxu0 %v2443
      %3932 = vmatpush1.bf16.msra.mxu0 %v2442
      %3933 = vmatprep.mubr.bf16.mxu0 %v2786
      %3934 = vmatmul.mubr.bf16.gmra.mrb[0].mxu0 %v2785
      %v3935 = vpop.f32.mrb[0].mxu0
      %v3936 = vadd.f32 0.0, %v3935
      %v3937 = vpop.f32.mrb[0].mxu0
      %v3938 = vadd.f32 0.0, %v3937
      %v3939 = vpop.f32.mrb[0].mxu0
      %v3940 = vpop.f32.mrb[0].mxu0
      %3941 = vdwg.mxu0
      %3942 = vmatprep.subr.bf16.mxu0 %v2447
      %3943 = vmatpush1.bf16.msra.mxu0 %v2446
      %3944 = vmatprep.subr.bf16.mxu0 %v2451
      %3945 = vmatpush1.bf16.msra.mxu0 %v2450
      %3946 = vmatprep.subr.bf16.mxu0 0
      %3947 = vmatpush1.bf16.msra.mxu0 0
      %3948 = vmatprep.subr.bf16.mxu0 0
      %3949 = vmatpush1.bf16.msra.mxu0 0
      %3950 = vmatprep.subr.bf16.mxu0 0
      %3951 = vmatpush1.bf16.msra.mxu0 0
      %3952 = vmatprep.subr.bf16.mxu0 0
      %3953 = vmatpush1.bf16.msra.mxu0 0
      %3954 = vmatprep.subr.bf16.mxu0 0
      %3955 = vmatpush1.bf16.msra.mxu0 0
      %3956 = vmatprep.subr.bf16.mxu0 0
      %3957 = vmatpush1.bf16.msra.mxu0 0
      %3958 = vmatprep.subr.bf16.mxu0 0
      %3959 = vmatpush1.bf16.msra.mxu0 0
      %3960 = vmatprep.subr.bf16.mxu0 0
      %3961 = vmatpush1.bf16.msra.mxu0 0
      %3962 = vmatprep.subr.bf16.mxu0 0
      %3963 = vmatpush1.bf16.msra.mxu0 0
      %3964 = vmatprep.subr.bf16.mxu0 0
      %3965 = vmatpush1.bf16.msra.mxu0 0
      %3966 = vmatprep.subr.bf16.mxu0 0
      %3967 = vmatpush1.bf16.msra.mxu0 0
      %3968 = vmatprep.subr.bf16.mxu0 0
      %3969 = vmatpush1.bf16.msra.mxu0 0
      %3970 = vmatprep.subr.bf16.mxu0 0
      %3971 = vmatpush1.bf16.msra.mxu0 0
      %3972 = vmatprep.subr.bf16.mxu0 0
      %3973 = vmatpush1.bf16.msra.mxu0 0
      %3974 = vmatprep.mubr.bf16.mxu0 0
      %3975 = vmatmul.mubr.bf16.gmra.mrb[0].mxu0 %v3151
      %v3976 = vpop.f32.mrb[0].mxu0
      %v3977 = vadd.f32 %v3936, %v3976
      %v3978 = vpop.f32.mrb[0].mxu0
      %v3979 = vadd.f32 %v3938, %v3978
      %v3980 = vpop.f32.mrb[0].mxu0
      %v3981 = vpop.f32.mrb[0].mxu0
      %3982 = vdwg.mxu0
      %v3983 = vadd.f32 %v3815, %v3895
      %v3984 = vadd.f32 %v3816, %v3897
      %v3985 = vadd.f32 %v3817, %v3977
      %v3986 = vadd.f32 %v3818, %v3979
      %v3987 = vld [vmem:[%s212] sm:$0xee]
      %v3988 = vld [vmem:[%s212 + $0x8] sm:$0xe]
      %v3989 = vld [vmem:[%s212 + $0xc] sm:$0x11]
      %v3990 = vld [vmem:[%s212 + $0x14] sm:$0x1]
      %v3995 = vunpack.c.l.b16 %v3987
      %v3996 = vunpack.c.h.b16 %v3987
      %v3997 = vunpack.c.l.b16 %v3988
      %v3998 = vunpack.c.l.b16 %v3989
      %v3999 = vunpack.c.h.b16 %v3989
      %v4000 = vunpack.c.l.b16 %v3990
      %v4001 = vpack.c.b16 %v3998, %v3995
      %v4002 = vpack.c.b16 %v3999, %v3996
      %v4003 = vpack.c.b16 %v4000, %v3997
      %v4004 = vrot.slane %v4001, 1
      %v4005 = vrot.slane %v4002, 1
      %v4006 = vrot.slane %v4003, 1
      %v4010 = vsel %vm738, %v4006, 0
      %4012 = vmatprep.subr.bf16.mxu0 %v3007
      %4013 = vmatpush1.bf16.msra.mxu0 %v3006
      %4014 = vmatprep.subr.bf16.mxu0 %v3011
      %4015 = vmatpush1.bf16.msra.mxu0 %v3010
      %4016 = vmatprep.subr.bf16.mxu0 %v3015
      %4017 = vmatpush1.bf16.msra.mxu0 %v3014
      %4018 = vmatprep.subr.bf16.mxu0 %v3019
      %4019 = vmatpush1.bf16.msra.mxu0 %v3018
      %4020 = vmatprep.subr.bf16.mxu0 %v3023
      %4021 = vmatpush1.bf16.msra.mxu0 %v3022
      %4022 = vmatprep.subr.bf16.mxu0 %v3027
      %4023 = vmatpush1.bf16.msra.mxu0 %v3026
      %4024 = vmatprep.subr.bf16.mxu0 %v3031
      %4025 = vmatpush1.bf16.msra.mxu0 %v3030
      %4026 = vmatprep.subr.bf16.mxu0 %v3035
      %4027 = vmatpush1.bf16.msra.mxu0 %v3034
      %4028 = vmatprep.subr.bf16.mxu0 %v3039
      %4029 = vmatpush1.bf16.msra.mxu0 %v3038
      %4030 = vmatprep.subr.bf16.mxu0 %v3043
      %4031 = vmatpush1.bf16.msra.mxu0 %v3042
      %4032 = vmatprep.subr.bf16.mxu0 %v3047
      %4033 = vmatpush1.bf16.msra.mxu0 %v3046
      %4034 = vmatprep.subr.bf16.mxu0 %v3051
      %4035 = vmatpush1.bf16.msra.mxu0 %v3050
      %4036 = vmatprep.subr.bf16.mxu0 %v3055
      %4037 = vmatpush1.bf16.msra.mxu0 %v3054
      %4038 = vmatprep.subr.bf16.mxu0 %v3059
      %4039 = vmatpush1.bf16.msra.mxu0 %v3058
      %4040 = vmatprep.subr.bf16.mxu0 %v3063
      %4041 = vmatpush1.bf16.msra.mxu0 %v3062
      %4042 = vmatprep.subr.bf16.mxu0 %v3067
      %4043 = vmatpush1.bf16.msra.mxu0 %v3066
      %4044 = vmatprep.mubr.bf16.mxu0 %v4005
      %4045 = vmatmul.mubr.bf16.gmra.mrb[0].mxu0 %v4004
      %v4046 = vpop.f32.mrb[0].mxu0
      %v4047 = vadd.f32 0.0, %v4046
      %v4048 = vpop.f32.mrb[0].mxu0
      %v4049 = vadd.f32 0.0, %v4048
      %v4050 = vpop.f32.mrb[0].mxu0
      %v4051 = vpop.f32.mrb[0].mxu0
      %4052 = vdwg.mxu0
      %4053 = vmatprep.subr.bf16.mxu0 %v3071
      %4054 = vmatpush1.bf16.msra.mxu0 %v3070
      %4055 = vmatprep.subr.bf16.mxu0 %v3075
      %4056 = vmatpush1.bf16.msra.mxu0 %v3074
      %4057 = vmatprep.subr.bf16.mxu0 0
      %4058 = vmatpush1.bf16.msra.mxu0 0
      %4059 = vmatprep.subr.bf16.mxu0 0
      %4060 = vmatpush1.bf16.msra.mxu0 0
      %4061 = vmatprep.subr.bf16.mxu0 0
      %4062 = vmatpush1.bf16.msra.mxu0 0
      %4063 = vmatprep.subr.bf16.mxu0 0
      %4064 = vmatpush1.bf16.msra.mxu0 0
      %4065 = vmatprep.subr.bf16.mxu0 0
      %4066 = vmatpush1.bf16.msra.mxu0 0
      %4067 = vmatprep.subr.bf16.mxu0 0
      %4068 = vmatpush1.bf16.msra.mxu0 0
      %4069 = vmatprep.subr.bf16.mxu0 0
      %4070 = vmatpush1.bf16.msra.mxu0 0
      %4071 = vmatprep.subr.bf16.mxu0 0
      %4072 = vmatpush1.bf16.msra.mxu0 0
      %4073 = vmatprep.subr.bf16.mxu0 0
      %4074 = vmatpush1.bf16.msra.mxu0 0
      %4075 = vmatprep.subr.bf16.mxu0 0
      %4076 = vmatpush1.bf16.msra.mxu0 0
      %4077 = vmatprep.subr.bf16.mxu0 0
      %4078 = vmatpush1.bf16.msra.mxu0 0
      %4079 = vmatprep.subr.bf16.mxu0 0
      %4080 = vmatpush1.bf16.msra.mxu0 0
      %4081 = vmatprep.subr.bf16.mxu0 0
      %4082 = vmatpush1.bf16.msra.mxu0 0
      %4083 = vmatprep.subr.bf16.mxu0 0
      %4084 = vmatpush1.bf16.msra.mxu0 0
      %4085 = vmatprep.mubr.bf16.mxu0 0
      %4086 = vmatmul.mubr.bf16.gmra.mrb[0].mxu0 %v4010
      %v4087 = vpop.f32.mrb[0].mxu0
      %v4088 = vadd.f32 %v4047, %v4087
      %v4089 = vpop.f32.mrb[0].mxu0
      %v4090 = vadd.f32 %v4049, %v4089
      %v4091 = vpop.f32.mrb[0].mxu0
      %v4092 = vpop.f32.mrb[0].mxu0
      %4093 = vdwg.mxu0
      %4094 = vmatprep.subr.bf16.mxu0 %v3009
      %4095 = vmatpush1.bf16.msra.mxu0 %v3008
      %4096 = vmatprep.subr.bf16.mxu0 %v3013
      %4097 = vmatpush1.bf16.msra.mxu0 %v3012
      %4098 = vmatprep.subr.bf16.mxu0 %v3017
      %4099 = vmatpush1.bf16.msra.mxu0 %v3016
      %4100 = vmatprep.subr.bf16.mxu0 %v3021
      %4101 = vmatpush1.bf16.msra.mxu0 %v3020
      %4102 = vmatprep.subr.bf16.mxu0 %v3025
      %4103 = vmatpush1.bf16.msra.mxu0 %v3024
      %4104 = vmatprep.subr.bf16.mxu0 %v3029
      %4105 = vmatpush1.bf16.msra.mxu0 %v3028
      %4106 = vmatprep.subr.bf16.mxu0 %v3033
      %4107 = vmatpush1.bf16.msra.mxu0 %v3032
      %4108 = vmatprep.subr.bf16.mxu0 %v3037
      %4109 = vmatpush1.bf16.msra.mxu0 %v3036
      %4110 = vmatprep.subr.bf16.mxu0 %v3041
      %4111 = vmatpush1.bf16.msra.mxu0 %v3040
      %4112 = vmatprep.subr.bf16.mxu0 %v3045
      %4113 = vmatpush1.bf16.msra.mxu0 %v3044
      %4114 = vmatprep.subr.bf16.mxu0 %v3049
      %4115 = vmatpush1.bf16.msra.mxu0 %v3048
      %4116 = vmatprep.subr.bf16.mxu0 %v3053
      %4117 = vmatpush1.bf16.msra.mxu0 %v3052
      %4118 = vmatprep.subr.bf16.mxu0 %v3057
      %4119 = vmatpush1.bf16.msra.mxu0 %v3056
      %4120 = vmatprep.subr.bf16.mxu0 %v3061
      %4121 = vmatpush1.bf16.msra.mxu0 %v3060
      %4122 = vmatprep.subr.bf16.mxu0 %v3065
      %4123 = vmatpush1.bf16.msra.mxu0 %v3064
      %4124 = vmatprep.subr.bf16.mxu0 %v3069
      %4125 = vmatpush1.bf16.msra.mxu0 %v3068
      %4126 = vmatprep.mubr.bf16.mxu0 %v4005
      %4127 = vmatmul.mubr.bf16.gmra.mrb[0].mxu0 %v4004
      %v4128 = vpop.f32.mrb[0].mxu0
      %v4129 = vadd.f32 0.0, %v4128
      %v4130 = vpop.f32.mrb[0].mxu0
      %v4131 = vadd.f32 0.0, %v4130
      %v4132 = vpop.f32.mrb[0].mxu0
      %v4133 = vpop.f32.mrb[0].mxu0
      %4134 = vdwg.mxu0
      %4135 = vmatprep.subr.bf16.mxu0 %v3073
      %4136 = vmatpush1.bf16.msra.mxu0 %v3072
      %4137 = vmatprep.subr.bf16.mxu0 %v3077
      %4138 = vmatpush1.bf16.msra.mxu0 %v3076
      %4139 = vmatprep.subr.bf16.mxu0 0
      %4140 = vmatpush1.bf16.msra.mxu0 0
      %4141 = vmatprep.subr.bf16.mxu0 0
      %4142 = vmatpush1.bf16.msra.mxu0 0
      %4143 = vmatprep.subr.bf16.mxu0 0
      %4144 = vmatpush1.bf16.msra.mxu0 0
      %4145 = vmatprep.subr.bf16.mxu0 0
      %4146 = vmatpush1.bf16.msra.mxu0 0
      %4147 = vmatprep.subr.bf16.mxu0 0
      %4148 = vmatpush1.bf16.msra.mxu0 0
      %4149 = vmatprep.subr.bf16.mxu0 0
      %4150 = vmatpush1.bf16.msra.mxu0 0
      %4151 = vmatprep.subr.bf16.mxu0 0
      %4152 = vmatpush1.bf16.msra.mxu0 0
      %4153 = vmatprep.subr.bf16.mxu0 0
      %4154 = vmatpush1.bf16.msra.mxu0 0
      %4155 = vmatprep.subr.bf16.mxu0 0
      %4156 = vmatpush1.bf16.msra.mxu0 0
      %4157 = vmatprep.subr.bf16.mxu0 0
      %4158 = vmatpush1.bf16.msra.mxu0 0
      %4159 = vmatprep.subr.bf16.mxu0 0
      %4160 = vmatpush1.bf16.msra.mxu0 0
      %4161 = vmatprep.subr.bf16.mxu0 0
      %4162 = vmatpush1.bf16.msra.mxu0 0
      %4163 = vmatprep.subr.bf16.mxu0 0
      %4164 = vmatpush1.bf16.msra.mxu0 0
      %4165 = vmatprep.subr.bf16.mxu0 0
      %4166 = vmatpush1.bf16.msra.mxu0 0
      %4167 = vmatprep.mubr.bf16.mxu0 0
      %4168 = vmatmul.mubr.bf16.gmra.mrb[0].mxu0 %v4010
      %v4169 = vpop.f32.mrb[0].mxu0
      %v4170 = vadd.f32 %v4129, %v4169
      %v4171 = vpop.f32.mrb[0].mxu0
      %v4172 = vadd.f32 %v4131, %v4171
      %v4173 = vpop.f32.mrb[0].mxu0
      %v4174 = vpop.f32.mrb[0].mxu0
      %4175 = vdwg.mxu0
      %v4176 = vadd.f32 %v3983, %v4088
      %v4177 = vadd.f32 %v3984, %v4090
      %v4178 = vadd.f32 %v3985, %v4170
      %v4179 = vadd.f32 %v3986, %v4172
      %v4180 = vmax.f32 %v4176, %v4178
      %v4181 = vmax.f32 %v4177, %v4179
      %v4182 = vmax.f32 %v3321, %v4180
      %v4183 = vmax.f32 %v3322, %v4181
      %v4184 = vld [vmem:[%s3] sm:$0x3]
      %v4186 = vlaneseq
      %v4187 = vshrl.u32 %v4186, 7
      %v4188 = vsub.s32 0, %v4187
      %v4189 = vrot.slane %v4184, %v4188
      %v4190 = vlaneseq
      %v4191 = vshrl.u32 %v4190, 7
      %v4192 = vsub.s32 1, %v4191
      %v4193 = vrot.slane %v4184, %v4192
      %v4196 = vadd.f32 %v4182, %v4189
      %v4197 = vadd.f32 %v4183, %v4193
      %v4198 = vmax.f32 %v4196, 0.0
      %v4199 = vmax.f32 %v4197, 0.0
      %v4200 = vpack.c.bf16 %v4198, %v4198
      %v4201 = vpack.c.bf16 %v4199, %v4199
      %v4204 = vunpack.c.l.b16 %v4200
      %v4205 = vunpack.c.l.b16 %v4201
      %v4206 = vpack.c.b16 %v4205, %v4204
      %vm4208 = vcmask 1043456
      %vm4209 = vsmask.f32 3328
      %vm4210 = vmand %vm4208, %vm4209
      %vm4211 = vcmask 1047556
      %vm4212 = vsmask.f32 7424
      %vm4213 = vmand %vm4211, %vm4212
      %vm4214 = vmor %vm4213, %vm4210
      %v4215 = vld [vmem:[%s217] sm:$0xff]
      %v4216 = vsel %vm4214, %v4206, %v4215
      %4217 = vst [vmem:[%s217] sm:$0xff] %v4216
      %p4218 = scmp.lt.s32.totalorder %s15, 1
      %s4219 = scalar_select %p4218, %s15, 1
      %s4220 = smul.addr %s4219, 2
      %s4221 = smul.addr %s4220, 4
      %s4222 = scalar_lea.vmem %s4, %s4221
      // Predicated region
      $region37: #{cnn_forward.4} parent=35 // pred_check
        %p4223 = pneg %p127
      $region38: #{cnn_forward.4} parent=35 // pred_check_branch
        %4225 = sbr.rel (%p4223) target = $region40
      $region39: #{cnn_forward.4} parent=35 // pred_region
        _
      $region40: #{cnn_forward.4} parent=35 // pred_fallthru
        _
    $region36: #{cnn_forward.4} parent=5 // pred_fallthru
      _
    %p4226 = scmp.le.s32.totalorder 2, %s10
    // Predicated region
    $region41: #{cnn_forward.4} parent=5 // pred_check
      %p4227 = pneg %p4226
    $region42: #{cnn_forward.4} parent=5 // pred_check_branch
      %4229 = sbr.rel (%p4227) target = $region44
    $region43: #{cnn_forward.4} parent=5 // pred_region
      %s4230 = ssub.s32 %s10, 2
      // Predicated region
      $region45: #{cnn_forward.4} parent=43 // pred_check
        %p4231 = pneg %p133
      $region46: #{cnn_forward.4} parent=43 // pred_check_branch
        %4233 = sbr.rel (%p4231) target = $region48
      $region47: #{cnn_forward.4} parent=43 // pred_region
        %p4234 = scmp.lt.s32.totalorder %s16, 1
        %s4235 = scalar_select %p4234, %s16, 1
        %s4236 = smul.addr %s4235, 2
        %s4237 = smul.addr %s4236, 4
        %s4238 = scalar_lea.vmem %s4, %s4237
      $region48: #{cnn_forward.4} parent=43 // pred_fallthru
        _
    $region44: #{cnn_forward.4} parent=5 // pred_fallthru
      _
  $region6: #{cnn_forward.4} parent=0 // loop_footer
    %s14 = sadd.s32 1, %s10
  $region7: #{cnn_forward.4} parent=0 // loop_footer_branch
    %9 = sbr.rel target = $region3
  $region8: #{cnn_forward.4} parent=0 // loop_exit
    _

</llo_original>
